<compile_context>
chip_gen: v7x
topology: tpu7x:2x2x1
jax: 0.10.0
libtpu: 0.0.40
codegen_flags: <defaults>
</compile_context>

<pallas_src>
import functools
import math

import jax
import jax.numpy as jnp
from jax.experimental import pallas as pl
from jax.experimental.pallas import tpu as pltpu

POS_EMBED_DIM = 60
_VMEM_LIMIT = 32 * 1024 * 1024  # explicit scoped-VMEM budget, safe on v5e/v6e/v7x


# ----------------------------- small helpers ---------------------------------

def _round_up(a, b):
    return pl.cdiv(a, b) * b


def _mosaic(*sem):
    return pltpu.CompilerParams(dimension_semantics=sem,
                                vmem_limit_bytes=_VMEM_LIMIT)


def _row_tiling(m, tm_max):
    """Pick a sublane-aligned row tile and the padded row count."""
    mp8 = _round_up(m, 8)
    tm = min(tm_max, mp8)
    return tm, _round_up(m, tm)


def _pad_rows(x, m_padded):
    pad = m_padded - x.shape[0]
    return x if pad == 0 else jnp.pad(x, ((0, pad), (0, 0)))


# ----------------------------- Pallas kernels --------------------------------

def _linear_kernel(x_ref, w_ref, b_ref, o_ref, *, apply_relu):
    # x: (tm, K) f32, w: (K, Nout) bf16, b: (1, Nout) f32
    y = jnp.dot(x_ref[...].astype(jnp.bfloat16), w_ref[...],
                preferred_element_type=jnp.float32) + b_ref[...]
    if apply_relu:
        y = jnp.maximum(y, 0.0)
    o_ref[...] = y.astype(o_ref.dtype)


def linear(x, w, b, *, relu=False, tm_max=512):
    """y = act(x @ w + b); rows padded to the tile (no divisibility assert)."""
    M, K = x.shape
    Nout = w.shape[1]
    tm, Mp = _row_tiling(M, tm_max)
    out = pl.pallas_call(
        functools.partial(_linear_kernel, apply_relu=relu),
        out_shape=jax.ShapeDtypeStruct((Mp, Nout), jnp.float32),
        grid=(Mp // tm,),
        in_specs=[pl.BlockSpec((tm, K), lambda i: (i, 0)),
                  pl.BlockSpec((K, Nout), lambda i: (0, 0)),
                  pl.BlockSpec((1, Nout), lambda i: (0, 0))],
        out_specs=pl.BlockSpec((tm, Nout), lambda i: (i, 0)),
        compiler_params=_mosaic("parallel"),
    )(_pad_rows(x, Mp), w.astype(jnp.bfloat16), b.reshape(1, Nout))
    return out[:M]


def _mlp2_kernel(x_ref, w1_ref, b1_ref, w2_ref, b2_ref, o_ref):
    # Fused Linear -> ReLU -> Linear (fc_delta): hidden h never leaves VMEM.
    h = jnp.dot(x_ref[...].astype(jnp.bfloat16), w1_ref[...],
                preferred_element_type=jnp.float32) + b1_ref[...]
    h = jnp.maximum(h, 0.0)
    y = jnp.dot(h.astype(jnp.bfloat16), w2_ref[...],
                preferred_element_type=jnp.float32) + b2_ref[...]
    o_ref[...] = y.astype(o_ref.dtype)


def mlp2(x, w1, b1, w2, b2, *, tm_max=512):
    M, K1 = x.shape
    H = w1.shape[1]
    Nout = w2.shape[1]
    tm, Mp = _row_tiling(M, tm_max)
    out = pl.pallas_call(
        _mlp2_kernel,
        out_shape=jax.ShapeDtypeStruct((Mp, Nout), jnp.float32),
        grid=(Mp // tm,),
        in_specs=[pl.BlockSpec((tm, K1), lambda i: (i, 0)),
                  pl.BlockSpec((K1, H), lambda i: (0, 0)),
                  pl.BlockSpec((1, H), lambda i: (0, 0)),
                  pl.BlockSpec((H, Nout), lambda i: (0, 0)),
                  pl.BlockSpec((1, Nout), lambda i: (0, 0))],
        out_specs=pl.BlockSpec((tm, Nout), lambda i: (i, 0)),
        compiler_params=_mosaic("parallel"),
    )(_pad_rows(x, Mp), w1.astype(jnp.bfloat16), b1.reshape(1, H),
      w2.astype(jnp.bfloat16), b2.reshape(1, Nout))
    return out[:M]


def _prep_atten_kernel(x_ref, kvf_ref, posf_ref, w_ref, wx_ref, b_ref, o_ref):
    # logits = (q_rep - kv + pos) @ W + b on lane-dense (tm, k*d_model) tiles.
    # The broadcast q term is folded into Wx (= per-feature column sums of W),
    # so q never needs lane-tiling/reshaping in-kernel:
    #   (q_rep @ W)[i, c] == (x @ Wx)[i, c]  with  Wx[e, c] = sum_j W[j*d+e, c].
    pk = (posf_ref[...] - kvf_ref[...]).astype(jnp.bfloat16)   # (tm, k*d)
    xb = x_ref[...].astype(jnp.bfloat16)                       # (tm, d)
    acc = jnp.dot(pk, w_ref[...], preferred_element_type=jnp.float32)
    acc = acc + jnp.dot(xb, wx_ref[...], preferred_element_type=jnp.float32)
    o_ref[...] = (acc + b_ref[...]).astype(o_ref.dtype)


def prep_fc_atten(x2, kvf, posf, atten_w, atten_b, *, k, d_model, tm_max=256):
    """Fused (q - k + pos_enc) prep + fc_atten GEMM. Returns (M, k*d_model)."""
    M, D = x2.shape
    KD = k * d_model
    wx = atten_w.reshape(k, d_model, KD).sum(axis=0)           # (d_model, KD)
    tm, Mp = _row_tiling(M, tm_max)
    # Only tile output columns when k*d_model is large enough that the full
    # bf16 weight slab would be uncomfortable in VMEM.  At typical sizes the
    # column grid is 1, so the (pos - k) difference is computed once per row
    # tile and there are no redundant grid steps.
    if KD % 128 != 0 or KD <= 2048:
        tn = KD
    elif KD % 256 == 0:
        tn = 256
    else:
        tn = 128
    out = pl.pallas_call(
        _prep_atten_kernel,
        out_shape=jax.ShapeDtypeStruct((Mp, KD), jnp.float32),
        grid=(Mp // tm, KD // tn),
        in_specs=[
            pl.BlockSpec((tm, D), lambda i, j: (i, 0)),        # x
            pl.BlockSpec((tm, KD), lambda i, j: (i, 0)),       # kv flat
            pl.BlockSpec((tm, KD), lambda i, j: (i, 0)),       # pos flat
            pl.BlockSpec((KD, tn), lambda i, j: (0, j)),       # W (bf16)
            pl.BlockSpec((D, tn), lambda i, j: (0, j)),        # Wx (bf16)
            pl.BlockSpec((1, tn), lambda i, j: (0, j)),        # bias
        ],
        out_specs=pl.BlockSpec((tm, tn), lambda i, j: (i, j)),
        compiler_params=_mosaic("parallel", "parallel"),
    )(_pad_rows(x2, Mp), _pad_rows(kvf, Mp), _pad_rows(posf, Mp),
      atten_w.astype(jnp.bfloat16), wx.astype(jnp.bfloat16),
      atten_b.reshape(1, KD))
    return out[:M]


def _attn_epilogue_kernel(logits_ref, kv_ref, pos_ref, x_ref, w2_ref, b2_ref,
                          attn_ref, res_ref, *, scale):
    # Softmax over the neighbour axis + einsum('bmnf,bmnf->bmf') + fc2 +
    # residual, all in VMEM.  Elementwise math stays f32 (v5e has no bf16 VPU);
    # only the small fc2 matmul operands are bf16.
    l = logits_ref[0] * scale                      # (tn, k, d)
    vpe = kv_ref[0] + pos_ref[0]                   # v + pos_enc (recomputed)
    m = jnp.max(l, axis=1, keepdims=True)          # (tn, 1, d)
    e = jnp.exp(l - m)                             # (tn, k, d)
    s = jnp.sum(e, axis=1)                         # (tn, d)
    inv = pl.reciprocal(s, approx=True)            # EUP; reduced tensor only
    attn_ref[0] = (e * inv[:, None, :]).astype(attn_ref.dtype)
    red = jnp.sum(e * vpe, axis=1) * inv           # (tn, d)
    y = jnp.dot(red.astype(jnp.bfloat16), w2_ref[...],
                preferred_element_type=jnp.float32) + b2_ref[...]
    res_ref[0] = (y + x_ref[0]).astype(res_ref.dtype)


def _pick_n_tile(n, k, d):
    """Largest N-tile (divisor of N, <=128) within a conservative VMEM budget."""
    per_row = k * d * 4 * 10     # ~5 blocks, double-buffered, f32
    for cand in (128, 64, 32, 16, 8):
        if n % cand == 0 and cand * per_row <= 12 * 1024 * 1024:
            return cand
    return n


def attn_softmax_fc2(logits4, kv4, pos4, x3, fc2_w, fc2_b, *, scale):
    B, N, K, D = logits4.shape
    tn = _pick_n_tile(N, K, D)
    spec4 = pl.BlockSpec((1, tn, K, D), lambda b, n: (b, n, 0, 0))
    spec3 = pl.BlockSpec((1, tn, D), lambda b, n: (b, n, 0))
    return pl.pallas_call(
        functools.partial(_attn_epilogue_kernel, scale=scale),
        out_shape=(jax.ShapeDtypeStruct((B, N, K, D), jnp.float32),
                   jax.ShapeDtypeStruct((B, N, D), jnp.float32)),
        grid=(B, N // tn),
        in_specs=[spec4, spec4, spec4, spec3,
                  pl.BlockSpec((D, D), lambda b, n: (0, 0)),
                  pl.BlockSpec((1, D), lambda b, n: (0, 0))],
        out_specs=(spec4, spec3),
        compiler_params=_mosaic("parallel", "parallel"),
    )(logits4, kv4, pos4, x3, fc2_w.astype(jnp.bfloat16), fc2_b.reshape(1, D))


# ----------------------------- JAX glue ---------------------------------------

def index_points(points, idx):
    """points: (B, M, C), idx: (B, N, k) int -> (B, N, k, C)."""
    return jax.vmap(lambda p, i: p[i])(points, idx)


def _sincos_1d(embed_dim, pos):
    omega = jnp.arange(embed_dim // 2, dtype=jnp.float32) / (embed_dim / 2.0)
    omega = 1.0 / (10000.0 ** omega)
    out = pos[..., None] * omega
    return jnp.concatenate([jnp.sin(out), jnp.cos(out)], axis=-1)


def get_3d_sincos_pos_embed_from_point(embed_dim, pts):
    # TODO(synk): exact helper not shown in the reference snippet; this is the
    # standard MAE-style 3D sincos embedding (embed_dim//3 per coordinate).
    d = embed_dim // 3
    return jnp.concatenate([_sincos_1d(d, pts[..., i]) for i in range(3)], axis=-1)


def transformer_block_fc(params, features, xyz, *, k):
    B, N, d_points = features.shape
    d_model = params["fc1_w"].shape[1]

    # --- KNN (torch.no_grad block): top_k instead of a full argsort ---
    sq = jnp.sum(xyz * xyz, axis=-1)
    dists = sq[:, :, None] - 2.0 * jnp.einsum("bnd,bmd->bnm", xyz, xyz) + sq[:, None, :]
    _, knn_idx = jax.lax.top_k(-dists, k)                     # (B, N, k) nearest first
    knn_xyz = index_points(xyz, knn_idx)                      # (B, N, k, 3)

    # --- fc1 ---
    x2 = linear(features.reshape(B * N, d_points), params["fc1_w"], params["fc1_b"])
    x3 = x2.reshape(B, N, d_model)

    # q = x;  k = v = index_points(x, knn_idx)  (data-dependent gather in XLA)
    kv = index_points(x3, knn_idx)                            # (B, N, k, d_model)

    # --- positional encoding branch: fused Linear->ReLU->Linear ---
    g_xyz = xyz[:, :, None, :] - knn_xyz                      # (B, N, k, 3)
    emb = get_3d_sincos_pos_embed_from_point(POS_EMBED_DIM, g_xyz)   # (B, N, k, 60)
    pos = mlp2(emb.reshape(B * N * k, POS_EMBED_DIM),
               params["delta1_w"], params["delta1_b"],
               params["delta2_w"], params["delta2_b"])         # (B*N*k, d_model)

    # --- fused prep + fc_atten on lane-dense flat layout ---
    kvf = kv.reshape(B * N, k * d_model)
    posf = pos.reshape(B * N, k * d_model)
    logits = prep_fc_atten(x2, kvf, posf, params["atten_w"], params["atten_b"],
                           k=k, d_model=d_model)               # (B*N, k*d_model)

    # --- fused softmax(dim=-2) + weighted sum + fc2 + residual ---
    attn, res = attn_softmax_fc2(
        logits.reshape(B, N, k, d_model), kv, pos.reshape(B, N, k, d_model),
        x3, params["fc2_w"], params["fc2_b"], scale=1.0 / math.sqrt(d_model))
    return res, attn


# ----------------------------- parameters -------------------------------------

def _linear_init(key, fan_in, fan_out):
    kw, kb = jax.random.split(key)
    bound = 1.0 / math.sqrt(fan_in)
    w = jax.random.uniform(kw, (fan_in, fan_out), jnp.float32, -bound, bound)
    b = jax.random.uniform(kb, (fan_out,), jnp.float32, -bound, bound)
    return w, b


def init_params(key, d_points, d_model, k):
    ks = jax.random.split(key, 5)
    p = {}
    p["fc1_w"], p["fc1_b"] = _linear_init(ks[0], d_points, d_model)
    p["delta1_w"], p["delta1_b"] = _linear_init(ks[1], POS_EMBED_DIM, d_model)
    p["delta2_w"], p["delta2_b"] = _linear_init(ks[2], d_model, d_model)
    p["atten_w"], p["atten_b"] = _linear_init(ks[3], d_model * k, d_model * k)
    p["fc2_w"], p["fc2_b"] = _linear_init(ks[4], d_model, d_model)
    # NOTE: w_qs / w_ks / w_vs / fc_gamma are declared in the torch __init__ but
    # never used in this forward pass, so they are not materialized here.
    return p


# ----------------------------- main --------------------------------------------

if __name__ == "__main__":
    B, N, d_points, d_model, K = 2, 32, 16, 32, 24

    key = jax.random.PRNGKey(0)
    kf, kx, kp = jax.random.split(key, 3)
    features = jax.random.normal(kf, (B, N, d_points), dtype=jnp.float32)
    xyz = jax.random.normal(kx, (B, N, 3), dtype=jnp.float32)
    params = init_params(kp, d_points, d_model, K)

    fwd = jax.jit(functools.partial(transformer_block_fc, k=K))
    res, attn = fwd(params, features, xyz)
    jax.block_until_ready((res, attn))

    assert res.shape == (B, N, d_model), res.shape
    assert attn.shape == (B, N, K, d_model), attn.shape
    assert bool(jnp.all(jnp.isfinite(res))) and bool(jnp.all(jnp.isfinite(attn)))
    # softmax over the neighbour axis sums to ~1 (approx reciprocal -> loose tol)
    assert bool(jnp.allclose(jnp.sum(attn, axis=2), 1.0, atol=1e-2))
    print("KERNEL_OK")
</pallas_src>

<mosaic_0001>
module attributes {stable_mosaic.version = 11 : i64} {
  func.func @_mlp2_kernel(%arg0: i32, %arg1: memref<512x60xf32, #tpu.memory_space<vmem>>, %arg2: memref<60x32xbf16, #tpu.memory_space<vmem>>, %arg3: memref<1x32xf32, #tpu.memory_space<vmem>>, %arg4: memref<32x32xbf16, #tpu.memory_space<vmem>>, %arg5: memref<1x32xf32, #tpu.memory_space<vmem>>, %arg6: memref<512x32xf32, #tpu.memory_space<vmem>>) attributes {dimension_semantics = [#tpu.dimension_semantics<parallel>], iteration_bounds = array<i64: 3>, scalar_prefetch = 0 : i64, scratch_operands = 0 : i64, tpu.core_type = #tpu.core_type<tc>, window_params = [{transform_indices = @transform_0, window_bounds = array<i64: 512, 60>}, {pipeline_mode = #tpu.pipeline_mode<synchronous>, transform_indices = @transform_1, window_bounds = array<i64: 60, 32>}, {pipeline_mode = #tpu.pipeline_mode<synchronous>, transform_indices = @transform_2, window_bounds = array<i64: 1, 32>}, {pipeline_mode = #tpu.pipeline_mode<synchronous>, transform_indices = @transform_3, window_bounds = array<i64: 32, 32>}, {pipeline_mode = #tpu.pipeline_mode<synchronous>, transform_indices = @transform_4, window_bounds = array<i64: 1, 32>}, {transform_indices = @transform_5, window_bounds = array<i64: 512, 32>}]} {
    %c0 = arith.constant 0 : index
    %c0_0 = arith.constant 0 : index
    %0 = vector.load %arg1[%c0, %c0_0] : memref<512x60xf32, #tpu.memory_space<vmem>>, vector<512x60xf32>
    %1 = arith.truncf %0 : vector<512x60xf32> to vector<512x60xbf16>
    %c0_1 = arith.constant 0 : index
    %c0_2 = arith.constant 0 : index
    %2 = vector.load %arg2[%c0_1, %c0_2] : memref<60x32xbf16, #tpu.memory_space<vmem>>, vector<60x32xbf16>
    %cst = arith.constant dense<0.000000e+00> : vector<512x32xf32>
    %3 = tpu.matmul %1, %2, %cst {dimension_numbers = #tpu.dot_dimension_numbers<[1], [0], [0], [1], [0, 0, 1, 1], [], []>} : vector<512x60xbf16>, vector<60x32xbf16>, vector<512x32xf32> -> vector<512x32xf32>
    %c0_3 = arith.constant 0 : index
    %c0_4 = arith.constant 0 : index
    %4 = vector.load %arg3[%c0_3, %c0_4] : memref<1x32xf32, #tpu.memory_space<vmem>>, vector<1x32xf32>
    %5 = vector.broadcast %4 : vector<1x32xf32> to vector<512x32xf32>
    %6 = arith.addf %3, %5 : vector<512x32xf32>
    %cst_5 = arith.constant 0.000000e+00 : f32
    %7 = vector.broadcast %cst_5 : f32 to vector<512x32xf32>
    %8 = arith.maximumf %6, %7 : vector<512x32xf32>
    %9 = arith.truncf %8 : vector<512x32xf32> to vector<512x32xbf16>
    %c0_6 = arith.constant 0 : index
    %c0_7 = arith.constant 0 : index
    %10 = vector.load %arg4[%c0_6, %c0_7] : memref<32x32xbf16, #tpu.memory_space<vmem>>, vector<32x32xbf16>
    %cst_8 = arith.constant dense<0.000000e+00> : vector<512x32xf32>
    %11 = tpu.matmul %9, %10, %cst_8 {dimension_numbers = #tpu.dot_dimension_numbers<[1], [0], [0], [1], [0, 0, 1, 1], [], []>} : vector<512x32xbf16>, vector<32x32xbf16>, vector<512x32xf32> -> vector<512x32xf32>
    %c0_9 = arith.constant 0 : index
    %c0_10 = arith.constant 0 : index
    %12 = vector.load %arg5[%c0_9, %c0_10] : memref<1x32xf32, #tpu.memory_space<vmem>>, vector<1x32xf32>
    %13 = vector.broadcast %12 : vector<1x32xf32> to vector<512x32xf32>
    %14 = arith.addf %11, %13 : vector<512x32xf32>
    %c0_11 = arith.constant 0 : index
    %c0_12 = arith.constant 0 : index
    %15 = vector.load %arg6[%c0_11, %c0_12] : memref<512x32xf32, #tpu.memory_space<vmem>>, vector<512x32xf32>
    tpu.vector_store %arg6[%c0_11, %c0_12], %14 {strides = array<i32>} : memref<512x32xf32, #tpu.memory_space<vmem>>, vector<512x32xf32>,
    return
  }
  func.func @transform_0(%arg0: i32) -> (i32, i32) {
    %c0_i32 = arith.constant 0 : i32
    %c0_i32_0 = arith.constant 0 : i32
    return %arg0, %c0_i32 : i32, i32
  }
  func.func @transform_1(%arg0: i32) -> (i32, i32) {
    %c0_i32 = arith.constant 0 : i32
    %c0_i32_0 = arith.constant 0 : i32
    %c0_i32_1 = arith.constant 0 : i32
    return %c0_i32, %c0_i32_0 : i32, i32
  }
  func.func @transform_2(%arg0: i32) -> (i32, i32) {
    %c0_i32 = arith.constant 0 : i32
    %c0_i32_0 = arith.constant 0 : i32
    %c0_i32_1 = arith.constant 0 : i32
    return %c0_i32, %c0_i32_0 : i32, i32
  }
  func.func @transform_3(%arg0: i32) -> (i32, i32) {
    %c0_i32 = arith.constant 0 : i32
    %c0_i32_0 = arith.constant 0 : i32
    %c0_i32_1 = arith.constant 0 : i32
    return %c0_i32, %c0_i32_0 : i32, i32
  }
  func.func @transform_4(%arg0: i32) -> (i32, i32) {
    %c0_i32 = arith.constant 0 : i32
    %c0_i32_0 = arith.constant 0 : i32
    %c0_i32_1 = arith.constant 0 : i32
    return %c0_i32, %c0_i32_0 : i32, i32
  }
  func.func @transform_5(%arg0: i32) -> (i32, i32) {
    %c0_i32 = arith.constant 0 : i32
    %c0_i32_0 = arith.constant 0 : i32
    return %arg0, %c0_i32 : i32, i32
  }
}

module attributes {stable_mosaic.version = 11 : i64} {
  func.func @_linear_kernel(%arg0: i32, %arg1: memref<64x16xf32, #tpu.memory_space<vmem>>, %arg2: memref<16x32xbf16, #tpu.memory_space<vmem>>, %arg3: memref<1x32xf32, #tpu.memory_space<vmem>>, %arg4: memref<64x32xf32, #tpu.memory_space<vmem>>) attributes {dimension_semantics = [#tpu.dimension_semantics<parallel>], iteration_bounds = array<i64: 1>, scalar_prefetch = 0 : i64, scratch_operands = 0 : i64, tpu.core_type = #tpu.core_type<tc>, window_params = [{transform_indices = @transform_0, window_bounds = array<i64: 64, 16>}, {pipeline_mode = #tpu.pipeline_mode<synchronous>, transform_indices = @transform_1, window_bounds = array<i64: 16, 32>}, {pipeline_mode = #tpu.pipeline_mode<synchronous>, transform_indices = @transform_2, window_bounds = array<i64: 1, 32>}, {transform_indices = @transform_3, window_bounds = array<i64: 64, 32>}]} {
    %c0 = arith.constant 0 : index
    %c0_0 = arith.constant 0 : index
    %0 = vector.load %arg1[%c0, %c0_0] : memref<64x16xf32, #tpu.memory_space<vmem>>, vector<64x16xf32>
    %1 = arith.truncf %0 : vector<64x16xf32> to vector<64x16xbf16>
    %c0_1 = arith.constant 0 : index
    %c0_2 = arith.constant 0 : index
    %2 = vector.load %arg2[%c0_1, %c0_2] : memref<16x32xbf16, #tpu.memory_space<vmem>>, vector<16x32xbf16>
    %cst = arith.constant dense<0.000000e+00> : vector<64x32xf32>
    %3 = tpu.matmul %1, %2, %cst {dimension_numbers = #tpu.dot_dimension_numbers<[1], [0], [0], [1], [0, 0, 1, 1], [], []>} : vector<64x16xbf16>, vector<16x32xbf16>, vector<64x32xf32> -> vector<64x32xf32>
    %c0_3 = arith.constant 0 : index
    %c0_4 = arith.constant 0 : index
    %4 = vector.load %arg3[%c0_3, %c0_4] : memref<1x32xf32, #tpu.memory_space<vmem>>, vector<1x32xf32>
    %5 = vector.broadcast %4 : vector<1x32xf32> to vector<64x32xf32>
    %6 = arith.addf %3, %5 : vector<64x32xf32>
    %c0_5 = arith.constant 0 : index
    %c0_6 = arith.constant 0 : index
    %7 = vector.load %arg4[%c0_5, %c0_6] : memref<64x32xf32, #tpu.memory_space<vmem>>, vector<64x32xf32>
    tpu.vector_store %arg4[%c0_5, %c0_6], %6 {strides = array<i32>} : memref<64x32xf32, #tpu.memory_space<vmem>>, vector<64x32xf32>,
    return
  }
  func.func @transform_0(%arg0: i32) -> (i32, i32) {
    %c0_i32 = arith.constant 0 : i32
    %c0_i32_0 = arith.constant 0 : i32
    return %arg0, %c0_i32 : i32, i32
  }
  func.func @transform_1(%arg0: i32) -> (i32, i32) {
    %c0_i32 = arith.constant 0 : i32
    %c0_i32_0 = arith.constant 0 : i32
    %c0_i32_1 = arith.constant 0 : i32
    return %c0_i32, %c0_i32_0 : i32, i32
  }
  func.func @transform_2(%arg0: i32) -> (i32, i32) {
    %c0_i32 = arith.constant 0 : i32
    %c0_i32_0 = arith.constant 0 : i32
    %c0_i32_1 = arith.constant 0 : i32
    return %c0_i32, %c0_i32_0 : i32, i32
  }
  func.func @transform_3(%arg0: i32) -> (i32, i32) {
    %c0_i32 = arith.constant 0 : i32
    %c0_i32_0 = arith.constant 0 : i32
    return %arg0, %c0_i32 : i32, i32
  }
}

module attributes {stable_mosaic.version = 11 : i64} {
  func.func @_attn_epilogue_kernel(%arg0: i32, %arg1: i32, %arg2: memref<1x32x24x32xf32, #tpu.memory_space<vmem>>, %arg3: memref<1x32x24x32xf32, #tpu.memory_space<vmem>>, %arg4: memref<1x32x24x32xf32, #tpu.memory_space<vmem>>, %arg5: memref<1x32x32xf32, #tpu.memory_space<vmem>>, %arg6: memref<32x32xbf16, #tpu.memory_space<vmem>>, %arg7: memref<1x32xf32, #tpu.memory_space<vmem>>, %arg8: memref<1x32x24x32xf32, #tpu.memory_space<vmem>>, %arg9: memref<1x32x32xf32, #tpu.memory_space<vmem>>) attributes {dimension_semantics = [#tpu.dimension_semantics<parallel>, #tpu.dimension_semantics<parallel>], iteration_bounds = array<i64: 2, 1>, scalar_prefetch = 0 : i64, scratch_operands = 0 : i64, tpu.core_type = #tpu.core_type<tc>, window_params = [{transform_indices = @transform_0, window_bounds = array<i64: 1, 32, 24, 32>}, {transform_indices = @transform_1, window_bounds = array<i64: 1, 32, 24, 32>}, {transform_indices = @transform_2, window_bounds = array<i64: 1, 32, 24, 32>}, {transform_indices = @transform_3, window_bounds = array<i64: 1, 32, 32>}, {pipeline_mode = #tpu.pipeline_mode<synchronous>, transform_indices = @transform_4, window_bounds = array<i64: 32, 32>}, {pipeline_mode = #tpu.pipeline_mode<synchronous>, transform_indices = @transform_5, window_bounds = array<i64: 1, 32>}, {transform_indices = @transform_6, window_bounds = array<i64: 1, 32, 24, 32>}, {transform_indices = @transform_7, window_bounds = array<i64: 1, 32, 32>}]} {
    %c0 = arith.constant 0 : index
    %c0_0 = arith.constant 0 : index
    %c0_1 = arith.constant 0 : index
    %c0_2 = arith.constant 0 : index
    %0 = vector.load %arg2[%c0, %c0_0, %c0_1, %c0_2] : memref<1x32x24x32xf32, #tpu.memory_space<vmem>>, vector<1x32x24x32xf32>
    %1 = vector.shape_cast %0 : vector<1x32x24x32xf32> to vector<32x24x32xf32>
    %cst = arith.constant 0.176776692 : f32
    %2 = vector.broadcast %cst : f32 to vector<32x24x32xf32>
    %3 = arith.mulf %1, %2 : vector<32x24x32xf32>
    %c0_3 = arith.constant 0 : index
    %c0_4 = arith.constant 0 : index
    %c0_5 = arith.constant 0 : index
    %c0_6 = arith.constant 0 : index
    %4 = vector.load %arg3[%c0_3, %c0_4, %c0_5, %c0_6] : memref<1x32x24x32xf32, #tpu.memory_space<vmem>>, vector<1x32x24x32xf32>
    %5 = vector.shape_cast %4 : vector<1x32x24x32xf32> to vector<32x24x32xf32>
    %c0_7 = arith.constant 0 : index
    %c0_8 = arith.constant 0 : index
    %c0_9 = arith.constant 0 : index
    %c0_10 = arith.constant 0 : index
    %6 = vector.load %arg4[%c0_7, %c0_8, %c0_9, %c0_10] : memref<1x32x24x32xf32, #tpu.memory_space<vmem>>, vector<1x32x24x32xf32>
    %7 = vector.shape_cast %6 : vector<1x32x24x32xf32> to vector<32x24x32xf32>
    %8 = arith.addf %5, %7 : vector<32x24x32xf32>
    %cst_11 = arith.constant dense<0xFF800000> : vector<32x32xf32>
    %9 = vector.multi_reduction <maximumf>, %3, %cst_11 [1] : vector<32x24x32xf32> to vector<32x32xf32>
    %10 = vector.shape_cast %9 : vector<32x32xf32> to vector<32x1x32xf32>
    %11 = vector.broadcast %10 : vector<32x1x32xf32> to vector<32x24x32xf32>
    %12 = arith.subf %3, %11 : vector<32x24x32xf32>
    %13 = math.exp %12 : vector<32x24x32xf32>
    %cst_12 = arith.constant dense<0.000000e+00> : vector<32x32xf32>
    %14 = vector.multi_reduction <add>, %13, %cst_12 [1] : vector<32x24x32xf32> to vector<32x32xf32>
    %15 = tpu.reciprocal %14 {approx = true} : vector<32x32xf32> -> vector<32x32xf32>
    %16 = vector.shape_cast %15 : vector<32x32xf32> to vector<32x1x32xf32>
    %17 = vector.broadcast %16 : vector<32x1x32xf32> to vector<32x24x32xf32>
    %18 = arith.mulf %13, %17 : vector<32x24x32xf32>
    %c0_13 = arith.constant 0 : index
    %c0_14 = arith.constant 0 : index
    %c0_15 = arith.constant 0 : index
    %c0_16 = arith.constant 0 : index
    %19 = vector.load %arg8[%c0_13, %c0_14, %c0_15, %c0_16] : memref<1x32x24x32xf32, #tpu.memory_space<vmem>>, vector<1x32x24x32xf32>
    %20 = vector.shape_cast %19 : vector<1x32x24x32xf32> to vector<32x24x32xf32>
    %21 = vector.shape_cast %18 : vector<32x24x32xf32> to vector<1x32x24x32xf32>
    tpu.vector_store %arg8[%c0_13, %c0_14, %c0_15, %c0_16], %21 {strides = array<i32>} : memref<1x32x24x32xf32, #tpu.memory_space<vmem>>, vector<1x32x24x32xf32>,
    %22 = arith.mulf %13, %8 : vector<32x24x32xf32>
    %cst_17 = arith.constant dense<0.000000e+00> : vector<32x32xf32>
    %23 = vector.multi_reduction <add>, %22, %cst_17 [1] : vector<32x24x32xf32> to vector<32x32xf32>
    %24 = arith.mulf %23, %15 : vector<32x32xf32>
    %25 = arith.truncf %24 : vector<32x32xf32> to vector<32x32xbf16>
    %c0_18 = arith.constant 0 : index
    %c0_19 = arith.constant 0 : index
    %26 = vector.load %arg6[%c0_18, %c0_19] : memref<32x32xbf16, #tpu.memory_space<vmem>>, vector<32x32xbf16>
    %cst_20 = arith.constant dense<0.000000e+00> : vector<32x32xf32>
    %27 = tpu.matmul %25, %26, %cst_20 {dimension_numbers = #tpu.dot_dimension_numbers<[1], [0], [0], [1], [0, 0, 1, 1], [], []>} : vector<32x32xbf16>, vector<32x32xbf16>, vector<32x32xf32> -> vector<32x32xf32>
    %c0_21 = arith.constant 0 : index
    %c0_22 = arith.constant 0 : index
    %28 = vector.load %arg7[%c0_21, %c0_22] : memref<1x32xf32, #tpu.memory_space<vmem>>, vector<1x32xf32>
    %29 = vector.broadcast %28 : vector<1x32xf32> to vector<32x32xf32>
    %30 = arith.addf %27, %29 : vector<32x32xf32>
    %c0_23 = arith.constant 0 : index
    %c0_24 = arith.constant 0 : index
    %c0_25 = arith.constant 0 : index
    %31 = vector.load %arg5[%c0_23, %c0_24, %c0_25] : memref<1x32x32xf32, #tpu.memory_space<vmem>>, vector<1x32x32xf32>
    %32 = vector.shape_cast %31 : vector<1x32x32xf32> to vector<32x32xf32>
    %33 = arith.addf %30, %32 : vector<32x32xf32>
    %c0_26 = arith.constant 0 : index
    %c0_27 = arith.constant 0 : index
    %c0_28 = arith.constant 0 : index
    %34 = vector.load %arg9[%c0_26, %c0_27, %c0_28] : memref<1x32x32xf32, #tpu.memory_space<vmem>>, vector<1x32x32xf32>
    %35 = vector.shape_cast %34 : vector<1x32x32xf32> to vector<32x32xf32>
    %36 = vector.shape_cast %33 : vector<32x32xf32> to vector<1x32x32xf32>
    tpu.vector_store %arg9[%c0_26, %c0_27, %c0_28], %36 {strides = array<i32>} : memref<1x32x32xf32, #tpu.memory_space<vmem>>, vector<1x32x32xf32>,
    return
  }
  func.func @transform_0(%arg0: i32, %arg1: i32) -> (i32, i32, i32, i32) {
    %c0_i32 = arith.constant 0 : i32
    %c0_i32_0 = arith.constant 0 : i32
    %c0_i32_1 = arith.constant 0 : i32
    return %arg0, %arg1, %c0_i32, %c0_i32_0 : i32, i32, i32, i32
  }
  func.func @transform_1(%arg0: i32, %arg1: i32) -> (i32, i32, i32, i32) {
    %c0_i32 = arith.constant 0 : i32
    %c0_i32_0 = arith.constant 0 : i32
    %c0_i32_1 = arith.constant 0 : i32
    return %arg0, %arg1, %c0_i32, %c0_i32_0 : i32, i32, i32, i32
  }
  func.func @transform_2(%arg0: i32, %arg1: i32) -> (i32, i32, i32, i32) {
    %c0_i32 = arith.constant 0 : i32
    %c0_i32_0 = arith.constant 0 : i32
    %c0_i32_1 = arith.constant 0 : i32
    return %arg0, %arg1, %c0_i32, %c0_i32_0 : i32, i32, i32, i32
  }
  func.func @transform_3(%arg0: i32, %arg1: i32) -> (i32, i32, i32) {
    %c0_i32 = arith.constant 0 : i32
    %c0_i32_0 = arith.constant 0 : i32
    return %arg0, %arg1, %c0_i32 : i32, i32, i32
  }
  func.func @transform_4(%arg0: i32, %arg1: i32) -> (i32, i32) {
    %c0_i32 = arith.constant 0 : i32
    %c0_i32_0 = arith.constant 0 : i32
    %c0_i32_1 = arith.constant 0 : i32
    return %c0_i32, %c0_i32_0 : i32, i32
  }
  func.func @transform_5(%arg0: i32, %arg1: i32) -> (i32, i32) {
    %c0_i32 = arith.constant 0 : i32
    %c0_i32_0 = arith.constant 0 : i32
    %c0_i32_1 = arith.constant 0 : i32
    return %c0_i32, %c0_i32_0 : i32, i32
  }
  func.func @transform_6(%arg0: i32, %arg1: i32) -> (i32, i32, i32, i32) {
    %c0_i32 = arith.constant 0 : i32
    %c0_i32_0 = arith.constant 0 : i32
    %c0_i32_1 = arith.constant 0 : i32
    return %arg0, %arg1, %c0_i32, %c0_i32_0 : i32, i32, i32, i32
  }
  func.func @transform_7(%arg0: i32, %arg1: i32) -> (i32, i32, i32) {
    %c0_i32 = arith.constant 0 : i32
    %c0_i32_0 = arith.constant 0 : i32
    return %arg0, %arg1, %c0_i32 : i32, i32, i32
  }
}

module attributes {stable_mosaic.version = 11 : i64} {
  func.func @_prep_atten_kernel(%arg0: i32, %arg1: i32, %arg2: memref<64x32xf32, #tpu.memory_space<vmem>>, %arg3: memref<64x768xf32, #tpu.memory_space<vmem>>, %arg4: memref<64x768xf32, #tpu.memory_space<vmem>>, %arg5: memref<768x768xbf16, #tpu.memory_space<vmem>>, %arg6: memref<32x768xbf16, #tpu.memory_space<vmem>>, %arg7: memref<1x768xf32, #tpu.memory_space<vmem>>, %arg8: memref<64x768xf32, #tpu.memory_space<vmem>>) attributes {dimension_semantics = [#tpu.dimension_semantics<parallel>, #tpu.dimension_semantics<parallel>], iteration_bounds = array<i64: 1, 1>, scalar_prefetch = 0 : i64, scratch_operands = 0 : i64, tpu.core_type = #tpu.core_type<tc>, window_params = [{transform_indices = @transform_0, window_bounds = array<i64: 64, 32>}, {transform_indices = @transform_1, window_bounds = array<i64: 64, 768>}, {transform_indices = @transform_2, window_bounds = array<i64: 64, 768>}, {transform_indices = @transform_3, window_bounds = array<i64: 768, 768>}, {transform_indices = @transform_4, window_bounds = array<i64: 32, 768>}, {transform_indices = @transform_5, window_bounds = array<i64: 1, 768>}, {transform_indices = @transform_6, window_bounds = array<i64: 64, 768>}]} {
    %c0 = arith.constant 0 : index
    %c0_0 = arith.constant 0 : index
    %0 = vector.load %arg4[%c0, %c0_0] : memref<64x768xf32, #tpu.memory_space<vmem>>, vector<64x768xf32>
    %c0_1 = arith.constant 0 : index
    %c0_2 = arith.constant 0 : index
    %1 = vector.load %arg3[%c0_1, %c0_2] : memref<64x768xf32, #tpu.memory_space<vmem>>, vector<64x768xf32>
    %2 = arith.subf %0, %1 : vector<64x768xf32>
    %3 = arith.truncf %2 : vector<64x768xf32> to vector<64x768xbf16>
    %c0_3 = arith.constant 0 : index
    %c0_4 = arith.constant 0 : index
    %4 = vector.load %arg2[%c0_3, %c0_4] : memref<64x32xf32, #tpu.memory_space<vmem>>, vector<64x32xf32>
    %5 = arith.truncf %4 : vector<64x32xf32> to vector<64x32xbf16>
    %c0_5 = arith.constant 0 : index
    %c0_6 = arith.constant 0 : index
    %6 = vector.load %arg5[%c0_5, %c0_6] : memref<768x768xbf16, #tpu.memory_space<vmem>>, vector<768x768xbf16>
    %cst = arith.constant dense<0.000000e+00> : vector<64x768xf32>
    %7 = tpu.matmul %3, %6, %cst {dimension_numbers = #tpu.dot_dimension_numbers<[1], [0], [0], [1], [0, 0, 1, 1], [], []>} : vector<64x768xbf16>, vector<768x768xbf16>, vector<64x768xf32> -> vector<64x768xf32>
    %c0_7 = arith.constant 0 : index
    %c0_8 = arith.constant 0 : index
    %8 = vector.load %arg6[%c0_7, %c0_8] : memref<32x768xbf16, #tpu.memory_space<vmem>>, vector<32x768xbf16>
    %cst_9 = arith.constant dense<0.000000e+00> : vector<64x768xf32>
    %9 = tpu.matmul %5, %8, %cst_9 {dimension_numbers = #tpu.dot_dimension_numbers<[1], [0], [0], [1], [0, 0, 1, 1], [], []>} : vector<64x32xbf16>, vector<32x768xbf16>, vector<64x768xf32> -> vector<64x768xf32>
    %10 = arith.addf %7, %9 : vector<64x768xf32>
    %c0_10 = arith.constant 0 : index
    %c0_11 = arith.constant 0 : index
    %11 = vector.load %arg7[%c0_10, %c0_11] : memref<1x768xf32, #tpu.memory_space<vmem>>, vector<1x768xf32>
    %12 = vector.broadcast %11 : vector<1x768xf32> to vector<64x768xf32>
    %13 = arith.addf %10, %12 : vector<64x768xf32>
    %c0_12 = arith.constant 0 : index
    %c0_13 = arith.constant 0 : index
    %14 = vector.load %arg8[%c0_12, %c0_13] : memref<64x768xf32, #tpu.memory_space<vmem>>, vector<64x768xf32>
    tpu.vector_store %arg8[%c0_12, %c0_13], %13 {strides = array<i32>} : memref<64x768xf32, #tpu.memory_space<vmem>>, vector<64x768xf32>,
    return
  }
  func.func @transform_0(%arg0: i32, %arg1: i32) -> (i32, i32) {
    %c0_i32 = arith.constant 0 : i32
    %c0_i32_0 = arith.constant 0 : i32
    return %arg0, %c0_i32 : i32, i32
  }
  func.func @transform_1(%arg0: i32, %arg1: i32) -> (i32, i32) {
    %c0_i32 = arith.constant 0 : i32
    %c0_i32_0 = arith.constant 0 : i32
    return %arg0, %c0_i32 : i32, i32
  }
  func.func @transform_2(%arg0: i32, %arg1: i32) -> (i32, i32) {
    %c0_i32 = arith.constant 0 : i32
    %c0_i32_0 = arith.constant 0 : i32
    return %arg0, %c0_i32 : i32, i32
  }
  func.func @transform_3(%arg0: i32, %arg1: i32) -> (i32, i32) {
    %c0_i32 = arith.constant 0 : i32
    %c0_i32_0 = arith.constant 0 : i32
    return %c0_i32, %arg1 : i32, i32
  }
  func.func @transform_4(%arg0: i32, %arg1: i32) -> (i32, i32) {
    %c0_i32 = arith.constant 0 : i32
    %c0_i32_0 = arith.constant 0 : i32
    return %c0_i32, %arg1 : i32, i32
  }
  func.func @transform_5(%arg0: i32, %arg1: i32) -> (i32, i32) {
    %c0_i32 = arith.constant 0 : i32
    %c0_i32_0 = arith.constant 0 : i32
    return %c0_i32, %arg1 : i32, i32
  }
  func.func @transform_6(%arg0: i32, %arg1: i32) -> (i32, i32) {
    %c0_i32 = arith.constant 0 : i32
    return %arg0, %arg1 : i32, i32
  }
}

</mosaic_0001>

<llo_original>
// kernel: transformer_block_fc.5
$region0: #{transformer_block_fc.5}
  #allocation0 [shape = 'u32[]', space=smem, size = 0x4, offset = 0x4, fixed_abs, tag = 'smem constant byte address 0x4 - core index']
  #allocation1 [shape = 'u32[144,128]{1,0:T(1,128)}', space=vmem, size = 0x12000, scoped, tag = 'internal scratch']
  %s0 = inlined_call_operand.vmem [shape: f32[1536,60], index: 0, kind: input, shape index: {}]
  %s1 = inlined_call_operand.vmem [shape: bf16[60,32], index: 1, kind: input, shape index: {}]
  %s2 = inlined_call_operand.vmem [shape: f32[1,32], index: 2, kind: input, shape index: {}]
  %s3 = inlined_call_operand.vmem [shape: bf16[32,32], index: 3, kind: input, shape index: {}]
  %s4 = inlined_call_operand.vmem [shape: f32[1,32], index: 4, kind: input, shape index: {}]
  %s5 = inlined_call_operand.vmem [shape: f32[1536,32], index: 5, kind: output, shape index: {}]
  %s6 = sld [smem:[#allocation0]]
  $region53: #{transformer_block_fc.5} parent=0
    _
  %s8 = ssub.s32 1, %s6
  %s9 = scalar_select 0, %s8, %s6
  loop: start=0, step=1, limit=5
  $region2: #{transformer_block_fc.5} parent=0 // loop_pre_header
    _
  $region3: #{transformer_block_fc.5} parent=0 // loop_header
    %s11 = sphi 0, %s15
    %p12 = scmp.ge.s32.totalorder %s11, 5
    %s21 = sphi 0, %s23
    %s24 = sphi 0, %s21
    %s25 = sphi 0, %s24
    %s41 = sphi 0, %s25
    %s45 = sphi 0, %s45
    %s47 = sphi 0, %s45
    %s48 = sphi 0, %s47
    %s62 = sphi 0, %s48
    %s66 = sphi 0, %s66
    %s68 = sphi 0, %s66
    %s69 = sphi 0, %s68
    %s83 = sphi 0, %s69
    %s87 = sphi 0, %s87
    %s89 = sphi 0, %s87
    %s90 = sphi 0, %s89
    %s104 = sphi 0, %s90
    %s108 = sphi 0, %s108
    %s110 = sphi 0, %s108
    %s111 = sphi 0, %s110
    %s125 = sphi 0, %s111
    %s131 = sphi 0, %s133
    %s134 = sphi 0, %s131
    %s135 = sphi 0, %s134
    %s151 = sphi 0, %s135
  $region4: #{transformer_block_fc.5} parent=0 // loop_header_branch
    %14 = sbr.rel (%p12) target = $region8
  $region5: #{transformer_block_fc.5} parent=0 // loop_body
    %s16 = ssub.s32 %s11, 1
    %s17 = ssub.s32 %s11, 2
    %s18 = sadd.s32 %s11, 1
    %s19 = ssub.s32 %s11, %s18
    %p20 = scmp.eq.s32.totalorder %s19, 0
    %s22 = sadd.s32 %s21, 1
    %s23 = scalar_select %p20, %s21, %s22
    %p26 = pneg %p20
    %p27 = scmp.eq.s32.totalorder %s11, 2
    %p28 = por %p26, %p27
    %p29 = scmp.ne.s32.totalorder %s21, %s24
    %p30 = scmp.eq.s32.totalorder %s11, 0
    %p31 = por %p29, %p30
    %p32 = scmp.ne.s32.totalorder %s21, %s24
    %p33 = scmp.eq.s32.totalorder %s16, 2
    %p34 = por %p32, %p33
    %p35 = scmp.ne.s32.totalorder %s24, %s25
    %p36 = scmp.eq.s32.totalorder %s16, 0
    %p37 = por %p35, %p36
    %p38 = scmp.ne.s32.totalorder %s24, %s25
    %p39 = scmp.eq.s32.totalorder %s17, 2
    %p40 = por %p38, %p39
    %p42 = scmp.ne.s32.totalorder %s25, %s41
    %p43 = scmp.eq.s32.totalorder %s17, 0
    %p44 = por %p42, %p43
    %s46 = sadd.s32 %s45, 1
    %p49 = scmp.eq.s32.totalorder %s11, 2
    %p50 = scmp.ne.s32.totalorder %s45, %s47
    %p51 = scmp.eq.s32.totalorder %s11, 0
    %p52 = por %p50, %p51
    %p53 = scmp.ne.s32.totalorder %s45, %s47
    %p54 = scmp.eq.s32.totalorder %s16, 2
    %p55 = por %p53, %p54
    %p56 = scmp.ne.s32.totalorder %s47, %s48
    %p57 = scmp.eq.s32.totalorder %s16, 0
    %p58 = por %p56, %p57
    %p59 = scmp.ne.s32.totalorder %s47, %s48
    %p60 = scmp.eq.s32.totalorder %s17, 2
    %p61 = por %p59, %p60
    %p63 = scmp.ne.s32.totalorder %s48, %s62
    %p64 = scmp.eq.s32.totalorder %s17, 0
    %p65 = por %p63, %p64
    %s67 = sadd.s32 %s66, 1
    %p70 = scmp.eq.s32.totalorder %s11, 2
    %p71 = scmp.ne.s32.totalorder %s66, %s68
    %p72 = scmp.eq.s32.totalorder %s11, 0
    %p73 = por %p71, %p72
    %p74 = scmp.ne.s32.totalorder %s66, %s68
    %p75 = scmp.eq.s32.totalorder %s16, 2
    %p76 = por %p74, %p75
    %p77 = scmp.ne.s32.totalorder %s68, %s69
    %p78 = scmp.eq.s32.totalorder %s16, 0
    %p79 = por %p77, %p78
    %p80 = scmp.ne.s32.totalorder %s68, %s69
    %p81 = scmp.eq.s32.totalorder %s17, 2
    %p82 = por %p80, %p81
    %p84 = scmp.ne.s32.totalorder %s69, %s83
    %p85 = scmp.eq.s32.totalorder %s17, 0
    %p86 = por %p84, %p85
    %s88 = sadd.s32 %s87, 1
    %p91 = scmp.eq.s32.totalorder %s11, 2
    %p92 = scmp.ne.s32.totalorder %s87, %s89
    %p93 = scmp.eq.s32.totalorder %s11, 0
    %p94 = por %p92, %p93
    %p95 = scmp.ne.s32.totalorder %s87, %s89
    %p96 = scmp.eq.s32.totalorder %s16, 2
    %p97 = por %p95, %p96
    %p98 = scmp.ne.s32.totalorder %s89, %s90
    %p99 = scmp.eq.s32.totalorder %s16, 0
    %p100 = por %p98, %p99
    %p101 = scmp.ne.s32.totalorder %s89, %s90
    %p102 = scmp.eq.s32.totalorder %s17, 2
    %p103 = por %p101, %p102
    %p105 = scmp.ne.s32.totalorder %s90, %s104
    %p106 = scmp.eq.s32.totalorder %s17, 0
    %p107 = por %p105, %p106
    %s109 = sadd.s32 %s108, 1
    %p112 = scmp.eq.s32.totalorder %s11, 2
    %p113 = scmp.ne.s32.totalorder %s108, %s110
    %p114 = scmp.eq.s32.totalorder %s11, 0
    %p115 = por %p113, %p114
    %p116 = scmp.ne.s32.totalorder %s108, %s110
    %p117 = scmp.eq.s32.totalorder %s16, 2
    %p118 = por %p116, %p117
    %p119 = scmp.ne.s32.totalorder %s110, %s111
    %p120 = scmp.eq.s32.totalorder %s16, 0
    %p121 = por %p119, %p120
    %p122 = scmp.ne.s32.totalorder %s110, %s111
    %p123 = scmp.eq.s32.totalorder %s17, 2
    %p124 = por %p122, %p123
    %p126 = scmp.ne.s32.totalorder %s111, %s125
    %p127 = scmp.eq.s32.totalorder %s17, 0
    %p128 = por %p126, %p127
    %s129 = ssub.s32 %s11, %s18
    %p130 = scmp.eq.s32.totalorder %s129, 0
    %s132 = sadd.s32 %s131, 1
    %s133 = scalar_select %p130, %s131, %s132
    %p136 = pneg %p130
    %p137 = scmp.eq.s32.totalorder %s11, 2
    %p138 = por %p136, %p137
    %p139 = scmp.ne.s32.totalorder %s131, %s134
    %p140 = scmp.eq.s32.totalorder %s11, 0
    %p141 = por %p139, %p140
    %p142 = scmp.ne.s32.totalorder %s131, %s134
    %p143 = scmp.eq.s32.totalorder %s16, 2
    %p144 = por %p142, %p143
    %p145 = scmp.ne.s32.totalorder %s134, %s135
    %p146 = scmp.eq.s32.totalorder %s16, 0
    %p147 = por %p145, %p146
    %p148 = scmp.ne.s32.totalorder %s134, %s135
    %p149 = scmp.eq.s32.totalorder %s17, 2
    %p150 = por %p148, %p149
    %p152 = scmp.ne.s32.totalorder %s135, %s151
    %p153 = scmp.eq.s32.totalorder %s17, 0
    %p154 = por %p152, %p153
    %p155 = scmp.le.s32.totalorder 1, %s11
    %p156 = scmp.lt.s32.totalorder %s11, 4
    %p157 = pnand %p155, %p156
    %p158 = pneg %p157
    // Predicated region
    $region9: #{transformer_block_fc.5} parent=5 // pred_check
      _
    $region10: #{transformer_block_fc.5} parent=5 // pred_check_branch
      %160 = sbr.rel (%p157) target = $region12
    $region11: #{transformer_block_fc.5} parent=5 // pred_region
      %s161 = ssub.s32 %s11, 1
      // Predicated region
      $region13: #{transformer_block_fc.5} parent=11 // pred_check
        %p162 = pneg %p58
      $region14: #{transformer_block_fc.5} parent=11 // pred_check_branch
        %164 = sbr.rel (%p162) target = $region16
      $region15: #{transformer_block_fc.5} parent=11 // pred_region
        _
      $region16: #{transformer_block_fc.5} parent=11 // pred_fallthru
        _
      // Predicated region
      $region17: #{transformer_block_fc.5} parent=11 // pred_check
        %p165 = pneg %p79
      $region18: #{transformer_block_fc.5} parent=11 // pred_check_branch
        %167 = sbr.rel (%p165) target = $region20
      $region19: #{transformer_block_fc.5} parent=11 // pred_region
        _
      $region20: #{transformer_block_fc.5} parent=11 // pred_fallthru
        _
      // Predicated region
      $region21: #{transformer_block_fc.5} parent=11 // pred_check
        %p168 = pneg %p100
      $region22: #{transformer_block_fc.5} parent=11 // pred_check_branch
        %170 = sbr.rel (%p168) target = $region24
      $region23: #{transformer_block_fc.5} parent=11 // pred_region
        _
      $region24: #{transformer_block_fc.5} parent=11 // pred_fallthru
        _
      // Predicated region
      $region25: #{transformer_block_fc.5} parent=11 // pred_check
        %p171 = pneg %p121
      $region26: #{transformer_block_fc.5} parent=11 // pred_check_branch
        %173 = sbr.rel (%p171) target = $region28
      $region27: #{transformer_block_fc.5} parent=11 // pred_region
        _
      $region28: #{transformer_block_fc.5} parent=11 // pred_fallthru
        _
    $region12: #{transformer_block_fc.5} parent=5 // pred_fallthru
      _
    %p174 = scmp.lt.s32.totalorder %s11, 3
    // Predicated region
    $region29: #{transformer_block_fc.5} parent=5 // pred_check
      %p175 = pneg %p174
    $region30: #{transformer_block_fc.5} parent=5 // pred_check_branch
      %177 = sbr.rel (%p175) target = $region32
    $region31: #{transformer_block_fc.5} parent=5 // pred_region
      // Predicated region
      $region33: #{transformer_block_fc.5} parent=31 // pred_check
        %p178 = pneg %p31
      $region34: #{transformer_block_fc.5} parent=31 // pred_check_branch
        %180 = sbr.rel (%p178) target = $region36
      $region35: #{transformer_block_fc.5} parent=31 // pred_region
        %s181 = smul.u32 64, %s11
        %p182 = scmp.lt.s32.totalorder %s181, 191
        %s183 = scalar_select %p182, %s181, 191
        %s184 = smul.addr %s183, 8
        %s185 = scalar_lea.vmem %s0, %s184
        %s186 = smul.u32 64, %s11
      $region36: #{transformer_block_fc.5} parent=31 // pred_fallthru
        _
    $region32: #{transformer_block_fc.5} parent=5 // pred_fallthru
      _
    %p187 = scmp.le.s32.totalorder 1, %s11
    %p188 = scmp.lt.s32.totalorder %s11, 4
    %p189 = pnand %p187, %p188
    %p190 = pneg %p189
    // Predicated region
    $region37: #{transformer_block_fc.5} parent=5 // pred_check
      _
    $region38: #{transformer_block_fc.5} parent=5 // pred_check_branch
      %192 = sbr.rel (%p189) target = $region40
    $region39: #{transformer_block_fc.5} parent=5 // pred_region
      %s193 = ssub.s32 %s11, 1
      %s194 = smul.u32 64, %s16
      %p195 = scmp.lt.s32.totalorder %s194, 191
      %s196 = scalar_select %p195, %s194, 191
      %s197 = smul.addr %s196, 8
      %s198 = scalar_lea.vmem %s0, %s197
      %p199 = pneg %p37
      %p200 = pneg %p34
      %p201 = pneg %p58
      %p202 = pneg %p55
      %p203 = pneg %p79
      %p204 = pneg %p76
      %p205 = pneg %p100
      %p206 = pneg %p97
      %p207 = pneg %p121
      %p208 = pneg %p118
      %p209 = pneg %p147
      %p210 = pneg %p144
      %s211 = smul.u32 64, %s16
      %p212 = scmp.lt.s32.totalorder %s211, 191
      %s213 = scalar_select %p212, %s211, 191
      %s214 = smul.addr %s213, 8
      %s215 = scalar_lea.vmem %s5, %s214
      %s216 = smul.u32 64, %s16
      %p217 = scmp.lt.s32.totalorder %s216, 191
      %s218 = scalar_select %p217, %s216, 191
      %s219 = smul.addr %s218, 8
      %s220 = scalar_lea.vmem %s0, %s219
      %s221 = smul.u32 64, %s16
      %s222 = smul.u32 64, %s16
      %p223 = scmp.lt.s32.totalorder %s222, 191
      %s224 = scalar_select %p223, %s222, 191
      %s225 = smul.addr %s224, 8
      %s226 = scalar_lea.vmem %s5, %s225
      %s227 = smul.u32 64, %s16
      %v229 = vld [vmem:[%s220] sm:$0xff]
      %v230 = vld [vmem:[%s220 + $0x8] sm:$0xff]
      %v231 = vld [vmem:[%s220 + $0x10] sm:$0xff]
      %v232 = vld [vmem:[%s220 + $0x18] sm:$0xff]
      %v233 = vld [vmem:[%s220 + $0x20] sm:$0xff]
      %v234 = vld [vmem:[%s220 + $0x28] sm:$0xff]
      %v235 = vld [vmem:[%s220 + $0x30] sm:$0xff]
      %v236 = vld [vmem:[%s220 + $0x38] sm:$0xff]
      %v237 = vld [vmem:[%s220 + $0x40] sm:$0xff]
      %v238 = vld [vmem:[%s220 + $0x48] sm:$0xff]
      %v239 = vld [vmem:[%s220 + $0x50] sm:$0xff]
      %v240 = vld [vmem:[%s220 + $0x58] sm:$0xff]
      %v241 = vld [vmem:[%s220 + $0x60] sm:$0xff]
      %v242 = vld [vmem:[%s220 + $0x68] sm:$0xff]
      %v243 = vld [vmem:[%s220 + $0x70] sm:$0xff]
      %v244 = vld [vmem:[%s220 + $0x78] sm:$0xff]
      %v245 = vld [vmem:[%s220 + $0x80] sm:$0xff]
      %v246 = vld [vmem:[%s220 + $0x88] sm:$0xff]
      %v247 = vld [vmem:[%s220 + $0x90] sm:$0xff]
      %v248 = vld [vmem:[%s220 + $0x98] sm:$0xff]
      %v249 = vld [vmem:[%s220 + $0xa0] sm:$0xff]
      %v250 = vld [vmem:[%s220 + $0xa8] sm:$0xff]
      %v251 = vld [vmem:[%s220 + $0xb0] sm:$0xff]
      %v252 = vld [vmem:[%s220 + $0xb8] sm:$0xff]
      %v253 = vld [vmem:[%s220 + $0xc0] sm:$0xff]
      %v254 = vld [vmem:[%s220 + $0xc8] sm:$0xff]
      %v255 = vld [vmem:[%s220 + $0xd0] sm:$0xff]
      %v256 = vld [vmem:[%s220 + $0xd8] sm:$0xff]
      %v257 = vld [vmem:[%s220 + $0xe0] sm:$0xff]
      %v258 = vld [vmem:[%s220 + $0xe8] sm:$0xff]
      %v259 = vld [vmem:[%s220 + $0xf0] sm:$0xff]
      %v260 = vld [vmem:[%s220 + $0xf8] sm:$0xff]
      %v261 = vld [vmem:[%s220 + $0x100] sm:$0xff]
      %v262 = vld [vmem:[%s220 + $0x108] sm:$0xff]
      %v263 = vld [vmem:[%s220 + $0x110] sm:$0xff]
      %v264 = vld [vmem:[%s220 + $0x118] sm:$0xff]
      %v265 = vld [vmem:[%s220 + $0x120] sm:$0xff]
      %v266 = vld [vmem:[%s220 + $0x128] sm:$0xff]
      %v267 = vld [vmem:[%s220 + $0x130] sm:$0xff]
      %v268 = vld [vmem:[%s220 + $0x138] sm:$0xff]
      %v269 = vld [vmem:[%s220 + $0x140] sm:$0xff]
      %v270 = vld [vmem:[%s220 + $0x148] sm:$0xff]
      %v271 = vld [vmem:[%s220 + $0x150] sm:$0xff]
      %v272 = vld [vmem:[%s220 + $0x158] sm:$0xff]
      %v273 = vld [vmem:[%s220 + $0x160] sm:$0xff]
      %v274 = vld [vmem:[%s220 + $0x168] sm:$0xff]
      %v275 = vld [vmem:[%s220 + $0x170] sm:$0xff]
      %v276 = vld [vmem:[%s220 + $0x178] sm:$0xff]
      %v277 = vld [vmem:[%s220 + $0x180] sm:$0xff]
      %v278 = vld [vmem:[%s220 + $0x188] sm:$0xff]
      %v279 = vld [vmem:[%s220 + $0x190] sm:$0xff]
      %v280 = vld [vmem:[%s220 + $0x198] sm:$0xff]
      %v281 = vld [vmem:[%s220 + $0x1a0] sm:$0xff]
      %v282 = vld [vmem:[%s220 + $0x1a8] sm:$0xff]
      %v283 = vld [vmem:[%s220 + $0x1b0] sm:$0xff]
      %v284 = vld [vmem:[%s220 + $0x1b8] sm:$0xff]
      %v285 = vld [vmem:[%s220 + $0x1c0] sm:$0xff]
      %v286 = vld [vmem:[%s220 + $0x1c8] sm:$0xff]
      %v287 = vld [vmem:[%s220 + $0x1d0] sm:$0xff]
      %v288 = vld [vmem:[%s220 + $0x1d8] sm:$0xff]
      %v289 = vld [vmem:[%s220 + $0x1e0] sm:$0xff]
      %v290 = vld [vmem:[%s220 + $0x1e8] sm:$0xff]
      %v291 = vld [vmem:[%s220 + $0x1f0] sm:$0xff]
      %v292 = vld [vmem:[%s220 + $0x1f8] sm:$0xff]
      %v293 = vpack.c.bf16 %v230, %v229
      %v294 = vpack.c.bf16 %v232, %v231
      %v295 = vpack.c.bf16 %v234, %v233
      %v296 = vpack.c.bf16 %v236, %v235
      %v297 = vpack.c.bf16 %v238, %v237
      %v298 = vpack.c.bf16 %v240, %v239
      %v299 = vpack.c.bf16 %v242, %v241
      %v300 = vpack.c.bf16 %v244, %v243
      %v301 = vpack.c.bf16 %v246, %v245
      %v302 = vpack.c.bf16 %v248, %v247
      %v303 = vpack.c.bf16 %v250, %v249
      %v304 = vpack.c.bf16 %v252, %v251
      %v305 = vpack.c.bf16 %v254, %v253
      %v306 = vpack.c.bf16 %v256, %v255
      %v307 = vpack.c.bf16 %v258, %v257
      %v308 = vpack.c.bf16 %v260, %v259
      %v309 = vpack.c.bf16 %v262, %v261
      %v310 = vpack.c.bf16 %v264, %v263
      %v311 = vpack.c.bf16 %v266, %v265
      %v312 = vpack.c.bf16 %v268, %v267
      %v313 = vpack.c.bf16 %v270, %v269
      %v314 = vpack.c.bf16 %v272, %v271
      %v315 = vpack.c.bf16 %v274, %v273
      %v316 = vpack.c.bf16 %v276, %v275
      %v317 = vpack.c.bf16 %v278, %v277
      %v318 = vpack.c.bf16 %v280, %v279
      %v319 = vpack.c.bf16 %v282, %v281
      %v320 = vpack.c.bf16 %v284, %v283
      %v321 = vpack.c.bf16 %v286, %v285
      %v322 = vpack.c.bf16 %v288, %v287
      %v323 = vpack.c.bf16 %v290, %v289
      %v324 = vpack.c.bf16 %v292, %v291
      %v325 = vld [vmem:[%s1] sm:$0xf]
      %v326 = vld [vmem:[%s1 + $0x4] sm:$0xf]
      %v327 = vld [vmem:[%s1 + $0x8] sm:$0xf]
      %v328 = vld [vmem:[%s1 + $0xc] sm:$0xf]
      %v329 = vld [vmem:[%s1 + $0x10] sm:$0xf]
      %v330 = vld [vmem:[%s1 + $0x14] sm:$0xf]
      %v331 = vld [vmem:[%s1 + $0x18] sm:$0xf]
      %v332 = vld [vmem:[%s1 + $0x1c] sm:$0x3]
      %v333 = vld [vmem:[%s2] sm:$0x1]
      %v335 = vlaneseq
      %v336 = vshrl.u32 %v335, 7
      %v337 = vsub.s32 0, %v336
      %v338 = vrot.slane %v333, %v337
      %v348 = vunpack.c.l.b16 %v325
      %v349 = vunpack.c.l.b16 %v326
      %v350 = vunpack.c.l.b16 %v327
      %v351 = vunpack.c.l.b16 %v328
      %v352 = vunpack.c.l.b16 %v329
      %v353 = vunpack.c.l.b16 %v330
      %v354 = vunpack.c.l.b16 %v331
      %v355 = vunpack.c.l.b16 %v332
      %v356 = vpack.c.b16 %v349, %v348
      %v357 = vpack.c.b16 %v351, %v350
      %v358 = vpack.c.b16 %v353, %v352
      %v359 = vpack.c.b16 %v355, %v354
      %vm363 = vcmask 490496
      %v365 = vsel %vm363, %v293, 0
      %v368 = vsel %vm363, %v294, 0
      %v371 = vsel %vm363, %v295, 0
      %v374 = vsel %vm363, %v296, 0
      %v377 = vsel %vm363, %v297, 0
      %v380 = vsel %vm363, %v298, 0
      %v383 = vsel %vm363, %v299, 0
      %v386 = vsel %vm363, %v300, 0
      %v389 = vsel %vm363, %v301, 0
      %v392 = vsel %vm363, %v302, 0
      %v395 = vsel %vm363, %v303, 0
      %v398 = vsel %vm363, %v304, 0
      %v401 = vsel %vm363, %v305, 0
      %v404 = vsel %vm363, %v306, 0
      %v407 = vsel %vm363, %v307, 0
      %v410 = vsel %vm363, %v308, 0
      %v413 = vsel %vm363, %v309, 0
      %v416 = vsel %vm363, %v310, 0
      %v419 = vsel %vm363, %v311, 0
      %v422 = vsel %vm363, %v312, 0
      %v425 = vsel %vm363, %v313, 0
      %v428 = vsel %vm363, %v314, 0
      %v431 = vsel %vm363, %v315, 0
      %v434 = vsel %vm363, %v316, 0
      %v437 = vsel %vm363, %v317, 0
      %v440 = vsel %vm363, %v318, 0
      %v443 = vsel %vm363, %v319, 0
      %v446 = vsel %vm363, %v320, 0
      %v449 = vsel %vm363, %v321, 0
      %v452 = vsel %vm363, %v322, 0
      %v455 = vsel %vm363, %v323, 0
      %v458 = vsel %vm363, %v324, 0
      %vm460 = vcmask 1045504
      %v462 = vsel %vm460, %v359, 0
      %464 = vmatprep.subr.bf16.mxu0 0
      %465 = vmatpush1.bf16.msra.mxu0 %v356
      %466 = vmatprep.subr.bf16.mxu0 0
      %467 = vmatpush1.bf16.msra.mxu0 %v357
      %468 = vmatprep.subr.bf16.mxu0 0
      %469 = vmatpush1.bf16.msra.mxu0 %v358
      %470 = vmatprep.subr.bf16.mxu0 0
      %471 = vmatpush1.bf16.msra.mxu0 %v462
      %472 = vmatprep.subr.bf16.mxu0 0
      %473 = vmatpush1.bf16.msra.mxu0 0
      %474 = vmatprep.subr.bf16.mxu0 0
      %475 = vmatpush1.bf16.msra.mxu0 0
      %476 = vmatprep.subr.bf16.mxu0 0
      %477 = vmatpush1.bf16.msra.mxu0 0
      %478 = vmatprep.subr.bf16.mxu0 0
      %479 = vmatpush1.bf16.msra.mxu0 0
      %480 = vmatprep.subr.bf16.mxu0 0
      %481 = vmatpush1.bf16.msra.mxu0 0
      %482 = vmatprep.subr.bf16.mxu0 0
      %483 = vmatpush1.bf16.msra.mxu0 0
      %484 = vmatprep.subr.bf16.mxu0 0
      %485 = vmatpush1.bf16.msra.mxu0 0
      %486 = vmatprep.subr.bf16.mxu0 0
      %487 = vmatpush1.bf16.msra.mxu0 0
      %488 = vmatprep.subr.bf16.mxu0 0
      %489 = vmatpush1.bf16.msra.mxu0 0
      %490 = vmatprep.subr.bf16.mxu0 0
      %491 = vmatpush1.bf16.msra.mxu0 0
      %492 = vmatprep.subr.bf16.mxu0 0
      %493 = vmatpush1.bf16.msra.mxu0 0
      %494 = vmatprep.subr.bf16.mxu0 0
      %495 = vmatpush1.bf16.msra.mxu0 0
      %496 = vmatprep.mubr.bf16.mxu0 0
      %497 = vmatmul.mubr.bf16.gmra.mrb[0].mxu0 %v365
      %v498 = vpop.f32.mrb[0].mxu0
      %v499 = vadd.f32 %v338, %v498
      %v500 = vpop.f32.mrb[0].mxu0
      %v501 = vpop.f32.mrb[0].mxu0
      %v502 = vadd.f32 %v338, %v501
      %v503 = vpop.f32.mrb[0].mxu0
      %504 = vmatprep.mubr.bf16.mxu0 0
      %505 = vmatmul.mubr.bf16.gmra.mrb[0].mxu0 %v368
      %v506 = vpop.f32.mrb[0].mxu0
      %v507 = vadd.f32 %v338, %v506
      %v508 = vpop.f32.mrb[0].mxu0
      %v509 = vpop.f32.mrb[0].mxu0
      %v510 = vadd.f32 %v338, %v509
      %v511 = vpop.f32.mrb[0].mxu0
      %512 = vmatprep.mubr.bf16.mxu0 0
      %513 = vmatmul.mubr.bf16.gmra.mrb[0].mxu0 %v371
      %v514 = vpop.f32.mrb[0].mxu0
      %v515 = vadd.f32 %v338, %v514
      %v516 = vpop.f32.mrb[0].mxu0
      %v517 = vpop.f32.mrb[0].mxu0
      %v518 = vadd.f32 %v338, %v517
      %v519 = vpop.f32.mrb[0].mxu0
      %520 = vmatprep.mubr.bf16.mxu0 0
      %521 = vmatmul.mubr.bf16.gmra.mrb[0].mxu0 %v374
      %v522 = vpop.f32.mrb[0].mxu0
      %v523 = vadd.f32 %v338, %v522
      %v524 = vpop.f32.mrb[0].mxu0
      %v525 = vpop.f32.mrb[0].mxu0
      %v526 = vadd.f32 %v338, %v525
      %v527 = vpop.f32.mrb[0].mxu0
      %528 = vmatprep.mubr.bf16.mxu0 0
      %529 = vmatmul.mubr.bf16.gmra.mrb[0].mxu0 %v377
      %v530 = vpop.f32.mrb[0].mxu0
      %v531 = vadd.f32 %v338, %v530
      %v532 = vpop.f32.mrb[0].mxu0
      %v533 = vpop.f32.mrb[0].mxu0
      %v534 = vadd.f32 %v338, %v533
      %v535 = vpop.f32.mrb[0].mxu0
      %536 = vmatprep.mubr.bf16.mxu0 0
      %537 = vmatmul.mubr.bf16.gmra.mrb[0].mxu0 %v380
      %v538 = vpop.f32.mrb[0].mxu0
      %v539 = vadd.f32 %v338, %v538
      %v540 = vpop.f32.mrb[0].mxu0
      %v541 = vpop.f32.mrb[0].mxu0
      %v542 = vadd.f32 %v338, %v541
      %v543 = vpop.f32.mrb[0].mxu0
      %544 = vmatprep.mubr.bf16.mxu0 0
      %545 = vmatmul.mubr.bf16.gmra.mrb[0].mxu0 %v383
      %v546 = vpop.f32.mrb[0].mxu0
      %v547 = vadd.f32 %v338, %v546
      %v548 = vpop.f32.mrb[0].mxu0
      %v549 = vpop.f32.mrb[0].mxu0
      %v550 = vadd.f32 %v338, %v549
      %v551 = vpop.f32.mrb[0].mxu0
      %552 = vmatprep.mubr.bf16.mxu0 0
      %553 = vmatmul.mubr.bf16.gmra.mrb[0].mxu0 %v386
      %v554 = vpop.f32.mrb[0].mxu0
      %v555 = vadd.f32 %v338, %v554
      %v556 = vpop.f32.mrb[0].mxu0
      %v557 = vpop.f32.mrb[0].mxu0
      %v558 = vadd.f32 %v338, %v557
      %v559 = vpop.f32.mrb[0].mxu0
      %560 = vmatprep.mubr.bf16.mxu0 0
      %561 = vmatmul.mubr.bf16.gmra.mrb[0].mxu0 %v389
      %v562 = vpop.f32.mrb[0].mxu0
      %v563 = vadd.f32 %v338, %v562
      %v564 = vpop.f32.mrb[0].mxu0
      %v565 = vpop.f32.mrb[0].mxu0
      %v566 = vadd.f32 %v338, %v565
      %v567 = vpop.f32.mrb[0].mxu0
      %568 = vmatprep.mubr.bf16.mxu0 0
      %569 = vmatmul.mubr.bf16.gmra.mrb[0].mxu0 %v392
      %v570 = vpop.f32.mrb[0].mxu0
      %v571 = vadd.f32 %v338, %v570
      %v572 = vpop.f32.mrb[0].mxu0
      %v573 = vpop.f32.mrb[0].mxu0
      %v574 = vadd.f32 %v338, %v573
      %v575 = vpop.f32.mrb[0].mxu0
      %576 = vmatprep.mubr.bf16.mxu0 0
      %577 = vmatmul.mubr.bf16.gmra.mrb[0].mxu0 %v395
      %v578 = vpop.f32.mrb[0].mxu0
      %v579 = vadd.f32 %v338, %v578
      %v580 = vpop.f32.mrb[0].mxu0
      %v581 = vpop.f32.mrb[0].mxu0
      %v582 = vadd.f32 %v338, %v581
      %v583 = vpop.f32.mrb[0].mxu0
      %584 = vmatprep.mubr.bf16.mxu0 0
      %585 = vmatmul.mubr.bf16.gmra.mrb[0].mxu0 %v398
      %v586 = vpop.f32.mrb[0].mxu0
      %v587 = vadd.f32 %v338, %v586
      %v588 = vpop.f32.mrb[0].mxu0
      %v589 = vpop.f32.mrb[0].mxu0
      %v590 = vadd.f32 %v338, %v589
      %v591 = vpop.f32.mrb[0].mxu0
      %592 = vmatprep.mubr.bf16.mxu0 0
      %593 = vmatmul.mubr.bf16.gmra.mrb[0].mxu0 %v401
      %v594 = vpop.f32.mrb[0].mxu0
      %v595 = vadd.f32 %v338, %v594
      %v596 = vpop.f32.mrb[0].mxu0
      %v597 = vpop.f32.mrb[0].mxu0
      %v598 = vadd.f32 %v338, %v597
      %v599 = vpop.f32.mrb[0].mxu0
      %600 = vmatprep.mubr.bf16.mxu0 0
      %601 = vmatmul.mubr.bf16.gmra.mrb[0].mxu0 %v404
      %v602 = vpop.f32.mrb[0].mxu0
      %v603 = vadd.f32 %v338, %v602
      %v604 = vpop.f32.mrb[0].mxu0
      %v605 = vpop.f32.mrb[0].mxu0
      %v606 = vadd.f32 %v338, %v605
      %v607 = vpop.f32.mrb[0].mxu0
      %608 = vmatprep.mubr.bf16.mxu0 0
      %609 = vmatmul.mubr.bf16.gmra.mrb[0].mxu0 %v407
      %v610 = vpop.f32.mrb[0].mxu0
      %v611 = vadd.f32 %v338, %v610
      %v612 = vpop.f32.mrb[0].mxu0
      %v613 = vpop.f32.mrb[0].mxu0
      %v614 = vadd.f32 %v338, %v613
      %v615 = vpop.f32.mrb[0].mxu0
      %616 = vmatprep.mubr.bf16.mxu0 0
      %617 = vmatmul.mubr.bf16.gmra.mrb[0].mxu0 %v410
      %v618 = vpop.f32.mrb[0].mxu0
      %v619 = vadd.f32 %v338, %v618
      %v620 = vpop.f32.mrb[0].mxu0
      %v621 = vpop.f32.mrb[0].mxu0
      %v622 = vadd.f32 %v338, %v621
      %v623 = vpop.f32.mrb[0].mxu0
      %624 = vmatprep.mubr.bf16.mxu0 0
      %625 = vmatmul.mubr.bf16.gmra.mrb[0].mxu0 %v413
      %v626 = vpop.f32.mrb[0].mxu0
      %v627 = vadd.f32 %v338, %v626
      %v628 = vpop.f32.mrb[0].mxu0
      %v629 = vpop.f32.mrb[0].mxu0
      %v630 = vadd.f32 %v338, %v629
      %v631 = vpop.f32.mrb[0].mxu0
      %632 = vmatprep.mubr.bf16.mxu0 0
      %633 = vmatmul.mubr.bf16.gmra.mrb[0].mxu0 %v416
      %v634 = vpop.f32.mrb[0].mxu0
      %v635 = vadd.f32 %v338, %v634
      %v636 = vpop.f32.mrb[0].mxu0
      %v637 = vpop.f32.mrb[0].mxu0
      %v638 = vadd.f32 %v338, %v637
      %v639 = vpop.f32.mrb[0].mxu0
      %640 = vmatprep.mubr.bf16.mxu0 0
      %641 = vmatmul.mubr.bf16.gmra.mrb[0].mxu0 %v419
      %v642 = vpop.f32.mrb[0].mxu0
      %v643 = vadd.f32 %v338, %v642
      %v644 = vpop.f32.mrb[0].mxu0
      %v645 = vpop.f32.mrb[0].mxu0
      %v646 = vadd.f32 %v338, %v645
      %v647 = vpop.f32.mrb[0].mxu0
      %648 = vmatprep.mubr.bf16.mxu0 0
      %649 = vmatmul.mubr.bf16.gmra.mrb[0].mxu0 %v422
      %v650 = vpop.f32.mrb[0].mxu0
      %v651 = vadd.f32 %v338, %v650
      %v652 = vpop.f32.mrb[0].mxu0
      %v653 = vpop.f32.mrb[0].mxu0
      %v654 = vadd.f32 %v338, %v653
      %v655 = vpop.f32.mrb[0].mxu0
      %656 = vmatprep.mubr.bf16.mxu0 0
      %657 = vmatmul.mubr.bf16.gmra.mrb[0].mxu0 %v425
      %v658 = vpop.f32.mrb[0].mxu0
      %v659 = vadd.f32 %v338, %v658
      %v660 = vpop.f32.mrb[0].mxu0
      %v661 = vpop.f32.mrb[0].mxu0
      %v662 = vadd.f32 %v338, %v661
      %v663 = vpop.f32.mrb[0].mxu0
      %664 = vmatprep.mubr.bf16.mxu0 0
      %665 = vmatmul.mubr.bf16.gmra.mrb[0].mxu0 %v428
      %v666 = vpop.f32.mrb[0].mxu0
      %v667 = vadd.f32 %v338, %v666
      %v668 = vpop.f32.mrb[0].mxu0
      %v669 = vpop.f32.mrb[0].mxu0
      %v670 = vadd.f32 %v338, %v669
      %v671 = vpop.f32.mrb[0].mxu0
      %672 = vmatprep.mubr.bf16.mxu0 0
      %673 = vmatmul.mubr.bf16.gmra.mrb[0].mxu0 %v431
      %v674 = vpop.f32.mrb[0].mxu0
      %v675 = vadd.f32 %v338, %v674
      %v676 = vpop.f32.mrb[0].mxu0
      %v677 = vpop.f32.mrb[0].mxu0
      %v678 = vadd.f32 %v338, %v677
      %v679 = vpop.f32.mrb[0].mxu0
      %680 = vmatprep.mubr.bf16.mxu0 0
      %681 = vmatmul.mubr.bf16.gmra.mrb[0].mxu0 %v434
      %v682 = vpop.f32.mrb[0].mxu0
      %v683 = vadd.f32 %v338, %v682
      %v684 = vpop.f32.mrb[0].mxu0
      %v685 = vpop.f32.mrb[0].mxu0
      %v686 = vadd.f32 %v338, %v685
      %v687 = vpop.f32.mrb[0].mxu0
      %688 = vmatprep.mubr.bf16.mxu0 0
      %689 = vmatmul.mubr.bf16.gmra.mrb[0].mxu0 %v437
      %v690 = vpop.f32.mrb[0].mxu0
      %v691 = vadd.f32 %v338, %v690
      %v692 = vpop.f32.mrb[0].mxu0
      %v693 = vpop.f32.mrb[0].mxu0
      %v694 = vadd.f32 %v338, %v693
      %v695 = vpop.f32.mrb[0].mxu0
      %696 = vmatprep.mubr.bf16.mxu0 0
      %697 = vmatmul.mubr.bf16.gmra.mrb[0].mxu0 %v440
      %v698 = vpop.f32.mrb[0].mxu0
      %v699 = vadd.f32 %v338, %v698
      %v700 = vpop.f32.mrb[0].mxu0
      %v701 = vpop.f32.mrb[0].mxu0
      %v702 = vadd.f32 %v338, %v701
      %v703 = vpop.f32.mrb[0].mxu0
      %704 = vmatprep.mubr.bf16.mxu0 0
      %705 = vmatmul.mubr.bf16.gmra.mrb[0].mxu0 %v443
      %v706 = vpop.f32.mrb[0].mxu0
      %v707 = vadd.f32 %v338, %v706
      %v708 = vpop.f32.mrb[0].mxu0
      %v709 = vpop.f32.mrb[0].mxu0
      %v710 = vadd.f32 %v338, %v709
      %v711 = vpop.f32.mrb[0].mxu0
      %712 = vmatprep.mubr.bf16.mxu0 0
      %713 = vmatmul.mubr.bf16.gmra.mrb[0].mxu0 %v446
      %v714 = vpop.f32.mrb[0].mxu0
      %v715 = vadd.f32 %v338, %v714
      %v716 = vpop.f32.mrb[0].mxu0
      %v717 = vpop.f32.mrb[0].mxu0
      %v718 = vadd.f32 %v338, %v717
      %v719 = vpop.f32.mrb[0].mxu0
      %720 = vmatprep.mubr.bf16.mxu0 0
      %721 = vmatmul.mubr.bf16.gmra.mrb[0].mxu0 %v449
      %v722 = vpop.f32.mrb[0].mxu0
      %v723 = vadd.f32 %v338, %v722
      %v724 = vpop.f32.mrb[0].mxu0
      %v725 = vpop.f32.mrb[0].mxu0
      %v726 = vadd.f32 %v338, %v725
      %v727 = vpop.f32.mrb[0].mxu0
      %728 = vmatprep.mubr.bf16.mxu0 0
      %729 = vmatmul.mubr.bf16.gmra.mrb[0].mxu0 %v452
      %v730 = vpop.f32.mrb[0].mxu0
      %v731 = vadd.f32 %v338, %v730
      %v732 = vpop.f32.mrb[0].mxu0
      %v733 = vpop.f32.mrb[0].mxu0
      %v734 = vadd.f32 %v338, %v733
      %v735 = vpop.f32.mrb[0].mxu0
      %736 = vmatprep.mubr.bf16.mxu0 0
      %737 = vmatmul.mubr.bf16.gmra.mrb[0].mxu0 %v455
      %v738 = vpop.f32.mrb[0].mxu0
      %v739 = vadd.f32 %v338, %v738
      %v740 = vpop.f32.mrb[0].mxu0
      %v741 = vpop.f32.mrb[0].mxu0
      %v742 = vadd.f32 %v338, %v741
      %v743 = vpop.f32.mrb[0].mxu0
      %744 = vmatprep.mubr.bf16.mxu0 0
      %745 = vmatmul.mubr.bf16.gmra.mrb[0].mxu0 %v458
      %v746 = vpop.f32.mrb[0].mxu0
      %v747 = vadd.f32 %v338, %v746
      %v748 = vpop.f32.mrb[0].mxu0
      %v749 = vpop.f32.mrb[0].mxu0
      %v750 = vadd.f32 %v338, %v749
      %v751 = vpop.f32.mrb[0].mxu0
      %752 = vdwg.mxu0
      %v753 = vmax.f32 %v499, 0.0
      %v754 = vmax.f32 %v502, 0.0
      %v755 = vmax.f32 %v507, 0.0
      %v756 = vmax.f32 %v510, 0.0
      %v757 = vmax.f32 %v515, 0.0
      %v758 = vmax.f32 %v518, 0.0
      %v759 = vmax.f32 %v523, 0.0
      %v760 = vmax.f32 %v526, 0.0
      %v761 = vmax.f32 %v531, 0.0
      %v762 = vmax.f32 %v534, 0.0
      %v763 = vmax.f32 %v539, 0.0
      %v764 = vmax.f32 %v542, 0.0
      %v765 = vmax.f32 %v547, 0.0
      %v766 = vmax.f32 %v550, 0.0
      %v767 = vmax.f32 %v555, 0.0
      %v768 = vmax.f32 %v558, 0.0
      %v769 = vmax.f32 %v563, 0.0
      %v770 = vmax.f32 %v566, 0.0
      %v771 = vmax.f32 %v571, 0.0
      %v772 = vmax.f32 %v574, 0.0
      %v773 = vmax.f32 %v579, 0.0
      %v774 = vmax.f32 %v582, 0.0
      %v775 = vmax.f32 %v587, 0.0
      %v776 = vmax.f32 %v590, 0.0
      %v777 = vmax.f32 %v595, 0.0
      %v778 = vmax.f32 %v598, 0.0
      %v779 = vmax.f32 %v603, 0.0
      %v780 = vmax.f32 %v606, 0.0
      %v781 = vmax.f32 %v611, 0.0
      %v782 = vmax.f32 %v614, 0.0
      %v783 = vmax.f32 %v619, 0.0
      %v784 = vmax.f32 %v622, 0.0
      %v785 = vmax.f32 %v627, 0.0
      %v786 = vmax.f32 %v630, 0.0
      %v787 = vmax.f32 %v635, 0.0
      %v788 = vmax.f32 %v638, 0.0
      %v789 = vmax.f32 %v643, 0.0
      %v790 = vmax.f32 %v646, 0.0
      %v791 = vmax.f32 %v651, 0.0
      %v792 = vmax.f32 %v654, 0.0
      %v793 = vmax.f32 %v659, 0.0
      %v794 = vmax.f32 %v662, 0.0
      %v795 = vmax.f32 %v667, 0.0
      %v796 = vmax.f32 %v670, 0.0
      %v797 = vmax.f32 %v675, 0.0
      %v798 = vmax.f32 %v678, 0.0
      %v799 = vmax.f32 %v683, 0.0
      %v800 = vmax.f32 %v686, 0.0
      %v801 = vmax.f32 %v691, 0.0
      %v802 = vmax.f32 %v694, 0.0
      %v803 = vmax.f32 %v699, 0.0
      %v804 = vmax.f32 %v702, 0.0
      %v805 = vmax.f32 %v707, 0.0
      %v806 = vmax.f32 %v710, 0.0
      %v807 = vmax.f32 %v715, 0.0
      %v808 = vmax.f32 %v718, 0.0
      %v809 = vmax.f32 %v723, 0.0
      %v810 = vmax.f32 %v726, 0.0
      %v811 = vmax.f32 %v731, 0.0
      %v812 = vmax.f32 %v734, 0.0
      %v813 = vmax.f32 %v739, 0.0
      %v814 = vmax.f32 %v742, 0.0
      %v815 = vmax.f32 %v747, 0.0
      %v816 = vmax.f32 %v750, 0.0
      %v817 = vpack.c.bf16 %v754, %v753
      %v818 = vpack.c.bf16 %v756, %v755
      %v819 = vpack.c.bf16 %v758, %v757
      %v820 = vpack.c.bf16 %v760, %v759
      %v821 = vpack.c.bf16 %v762, %v761
      %v822 = vpack.c.bf16 %v764, %v763
      %v823 = vpack.c.bf16 %v766, %v765
      %v824 = vpack.c.bf16 %v768, %v767
      %v825 = vpack.c.bf16 %v770, %v769
      %v826 = vpack.c.bf16 %v772, %v771
      %v827 = vpack.c.bf16 %v774, %v773
      %v828 = vpack.c.bf16 %v776, %v775
      %v829 = vpack.c.bf16 %v778, %v777
      %v830 = vpack.c.bf16 %v780, %v779
      %v831 = vpack.c.bf16 %v782, %v781
      %v832 = vpack.c.bf16 %v784, %v783
      %v833 = vpack.c.bf16 %v786, %v785
      %v834 = vpack.c.bf16 %v788, %v787
      %v835 = vpack.c.bf16 %v790, %v789
      %v836 = vpack.c.bf16 %v792, %v791
      %v837 = vpack.c.bf16 %v794, %v793
      %v838 = vpack.c.bf16 %v796, %v795
      %v839 = vpack.c.bf16 %v798, %v797
      %v840 = vpack.c.bf16 %v800, %v799
      %v841 = vpack.c.bf16 %v802, %v801
      %v842 = vpack.c.bf16 %v804, %v803
      %v843 = vpack.c.bf16 %v806, %v805
      %v844 = vpack.c.bf16 %v808, %v807
      %v845 = vpack.c.bf16 %v810, %v809
      %v846 = vpack.c.bf16 %v812, %v811
      %v847 = vpack.c.bf16 %v814, %v813
      %v848 = vpack.c.bf16 %v816, %v815
      %v849 = vld [vmem:[%s3] sm:$0xf]
      %v850 = vld [vmem:[%s3 + $0x4] sm:$0xf]
      %v851 = vld [vmem:[%s3 + $0x8] sm:$0xf]
      %v852 = vld [vmem:[%s3 + $0xc] sm:$0xf]
      %v853 = vld [vmem:[%s4] sm:$0x1]
      %v855 = vlaneseq
      %v856 = vshrl.u32 %v855, 7
      %v857 = vsub.s32 0, %v856
      %v858 = vrot.slane %v853, %v857
      %v864 = vunpack.c.l.b16 %v849
      %v865 = vunpack.c.l.b16 %v850
      %v866 = vunpack.c.l.b16 %v851
      %v867 = vunpack.c.l.b16 %v852
      %v868 = vpack.c.b16 %v865, %v864
      %v869 = vpack.c.b16 %v867, %v866
      %vm872 = vcmask 261120
      %v874 = vsel %vm872, %v817, 0
      %v877 = vsel %vm872, %v818, 0
      %v880 = vsel %vm872, %v819, 0
      %v883 = vsel %vm872, %v820, 0
      %v886 = vsel %vm872, %v821, 0
      %v889 = vsel %vm872, %v822, 0
      %v892 = vsel %vm872, %v823, 0
      %v895 = vsel %vm872, %v824, 0
      %v898 = vsel %vm872, %v825, 0
      %v901 = vsel %vm872, %v826, 0
      %v904 = vsel %vm872, %v827, 0
      %v907 = vsel %vm872, %v828, 0
      %v910 = vsel %vm872, %v829, 0
      %v913 = vsel %vm872, %v830, 0
      %v916 = vsel %vm872, %v831, 0
      %v919 = vsel %vm872, %v832, 0
      %v922 = vsel %vm872, %v833, 0
      %v925 = vsel %vm872, %v834, 0
      %v928 = vsel %vm872, %v835, 0
      %v931 = vsel %vm872, %v836, 0
      %v934 = vsel %vm872, %v837, 0
      %v937 = vsel %vm872, %v838, 0
      %v940 = vsel %vm872, %v839, 0
      %v943 = vsel %vm872, %v840, 0
      %v946 = vsel %vm872, %v841, 0
      %v949 = vsel %vm872, %v842, 0
      %v952 = vsel %vm872, %v843, 0
      %v955 = vsel %vm872, %v844, 0
      %v958 = vsel %vm872, %v845, 0
      %v961 = vsel %vm872, %v846, 0
      %v964 = vsel %vm872, %v847, 0
      %v967 = vsel %vm872, %v848, 0
      %969 = vmatprep.subr.bf16.mxu0 0
      %970 = vmatpush1.bf16.msra.mxu0 %v868
      %971 = vmatprep.subr.bf16.mxu0 0
      %972 = vmatpush1.bf16.msra.mxu0 %v869
      %973 = vmatprep.subr.bf16.mxu0 0
      %974 = vmatpush1.bf16.msra.mxu0 0
      %975 = vmatprep.subr.bf16.mxu0 0
      %976 = vmatpush1.bf16.msra.mxu0 0
      %977 = vmatprep.subr.bf16.mxu0 0
      %978 = vmatpush1.bf16.msra.mxu0 0
      %979 = vmatprep.subr.bf16.mxu0 0
      %980 = vmatpush1.bf16.msra.mxu0 0
      %981 = vmatprep.subr.bf16.mxu0 0
      %982 = vmatpush1.bf16.msra.mxu0 0
      %983 = vmatprep.subr.bf16.mxu0 0
      %984 = vmatpush1.bf16.msra.mxu0 0
      %985 = vmatprep.subr.bf16.mxu0 0
      %986 = vmatpush1.bf16.msra.mxu0 0
      %987 = vmatprep.subr.bf16.mxu0 0
      %988 = vmatpush1.bf16.msra.mxu0 0
      %989 = vmatprep.subr.bf16.mxu0 0
      %990 = vmatpush1.bf16.msra.mxu0 0
      %991 = vmatprep.subr.bf16.mxu0 0
      %992 = vmatpush1.bf16.msra.mxu0 0
      %993 = vmatprep.subr.bf16.mxu0 0
      %994 = vmatpush1.bf16.msra.mxu0 0
      %995 = vmatprep.subr.bf16.mxu0 0
      %996 = vmatpush1.bf16.msra.mxu0 0
      %997 = vmatprep.subr.bf16.mxu0 0
      %998 = vmatpush1.bf16.msra.mxu0 0
      %999 = vmatprep.subr.bf16.mxu0 0
      %1000 = vmatpush1.bf16.msra.mxu0 0
      %1001 = vmatprep.mubr.bf16.mxu0 0
      %1002 = vmatmul.mubr.bf16.gmra.mrb[0].mxu0 %v874
      %v1003 = vpop.f32.mrb[0].mxu0
      %v1004 = vadd.f32 %v858, %v1003
      %v1005 = vpop.f32.mrb[0].mxu0
      %v1006 = vpop.f32.mrb[0].mxu0
      %v1007 = vadd.f32 %v858, %v1006
      %v1008 = vpop.f32.mrb[0].mxu0
      %1009 = vmatprep.mubr.bf16.mxu0 0
      %1010 = vmatmul.mubr.bf16.gmra.mrb[0].mxu0 %v877
      %v1011 = vpop.f32.mrb[0].mxu0
      %v1012 = vadd.f32 %v858, %v1011
      %v1013 = vpop.f32.mrb[0].mxu0
      %v1014 = vpop.f32.mrb[0].mxu0
      %v1015 = vadd.f32 %v858, %v1014
      %v1016 = vpop.f32.mrb[0].mxu0
      %1017 = vmatprep.mubr.bf16.mxu0 0
      %1018 = vmatmul.mubr.bf16.gmra.mrb[0].mxu0 %v880
      %v1019 = vpop.f32.mrb[0].mxu0
      %v1020 = vadd.f32 %v858, %v1019
      %v1021 = vpop.f32.mrb[0].mxu0
      %v1022 = vpop.f32.mrb[0].mxu0
      %v1023 = vadd.f32 %v858, %v1022
      %v1024 = vpop.f32.mrb[0].mxu0
      %1025 = vmatprep.mubr.bf16.mxu0 0
      %1026 = vmatmul.mubr.bf16.gmra.mrb[0].mxu0 %v883
      %v1027 = vpop.f32.mrb[0].mxu0
      %v1028 = vadd.f32 %v858, %v1027
      %v1029 = vpop.f32.mrb[0].mxu0
      %v1030 = vpop.f32.mrb[0].mxu0
      %v1031 = vadd.f32 %v858, %v1030
      %v1032 = vpop.f32.mrb[0].mxu0
      %1033 = vmatprep.mubr.bf16.mxu0 0
      %1034 = vmatmul.mubr.bf16.gmra.mrb[0].mxu0 %v886
      %v1035 = vpop.f32.mrb[0].mxu0
      %v1036 = vadd.f32 %v858, %v1035
      %v1037 = vpop.f32.mrb[0].mxu0
      %v1038 = vpop.f32.mrb[0].mxu0
      %v1039 = vadd.f32 %v858, %v1038
      %v1040 = vpop.f32.mrb[0].mxu0
      %1041 = vmatprep.mubr.bf16.mxu0 0
      %1042 = vmatmul.mubr.bf16.gmra.mrb[0].mxu0 %v889
      %v1043 = vpop.f32.mrb[0].mxu0
      %v1044 = vadd.f32 %v858, %v1043
      %v1045 = vpop.f32.mrb[0].mxu0
      %v1046 = vpop.f32.mrb[0].mxu0
      %v1047 = vadd.f32 %v858, %v1046
      %v1048 = vpop.f32.mrb[0].mxu0
      %1049 = vmatprep.mubr.bf16.mxu0 0
      %1050 = vmatmul.mubr.bf16.gmra.mrb[0].mxu0 %v892
      %v1051 = vpop.f32.mrb[0].mxu0
      %v1052 = vadd.f32 %v858, %v1051
      %v1053 = vpop.f32.mrb[0].mxu0
      %v1054 = vpop.f32.mrb[0].mxu0
      %v1055 = vadd.f32 %v858, %v1054
      %v1056 = vpop.f32.mrb[0].mxu0
      %1057 = vmatprep.mubr.bf16.mxu0 0
      %1058 = vmatmul.mubr.bf16.gmra.mrb[0].mxu0 %v895
      %v1059 = vpop.f32.mrb[0].mxu0
      %v1060 = vadd.f32 %v858, %v1059
      %v1061 = vpop.f32.mrb[0].mxu0
      %v1062 = vpop.f32.mrb[0].mxu0
      %v1063 = vadd.f32 %v858, %v1062
      %v1064 = vpop.f32.mrb[0].mxu0
      %1065 = vmatprep.mubr.bf16.mxu0 0
      %1066 = vmatmul.mubr.bf16.gmra.mrb[0].mxu0 %v898
      %v1067 = vpop.f32.mrb[0].mxu0
      %v1068 = vadd.f32 %v858, %v1067
      %v1069 = vpop.f32.mrb[0].mxu0
      %v1070 = vpop.f32.mrb[0].mxu0
      %v1071 = vadd.f32 %v858, %v1070
      %v1072 = vpop.f32.mrb[0].mxu0
      %1073 = vmatprep.mubr.bf16.mxu0 0
      %1074 = vmatmul.mubr.bf16.gmra.mrb[0].mxu0 %v901
      %v1075 = vpop.f32.mrb[0].mxu0
      %v1076 = vadd.f32 %v858, %v1075
      %v1077 = vpop.f32.mrb[0].mxu0
      %v1078 = vpop.f32.mrb[0].mxu0
      %v1079 = vadd.f32 %v858, %v1078
      %v1080 = vpop.f32.mrb[0].mxu0
      %1081 = vmatprep.mubr.bf16.mxu0 0
      %1082 = vmatmul.mubr.bf16.gmra.mrb[0].mxu0 %v904
      %v1083 = vpop.f32.mrb[0].mxu0
      %v1084 = vadd.f32 %v858, %v1083
      %v1085 = vpop.f32.mrb[0].mxu0
      %v1086 = vpop.f32.mrb[0].mxu0
      %v1087 = vadd.f32 %v858, %v1086
      %v1088 = vpop.f32.mrb[0].mxu0
      %1089 = vmatprep.mubr.bf16.mxu0 0
      %1090 = vmatmul.mubr.bf16.gmra.mrb[0].mxu0 %v907
      %v1091 = vpop.f32.mrb[0].mxu0
      %v1092 = vadd.f32 %v858, %v1091
      %v1093 = vpop.f32.mrb[0].mxu0
      %v1094 = vpop.f32.mrb[0].mxu0
      %v1095 = vadd.f32 %v858, %v1094
      %v1096 = vpop.f32.mrb[0].mxu0
      %1097 = vmatprep.mubr.bf16.mxu0 0
      %1098 = vmatmul.mubr.bf16.gmra.mrb[0].mxu0 %v910
      %v1099 = vpop.f32.mrb[0].mxu0
      %v1100 = vadd.f32 %v858, %v1099
      %v1101 = vpop.f32.mrb[0].mxu0
      %v1102 = vpop.f32.mrb[0].mxu0
      %v1103 = vadd.f32 %v858, %v1102
      %v1104 = vpop.f32.mrb[0].mxu0
      %1105 = vmatprep.mubr.bf16.mxu0 0
      %1106 = vmatmul.mubr.bf16.gmra.mrb[0].mxu0 %v913
      %v1107 = vpop.f32.mrb[0].mxu0
      %v1108 = vadd.f32 %v858, %v1107
      %v1109 = vpop.f32.mrb[0].mxu0
      %v1110 = vpop.f32.mrb[0].mxu0
      %v1111 = vadd.f32 %v858, %v1110
      %v1112 = vpop.f32.mrb[0].mxu0
      %1113 = vmatprep.mubr.bf16.mxu0 0
      %1114 = vmatmul.mubr.bf16.gmra.mrb[0].mxu0 %v916
      %v1115 = vpop.f32.mrb[0].mxu0
      %v1116 = vadd.f32 %v858, %v1115
      %v1117 = vpop.f32.mrb[0].mxu0
      %v1118 = vpop.f32.mrb[0].mxu0
      %v1119 = vadd.f32 %v858, %v1118
      %v1120 = vpop.f32.mrb[0].mxu0
      %1121 = vmatprep.mubr.bf16.mxu0 0
      %1122 = vmatmul.mubr.bf16.gmra.mrb[0].mxu0 %v919
      %v1123 = vpop.f32.mrb[0].mxu0
      %v1124 = vadd.f32 %v858, %v1123
      %v1125 = vpop.f32.mrb[0].mxu0
      %v1126 = vpop.f32.mrb[0].mxu0
      %v1127 = vadd.f32 %v858, %v1126
      %v1128 = vpop.f32.mrb[0].mxu0
      %1129 = vmatprep.mubr.bf16.mxu0 0
      %1130 = vmatmul.mubr.bf16.gmra.mrb[0].mxu0 %v922
      %v1131 = vpop.f32.mrb[0].mxu0
      %v1132 = vadd.f32 %v858, %v1131
      %v1133 = vpop.f32.mrb[0].mxu0
      %v1134 = vpop.f32.mrb[0].mxu0
      %v1135 = vadd.f32 %v858, %v1134
      %v1136 = vpop.f32.mrb[0].mxu0
      %1137 = vmatprep.mubr.bf16.mxu0 0
      %1138 = vmatmul.mubr.bf16.gmra.mrb[0].mxu0 %v925
      %v1139 = vpop.f32.mrb[0].mxu0
      %v1140 = vadd.f32 %v858, %v1139
      %v1141 = vpop.f32.mrb[0].mxu0
      %v1142 = vpop.f32.mrb[0].mxu0
      %v1143 = vadd.f32 %v858, %v1142
      %v1144 = vpop.f32.mrb[0].mxu0
      %1145 = vmatprep.mubr.bf16.mxu0 0
      %1146 = vmatmul.mubr.bf16.gmra.mrb[0].mxu0 %v928
      %v1147 = vpop.f32.mrb[0].mxu0
      %v1148 = vadd.f32 %v858, %v1147
      %v1149 = vpop.f32.mrb[0].mxu0
      %v1150 = vpop.f32.mrb[0].mxu0
      %v1151 = vadd.f32 %v858, %v1150
      %v1152 = vpop.f32.mrb[0].mxu0
      %1153 = vmatprep.mubr.bf16.mxu0 0
      %1154 = vmatmul.mubr.bf16.gmra.mrb[0].mxu0 %v931
      %v1155 = vpop.f32.mrb[0].mxu0
      %v1156 = vadd.f32 %v858, %v1155
      %v1157 = vpop.f32.mrb[0].mxu0
      %v1158 = vpop.f32.mrb[0].mxu0
      %v1159 = vadd.f32 %v858, %v1158
      %v1160 = vpop.f32.mrb[0].mxu0
      %1161 = vmatprep.mubr.bf16.mxu0 0
      %1162 = vmatmul.mubr.bf16.gmra.mrb[0].mxu0 %v934
      %v1163 = vpop.f32.mrb[0].mxu0
      %v1164 = vadd.f32 %v858, %v1163
      %v1165 = vpop.f32.mrb[0].mxu0
      %v1166 = vpop.f32.mrb[0].mxu0
      %v1167 = vadd.f32 %v858, %v1166
      %v1168 = vpop.f32.mrb[0].mxu0
      %1169 = vmatprep.mubr.bf16.mxu0 0
      %1170 = vmatmul.mubr.bf16.gmra.mrb[0].mxu0 %v937
      %v1171 = vpop.f32.mrb[0].mxu0
      %v1172 = vadd.f32 %v858, %v1171
      %v1173 = vpop.f32.mrb[0].mxu0
      %v1174 = vpop.f32.mrb[0].mxu0
      %v1175 = vadd.f32 %v858, %v1174
      %v1176 = vpop.f32.mrb[0].mxu0
      %1177 = vmatprep.mubr.bf16.mxu0 0
      %1178 = vmatmul.mubr.bf16.gmra.mrb[0].mxu0 %v940
      %v1179 = vpop.f32.mrb[0].mxu0
      %v1180 = vadd.f32 %v858, %v1179
      %v1181 = vpop.f32.mrb[0].mxu0
      %v1182 = vpop.f32.mrb[0].mxu0
      %v1183 = vadd.f32 %v858, %v1182
      %v1184 = vpop.f32.mrb[0].mxu0
      %1185 = vmatprep.mubr.bf16.mxu0 0
      %1186 = vmatmul.mubr.bf16.gmra.mrb[0].mxu0 %v943
      %v1187 = vpop.f32.mrb[0].mxu0
      %v1188 = vadd.f32 %v858, %v1187
      %v1189 = vpop.f32.mrb[0].mxu0
      %v1190 = vpop.f32.mrb[0].mxu0
      %v1191 = vadd.f32 %v858, %v1190
      %v1192 = vpop.f32.mrb[0].mxu0
      %1193 = vmatprep.mubr.bf16.mxu0 0
      %1194 = vmatmul.mubr.bf16.gmra.mrb[0].mxu0 %v946
      %v1195 = vpop.f32.mrb[0].mxu0
      %v1196 = vadd.f32 %v858, %v1195
      %v1197 = vpop.f32.mrb[0].mxu0
      %v1198 = vpop.f32.mrb[0].mxu0
      %v1199 = vadd.f32 %v858, %v1198
      %v1200 = vpop.f32.mrb[0].mxu0
      %1201 = vmatprep.mubr.bf16.mxu0 0
      %1202 = vmatmul.mubr.bf16.gmra.mrb[0].mxu0 %v949
      %v1203 = vpop.f32.mrb[0].mxu0
      %v1204 = vadd.f32 %v858, %v1203
      %v1205 = vpop.f32.mrb[0].mxu0
      %v1206 = vpop.f32.mrb[0].mxu0
      %v1207 = vadd.f32 %v858, %v1206
      %v1208 = vpop.f32.mrb[0].mxu0
      %1209 = vmatprep.mubr.bf16.mxu0 0
      %1210 = vmatmul.mubr.bf16.gmra.mrb[0].mxu0 %v952
      %v1211 = vpop.f32.mrb[0].mxu0
      %v1212 = vadd.f32 %v858, %v1211
      %v1213 = vpop.f32.mrb[0].mxu0
      %v1214 = vpop.f32.mrb[0].mxu0
      %v1215 = vadd.f32 %v858, %v1214
      %v1216 = vpop.f32.mrb[0].mxu0
      %1217 = vmatprep.mubr.bf16.mxu0 0
      %1218 = vmatmul.mubr.bf16.gmra.mrb[0].mxu0 %v955
      %v1219 = vpop.f32.mrb[0].mxu0
      %v1220 = vadd.f32 %v858, %v1219
      %v1221 = vpop.f32.mrb[0].mxu0
      %v1222 = vpop.f32.mrb[0].mxu0
      %v1223 = vadd.f32 %v858, %v1222
      %v1224 = vpop.f32.mrb[0].mxu0
      %1225 = vmatprep.mubr.bf16.mxu0 0
      %1226 = vmatmul.mubr.bf16.gmra.mrb[0].mxu0 %v958
      %v1227 = vpop.f32.mrb[0].mxu0
      %v1228 = vadd.f32 %v858, %v1227
      %v1229 = vpop.f32.mrb[0].mxu0
      %v1230 = vpop.f32.mrb[0].mxu0
      %v1231 = vadd.f32 %v858, %v1230
      %v1232 = vpop.f32.mrb[0].mxu0
      %1233 = vmatprep.mubr.bf16.mxu0 0
      %1234 = vmatmul.mubr.bf16.gmra.mrb[0].mxu0 %v961
      %v1235 = vpop.f32.mrb[0].mxu0
      %v1236 = vadd.f32 %v858, %v1235
      %v1237 = vpop.f32.mrb[0].mxu0
      %v1238 = vpop.f32.mrb[0].mxu0
      %v1239 = vadd.f32 %v858, %v1238
      %v1240 = vpop.f32.mrb[0].mxu0
      %1241 = vmatprep.mubr.bf16.mxu0 0
      %1242 = vmatmul.mubr.bf16.gmra.mrb[0].mxu0 %v964
      %v1243 = vpop.f32.mrb[0].mxu0
      %v1244 = vadd.f32 %v858, %v1243
      %v1245 = vpop.f32.mrb[0].mxu0
      %v1246 = vpop.f32.mrb[0].mxu0
      %v1247 = vadd.f32 %v858, %v1246
      %v1248 = vpop.f32.mrb[0].mxu0
      %1249 = vmatprep.mubr.bf16.mxu0 0
      %1250 = vmatmul.mubr.bf16.gmra.mrb[0].mxu0 %v967
      %v1251 = vpop.f32.mrb[0].mxu0
      %v1252 = vadd.f32 %v858, %v1251
      %v1253 = vpop.f32.mrb[0].mxu0
      %v1254 = vpop.f32.mrb[0].mxu0
      %v1255 = vadd.f32 %v858, %v1254
      %v1256 = vpop.f32.mrb[0].mxu0
      %1257 = vdwg.mxu0
      %1258 = vst.msk [vmem:[%s226] sm:$0xff] %vm872, %v1004
      %1259 = vst.msk [vmem:[%s226 + $0x8] sm:$0xff] %vm872, %v1007
      %1260 = vst.msk [vmem:[%s226 + $0x10] sm:$0xff] %vm872, %v1012
      %1261 = vst.msk [vmem:[%s226 + $0x18] sm:$0xff] %vm872, %v1015
      %1262 = vst.msk [vmem:[%s226 + $0x20] sm:$0xff] %vm872, %v1020
      %1263 = vst.msk [vmem:[%s226 + $0x28] sm:$0xff] %vm872, %v1023
      %1264 = vst.msk [vmem:[%s226 + $0x30] sm:$0xff] %vm872, %v1028
      %1265 = vst.msk [vmem:[%s226 + $0x38] sm:$0xff] %vm872, %v1031
      %1266 = vst.msk [vmem:[%s226 + $0x40] sm:$0xff] %vm872, %v1036
      %1267 = vst.msk [vmem:[%s226 + $0x48] sm:$0xff] %vm872, %v1039
      %1268 = vst.msk [vmem:[%s226 + $0x50] sm:$0xff] %vm872, %v1044
      %1269 = vst.msk [vmem:[%s226 + $0x58] sm:$0xff] %vm872, %v1047
      %1270 = vst.msk [vmem:[%s226 + $0x60] sm:$0xff] %vm872, %v1052
      %1271 = vst.msk [vmem:[%s226 + $0x68] sm:$0xff] %vm872, %v1055
      %1272 = vst.msk [vmem:[%s226 + $0x70] sm:$0xff] %vm872, %v1060
      %1273 = vst.msk [vmem:[%s226 + $0x78] sm:$0xff] %vm872, %v1063
      %1274 = vst.msk [vmem:[%s226 + $0x80] sm:$0xff] %vm872, %v1068
      %1275 = vst.msk [vmem:[%s226 + $0x88] sm:$0xff] %vm872, %v1071
      %1276 = vst.msk [vmem:[%s226 + $0x90] sm:$0xff] %vm872, %v1076
      %1277 = vst.msk [vmem:[%s226 + $0x98] sm:$0xff] %vm872, %v1079
      %1278 = vst.msk [vmem:[%s226 + $0xa0] sm:$0xff] %vm872, %v1084
      %1279 = vst.msk [vmem:[%s226 + $0xa8] sm:$0xff] %vm872, %v1087
      %1280 = vst.msk [vmem:[%s226 + $0xb0] sm:$0xff] %vm872, %v1092
      %1281 = vst.msk [vmem:[%s226 + $0xb8] sm:$0xff] %vm872, %v1095
      %1282 = vst.msk [vmem:[%s226 + $0xc0] sm:$0xff] %vm872, %v1100
      %1283 = vst.msk [vmem:[%s226 + $0xc8] sm:$0xff] %vm872, %v1103
      %1284 = vst.msk [vmem:[%s226 + $0xd0] sm:$0xff] %vm872, %v1108
      %1285 = vst.msk [vmem:[%s226 + $0xd8] sm:$0xff] %vm872, %v1111
      %1286 = vst.msk [vmem:[%s226 + $0xe0] sm:$0xff] %vm872, %v1116
      %1287 = vst.msk [vmem:[%s226 + $0xe8] sm:$0xff] %vm872, %v1119
      %1288 = vst.msk [vmem:[%s226 + $0xf0] sm:$0xff] %vm872, %v1124
      %1289 = vst.msk [vmem:[%s226 + $0xf8] sm:$0xff] %vm872, %v1127
      %1290 = vst.msk [vmem:[%s226 + $0x100] sm:$0xff] %vm872, %v1132
      %1291 = vst.msk [vmem:[%s226 + $0x108] sm:$0xff] %vm872, %v1135
      %1292 = vst.msk [vmem:[%s226 + $0x110] sm:$0xff] %vm872, %v1140
      %1293 = vst.msk [vmem:[%s226 + $0x118] sm:$0xff] %vm872, %v1143
      %1294 = vst.msk [vmem:[%s226 + $0x120] sm:$0xff] %vm872, %v1148
      %1295 = vst.msk [vmem:[%s226 + $0x128] sm:$0xff] %vm872, %v1151
      %1296 = vst.msk [vmem:[%s226 + $0x130] sm:$0xff] %vm872, %v1156
      %1297 = vst.msk [vmem:[%s226 + $0x138] sm:$0xff] %vm872, %v1159
      %1298 = vst.msk [vmem:[%s226 + $0x140] sm:$0xff] %vm872, %v1164
      %1299 = vst.msk [vmem:[%s226 + $0x148] sm:$0xff] %vm872, %v1167
      %1300 = vst.msk [vmem:[%s226 + $0x150] sm:$0xff] %vm872, %v1172
      %1301 = vst.msk [vmem:[%s226 + $0x158] sm:$0xff] %vm872, %v1175
      %1302 = vst.msk [vmem:[%s226 + $0x160] sm:$0xff] %vm872, %v1180
      %1303 = vst.msk [vmem:[%s226 + $0x168] sm:$0xff] %vm872, %v1183
      %1304 = vst.msk [vmem:[%s226 + $0x170] sm:$0xff] %vm872, %v1188
      %1305 = vst.msk [vmem:[%s226 + $0x178] sm:$0xff] %vm872, %v1191
      %1306 = vst.msk [vmem:[%s226 + $0x180] sm:$0xff] %vm872, %v1196
      %1307 = vst.msk [vmem:[%s226 + $0x188] sm:$0xff] %vm872, %v1199
      %1308 = vst.msk [vmem:[%s226 + $0x190] sm:$0xff] %vm872, %v1204
      %1309 = vst.msk [vmem:[%s226 + $0x198] sm:$0xff] %vm872, %v1207
      %1310 = vst.msk [vmem:[%s226 + $0x1a0] sm:$0xff] %vm872, %v1212
      %1311 = vst.msk [vmem:[%s226 + $0x1a8] sm:$0xff] %vm872, %v1215
      %1312 = vst.msk [vmem:[%s226 + $0x1b0] sm:$0xff] %vm872, %v1220
      %1313 = vst.msk [vmem:[%s226 + $0x1b8] sm:$0xff] %vm872, %v1223
      %1314 = vst.msk [vmem:[%s226 + $0x1c0] sm:$0xff] %vm872, %v1228
      %1315 = vst.msk [vmem:[%s226 + $0x1c8] sm:$0xff] %vm872, %v1231
      %1316 = vst.msk [vmem:[%s226 + $0x1d0] sm:$0xff] %vm872, %v1236
      %1317 = vst.msk [vmem:[%s226 + $0x1d8] sm:$0xff] %vm872, %v1239
      %1318 = vst.msk [vmem:[%s226 + $0x1e0] sm:$0xff] %vm872, %v1244
      %1319 = vst.msk [vmem:[%s226 + $0x1e8] sm:$0xff] %vm872, %v1247
      %1320 = vst.msk [vmem:[%s226 + $0x1f0] sm:$0xff] %vm872, %v1252
      %1321 = vst.msk [vmem:[%s226 + $0x1f8] sm:$0xff] %vm872, %v1255
      %s1322 = smul.u32 64, %s16
      %p1323 = scmp.lt.s32.totalorder %s1322, 191
      %s1324 = scalar_select %p1323, %s1322, 191
      %s1325 = smul.addr %s1324, 8
      %s1326 = scalar_lea.vmem %s5, %s1325
      // Predicated region
      $region41: #{transformer_block_fc.5} parent=39 // pred_check
        %p1327 = pneg %p144
      $region42: #{transformer_block_fc.5} parent=39 // pred_check_branch
        %1329 = sbr.rel (%p1327) target = $region44
      $region43: #{transformer_block_fc.5} parent=39 // pred_region
        %s1330 = smul.u32 64, %s16
      $region44: #{transformer_block_fc.5} parent=39 // pred_fallthru
        _
    $region40: #{transformer_block_fc.5} parent=5 // pred_fallthru
      _
    %p1331 = scmp.le.s32.totalorder 2, %s11
    // Predicated region
    $region45: #{transformer_block_fc.5} parent=5 // pred_check
      %p1332 = pneg %p1331
    $region46: #{transformer_block_fc.5} parent=5 // pred_check_branch
      %1334 = sbr.rel (%p1332) target = $region48
    $region47: #{transformer_block_fc.5} parent=5 // pred_region
      %s1335 = ssub.s32 %s11, 2
      // Predicated region
      $region49: #{transformer_block_fc.5} parent=47 // pred_check
        %p1336 = pneg %p150
      $region50: #{transformer_block_fc.5} parent=47 // pred_check_branch
        %1338 = sbr.rel (%p1336) target = $region52
      $region51: #{transformer_block_fc.5} parent=47 // pred_region
        %s1339 = smul.u32 64, %s17
        %p1340 = scmp.lt.s32.totalorder %s1339, 191
        %s1341 = scalar_select %p1340, %s1339, 191
        %s1342 = smul.addr %s1341, 8
        %s1343 = scalar_lea.vmem %s5, %s1342
      $region52: #{transformer_block_fc.5} parent=47 // pred_fallthru
        _
    $region48: #{transformer_block_fc.5} parent=5 // pred_fallthru
      _
  $region6: #{transformer_block_fc.5} parent=0 // loop_footer
    %s15 = sadd.s32 1, %s11
  $region7: #{transformer_block_fc.5} parent=0 // loop_footer_branch
    %10 = sbr.rel target = $region3
  $region8: #{transformer_block_fc.5} parent=0 // loop_exit
    _

// kernel: transformer_block_fc.4
$region0: #{transformer_block_fc.4}
  #allocation0 [shape = 'u32[]', space=smem, size = 0x4, offset = 0x4, fixed_abs, tag = 'smem constant byte address 0x4 - core index']
  #allocation1 [shape = 'u32[144,128]{1,0:T(1,128)}', space=vmem, size = 0x12000, scoped, tag = 'internal scratch']
  %s0 = inlined_call_operand.vmem [shape: f32[64,16], index: 0, kind: input, shape index: {}]
  %s1 = inlined_call_operand.vmem [shape: bf16[16,32], index: 1, kind: input, shape index: {}]
  %s2 = inlined_call_operand.vmem [shape: f32[1,32], index: 2, kind: input, shape index: {}]
  %s3 = inlined_call_operand.vmem [shape: f32[64,32], index: 3, kind: output, shape index: {}]
  %s4 = sld [smem:[#allocation0]]
  $region22: #{transformer_block_fc.4} parent=0
    _
  %s6 = ssub.s32 1, %s4
  %s7 = scalar_select 0, %s6, %s4
  // Predicated region
  $region2: #{transformer_block_fc.4} parent=0 // pred_check
    _
  $region3: #{transformer_block_fc.4} parent=0 // pred_check_branch
    %9 = sbr.rel (0) target = $region5
  $region4: #{transformer_block_fc.4} parent=0 // pred_region
    _
  $region5: #{transformer_block_fc.4} parent=0 // pred_fallthru
    _
  // Predicated region
  $region6: #{transformer_block_fc.4} parent=0 // pred_check
    _
  $region7: #{transformer_block_fc.4} parent=0 // pred_check_branch
    %11 = sbr.rel (0) target = $region9
  $region8: #{transformer_block_fc.4} parent=0 // pred_region
    _
  $region9: #{transformer_block_fc.4} parent=0 // pred_fallthru
    _
  // Predicated region
  $region10: #{transformer_block_fc.4} parent=0 // pred_check
    _
  $region11: #{transformer_block_fc.4} parent=0 // pred_check_branch
    %13 = sbr.rel (0) target = $region13
  $region12: #{transformer_block_fc.4} parent=0 // pred_region
    _
  $region13: #{transformer_block_fc.4} parent=0 // pred_fallthru
    _
  %v15 = vld [vmem:[%s0] sm:$0xff]
  %v16 = vld [vmem:[%s0 + $0x8] sm:$0xff]
  %v17 = vld [vmem:[%s0 + $0x10] sm:$0xff]
  %v18 = vld [vmem:[%s0 + $0x18] sm:$0xff]
  %v19 = vld [vmem:[%s0 + $0x20] sm:$0xff]
  %v20 = vld [vmem:[%s0 + $0x28] sm:$0xff]
  %v21 = vld [vmem:[%s0 + $0x30] sm:$0xff]
  %v22 = vld [vmem:[%s0 + $0x38] sm:$0xff]
  %v23 = vpack.c.bf16 %v16, %v15
  %v24 = vpack.c.bf16 %v18, %v17
  %v25 = vpack.c.bf16 %v20, %v19
  %v26 = vpack.c.bf16 %v22, %v21
  %v27 = vld [vmem:[%s1] sm:$0xf]
  %v28 = vld [vmem:[%s1 + $0x4] sm:$0xf]
  %v29 = vld [vmem:[%s2] sm:$0x1]
  %v31 = vlaneseq
  %v32 = vshrl.u32 %v31, 7
  %v33 = vsub.s32 0, %v32
  %v34 = vrot.slane %v29, %v33
  %v38 = vunpack.c.l.b16 %v27
  %v39 = vunpack.c.l.b16 %v28
  %v40 = vpack.c.b16 %v39, %v38
  %vm42 = vcmask 130048
  %v44 = vsel %vm42, %v23, 0
  %v47 = vsel %vm42, %v24, 0
  %v50 = vsel %vm42, %v25, 0
  %v53 = vsel %vm42, %v26, 0
  %55 = vmatprep.subr.bf16.mxu0 0
  %56 = vmatpush1.bf16.msra.mxu0 %v40
  %57 = vmatprep.subr.bf16.mxu0 0
  %58 = vmatpush1.bf16.msra.mxu0 0
  %59 = vmatprep.subr.bf16.mxu0 0
  %60 = vmatpush1.bf16.msra.mxu0 0
  %61 = vmatprep.subr.bf16.mxu0 0
  %62 = vmatpush1.bf16.msra.mxu0 0
  %63 = vmatprep.subr.bf16.mxu0 0
  %64 = vmatpush1.bf16.msra.mxu0 0
  %65 = vmatprep.subr.bf16.mxu0 0
  %66 = vmatpush1.bf16.msra.mxu0 0
  %67 = vmatprep.subr.bf16.mxu0 0
  %68 = vmatpush1.bf16.msra.mxu0 0
  %69 = vmatprep.subr.bf16.mxu0 0
  %70 = vmatpush1.bf16.msra.mxu0 0
  %71 = vmatprep.subr.bf16.mxu0 0
  %72 = vmatpush1.bf16.msra.mxu0 0
  %73 = vmatprep.subr.bf16.mxu0 0
  %74 = vmatpush1.bf16.msra.mxu0 0
  %75 = vmatprep.subr.bf16.mxu0 0
  %76 = vmatpush1.bf16.msra.mxu0 0
  %77 = vmatprep.subr.bf16.mxu0 0
  %78 = vmatpush1.bf16.msra.mxu0 0
  %79 = vmatprep.subr.bf16.mxu0 0
  %80 = vmatpush1.bf16.msra.mxu0 0
  %81 = vmatprep.subr.bf16.mxu0 0
  %82 = vmatpush1.bf16.msra.mxu0 0
  %83 = vmatprep.subr.bf16.mxu0 0
  %84 = vmatpush1.bf16.msra.mxu0 0
  %85 = vmatprep.subr.bf16.mxu0 0
  %86 = vmatpush1.bf16.msra.mxu0 0
  %87 = vmatprep.mubr.bf16.mxu0 0
  %88 = vmatmul.mubr.bf16.gmra.mrb[0].mxu0 %v44
  %v89 = vpop.f32.mrb[0].mxu0
  %v90 = vadd.f32 %v34, %v89
  %v91 = vpop.f32.mrb[0].mxu0
  %v92 = vpop.f32.mrb[0].mxu0
  %v93 = vadd.f32 %v34, %v92
  %v94 = vpop.f32.mrb[0].mxu0
  %95 = vmatprep.mubr.bf16.mxu0 0
  %96 = vmatmul.mubr.bf16.gmra.mrb[0].mxu0 %v47
  %v97 = vpop.f32.mrb[0].mxu0
  %v98 = vadd.f32 %v34, %v97
  %v99 = vpop.f32.mrb[0].mxu0
  %v100 = vpop.f32.mrb[0].mxu0
  %v101 = vadd.f32 %v34, %v100
  %v102 = vpop.f32.mrb[0].mxu0
  %103 = vmatprep.mubr.bf16.mxu0 0
  %104 = vmatmul.mubr.bf16.gmra.mrb[0].mxu0 %v50
  %v105 = vpop.f32.mrb[0].mxu0
  %v106 = vadd.f32 %v34, %v105
  %v107 = vpop.f32.mrb[0].mxu0
  %v108 = vpop.f32.mrb[0].mxu0
  %v109 = vadd.f32 %v34, %v108
  %v110 = vpop.f32.mrb[0].mxu0
  %111 = vmatprep.mubr.bf16.mxu0 0
  %112 = vmatmul.mubr.bf16.gmra.mrb[0].mxu0 %v53
  %v113 = vpop.f32.mrb[0].mxu0
  %v114 = vadd.f32 %v34, %v113
  %v115 = vpop.f32.mrb[0].mxu0
  %v116 = vpop.f32.mrb[0].mxu0
  %v117 = vadd.f32 %v34, %v116
  %v118 = vpop.f32.mrb[0].mxu0
  %119 = vdwg.mxu0
  %vm120 = vcmask 261120
  %121 = vst.msk [vmem:[%s3] sm:$0xff] %vm120, %v90
  %122 = vst.msk [vmem:[%s3 + $0x8] sm:$0xff] %vm120, %v93
  %123 = vst.msk [vmem:[%s3 + $0x10] sm:$0xff] %vm120, %v98
  %124 = vst.msk [vmem:[%s3 + $0x18] sm:$0xff] %vm120, %v101
  %125 = vst.msk [vmem:[%s3 + $0x20] sm:$0xff] %vm120, %v106
  %126 = vst.msk [vmem:[%s3 + $0x28] sm:$0xff] %vm120, %v109
  %127 = vst.msk [vmem:[%s3 + $0x30] sm:$0xff] %vm120, %v114
  %128 = vst.msk [vmem:[%s3 + $0x38] sm:$0xff] %vm120, %v117
  // Predicated region
  $region14: #{transformer_block_fc.4} parent=0 // pred_check
    _
  $region15: #{transformer_block_fc.4} parent=0 // pred_check_branch
    %130 = sbr.rel (0) target = $region17
  $region16: #{transformer_block_fc.4} parent=0 // pred_region
    _
  $region17: #{transformer_block_fc.4} parent=0 // pred_fallthru
    _
  // Predicated region
  $region18: #{transformer_block_fc.4} parent=0 // pred_check
    _
  $region19: #{transformer_block_fc.4} parent=0 // pred_check_branch
    %132 = sbr.rel (0) target = $region21
  $region20: #{transformer_block_fc.4} parent=0 // pred_region
    _
  $region21: #{transformer_block_fc.4} parent=0 // pred_fallthru
    _

// kernel: transformer_block_fc.7
$region0: #{transformer_block_fc.7}
  #allocation0 [shape = 'u32[]', space=smem, size = 0x4, offset = 0x4, fixed_abs, tag = 'smem constant byte address 0x4 - core index']
  #allocation1 [shape = 'u32[144,128]{1,0:T(1,128)}', space=vmem, size = 0x12000, scoped, tag = 'internal scratch']
  %s0 = inlined_call_operand.vmem [shape: f32[2,32,24,32], index: 0, kind: input, shape index: {}]
  %s1 = inlined_call_operand.vmem [shape: f32[2,32,24,32], index: 1, kind: input, shape index: {}]
  %s2 = inlined_call_operand.vmem [shape: f32[2,32,24,32], index: 2, kind: input, shape index: {}]
  %s3 = inlined_call_operand.vmem [shape: f32[2,32,32], index: 3, kind: input, shape index: {}]
  %s4 = inlined_call_operand.vmem [shape: bf16[32,32], index: 4, kind: input, shape index: {}]
  %s5 = inlined_call_operand.vmem [shape: f32[1,32], index: 5, kind: input, shape index: {}]
  %s6 = inlined_call_operand.hbm [shape: f32[2,32,24,32], index: 6, kind: output, shape index: {0}]
  %s7 = inlined_call_operand.hbm [shape: f32[2,32,32], index: 7, kind: output, shape index: {1}]
  %8 = xla_tuple %s6, %s7
  %s9 = sld [smem:[#allocation0]]
  $region65: #{transformer_block_fc.7} parent=0
    _
  %s11 = ssub.s32 1, %s9
  %s12 = scalar_select 0, %s11, %s9
  $region1: #{transformer_block_fc.7} parent=0
    #allocation2 [shape = 'u8[786432]{0}', space=vmem, size = 0xc0000, scoped, tag = 'output window, operand 0']
    #allocation3 [shape = 's32[2]{0}', space=sflag, size = 0x8, scoped, tag = 'scoped memory for transformer_block_fc.7']
    #allocation4 [shape = 'u8[32768]{0}', space=vmem, size = 0x8000, scoped, tag = 'output window, operand 1']
    #allocation5 [shape = 's32[2]{0}', space=sflag, size = 0x8, scoped, tag = 'scoped memory for transformer_block_fc.7']
    %13 = vsyncpa [#allocation3], 0
    %s14 = scalar_lea.sflag [#allocation3], 1
    %15 = vsyncpa %s14, 0
    %16 = vsyncpa [#allocation5], 0
    %s17 = scalar_lea.sflag [#allocation5], 1
    %18 = vsyncpa %s17, 0
    loop: start=0, step=1, limit=4
    $region2: #{transformer_block_fc.7} parent=1 // loop_pre_header
      _
    $region3: #{transformer_block_fc.7} parent=1 // loop_header
      %s20 = sphi 0, %s24
      %p21 = scmp.ge.s32.totalorder %s20, 4
      %s27 = sphi 0, %s39
      %s28 = sphi 0, %s35
      %s29 = sphi 0, %s27
      %s30 = sphi 0, %s28
      %s31 = sphi 0, %s29
      %s32 = sphi 0, %s30
      %s44 = sphi 0, %s46
      %s47 = sphi 0, %s44
      %s48 = sphi 0, %s47
      %s64 = sphi 0, %s48
      %s72 = sphi 0, %s74
      %s75 = sphi 0, %s72
      %s76 = sphi 0, %s75
      %s92 = sphi 0, %s76
      %s100 = sphi 0, %s102
      %s103 = sphi 0, %s100
      %s104 = sphi 0, %s103
      %s120 = sphi 0, %s104
      %s128 = sphi 0, %s130
      %s131 = sphi 0, %s128
      %s132 = sphi 0, %s131
      %s148 = sphi 0, %s132
      %s152 = sphi 0, %s152
      %s154 = sphi 0, %s152
      %s155 = sphi 0, %s154
      %s169 = sphi 0, %s155
      %s173 = sphi 0, %s173
      %s175 = sphi 0, %s173
      %s176 = sphi 0, %s175
      %s190 = sphi 0, %s176
      %s198 = sphi 0, %s200
      %s201 = sphi 0, %s198
      %s202 = sphi 0, %s201
      %s218 = sphi 0, %s202
      %s226 = sphi 0, %s228
      %s229 = sphi 0, %s226
      %s230 = sphi 0, %s229
      %s246 = sphi 0, %s230
    $region4: #{transformer_block_fc.7} parent=1 // loop_header_branch
      %23 = sbr.rel (%p21) target = $region8
    $region5: #{transformer_block_fc.7} parent=1 // loop_body
      %s25 = ssub.s32 %s20, 1
      %s26 = ssub.s32 %s20, 2
      %s33 = sadd.s32 1, %s28
      %p34 = scmp.ge.s32.totalorder %s33, 1
      %s35 = scalar_select %p34, 0, %s33
      %s36 = sadd.s32 1, %s27
      %s37 = scalar_select %p34, %s36, %s27
      %p38 = scmp.ge.s32.totalorder %s37, 2
      %s39 = scalar_select %p38, 0, %s37
      %s40 = ssub.s32 %s27, %s39
      %s41 = ssub.s32 %s28, %s35
      %s42 = sor.u32 %s40, %s41
      %p43 = scmp.eq.s32.totalorder %s42, 0
      %s45 = sadd.s32 %s44, 1
      %s46 = scalar_select %p43, %s44, %s45
      %p49 = pneg %p43
      %p50 = scmp.eq.s32.totalorder %s20, 1
      %p51 = por %p49, %p50
      %p52 = scmp.ne.s32.totalorder %s44, %s47
      %p53 = scmp.eq.s32.totalorder %s20, 0
      %p54 = por %p52, %p53
      %p55 = scmp.ne.s32.totalorder %s44, %s47
      %p56 = scmp.eq.s32.totalorder %s25, 1
      %p57 = por %p55, %p56
      %p58 = scmp.ne.s32.totalorder %s47, %s48
      %p59 = scmp.eq.s32.totalorder %s25, 0
      %p60 = por %p58, %p59
      %p61 = scmp.ne.s32.totalorder %s47, %s48
      %p62 = scmp.eq.s32.totalorder %s26, 1
      %p63 = por %p61, %p62
      %p65 = scmp.ne.s32.totalorder %s48, %s64
      %p66 = scmp.eq.s32.totalorder %s26, 0
      %p67 = por %p65, %p66
      %s68 = ssub.s32 %s27, %s39
      %s69 = ssub.s32 %s28, %s35
      %s70 = sor.u32 %s68, %s69
      %p71 = scmp.eq.s32.totalorder %s70, 0
      %s73 = sadd.s32 %s72, 1
      %s74 = scalar_select %p71, %s72, %s73
      %p77 = pneg %p71
      %p78 = scmp.eq.s32.totalorder %s20, 1
      %p79 = por %p77, %p78
      %p80 = scmp.ne.s32.totalorder %s72, %s75
      %p81 = scmp.eq.s32.totalorder %s20, 0
      %p82 = por %p80, %p81
      %p83 = scmp.ne.s32.totalorder %s72, %s75
      %p84 = scmp.eq.s32.totalorder %s25, 1
      %p85 = por %p83, %p84
      %p86 = scmp.ne.s32.totalorder %s75, %s76
      %p87 = scmp.eq.s32.totalorder %s25, 0
      %p88 = por %p86, %p87
      %p89 = scmp.ne.s32.totalorder %s75, %s76
      %p90 = scmp.eq.s32.totalorder %s26, 1
      %p91 = por %p89, %p90
      %p93 = scmp.ne.s32.totalorder %s76, %s92
      %p94 = scmp.eq.s32.totalorder %s26, 0
      %p95 = por %p93, %p94
      %s96 = ssub.s32 %s27, %s39
      %s97 = ssub.s32 %s28, %s35
      %s98 = sor.u32 %s96, %s97
      %p99 = scmp.eq.s32.totalorder %s98, 0
      %s101 = sadd.s32 %s100, 1
      %s102 = scalar_select %p99, %s100, %s101
      %p105 = pneg %p99
      %p106 = scmp.eq.s32.totalorder %s20, 1
      %p107 = por %p105, %p106
      %p108 = scmp.ne.s32.totalorder %s100, %s103
      %p109 = scmp.eq.s32.totalorder %s20, 0
      %p110 = por %p108, %p109
      %p111 = scmp.ne.s32.totalorder %s100, %s103
      %p112 = scmp.eq.s32.totalorder %s25, 1
      %p113 = por %p111, %p112
      %p114 = scmp.ne.s32.totalorder %s103, %s104
      %p115 = scmp.eq.s32.totalorder %s25, 0
      %p116 = por %p114, %p115
      %p117 = scmp.ne.s32.totalorder %s103, %s104
      %p118 = scmp.eq.s32.totalorder %s26, 1
      %p119 = por %p117, %p118
      %p121 = scmp.ne.s32.totalorder %s104, %s120
      %p122 = scmp.eq.s32.totalorder %s26, 0
      %p123 = por %p121, %p122
      %s124 = ssub.s32 %s27, %s39
      %s125 = ssub.s32 %s28, %s35
      %s126 = sor.u32 %s124, %s125
      %p127 = scmp.eq.s32.totalorder %s126, 0
      %s129 = sadd.s32 %s128, 1
      %s130 = scalar_select %p127, %s128, %s129
      %p133 = pneg %p127
      %p134 = scmp.eq.s32.totalorder %s20, 1
      %p135 = por %p133, %p134
      %p136 = scmp.ne.s32.totalorder %s128, %s131
      %p137 = scmp.eq.s32.totalorder %s20, 0
      %p138 = por %p136, %p137
      %p139 = scmp.ne.s32.totalorder %s128, %s131
      %p140 = scmp.eq.s32.totalorder %s25, 1
      %p141 = por %p139, %p140
      %p142 = scmp.ne.s32.totalorder %s131, %s132
      %p143 = scmp.eq.s32.totalorder %s25, 0
      %p144 = por %p142, %p143
      %p145 = scmp.ne.s32.totalorder %s131, %s132
      %p146 = scmp.eq.s32.totalorder %s26, 1
      %p147 = por %p145, %p146
      %p149 = scmp.ne.s32.totalorder %s132, %s148
      %p150 = scmp.eq.s32.totalorder %s26, 0
      %p151 = por %p149, %p150
      %s153 = sadd.s32 %s152, 1
      %p156 = scmp.eq.s32.totalorder %s20, 1
      %p157 = scmp.ne.s32.totalorder %s152, %s154
      %p158 = scmp.eq.s32.totalorder %s20, 0
      %p159 = por %p157, %p158
      %p160 = scmp.ne.s32.totalorder %s152, %s154
      %p161 = scmp.eq.s32.totalorder %s25, 1
      %p162 = por %p160, %p161
      %p163 = scmp.ne.s32.totalorder %s154, %s155
      %p164 = scmp.eq.s32.totalorder %s25, 0
      %p165 = por %p163, %p164
      %p166 = scmp.ne.s32.totalorder %s154, %s155
      %p167 = scmp.eq.s32.totalorder %s26, 1
      %p168 = por %p166, %p167
      %p170 = scmp.ne.s32.totalorder %s155, %s169
      %p171 = scmp.eq.s32.totalorder %s26, 0
      %p172 = por %p170, %p171
      %s174 = sadd.s32 %s173, 1
      %p177 = scmp.eq.s32.totalorder %s20, 1
      %p178 = scmp.ne.s32.totalorder %s173, %s175
      %p179 = scmp.eq.s32.totalorder %s20, 0
      %p180 = por %p178, %p179
      %p181 = scmp.ne.s32.totalorder %s173, %s175
      %p182 = scmp.eq.s32.totalorder %s25, 1
      %p183 = por %p181, %p182
      %p184 = scmp.ne.s32.totalorder %s175, %s176
      %p185 = scmp.eq.s32.totalorder %s25, 0
      %p186 = por %p184, %p185
      %p187 = scmp.ne.s32.totalorder %s175, %s176
      %p188 = scmp.eq.s32.totalorder %s26, 1
      %p189 = por %p187, %p188
      %p191 = scmp.ne.s32.totalorder %s176, %s190
      %p192 = scmp.eq.s32.totalorder %s26, 0
      %p193 = por %p191, %p192
      %s194 = ssub.s32 %s27, %s39
      %s195 = ssub.s32 %s28, %s35
      %s196 = sor.u32 %s194, %s195
      %p197 = scmp.eq.s32.totalorder %s196, 0
      %s199 = sadd.s32 %s198, 1
      %s200 = scalar_select %p197, %s198, %s199
      %p203 = pneg %p197
      %p204 = scmp.eq.s32.totalorder %s20, 1
      %p205 = por %p203, %p204
      %p206 = scmp.ne.s32.totalorder %s198, %s201
      %p207 = scmp.eq.s32.totalorder %s20, 0
      %p208 = por %p206, %p207
      %p209 = scmp.ne.s32.totalorder %s198, %s201
      %p210 = scmp.eq.s32.totalorder %s25, 1
      %p211 = por %p209, %p210
      %p212 = scmp.ne.s32.totalorder %s201, %s202
      %p213 = scmp.eq.s32.totalorder %s25, 0
      %p214 = por %p212, %p213
      %p215 = scmp.ne.s32.totalorder %s201, %s202
      %p216 = scmp.eq.s32.totalorder %s26, 1
      %p217 = por %p215, %p216
      %p219 = scmp.ne.s32.totalorder %s202, %s218
      %p220 = scmp.eq.s32.totalorder %s26, 0
      %p221 = por %p219, %p220
      %s222 = ssub.s32 %s27, %s39
      %s223 = ssub.s32 %s28, %s35
      %s224 = sor.u32 %s222, %s223
      %p225 = scmp.eq.s32.totalorder %s224, 0
      %s227 = sadd.s32 %s226, 1
      %s228 = scalar_select %p225, %s226, %s227
      %p231 = pneg %p225
      %p232 = scmp.eq.s32.totalorder %s20, 1
      %p233 = por %p231, %p232
      %p234 = scmp.ne.s32.totalorder %s226, %s229
      %p235 = scmp.eq.s32.totalorder %s20, 0
      %p236 = por %p234, %p235
      %p237 = scmp.ne.s32.totalorder %s226, %s229
      %p238 = scmp.eq.s32.totalorder %s25, 1
      %p239 = por %p237, %p238
      %p240 = scmp.ne.s32.totalorder %s229, %s230
      %p241 = scmp.eq.s32.totalorder %s25, 0
      %p242 = por %p240, %p241
      %p243 = scmp.ne.s32.totalorder %s229, %s230
      %p244 = scmp.eq.s32.totalorder %s26, 1
      %p245 = por %p243, %p244
      %p247 = scmp.ne.s32.totalorder %s230, %s246
      %p248 = scmp.eq.s32.totalorder %s26, 0
      %p249 = por %p247, %p248
      %p250 = scmp.le.s32.totalorder 1, %s20
      %p251 = scmp.lt.s32.totalorder %s20, 3
      %p252 = pnand %p250, %p251
      %p253 = pneg %p252
      // Predicated region
      $region9: #{transformer_block_fc.7} parent=5 // pred_check
        _
      $region10: #{transformer_block_fc.7} parent=5 // pred_check_branch
        %255 = sbr.rel (%p252) target = $region12
      $region11: #{transformer_block_fc.7} parent=5 // pred_region
        %s256 = ssub.s32 %s20, 1
        // Predicated region
        $region13: #{transformer_block_fc.7} parent=11 // pred_check
          %p257 = pneg %p165
        $region14: #{transformer_block_fc.7} parent=11 // pred_check_branch
          %259 = sbr.rel (%p257) target = $region16
        $region15: #{transformer_block_fc.7} parent=11 // pred_region
          _
        $region16: #{transformer_block_fc.7} parent=11 // pred_fallthru
          _
        // Predicated region
        $region17: #{transformer_block_fc.7} parent=11 // pred_check
          %p260 = pneg %p186
        $region18: #{transformer_block_fc.7} parent=11 // pred_check_branch
          %262 = sbr.rel (%p260) target = $region20
        $region19: #{transformer_block_fc.7} parent=11 // pred_region
          _
        $region20: #{transformer_block_fc.7} parent=11 // pred_fallthru
          _
      $region12: #{transformer_block_fc.7} parent=5 // pred_fallthru
        _
      %p263 = scmp.lt.s32.totalorder %s20, 2
      // Predicated region
      $region21: #{transformer_block_fc.7} parent=5 // pred_check
        %p264 = pneg %p263
      $region22: #{transformer_block_fc.7} parent=5 // pred_check_branch
        %266 = sbr.rel (%p264) target = $region24
      $region23: #{transformer_block_fc.7} parent=5 // pred_region
        // Predicated region
        $region25: #{transformer_block_fc.7} parent=23 // pred_check
          %p267 = pneg %p54
        $region26: #{transformer_block_fc.7} parent=23 // pred_check_branch
          %269 = sbr.rel (%p267) target = $region28
        $region27: #{transformer_block_fc.7} parent=23 // pred_region
          %s270 = smul.u32 32, %s28
          %p271 = scmp.lt.s32.totalorder %s27, 1
          %s272 = scalar_select %p271, %s27, 1
          %p273 = scmp.lt.s32.totalorder %s270, 31
          %s274 = scalar_select %p273, %s270, 31
          %s275 = smul.addr %s274, 3
          %s276 = smul.addr %s272, 96
          %s277 = sadd.s32 %s275, %s276
          %s278 = smul.addr %s277, 8
          %s279 = scalar_lea.vmem %s0, %s278
          %s280 = smul.u32 32, %s28
        $region28: #{transformer_block_fc.7} parent=23 // pred_fallthru
          _
        // Predicated region
        $region29: #{transformer_block_fc.7} parent=23 // pred_check
          %p281 = pneg %p82
        $region30: #{transformer_block_fc.7} parent=23 // pred_check_branch
          %283 = sbr.rel (%p281) target = $region32
        $region31: #{transformer_block_fc.7} parent=23 // pred_region
          %s284 = smul.u32 32, %s28
          %p285 = scmp.lt.s32.totalorder %s27, 1
          %s286 = scalar_select %p285, %s27, 1
          %p287 = scmp.lt.s32.totalorder %s284, 31
          %s288 = scalar_select %p287, %s284, 31
          %s289 = smul.addr %s288, 3
          %s290 = smul.addr %s286, 96
          %s291 = sadd.s32 %s289, %s290
          %s292 = smul.addr %s291, 8
          %s293 = scalar_lea.vmem %s1, %s292
          %s294 = smul.u32 32, %s28
        $region32: #{transformer_block_fc.7} parent=23 // pred_fallthru
          _
        // Predicated region
        $region33: #{transformer_block_fc.7} parent=23 // pred_check
          %p295 = pneg %p110
        $region34: #{transformer_block_fc.7} parent=23 // pred_check_branch
          %297 = sbr.rel (%p295) target = $region36
        $region35: #{transformer_block_fc.7} parent=23 // pred_region
          %s298 = smul.u32 32, %s28
          %p299 = scmp.lt.s32.totalorder %s27, 1
          %s300 = scalar_select %p299, %s27, 1
          %p301 = scmp.lt.s32.totalorder %s298, 31
          %s302 = scalar_select %p301, %s298, 31
          %s303 = smul.addr %s302, 3
          %s304 = smul.addr %s300, 96
          %s305 = sadd.s32 %s303, %s304
          %s306 = smul.addr %s305, 8
          %s307 = scalar_lea.vmem %s2, %s306
          %s308 = smul.u32 32, %s28
        $region36: #{transformer_block_fc.7} parent=23 // pred_fallthru
          _
        // Predicated region
        $region37: #{transformer_block_fc.7} parent=23 // pred_check
          %p309 = pneg %p138
        $region38: #{transformer_block_fc.7} parent=23 // pred_check_branch
          %311 = sbr.rel (%p309) target = $region40
        $region39: #{transformer_block_fc.7} parent=23 // pred_region
          %s312 = smul.u32 4, %s28
          %p313 = scmp.lt.s32.totalorder %s27, 1
          %s314 = scalar_select %p313, %s27, 1
          %p315 = scmp.lt.s32.totalorder %s312, 3
          %s316 = scalar_select %p315, %s312, 3
          %s317 = smul.addr %s314, 4
          %s318 = sadd.s32 %s316, %s317
          %s319 = smul.addr %s318, 8
          %s320 = scalar_lea.vmem %s3, %s319
          %s321 = smul.u32 4, %s28
        $region40: #{transformer_block_fc.7} parent=23 // pred_fallthru
          _
      $region24: #{transformer_block_fc.7} parent=5 // pred_fallthru
        _
      %p322 = scmp.le.s32.totalorder 1, %s20
      %p323 = scmp.lt.s32.totalorder %s20, 3
      %p324 = pnand %p322, %p323
      %p325 = pneg %p324
      // Predicated region
      $region41: #{transformer_block_fc.7} parent=5 // pred_check
        _
      $region42: #{transformer_block_fc.7} parent=5 // pred_check_branch
        %327 = sbr.rel (%p324) target = $region44
      $region43: #{transformer_block_fc.7} parent=5 // pred_region
        %s328 = ssub.s32 %s20, 1
        %s329 = smul.u32 32, %s30
        %p330 = scmp.lt.s32.totalorder %s29, 1
        %s331 = scalar_select %p330, %s29, 1
        %p332 = scmp.lt.s32.totalorder %s329, 31
        %s333 = scalar_select %p332, %s329, 31
        %s334 = smul.addr %s333, 3
        %s335 = smul.addr %s331, 96
        %s336 = sadd.s32 %s334, %s335
        %s337 = smul.addr %s336, 8
        %s338 = scalar_lea.vmem %s0, %s337
        %p339 = pneg %p60
        %p340 = pneg %p57
        %s341 = smul.u32 32, %s30
        %p342 = scmp.lt.s32.totalorder %s29, 1
        %s343 = scalar_select %p342, %s29, 1
        %p344 = scmp.lt.s32.totalorder %s341, 31
        %s345 = scalar_select %p344, %s341, 31
        %s346 = smul.addr %s345, 3
        %s347 = smul.addr %s343, 96
        %s348 = sadd.s32 %s346, %s347
        %s349 = smul.addr %s348, 8
        %s350 = scalar_lea.vmem %s1, %s349
        %p351 = pneg %p88
        %p352 = pneg %p85
        %s353 = smul.u32 32, %s30
        %p354 = scmp.lt.s32.totalorder %s29, 1
        %s355 = scalar_select %p354, %s29, 1
        %p356 = scmp.lt.s32.totalorder %s353, 31
        %s357 = scalar_select %p356, %s353, 31
        %s358 = smul.addr %s357, 3
        %s359 = smul.addr %s355, 96
        %s360 = sadd.s32 %s358, %s359
        %s361 = smul.addr %s360, 8
        %s362 = scalar_lea.vmem %s2, %s361
        %p363 = pneg %p116
        %p364 = pneg %p113
        %s365 = smul.u32 4, %s30
        %p366 = scmp.lt.s32.totalorder %s29, 1
        %s367 = scalar_select %p366, %s29, 1
        %p368 = scmp.lt.s32.totalorder %s365, 3
        %s369 = scalar_select %p368, %s365, 3
        %s370 = smul.addr %s367, 4
        %s371 = sadd.s32 %s369, %s370
        %s372 = smul.addr %s371, 8
        %s373 = scalar_lea.vmem %s3, %s372
        %p374 = pneg %p144
        %p375 = pneg %p141
        %p376 = pneg %p165
        %p377 = pneg %p162
        %p378 = pneg %p186
        %p379 = pneg %p183
        %p380 = pneg %p214
        %p381 = pneg %p211
        %s382 = sand.u32 %s201, 1
        %s383 = scalar_lea.sflag [#allocation3], %s382
        %s384 = sand.u32 %s201, 1
        %s385 = smul.addr %s384, 768
        %s386 = scalar_lea.vmem [#allocation2], %s385
        %p387 = pneg %p242
        %p388 = pneg %p239
        %s389 = sand.u32 %s229, 1
        %s390 = scalar_lea.sflag [#allocation5], %s389
        %s391 = sand.u32 %s229, 1
        %s392 = smul.addr %s391, 32
        %s393 = scalar_lea.vmem [#allocation4], %s392
        %s394 = smul.u32 32, %s30
        %p395 = scmp.lt.s32.totalorder %s29, 1
        %s396 = scalar_select %p395, %s29, 1
        %p397 = scmp.lt.s32.totalorder %s394, 31
        %s398 = scalar_select %p397, %s394, 31
        %s399 = smul.addr %s398, 3
        %s400 = smul.addr %s396, 96
        %s401 = sadd.s32 %s399, %s400
        %s402 = smul.addr %s401, 8
        %s403 = scalar_lea.vmem %s0, %s402
        %s404 = smul.u32 32, %s30
        %s405 = smul.u32 32, %s30
        %p406 = scmp.lt.s32.totalorder %s29, 1
        %s407 = scalar_select %p406, %s29, 1
        %p408 = scmp.lt.s32.totalorder %s405, 31
        %s409 = scalar_select %p408, %s405, 31
        %s410 = smul.addr %s409, 3
        %s411 = smul.addr %s407, 96
        %s412 = sadd.s32 %s410, %s411
        %s413 = smul.addr %s412, 8
        %s414 = scalar_lea.vmem %s1, %s413
        %s415 = smul.u32 32, %s30
        %s416 = smul.u32 32, %s30
        %p417 = scmp.lt.s32.totalorder %s29, 1
        %s418 = scalar_select %p417, %s29, 1
        %p419 = scmp.lt.s32.totalorder %s416, 31
        %s420 = scalar_select %p419, %s416, 31
        %s421 = smul.addr %s420, 3
        %s422 = smul.addr %s418, 96
        %s423 = sadd.s32 %s421, %s422
        %s424 = smul.addr %s423, 8
        %s425 = scalar_lea.vmem %s2, %s424
        %s426 = smul.u32 32, %s30
        %s427 = smul.u32 4, %s30
        %p428 = scmp.lt.s32.totalorder %s29, 1
        %s429 = scalar_select %p428, %s29, 1
        %p430 = scmp.lt.s32.totalorder %s427, 3
        %s431 = scalar_select %p430, %s427, 3
        %s432 = smul.addr %s429, 4
        %s433 = sadd.s32 %s431, %s432
        %s434 = smul.addr %s433, 8
        %s435 = scalar_lea.vmem %s3, %s434
        %s436 = smul.u32 4, %s30
        %s437 = smul.u32 32, %s30
        %s438 = smul.u32 4, %s30
        %v440 = vld [vmem:[%s403] sm:$0xff]
        %v441 = vld [vmem:[%s403 + $0x8] sm:$0xff]
        %v442 = vld [vmem:[%s403 + $0x10] sm:$0xff]
        %v443 = vld [vmem:[%s403 + $0x18] sm:$0xff]
        %v444 = vld [vmem:[%s403 + $0x20] sm:$0xff]
        %v445 = vld [vmem:[%s403 + $0x28] sm:$0xff]
        %v446 = vld [vmem:[%s403 + $0x30] sm:$0xff]
        %v447 = vld [vmem:[%s403 + $0x38] sm:$0xff]
        %v448 = vld [vmem:[%s403 + $0x40] sm:$0xff]
        %v449 = vld [vmem:[%s403 + $0x48] sm:$0xff]
        %v450 = vld [vmem:[%s403 + $0x50] sm:$0xff]
        %v451 = vld [vmem:[%s403 + $0x58] sm:$0xff]
        %v452 = vld [vmem:[%s403 + $0x60] sm:$0xff]
        %v453 = vld [vmem:[%s403 + $0x68] sm:$0xff]
        %v454 = vld [vmem:[%s403 + $0x70] sm:$0xff]
        %v455 = vld [vmem:[%s403 + $0x78] sm:$0xff]
        %v456 = vld [vmem:[%s403 + $0x80] sm:$0xff]
        %v457 = vld [vmem:[%s403 + $0x88] sm:$0xff]
        %v458 = vld [vmem:[%s403 + $0x90] sm:$0xff]
        %v459 = vld [vmem:[%s403 + $0x98] sm:$0xff]
        %v460 = vld [vmem:[%s403 + $0xa0] sm:$0xff]
        %v461 = vld [vmem:[%s403 + $0xa8] sm:$0xff]
        %v462 = vld [vmem:[%s403 + $0xb0] sm:$0xff]
        %v463 = vld [vmem:[%s403 + $0xb8] sm:$0xff]
        %v464 = vld [vmem:[%s403 + $0xc0] sm:$0xff]
        %v465 = vld [vmem:[%s403 + $0xc8] sm:$0xff]
        %v466 = vld [vmem:[%s403 + $0xd0] sm:$0xff]
        %v467 = vld [vmem:[%s403 + $0xd8] sm:$0xff]
        %v468 = vld [vmem:[%s403 + $0xe0] sm:$0xff]
        %v469 = vld [vmem:[%s403 + $0xe8] sm:$0xff]
        %v470 = vld [vmem:[%s403 + $0xf0] sm:$0xff]
        %v471 = vld [vmem:[%s403 + $0xf8] sm:$0xff]
        %v472 = vld [vmem:[%s403 + $0x100] sm:$0xff]
        %v473 = vld [vmem:[%s403 + $0x108] sm:$0xff]
        %v474 = vld [vmem:[%s403 + $0x110] sm:$0xff]
        %v475 = vld [vmem:[%s403 + $0x118] sm:$0xff]
        %v476 = vld [vmem:[%s403 + $0x120] sm:$0xff]
        %v477 = vld [vmem:[%s403 + $0x128] sm:$0xff]
        %v478 = vld [vmem:[%s403 + $0x130] sm:$0xff]
        %v479 = vld [vmem:[%s403 + $0x138] sm:$0xff]
        %v480 = vld [vmem:[%s403 + $0x140] sm:$0xff]
        %v481 = vld [vmem:[%s403 + $0x148] sm:$0xff]
        %v482 = vld [vmem:[%s403 + $0x150] sm:$0xff]
        %v483 = vld [vmem:[%s403 + $0x158] sm:$0xff]
        %v484 = vld [vmem:[%s403 + $0x160] sm:$0xff]
        %v485 = vld [vmem:[%s403 + $0x168] sm:$0xff]
        %v486 = vld [vmem:[%s403 + $0x170] sm:$0xff]
        %v487 = vld [vmem:[%s403 + $0x178] sm:$0xff]
        %v488 = vld [vmem:[%s403 + $0x180] sm:$0xff]
        %v489 = vld [vmem:[%s403 + $0x188] sm:$0xff]
        %v490 = vld [vmem:[%s403 + $0x190] sm:$0xff]
        %v491 = vld [vmem:[%s403 + $0x198] sm:$0xff]
        %v492 = vld [vmem:[%s403 + $0x1a0] sm:$0xff]
        %v493 = vld [vmem:[%s403 + $0x1a8] sm:$0xff]
        %v494 = vld [vmem:[%s403 + $0x1b0] sm:$0xff]
        %v495 = vld [vmem:[%s403 + $0x1b8] sm:$0xff]
        %v496 = vld [vmem:[%s403 + $0x1c0] sm:$0xff]
        %v497 = vld [vmem:[%s403 + $0x1c8] sm:$0xff]
        %v498 = vld [vmem:[%s403 + $0x1d0] sm:$0xff]
        %v499 = vld [vmem:[%s403 + $0x1d8] sm:$0xff]
        %v500 = vld [vmem:[%s403 + $0x1e0] sm:$0xff]
        %v501 = vld [vmem:[%s403 + $0x1e8] sm:$0xff]
        %v502 = vld [vmem:[%s403 + $0x1f0] sm:$0xff]
        %v503 = vld [vmem:[%s403 + $0x1f8] sm:$0xff]
        %v504 = vld [vmem:[%s403 + $0x200] sm:$0xff]
        %v505 = vld [vmem:[%s403 + $0x208] sm:$0xff]
        %v506 = vld [vmem:[%s403 + $0x210] sm:$0xff]
        %v507 = vld [vmem:[%s403 + $0x218] sm:$0xff]
        %v508 = vld [vmem:[%s403 + $0x220] sm:$0xff]
        %v509 = vld [vmem:[%s403 + $0x228] sm:$0xff]
        %v510 = vld [vmem:[%s403 + $0x230] sm:$0xff]
        %v511 = vld [vmem:[%s403 + $0x238] sm:$0xff]
        %v512 = vld [vmem:[%s403 + $0x240] sm:$0xff]
        %v513 = vld [vmem:[%s403 + $0x248] sm:$0xff]
        %v514 = vld [vmem:[%s403 + $0x250] sm:$0xff]
        %v515 = vld [vmem:[%s403 + $0x258] sm:$0xff]
        %v516 = vld [vmem:[%s403 + $0x260] sm:$0xff]
        %v517 = vld [vmem:[%s403 + $0x268] sm:$0xff]
        %v518 = vld [vmem:[%s403 + $0x270] sm:$0xff]
        %v519 = vld [vmem:[%s403 + $0x278] sm:$0xff]
        %v520 = vld [vmem:[%s403 + $0x280] sm:$0xff]
        %v521 = vld [vmem:[%s403 + $0x288] sm:$0xff]
        %v522 = vld [vmem:[%s403 + $0x290] sm:$0xff]
        %v523 = vld [vmem:[%s403 + $0x298] sm:$0xff]
        %v524 = vld [vmem:[%s403 + $0x2a0] sm:$0xff]
        %v525 = vld [vmem:[%s403 + $0x2a8] sm:$0xff]
        %v526 = vld [vmem:[%s403 + $0x2b0] sm:$0xff]
        %v527 = vld [vmem:[%s403 + $0x2b8] sm:$0xff]
        %v528 = vld [vmem:[%s403 + $0x2c0] sm:$0xff]
        %v529 = vld [vmem:[%s403 + $0x2c8] sm:$0xff]
        %v530 = vld [vmem:[%s403 + $0x2d0] sm:$0xff]
        %v531 = vld [vmem:[%s403 + $0x2d8] sm:$0xff]
        %v532 = vld [vmem:[%s403 + $0x2e0] sm:$0xff]
        %v533 = vld [vmem:[%s403 + $0x2e8] sm:$0xff]
        %v534 = vld [vmem:[%s403 + $0x2f0] sm:$0xff]
        %v535 = vld [vmem:[%s403 + $0x2f8] sm:$0xff]
        %v536 = vmul.f32 %v440, 0.17677669
        %v537 = vmul.f32 %v441, 0.17677669
        %v538 = vmul.f32 %v442, 0.17677669
        %v539 = vmul.f32 %v443, 0.17677669
        %v540 = vmul.f32 %v444, 0.17677669
        %v541 = vmul.f32 %v445, 0.17677669
        %v542 = vmul.f32 %v446, 0.17677669
        %v543 = vmul.f32 %v447, 0.17677669
        %v544 = vmul.f32 %v448, 0.17677669
        %v545 = vmul.f32 %v449, 0.17677669
        %v546 = vmul.f32 %v450, 0.17677669
        %v547 = vmul.f32 %v451, 0.17677669
        %v548 = vmul.f32 %v452, 0.17677669
        %v549 = vmul.f32 %v453, 0.17677669
        %v550 = vmul.f32 %v454, 0.17677669
        %v551 = vmul.f32 %v455, 0.17677669
        %v552 = vmul.f32 %v456, 0.17677669
        %v553 = vmul.f32 %v457, 0.17677669
        %v554 = vmul.f32 %v458, 0.17677669
        %v555 = vmul.f32 %v459, 0.17677669
        %v556 = vmul.f32 %v460, 0.17677669
        %v557 = vmul.f32 %v461, 0.17677669
        %v558 = vmul.f32 %v462, 0.17677669
        %v559 = vmul.f32 %v463, 0.17677669
        %v560 = vmul.f32 %v464, 0.17677669
        %v561 = vmul.f32 %v465, 0.17677669
        %v562 = vmul.f32 %v466, 0.17677669
        %v563 = vmul.f32 %v467, 0.17677669
        %v564 = vmul.f32 %v468, 0.17677669
        %v565 = vmul.f32 %v469, 0.17677669
        %v566 = vmul.f32 %v470, 0.17677669
        %v567 = vmul.f32 %v471, 0.17677669
        %v568 = vmul.f32 %v472, 0.17677669
        %v569 = vmul.f32 %v473, 0.17677669
        %v570 = vmul.f32 %v474, 0.17677669
        %v571 = vmul.f32 %v475, 0.17677669
        %v572 = vmul.f32 %v476, 0.17677669
        %v573 = vmul.f32 %v477, 0.17677669
        %v574 = vmul.f32 %v478, 0.17677669
        %v575 = vmul.f32 %v479, 0.17677669
        %v576 = vmul.f32 %v480, 0.17677669
        %v577 = vmul.f32 %v481, 0.17677669
        %v578 = vmul.f32 %v482, 0.17677669
        %v579 = vmul.f32 %v483, 0.17677669
        %v580 = vmul.f32 %v484, 0.17677669
        %v581 = vmul.f32 %v485, 0.17677669
        %v582 = vmul.f32 %v486, 0.17677669
        %v583 = vmul.f32 %v487, 0.17677669
        %v584 = vmul.f32 %v488, 0.17677669
        %v585 = vmul.f32 %v489, 0.17677669
        %v586 = vmul.f32 %v490, 0.17677669
        %v587 = vmul.f32 %v491, 0.17677669
        %v588 = vmul.f32 %v492, 0.17677669
        %v589 = vmul.f32 %v493, 0.17677669
        %v590 = vmul.f32 %v494, 0.17677669
        %v591 = vmul.f32 %v495, 0.17677669
        %v592 = vmul.f32 %v496, 0.17677669
        %v593 = vmul.f32 %v497, 0.17677669
        %v594 = vmul.f32 %v498, 0.17677669
        %v595 = vmul.f32 %v499, 0.17677669
        %v596 = vmul.f32 %v500, 0.17677669
        %v597 = vmul.f32 %v501, 0.17677669
        %v598 = vmul.f32 %v502, 0.17677669
        %v599 = vmul.f32 %v503, 0.17677669
        %v600 = vmul.f32 %v504, 0.17677669
        %v601 = vmul.f32 %v505, 0.17677669
        %v602 = vmul.f32 %v506, 0.17677669
        %v603 = vmul.f32 %v507, 0.17677669
        %v604 = vmul.f32 %v508, 0.17677669
        %v605 = vmul.f32 %v509, 0.17677669
        %v606 = vmul.f32 %v510, 0.17677669
        %v607 = vmul.f32 %v511, 0.17677669
        %v608 = vmul.f32 %v512, 0.17677669
        %v609 = vmul.f32 %v513, 0.17677669
        %v610 = vmul.f32 %v514, 0.17677669
        %v611 = vmul.f32 %v515, 0.17677669
        %v612 = vmul.f32 %v516, 0.17677669
        %v613 = vmul.f32 %v517, 0.17677669
        %v614 = vmul.f32 %v518, 0.17677669
        %v615 = vmul.f32 %v519, 0.17677669
        %v616 = vmul.f32 %v520, 0.17677669
        %v617 = vmul.f32 %v521, 0.17677669
        %v618 = vmul.f32 %v522, 0.17677669
        %v619 = vmul.f32 %v523, 0.17677669
        %v620 = vmul.f32 %v524, 0.17677669
        %v621 = vmul.f32 %v525, 0.17677669
        %v622 = vmul.f32 %v526, 0.17677669
        %v623 = vmul.f32 %v527, 0.17677669
        %v624 = vmul.f32 %v528, 0.17677669
        %v625 = vmul.f32 %v529, 0.17677669
        %v626 = vmul.f32 %v530, 0.17677669
        %v627 = vmul.f32 %v531, 0.17677669
        %v628 = vmul.f32 %v532, 0.17677669
        %v629 = vmul.f32 %v533, 0.17677669
        %v630 = vmul.f32 %v534, 0.17677669
        %v631 = vmul.f32 %v535, 0.17677669
        %v632 = vld [vmem:[%s414] sm:$0xff]
        %v633 = vld [vmem:[%s414 + $0x8] sm:$0xff]
        %v634 = vld [vmem:[%s414 + $0x10] sm:$0xff]
        %v635 = vld [vmem:[%s414 + $0x18] sm:$0xff]
        %v636 = vld [vmem:[%s414 + $0x20] sm:$0xff]
        %v637 = vld [vmem:[%s414 + $0x28] sm:$0xff]
        %v638 = vld [vmem:[%s414 + $0x30] sm:$0xff]
        %v639 = vld [vmem:[%s414 + $0x38] sm:$0xff]
        %v640 = vld [vmem:[%s414 + $0x40] sm:$0xff]
        %v641 = vld [vmem:[%s414 + $0x48] sm:$0xff]
        %v642 = vld [vmem:[%s414 + $0x50] sm:$0xff]
        %v643 = vld [vmem:[%s414 + $0x58] sm:$0xff]
        %v644 = vld [vmem:[%s414 + $0x60] sm:$0xff]
        %v645 = vld [vmem:[%s414 + $0x68] sm:$0xff]
        %v646 = vld [vmem:[%s414 + $0x70] sm:$0xff]
        %v647 = vld [vmem:[%s414 + $0x78] sm:$0xff]
        %v648 = vld [vmem:[%s414 + $0x80] sm:$0xff]
        %v649 = vld [vmem:[%s414 + $0x88] sm:$0xff]
        %v650 = vld [vmem:[%s414 + $0x90] sm:$0xff]
        %v651 = vld [vmem:[%s414 + $0x98] sm:$0xff]
        %v652 = vld [vmem:[%s414 + $0xa0] sm:$0xff]
        %v653 = vld [vmem:[%s414 + $0xa8] sm:$0xff]
        %v654 = vld [vmem:[%s414 + $0xb0] sm:$0xff]
        %v655 = vld [vmem:[%s414 + $0xb8] sm:$0xff]
        %v656 = vld [vmem:[%s414 + $0xc0] sm:$0xff]
        %v657 = vld [vmem:[%s414 + $0xc8] sm:$0xff]
        %v658 = vld [vmem:[%s414 + $0xd0] sm:$0xff]
        %v659 = vld [vmem:[%s414 + $0xd8] sm:$0xff]
        %v660 = vld [vmem:[%s414 + $0xe0] sm:$0xff]
        %v661 = vld [vmem:[%s414 + $0xe8] sm:$0xff]
        %v662 = vld [vmem:[%s414 + $0xf0] sm:$0xff]
        %v663 = vld [vmem:[%s414 + $0xf8] sm:$0xff]
        %v664 = vld [vmem:[%s414 + $0x100] sm:$0xff]
        %v665 = vld [vmem:[%s414 + $0x108] sm:$0xff]
        %v666 = vld [vmem:[%s414 + $0x110] sm:$0xff]
        %v667 = vld [vmem:[%s414 + $0x118] sm:$0xff]
        %v668 = vld [vmem:[%s414 + $0x120] sm:$0xff]
        %v669 = vld [vmem:[%s414 + $0x128] sm:$0xff]
        %v670 = vld [vmem:[%s414 + $0x130] sm:$0xff]
        %v671 = vld [vmem:[%s414 + $0x138] sm:$0xff]
        %v672 = vld [vmem:[%s414 + $0x140] sm:$0xff]
        %v673 = vld [vmem:[%s414 + $0x148] sm:$0xff]
        %v674 = vld [vmem:[%s414 + $0x150] sm:$0xff]
        %v675 = vld [vmem:[%s414 + $0x158] sm:$0xff]
        %v676 = vld [vmem:[%s414 + $0x160] sm:$0xff]
        %v677 = vld [vmem:[%s414 + $0x168] sm:$0xff]
        %v678 = vld [vmem:[%s414 + $0x170] sm:$0xff]
        %v679 = vld [vmem:[%s414 + $0x178] sm:$0xff]
        %v680 = vld [vmem:[%s414 + $0x180] sm:$0xff]
        %v681 = vld [vmem:[%s414 + $0x188] sm:$0xff]
        %v682 = vld [vmem:[%s414 + $0x190] sm:$0xff]
        %v683 = vld [vmem:[%s414 + $0x198] sm:$0xff]
        %v684 = vld [vmem:[%s414 + $0x1a0] sm:$0xff]
        %v685 = vld [vmem:[%s414 + $0x1a8] sm:$0xff]
        %v686 = vld [vmem:[%s414 + $0x1b0] sm:$0xff]
        %v687 = vld [vmem:[%s414 + $0x1b8] sm:$0xff]
        %v688 = vld [vmem:[%s414 + $0x1c0] sm:$0xff]
        %v689 = vld [vmem:[%s414 + $0x1c8] sm:$0xff]
        %v690 = vld [vmem:[%s414 + $0x1d0] sm:$0xff]
        %v691 = vld [vmem:[%s414 + $0x1d8] sm:$0xff]
        %v692 = vld [vmem:[%s414 + $0x1e0] sm:$0xff]
        %v693 = vld [vmem:[%s414 + $0x1e8] sm:$0xff]
        %v694 = vld [vmem:[%s414 + $0x1f0] sm:$0xff]
        %v695 = vld [vmem:[%s414 + $0x1f8] sm:$0xff]
        %v696 = vld [vmem:[%s414 + $0x200] sm:$0xff]
        %v697 = vld [vmem:[%s414 + $0x208] sm:$0xff]
        %v698 = vld [vmem:[%s414 + $0x210] sm:$0xff]
        %v699 = vld [vmem:[%s414 + $0x218] sm:$0xff]
        %v700 = vld [vmem:[%s414 + $0x220] sm:$0xff]
        %v701 = vld [vmem:[%s414 + $0x228] sm:$0xff]
        %v702 = vld [vmem:[%s414 + $0x230] sm:$0xff]
        %v703 = vld [vmem:[%s414 + $0x238] sm:$0xff]
        %v704 = vld [vmem:[%s414 + $0x240] sm:$0xff]
        %v705 = vld [vmem:[%s414 + $0x248] sm:$0xff]
        %v706 = vld [vmem:[%s414 + $0x250] sm:$0xff]
        %v707 = vld [vmem:[%s414 + $0x258] sm:$0xff]
        %v708 = vld [vmem:[%s414 + $0x260] sm:$0xff]
        %v709 = vld [vmem:[%s414 + $0x268] sm:$0xff]
        %v710 = vld [vmem:[%s414 + $0x270] sm:$0xff]
        %v711 = vld [vmem:[%s414 + $0x278] sm:$0xff]
        %v712 = vld [vmem:[%s414 + $0x280] sm:$0xff]
        %v713 = vld [vmem:[%s414 + $0x288] sm:$0xff]
        %v714 = vld [vmem:[%s414 + $0x290] sm:$0xff]
        %v715 = vld [vmem:[%s414 + $0x298] sm:$0xff]
        %v716 = vld [vmem:[%s414 + $0x2a0] sm:$0xff]
        %v717 = vld [vmem:[%s414 + $0x2a8] sm:$0xff]
        %v718 = vld [vmem:[%s414 + $0x2b0] sm:$0xff]
        %v719 = vld [vmem:[%s414 + $0x2b8] sm:$0xff]
        %v720 = vld [vmem:[%s414 + $0x2c0] sm:$0xff]
        %v721 = vld [vmem:[%s414 + $0x2c8] sm:$0xff]
        %v722 = vld [vmem:[%s414 + $0x2d0] sm:$0xff]
        %v723 = vld [vmem:[%s414 + $0x2d8] sm:$0xff]
        %v724 = vld [vmem:[%s414 + $0x2e0] sm:$0xff]
        %v725 = vld [vmem:[%s414 + $0x2e8] sm:$0xff]
        %v726 = vld [vmem:[%s414 + $0x2f0] sm:$0xff]
        %v727 = vld [vmem:[%s414 + $0x2f8] sm:$0xff]
        %v728 = vld [vmem:[%s425] sm:$0xff]
        %v729 = vld [vmem:[%s425 + $0x8] sm:$0xff]
        %v730 = vld [vmem:[%s425 + $0x10] sm:$0xff]
        %v731 = vld [vmem:[%s425 + $0x18] sm:$0xff]
        %v732 = vld [vmem:[%s425 + $0x20] sm:$0xff]
        %v733 = vld [vmem:[%s425 + $0x28] sm:$0xff]
        %v734 = vld [vmem:[%s425 + $0x30] sm:$0xff]
        %v735 = vld [vmem:[%s425 + $0x38] sm:$0xff]
        %v736 = vld [vmem:[%s425 + $0x40] sm:$0xff]
        %v737 = vld [vmem:[%s425 + $0x48] sm:$0xff]
        %v738 = vld [vmem:[%s425 + $0x50] sm:$0xff]
        %v739 = vld [vmem:[%s425 + $0x58] sm:$0xff]
        %v740 = vld [vmem:[%s425 + $0x60] sm:$0xff]
        %v741 = vld [vmem:[%s425 + $0x68] sm:$0xff]
        %v742 = vld [vmem:[%s425 + $0x70] sm:$0xff]
        %v743 = vld [vmem:[%s425 + $0x78] sm:$0xff]
        %v744 = vld [vmem:[%s425 + $0x80] sm:$0xff]
        %v745 = vld [vmem:[%s425 + $0x88] sm:$0xff]
        %v746 = vld [vmem:[%s425 + $0x90] sm:$0xff]
        %v747 = vld [vmem:[%s425 + $0x98] sm:$0xff]
        %v748 = vld [vmem:[%s425 + $0xa0] sm:$0xff]
        %v749 = vld [vmem:[%s425 + $0xa8] sm:$0xff]
        %v750 = vld [vmem:[%s425 + $0xb0] sm:$0xff]
        %v751 = vld [vmem:[%s425 + $0xb8] sm:$0xff]
        %v752 = vld [vmem:[%s425 + $0xc0] sm:$0xff]
        %v753 = vld [vmem:[%s425 + $0xc8] sm:$0xff]
        %v754 = vld [vmem:[%s425 + $0xd0] sm:$0xff]
        %v755 = vld [vmem:[%s425 + $0xd8] sm:$0xff]
        %v756 = vld [vmem:[%s425 + $0xe0] sm:$0xff]
        %v757 = vld [vmem:[%s425 + $0xe8] sm:$0xff]
        %v758 = vld [vmem:[%s425 + $0xf0] sm:$0xff]
        %v759 = vld [vmem:[%s425 + $0xf8] sm:$0xff]
        %v760 = vld [vmem:[%s425 + $0x100] sm:$0xff]
        %v761 = vld [vmem:[%s425 + $0x108] sm:$0xff]
        %v762 = vld [vmem:[%s425 + $0x110] sm:$0xff]
        %v763 = vld [vmem:[%s425 + $0x118] sm:$0xff]
        %v764 = vld [vmem:[%s425 + $0x120] sm:$0xff]
        %v765 = vld [vmem:[%s425 + $0x128] sm:$0xff]
        %v766 = vld [vmem:[%s425 + $0x130] sm:$0xff]
        %v767 = vld [vmem:[%s425 + $0x138] sm:$0xff]
        %v768 = vld [vmem:[%s425 + $0x140] sm:$0xff]
        %v769 = vld [vmem:[%s425 + $0x148] sm:$0xff]
        %v770 = vld [vmem:[%s425 + $0x150] sm:$0xff]
        %v771 = vld [vmem:[%s425 + $0x158] sm:$0xff]
        %v772 = vld [vmem:[%s425 + $0x160] sm:$0xff]
        %v773 = vld [vmem:[%s425 + $0x168] sm:$0xff]
        %v774 = vld [vmem:[%s425 + $0x170] sm:$0xff]
        %v775 = vld [vmem:[%s425 + $0x178] sm:$0xff]
        %v776 = vld [vmem:[%s425 + $0x180] sm:$0xff]
        %v777 = vld [vmem:[%s425 + $0x188] sm:$0xff]
        %v778 = vld [vmem:[%s425 + $0x190] sm:$0xff]
        %v779 = vld [vmem:[%s425 + $0x198] sm:$0xff]
        %v780 = vld [vmem:[%s425 + $0x1a0] sm:$0xff]
        %v781 = vld [vmem:[%s425 + $0x1a8] sm:$0xff]
        %v782 = vld [vmem:[%s425 + $0x1b0] sm:$0xff]
        %v783 = vld [vmem:[%s425 + $0x1b8] sm:$0xff]
        %v784 = vld [vmem:[%s425 + $0x1c0] sm:$0xff]
        %v785 = vld [vmem:[%s425 + $0x1c8] sm:$0xff]
        %v786 = vld [vmem:[%s425 + $0x1d0] sm:$0xff]
        %v787 = vld [vmem:[%s425 + $0x1d8] sm:$0xff]
        %v788 = vld [vmem:[%s425 + $0x1e0] sm:$0xff]
        %v789 = vld [vmem:[%s425 + $0x1e8] sm:$0xff]
        %v790 = vld [vmem:[%s425 + $0x1f0] sm:$0xff]
        %v791 = vld [vmem:[%s425 + $0x1f8] sm:$0xff]
        %v792 = vld [vmem:[%s425 + $0x200] sm:$0xff]
        %v793 = vld [vmem:[%s425 + $0x208] sm:$0xff]
        %v794 = vld [vmem:[%s425 + $0x210] sm:$0xff]
        %v795 = vld [vmem:[%s425 + $0x218] sm:$0xff]
        %v796 = vld [vmem:[%s425 + $0x220] sm:$0xff]
        %v797 = vld [vmem:[%s425 + $0x228] sm:$0xff]
        %v798 = vld [vmem:[%s425 + $0x230] sm:$0xff]
        %v799 = vld [vmem:[%s425 + $0x238] sm:$0xff]
        %v800 = vld [vmem:[%s425 + $0x240] sm:$0xff]
        %v801 = vld [vmem:[%s425 + $0x248] sm:$0xff]
        %v802 = vld [vmem:[%s425 + $0x250] sm:$0xff]
        %v803 = vld [vmem:[%s425 + $0x258] sm:$0xff]
        %v804 = vld [vmem:[%s425 + $0x260] sm:$0xff]
        %v805 = vld [vmem:[%s425 + $0x268] sm:$0xff]
        %v806 = vld [vmem:[%s425 + $0x270] sm:$0xff]
        %v807 = vld [vmem:[%s425 + $0x278] sm:$0xff]
        %v808 = vld [vmem:[%s425 + $0x280] sm:$0xff]
        %v809 = vld [vmem:[%s425 + $0x288] sm:$0xff]
        %v810 = vld [vmem:[%s425 + $0x290] sm:$0xff]
        %v811 = vld [vmem:[%s425 + $0x298] sm:$0xff]
        %v812 = vld [vmem:[%s425 + $0x2a0] sm:$0xff]
        %v813 = vld [vmem:[%s425 + $0x2a8] sm:$0xff]
        %v814 = vld [vmem:[%s425 + $0x2b0] sm:$0xff]
        %v815 = vld [vmem:[%s425 + $0x2b8] sm:$0xff]
        %v816 = vld [vmem:[%s425 + $0x2c0] sm:$0xff]
        %v817 = vld [vmem:[%s425 + $0x2c8] sm:$0xff]
        %v818 = vld [vmem:[%s425 + $0x2d0] sm:$0xff]
        %v819 = vld [vmem:[%s425 + $0x2d8] sm:$0xff]
        %v820 = vld [vmem:[%s425 + $0x2e0] sm:$0xff]
        %v821 = vld [vmem:[%s425 + $0x2e8] sm:$0xff]
        %v822 = vld [vmem:[%s425 + $0x2f0] sm:$0xff]
        %v823 = vld [vmem:[%s425 + $0x2f8] sm:$0xff]
        %v824 = vadd.f32 %v632, %v728
        %v825 = vadd.f32 %v633, %v729
        %v826 = vadd.f32 %v634, %v730
        %v827 = vadd.f32 %v635, %v731
        %v828 = vadd.f32 %v636, %v732
        %v829 = vadd.f32 %v637, %v733
        %v830 = vadd.f32 %v638, %v734
        %v831 = vadd.f32 %v639, %v735
        %v832 = vadd.f32 %v640, %v736
        %v833 = vadd.f32 %v641, %v737
        %v834 = vadd.f32 %v642, %v738
        %v835 = vadd.f32 %v643, %v739
        %v836 = vadd.f32 %v644, %v740
        %v837 = vadd.f32 %v645, %v741
        %v838 = vadd.f32 %v646, %v742
        %v839 = vadd.f32 %v647, %v743
        %v840 = vadd.f32 %v648, %v744
        %v841 = vadd.f32 %v649, %v745
        %v842 = vadd.f32 %v650, %v746
        %v843 = vadd.f32 %v651, %v747
        %v844 = vadd.f32 %v652, %v748
        %v845 = vadd.f32 %v653, %v749
        %v846 = vadd.f32 %v654, %v750
        %v847 = vadd.f32 %v655, %v751
        %v848 = vadd.f32 %v656, %v752
        %v849 = vadd.f32 %v657, %v753
        %v850 = vadd.f32 %v658, %v754
        %v851 = vadd.f32 %v659, %v755
        %v852 = vadd.f32 %v660, %v756
        %v853 = vadd.f32 %v661, %v757
        %v854 = vadd.f32 %v662, %v758
        %v855 = vadd.f32 %v663, %v759
        %v856 = vadd.f32 %v664, %v760
        %v857 = vadd.f32 %v665, %v761
        %v858 = vadd.f32 %v666, %v762
        %v859 = vadd.f32 %v667, %v763
        %v860 = vadd.f32 %v668, %v764
        %v861 = vadd.f32 %v669, %v765
        %v862 = vadd.f32 %v670, %v766
        %v863 = vadd.f32 %v671, %v767
        %v864 = vadd.f32 %v672, %v768
        %v865 = vadd.f32 %v673, %v769
        %v866 = vadd.f32 %v674, %v770
        %v867 = vadd.f32 %v675, %v771
        %v868 = vadd.f32 %v676, %v772
        %v869 = vadd.f32 %v677, %v773
        %v870 = vadd.f32 %v678, %v774
        %v871 = vadd.f32 %v679, %v775
        %v872 = vadd.f32 %v680, %v776
        %v873 = vadd.f32 %v681, %v777
        %v874 = vadd.f32 %v682, %v778
        %v875 = vadd.f32 %v683, %v779
        %v876 = vadd.f32 %v684, %v780
        %v877 = vadd.f32 %v685, %v781
        %v878 = vadd.f32 %v686, %v782
        %v879 = vadd.f32 %v687, %v783
        %v880 = vadd.f32 %v688, %v784
        %v881 = vadd.f32 %v689, %v785
        %v882 = vadd.f32 %v690, %v786
        %v883 = vadd.f32 %v691, %v787
        %v884 = vadd.f32 %v692, %v788
        %v885 = vadd.f32 %v693, %v789
        %v886 = vadd.f32 %v694, %v790
        %v887 = vadd.f32 %v695, %v791
        %v888 = vadd.f32 %v696, %v792
        %v889 = vadd.f32 %v697, %v793
        %v890 = vadd.f32 %v698, %v794
        %v891 = vadd.f32 %v699, %v795
        %v892 = vadd.f32 %v700, %v796
        %v893 = vadd.f32 %v701, %v797
        %v894 = vadd.f32 %v702, %v798
        %v895 = vadd.f32 %v703, %v799
        %v896 = vadd.f32 %v704, %v800
        %v897 = vadd.f32 %v705, %v801
        %v898 = vadd.f32 %v706, %v802
        %v899 = vadd.f32 %v707, %v803
        %v900 = vadd.f32 %v708, %v804
        %v901 = vadd.f32 %v709, %v805
        %v902 = vadd.f32 %v710, %v806
        %v903 = vadd.f32 %v711, %v807
        %v904 = vadd.f32 %v712, %v808
        %v905 = vadd.f32 %v713, %v809
        %v906 = vadd.f32 %v714, %v810
        %v907 = vadd.f32 %v715, %v811
        %v908 = vadd.f32 %v716, %v812
        %v909 = vadd.f32 %v717, %v813
        %v910 = vadd.f32 %v718, %v814
        %v911 = vadd.f32 %v719, %v815
        %v912 = vadd.f32 %v720, %v816
        %v913 = vadd.f32 %v721, %v817
        %v914 = vadd.f32 %v722, %v818
        %v915 = vadd.f32 %v723, %v819
        %v916 = vadd.f32 %v724, %v820
        %v917 = vadd.f32 %v725, %v821
        %v918 = vadd.f32 %v726, %v822
        %v919 = vadd.f32 %v727, %v823
        %vm920 = vcmask 261120
        %v921 = vsel %vm920, %v536, -inf
        %v922 = vsel %vm920, %v537, -inf
        %v923 = vmax.f32 %v921, %v922
        %v924 = vsel %vm920, %v538, -inf
        %v925 = vmax.f32 %v923, %v924
        %v926 = vrot.slane %v925, 4
        %v927 = vmax.f32 %v925, %v926
        %v928 = vrot.slane %v927, 2
        %v929 = vmax.f32 %v927, %v928
        %v930 = vrot.slane %v929, 1
        %v931 = vmax.f32 %v929, %v930
        %v932 = vsel %vm920, %v539, -inf
        %v933 = vsel %vm920, %v540, -inf
        %v934 = vmax.f32 %v932, %v933
        %v935 = vsel %vm920, %v541, -inf
        %v936 = vmax.f32 %v934, %v935
        %v937 = vrot.slane %v936, 4
        %v938 = vmax.f32 %v936, %v937
        %v939 = vrot.slane %v938, 2
        %v940 = vmax.f32 %v938, %v939
        %v941 = vrot.slane %v940, 1
        %v942 = vmax.f32 %v940, %v941
        %v943 = vsel %vm920, %v542, -inf
        %v944 = vsel %vm920, %v543, -inf
        %v945 = vmax.f32 %v943, %v944
        %v946 = vsel %vm920, %v544, -inf
        %v947 = vmax.f32 %v945, %v946
        %v948 = vrot.slane %v947, 4
        %v949 = vmax.f32 %v947, %v948
        %v950 = vrot.slane %v949, 2
        %v951 = vmax.f32 %v949, %v950
        %v952 = vrot.slane %v951, 1
        %v953 = vmax.f32 %v951, %v952
        %v954 = vsel %vm920, %v545, -inf
        %v955 = vsel %vm920, %v546, -inf
        %v956 = vmax.f32 %v954, %v955
        %v957 = vsel %vm920, %v547, -inf
        %v958 = vmax.f32 %v956, %v957
        %v959 = vrot.slane %v958, 4
        %v960 = vmax.f32 %v958, %v959
        %v961 = vrot.slane %v960, 2
        %v962 = vmax.f32 %v960, %v961
        %v963 = vrot.slane %v962, 1
        %v964 = vmax.f32 %v962, %v963
        %v965 = vsel %vm920, %v548, -inf
        %v966 = vsel %vm920, %v549, -inf
        %v967 = vmax.f32 %v965, %v966
        %v968 = vsel %vm920, %v550, -inf
        %v969 = vmax.f32 %v967, %v968
        %v970 = vrot.slane %v969, 4
        %v971 = vmax.f32 %v969, %v970
        %v972 = vrot.slane %v971, 2
        %v973 = vmax.f32 %v971, %v972
        %v974 = vrot.slane %v973, 1
        %v975 = vmax.f32 %v973, %v974
        %v976 = vsel %vm920, %v551, -inf
        %v977 = vsel %vm920, %v552, -inf
        %v978 = vmax.f32 %v976, %v977
        %v979 = vsel %vm920, %v553, -inf
        %v980 = vmax.f32 %v978, %v979
        %v981 = vrot.slane %v980, 4
        %v982 = vmax.f32 %v980, %v981
        %v983 = vrot.slane %v982, 2
        %v984 = vmax.f32 %v982, %v983
        %v985 = vrot.slane %v984, 1
        %v986 = vmax.f32 %v984, %v985
        %v987 = vsel %vm920, %v554, -inf
        %v988 = vsel %vm920, %v555, -inf
        %v989 = vmax.f32 %v987, %v988
        %v990 = vsel %vm920, %v556, -inf
        %v991 = vmax.f32 %v989, %v990
        %v992 = vrot.slane %v991, 4
        %v993 = vmax.f32 %v991, %v992
        %v994 = vrot.slane %v993, 2
        %v995 = vmax.f32 %v993, %v994
        %v996 = vrot.slane %v995, 1
        %v997 = vmax.f32 %v995, %v996
        %v998 = vsel %vm920, %v557, -inf
        %v999 = vsel %vm920, %v558, -inf
        %v1000 = vmax.f32 %v998, %v999
        %v1001 = vsel %vm920, %v559, -inf
        %v1002 = vmax.f32 %v1000, %v1001
        %v1003 = vrot.slane %v1002, 4
        %v1004 = vmax.f32 %v1002, %v1003
        %v1005 = vrot.slane %v1004, 2
        %v1006 = vmax.f32 %v1004, %v1005
        %v1007 = vrot.slane %v1006, 1
        %v1008 = vmax.f32 %v1006, %v1007
        %v1009 = vsel %vm920, %v560, -inf
        %v1010 = vsel %vm920, %v561, -inf
        %v1011 = vmax.f32 %v1009, %v1010
        %v1012 = vsel %vm920, %v562, -inf
        %v1013 = vmax.f32 %v1011, %v1012
        %v1014 = vrot.slane %v1013, 4
        %v1015 = vmax.f32 %v1013, %v1014
        %v1016 = vrot.slane %v1015, 2
        %v1017 = vmax.f32 %v1015, %v1016
        %v1018 = vrot.slane %v1017, 1
        %v1019 = vmax.f32 %v1017, %v1018
        %v1020 = vsel %vm920, %v563, -inf
        %v1021 = vsel %vm920, %v564, -inf
        %v1022 = vmax.f32 %v1020, %v1021
        %v1023 = vsel %vm920, %v565, -inf
        %v1024 = vmax.f32 %v1022, %v1023
        %v1025 = vrot.slane %v1024, 4
        %v1026 = vmax.f32 %v1024, %v1025
        %v1027 = vrot.slane %v1026, 2
        %v1028 = vmax.f32 %v1026, %v1027
        %v1029 = vrot.slane %v1028, 1
        %v1030 = vmax.f32 %v1028, %v1029
        %v1031 = vsel %vm920, %v566, -inf
        %v1032 = vsel %vm920, %v567, -inf
        %v1033 = vmax.f32 %v1031, %v1032
        %v1034 = vsel %vm920, %v568, -inf
        %v1035 = vmax.f32 %v1033, %v1034
        %v1036 = vrot.slane %v1035, 4
        %v1037 = vmax.f32 %v1035, %v1036
        %v1038 = vrot.slane %v1037, 2
        %v1039 = vmax.f32 %v1037, %v1038
        %v1040 = vrot.slane %v1039, 1
        %v1041 = vmax.f32 %v1039, %v1040
        %v1042 = vsel %vm920, %v569, -inf
        %v1043 = vsel %vm920, %v570, -inf
        %v1044 = vmax.f32 %v1042, %v1043
        %v1045 = vsel %vm920, %v571, -inf
        %v1046 = vmax.f32 %v1044, %v1045
        %v1047 = vrot.slane %v1046, 4
        %v1048 = vmax.f32 %v1046, %v1047
        %v1049 = vrot.slane %v1048, 2
        %v1050 = vmax.f32 %v1048, %v1049
        %v1051 = vrot.slane %v1050, 1
        %v1052 = vmax.f32 %v1050, %v1051
        %v1053 = vsel %vm920, %v572, -inf
        %v1054 = vsel %vm920, %v573, -inf
        %v1055 = vmax.f32 %v1053, %v1054
        %v1056 = vsel %vm920, %v574, -inf
        %v1057 = vmax.f32 %v1055, %v1056
        %v1058 = vrot.slane %v1057, 4
        %v1059 = vmax.f32 %v1057, %v1058
        %v1060 = vrot.slane %v1059, 2
        %v1061 = vmax.f32 %v1059, %v1060
        %v1062 = vrot.slane %v1061, 1
        %v1063 = vmax.f32 %v1061, %v1062
        %v1064 = vsel %vm920, %v575, -inf
        %v1065 = vsel %vm920, %v576, -inf
        %v1066 = vmax.f32 %v1064, %v1065
        %v1067 = vsel %vm920, %v577, -inf
        %v1068 = vmax.f32 %v1066, %v1067
        %v1069 = vrot.slane %v1068, 4
        %v1070 = vmax.f32 %v1068, %v1069
        %v1071 = vrot.slane %v1070, 2
        %v1072 = vmax.f32 %v1070, %v1071
        %v1073 = vrot.slane %v1072, 1
        %v1074 = vmax.f32 %v1072, %v1073
        %v1075 = vsel %vm920, %v578, -inf
        %v1076 = vsel %vm920, %v579, -inf
        %v1077 = vmax.f32 %v1075, %v1076
        %v1078 = vsel %vm920, %v580, -inf
        %v1079 = vmax.f32 %v1077, %v1078
        %v1080 = vrot.slane %v1079, 4
        %v1081 = vmax.f32 %v1079, %v1080
        %v1082 = vrot.slane %v1081, 2
        %v1083 = vmax.f32 %v1081, %v1082
        %v1084 = vrot.slane %v1083, 1
        %v1085 = vmax.f32 %v1083, %v1084
        %v1086 = vsel %vm920, %v581, -inf
        %v1087 = vsel %vm920, %v582, -inf
        %v1088 = vmax.f32 %v1086, %v1087
        %v1089 = vsel %vm920, %v583, -inf
        %v1090 = vmax.f32 %v1088, %v1089
        %v1091 = vrot.slane %v1090, 4
        %v1092 = vmax.f32 %v1090, %v1091
        %v1093 = vrot.slane %v1092, 2
        %v1094 = vmax.f32 %v1092, %v1093
        %v1095 = vrot.slane %v1094, 1
        %v1096 = vmax.f32 %v1094, %v1095
        %v1097 = vsel %vm920, %v584, -inf
        %v1098 = vsel %vm920, %v585, -inf
        %v1099 = vmax.f32 %v1097, %v1098
        %v1100 = vsel %vm920, %v586, -inf
        %v1101 = vmax.f32 %v1099, %v1100
        %v1102 = vrot.slane %v1101, 4
        %v1103 = vmax.f32 %v1101, %v1102
        %v1104 = vrot.slane %v1103, 2
        %v1105 = vmax.f32 %v1103, %v1104
        %v1106 = vrot.slane %v1105, 1
        %v1107 = vmax.f32 %v1105, %v1106
        %v1108 = vsel %vm920, %v587, -inf
        %v1109 = vsel %vm920, %v588, -inf
        %v1110 = vmax.f32 %v1108, %v1109
        %v1111 = vsel %vm920, %v589, -inf
        %v1112 = vmax.f32 %v1110, %v1111
        %v1113 = vrot.slane %v1112, 4
        %v1114 = vmax.f32 %v1112, %v1113
        %v1115 = vrot.slane %v1114, 2
        %v1116 = vmax.f32 %v1114, %v1115
        %v1117 = vrot.slane %v1116, 1
        %v1118 = vmax.f32 %v1116, %v1117
        %v1119 = vsel %vm920, %v590, -inf
        %v1120 = vsel %vm920, %v591, -inf
        %v1121 = vmax.f32 %v1119, %v1120
        %v1122 = vsel %vm920, %v592, -inf
        %v1123 = vmax.f32 %v1121, %v1122
        %v1124 = vrot.slane %v1123, 4
        %v1125 = vmax.f32 %v1123, %v1124
        %v1126 = vrot.slane %v1125, 2
        %v1127 = vmax.f32 %v1125, %v1126
        %v1128 = vrot.slane %v1127, 1
        %v1129 = vmax.f32 %v1127, %v1128
        %v1130 = vsel %vm920, %v593, -inf
        %v1131 = vsel %vm920, %v594, -inf
        %v1132 = vmax.f32 %v1130, %v1131
        %v1133 = vsel %vm920, %v595, -inf
        %v1134 = vmax.f32 %v1132, %v1133
        %v1135 = vrot.slane %v1134, 4
        %v1136 = vmax.f32 %v1134, %v1135
        %v1137 = vrot.slane %v1136, 2
        %v1138 = vmax.f32 %v1136, %v1137
        %v1139 = vrot.slane %v1138, 1
        %v1140 = vmax.f32 %v1138, %v1139
        %v1141 = vsel %vm920, %v596, -inf
        %v1142 = vsel %vm920, %v597, -inf
        %v1143 = vmax.f32 %v1141, %v1142
        %v1144 = vsel %vm920, %v598, -inf
        %v1145 = vmax.f32 %v1143, %v1144
        %v1146 = vrot.slane %v1145, 4
        %v1147 = vmax.f32 %v1145, %v1146
        %v1148 = vrot.slane %v1147, 2
        %v1149 = vmax.f32 %v1147, %v1148
        %v1150 = vrot.slane %v1149, 1
        %v1151 = vmax.f32 %v1149, %v1150
        %v1152 = vsel %vm920, %v599, -inf
        %v1153 = vsel %vm920, %v600, -inf
        %v1154 = vmax.f32 %v1152, %v1153
        %v1155 = vsel %vm920, %v601, -inf
        %v1156 = vmax.f32 %v1154, %v1155
        %v1157 = vrot.slane %v1156, 4
        %v1158 = vmax.f32 %v1156, %v1157
        %v1159 = vrot.slane %v1158, 2
        %v1160 = vmax.f32 %v1158, %v1159
        %v1161 = vrot.slane %v1160, 1
        %v1162 = vmax.f32 %v1160, %v1161
        %v1163 = vsel %vm920, %v602, -inf
        %v1164 = vsel %vm920, %v603, -inf
        %v1165 = vmax.f32 %v1163, %v1164
        %v1166 = vsel %vm920, %v604, -inf
        %v1167 = vmax.f32 %v1165, %v1166
        %v1168 = vrot.slane %v1167, 4
        %v1169 = vmax.f32 %v1167, %v1168
        %v1170 = vrot.slane %v1169, 2
        %v1171 = vmax.f32 %v1169, %v1170
        %v1172 = vrot.slane %v1171, 1
        %v1173 = vmax.f32 %v1171, %v1172
        %v1174 = vsel %vm920, %v605, -inf
        %v1175 = vsel %vm920, %v606, -inf
        %v1176 = vmax.f32 %v1174, %v1175
        %v1177 = vsel %vm920, %v607, -inf
        %v1178 = vmax.f32 %v1176, %v1177
        %v1179 = vrot.slane %v1178, 4
        %v1180 = vmax.f32 %v1178, %v1179
        %v1181 = vrot.slane %v1180, 2
        %v1182 = vmax.f32 %v1180, %v1181
        %v1183 = vrot.slane %v1182, 1
        %v1184 = vmax.f32 %v1182, %v1183
        %v1185 = vsel %vm920, %v608, -inf
        %v1186 = vsel %vm920, %v609, -inf
        %v1187 = vmax.f32 %v1185, %v1186
        %v1188 = vsel %vm920, %v610, -inf
        %v1189 = vmax.f32 %v1187, %v1188
        %v1190 = vrot.slane %v1189, 4
        %v1191 = vmax.f32 %v1189, %v1190
        %v1192 = vrot.slane %v1191, 2
        %v1193 = vmax.f32 %v1191, %v1192
        %v1194 = vrot.slane %v1193, 1
        %v1195 = vmax.f32 %v1193, %v1194
        %v1196 = vsel %vm920, %v611, -inf
        %v1197 = vsel %vm920, %v612, -inf
        %v1198 = vmax.f32 %v1196, %v1197
        %v1199 = vsel %vm920, %v613, -inf
        %v1200 = vmax.f32 %v1198, %v1199
        %v1201 = vrot.slane %v1200, 4
        %v1202 = vmax.f32 %v1200, %v1201
        %v1203 = vrot.slane %v1202, 2
        %v1204 = vmax.f32 %v1202, %v1203
        %v1205 = vrot.slane %v1204, 1
        %v1206 = vmax.f32 %v1204, %v1205
        %v1207 = vsel %vm920, %v614, -inf
        %v1208 = vsel %vm920, %v615, -inf
        %v1209 = vmax.f32 %v1207, %v1208
        %v1210 = vsel %vm920, %v616, -inf
        %v1211 = vmax.f32 %v1209, %v1210
        %v1212 = vrot.slane %v1211, 4
        %v1213 = vmax.f32 %v1211, %v1212
        %v1214 = vrot.slane %v1213, 2
        %v1215 = vmax.f32 %v1213, %v1214
        %v1216 = vrot.slane %v1215, 1
        %v1217 = vmax.f32 %v1215, %v1216
        %v1218 = vsel %vm920, %v617, -inf
        %v1219 = vsel %vm920, %v618, -inf
        %v1220 = vmax.f32 %v1218, %v1219
        %v1221 = vsel %vm920, %v619, -inf
        %v1222 = vmax.f32 %v1220, %v1221
        %v1223 = vrot.slane %v1222, 4
        %v1224 = vmax.f32 %v1222, %v1223
        %v1225 = vrot.slane %v1224, 2
        %v1226 = vmax.f32 %v1224, %v1225
        %v1227 = vrot.slane %v1226, 1
        %v1228 = vmax.f32 %v1226, %v1227
        %v1229 = vsel %vm920, %v620, -inf
        %v1230 = vsel %vm920, %v621, -inf
        %v1231 = vmax.f32 %v1229, %v1230
        %v1232 = vsel %vm920, %v622, -inf
        %v1233 = vmax.f32 %v1231, %v1232
        %v1234 = vrot.slane %v1233, 4
        %v1235 = vmax.f32 %v1233, %v1234
        %v1236 = vrot.slane %v1235, 2
        %v1237 = vmax.f32 %v1235, %v1236
        %v1238 = vrot.slane %v1237, 1
        %v1239 = vmax.f32 %v1237, %v1238
        %v1240 = vsel %vm920, %v623, -inf
        %v1241 = vsel %vm920, %v624, -inf
        %v1242 = vmax.f32 %v1240, %v1241
        %v1243 = vsel %vm920, %v625, -inf
        %v1244 = vmax.f32 %v1242, %v1243
        %v1245 = vrot.slane %v1244, 4
        %v1246 = vmax.f32 %v1244, %v1245
        %v1247 = vrot.slane %v1246, 2
        %v1248 = vmax.f32 %v1246, %v1247
        %v1249 = vrot.slane %v1248, 1
        %v1250 = vmax.f32 %v1248, %v1249
        %v1251 = vsel %vm920, %v626, -inf
        %v1252 = vsel %vm920, %v627, -inf
        %v1253 = vmax.f32 %v1251, %v1252
        %v1254 = vsel %vm920, %v628, -inf
        %v1255 = vmax.f32 %v1253, %v1254
        %v1256 = vrot.slane %v1255, 4
        %v1257 = vmax.f32 %v1255, %v1256
        %v1258 = vrot.slane %v1257, 2
        %v1259 = vmax.f32 %v1257, %v1258
        %v1260 = vrot.slane %v1259, 1
        %v1261 = vmax.f32 %v1259, %v1260
        %v1262 = vsel %vm920, %v629, -inf
        %v1263 = vsel %vm920, %v630, -inf
        %v1264 = vmax.f32 %v1262, %v1263
        %v1265 = vsel %vm920, %v631, -inf
        %v1266 = vmax.f32 %v1264, %v1265
        %v1267 = vrot.slane %v1266, 4
        %v1268 = vmax.f32 %v1266, %v1267
        %v1269 = vrot.slane %v1268, 2
        %v1270 = vmax.f32 %v1268, %v1269
        %v1271 = vrot.slane %v1270, 1
        %v1272 = vmax.f32 %v1270, %v1271
        %v1273 = vsub.f32 %v536, %v931
        %v1274 = vsub.f32 %v537, %v931
        %v1275 = vsub.f32 %v538, %v931
        %v1276 = vsub.f32 %v539, %v942
        %v1277 = vsub.f32 %v540, %v942
        %v1278 = vsub.f32 %v541, %v942
        %v1279 = vsub.f32 %v542, %v953
        %v1280 = vsub.f32 %v543, %v953
        %v1281 = vsub.f32 %v544, %v953
        %v1282 = vsub.f32 %v545, %v964
        %v1283 = vsub.f32 %v546, %v964
        %v1284 = vsub.f32 %v547, %v964
        %v1285 = vsub.f32 %v548, %v975
        %v1286 = vsub.f32 %v549, %v975
        %v1287 = vsub.f32 %v550, %v975
        %v1288 = vsub.f32 %v551, %v986
        %v1289 = vsub.f32 %v552, %v986
        %v1290 = vsub.f32 %v553, %v986
        %v1291 = vsub.f32 %v554, %v997
        %v1292 = vsub.f32 %v555, %v997
        %v1293 = vsub.f32 %v556, %v997
        %v1294 = vsub.f32 %v557, %v1008
        %v1295 = vsub.f32 %v558, %v1008
        %v1296 = vsub.f32 %v559, %v1008
        %v1297 = vsub.f32 %v560, %v1019
        %v1298 = vsub.f32 %v561, %v1019
        %v1299 = vsub.f32 %v562, %v1019
        %v1300 = vsub.f32 %v563, %v1030
        %v1301 = vsub.f32 %v564, %v1030
        %v1302 = vsub.f32 %v565, %v1030
        %v1303 = vsub.f32 %v566, %v1041
        %v1304 = vsub.f32 %v567, %v1041
        %v1305 = vsub.f32 %v568, %v1041
        %v1306 = vsub.f32 %v569, %v1052
        %v1307 = vsub.f32 %v570, %v1052
        %v1308 = vsub.f32 %v571, %v1052
        %v1309 = vsub.f32 %v572, %v1063
        %v1310 = vsub.f32 %v573, %v1063
        %v1311 = vsub.f32 %v574, %v1063
        %v1312 = vsub.f32 %v575, %v1074
        %v1313 = vsub.f32 %v576, %v1074
        %v1314 = vsub.f32 %v577, %v1074
        %v1315 = vsub.f32 %v578, %v1085
        %v1316 = vsub.f32 %v579, %v1085
        %v1317 = vsub.f32 %v580, %v1085
        %v1318 = vsub.f32 %v581, %v1096
        %v1319 = vsub.f32 %v582, %v1096
        %v1320 = vsub.f32 %v583, %v1096
        %v1321 = vsub.f32 %v584, %v1107
        %v1322 = vsub.f32 %v585, %v1107
        %v1323 = vsub.f32 %v586, %v1107
        %v1324 = vsub.f32 %v587, %v1118
        %v1325 = vsub.f32 %v588, %v1118
        %v1326 = vsub.f32 %v589, %v1118
        %v1327 = vsub.f32 %v590, %v1129
        %v1328 = vsub.f32 %v591, %v1129
        %v1329 = vsub.f32 %v592, %v1129
        %v1330 = vsub.f32 %v593, %v1140
        %v1331 = vsub.f32 %v594, %v1140
        %v1332 = vsub.f32 %v595, %v1140
        %v1333 = vsub.f32 %v596, %v1151
        %v1334 = vsub.f32 %v597, %v1151
        %v1335 = vsub.f32 %v598, %v1151
        %v1336 = vsub.f32 %v599, %v1162
        %v1337 = vsub.f32 %v600, %v1162
        %v1338 = vsub.f32 %v601, %v1162
        %v1339 = vsub.f32 %v602, %v1173
        %v1340 = vsub.f32 %v603, %v1173
        %v1341 = vsub.f32 %v604, %v1173
        %v1342 = vsub.f32 %v605, %v1184
        %v1343 = vsub.f32 %v606, %v1184
        %v1344 = vsub.f32 %v607, %v1184
        %v1345 = vsub.f32 %v608, %v1195
        %v1346 = vsub.f32 %v609, %v1195
        %v1347 = vsub.f32 %v610, %v1195
        %v1348 = vsub.f32 %v611, %v1206
        %v1349 = vsub.f32 %v612, %v1206
        %v1350 = vsub.f32 %v613, %v1206
        %v1351 = vsub.f32 %v614, %v1217
        %v1352 = vsub.f32 %v615, %v1217
        %v1353 = vsub.f32 %v616, %v1217
        %v1354 = vsub.f32 %v617, %v1228
        %v1355 = vsub.f32 %v618, %v1228
        %v1356 = vsub.f32 %v619, %v1228
        %v1357 = vsub.f32 %v620, %v1239
        %v1358 = vsub.f32 %v621, %v1239
        %v1359 = vsub.f32 %v622, %v1239
        %v1360 = vsub.f32 %v623, %v1250
        %v1361 = vsub.f32 %v624, %v1250
        %v1362 = vsub.f32 %v625, %v1250
        %v1363 = vsub.f32 %v626, %v1261
        %v1364 = vsub.f32 %v627, %v1261
        %v1365 = vsub.f32 %v628, %v1261
        %v1366 = vsub.f32 %v629, %v1272
        %v1367 = vsub.f32 %v630, %v1272
        %v1368 = vsub.f32 %v631, %v1272
        %v1369 = vmul.f32 %v1273, 1.442695
        %v1370 = vpow.pop %v1369
        %v1371 = vmul.f32 %v1274, 1.442695
        %v1372 = vpow.pop %v1371
        %v1373 = vmul.f32 %v1275, 1.442695
        %v1374 = vpow.pop %v1373
        %v1375 = vmul.f32 %v1276, 1.442695
        %v1376 = vpow.pop %v1375
        %v1377 = vmul.f32 %v1277, 1.442695
        %v1378 = vpow.pop %v1377
        %v1379 = vmul.f32 %v1278, 1.442695
        %v1380 = vpow.pop %v1379
        %v1381 = vmul.f32 %v1279, 1.442695
        %v1382 = vpow.pop %v1381
        %v1383 = vmul.f32 %v1280, 1.442695
        %v1384 = vpow.pop %v1383
        %v1385 = vmul.f32 %v1281, 1.442695
        %v1386 = vpow.pop %v1385
        %v1387 = vmul.f32 %v1282, 1.442695
        %v1388 = vpow.pop %v1387
        %v1389 = vmul.f32 %v1283, 1.442695
        %v1390 = vpow.pop %v1389
        %v1391 = vmul.f32 %v1284, 1.442695
        %v1392 = vpow.pop %v1391
        %v1393 = vmul.f32 %v1285, 1.442695
        %v1394 = vpow.pop %v1393
        %v1395 = vmul.f32 %v1286, 1.442695
        %v1396 = vpow.pop %v1395
        %v1397 = vmul.f32 %v1287, 1.442695
        %v1398 = vpow.pop %v1397
        %v1399 = vmul.f32 %v1288, 1.442695
        %v1400 = vpow.pop %v1399
        %v1401 = vmul.f32 %v1289, 1.442695
        %v1402 = vpow.pop %v1401
        %v1403 = vmul.f32 %v1290, 1.442695
        %v1404 = vpow.pop %v1403
        %v1405 = vmul.f32 %v1291, 1.442695
        %v1406 = vpow.pop %v1405
        %v1407 = vmul.f32 %v1292, 1.442695
        %v1408 = vpow.pop %v1407
        %v1409 = vmul.f32 %v1293, 1.442695
        %v1410 = vpow.pop %v1409
        %v1411 = vmul.f32 %v1294, 1.442695
        %v1412 = vpow.pop %v1411
        %v1413 = vmul.f32 %v1295, 1.442695
        %v1414 = vpow.pop %v1413
        %v1415 = vmul.f32 %v1296, 1.442695
        %v1416 = vpow.pop %v1415
        %v1417 = vmul.f32 %v1297, 1.442695
        %v1418 = vpow.pop %v1417
        %v1419 = vmul.f32 %v1298, 1.442695
        %v1420 = vpow.pop %v1419
        %v1421 = vmul.f32 %v1299, 1.442695
        %v1422 = vpow.pop %v1421
        %v1423 = vmul.f32 %v1300, 1.442695
        %v1424 = vpow.pop %v1423
        %v1425 = vmul.f32 %v1301, 1.442695
        %v1426 = vpow.pop %v1425
        %v1427 = vmul.f32 %v1302, 1.442695
        %v1428 = vpow.pop %v1427
        %v1429 = vmul.f32 %v1303, 1.442695
        %v1430 = vpow.pop %v1429
        %v1431 = vmul.f32 %v1304, 1.442695
        %v1432 = vpow.pop %v1431
        %v1433 = vmul.f32 %v1305, 1.442695
        %v1434 = vpow.pop %v1433
        %v1435 = vmul.f32 %v1306, 1.442695
        %v1436 = vpow.pop %v1435
        %v1437 = vmul.f32 %v1307, 1.442695
        %v1438 = vpow.pop %v1437
        %v1439 = vmul.f32 %v1308, 1.442695
        %v1440 = vpow.pop %v1439
        %v1441 = vmul.f32 %v1309, 1.442695
        %v1442 = vpow.pop %v1441
        %v1443 = vmul.f32 %v1310, 1.442695
        %v1444 = vpow.pop %v1443
        %v1445 = vmul.f32 %v1311, 1.442695
        %v1446 = vpow.pop %v1445
        %v1447 = vmul.f32 %v1312, 1.442695
        %v1448 = vpow.pop %v1447
        %v1449 = vmul.f32 %v1313, 1.442695
        %v1450 = vpow.pop %v1449
        %v1451 = vmul.f32 %v1314, 1.442695
        %v1452 = vpow.pop %v1451
        %v1453 = vmul.f32 %v1315, 1.442695
        %v1454 = vpow.pop %v1453
        %v1455 = vmul.f32 %v1316, 1.442695
        %v1456 = vpow.pop %v1455
        %v1457 = vmul.f32 %v1317, 1.442695
        %v1458 = vpow.pop %v1457
        %v1459 = vmul.f32 %v1318, 1.442695
        %v1460 = vpow.pop %v1459
        %v1461 = vmul.f32 %v1319, 1.442695
        %v1462 = vpow.pop %v1461
        %v1463 = vmul.f32 %v1320, 1.442695
        %v1464 = vpow.pop %v1463
        %v1465 = vmul.f32 %v1321, 1.442695
        %v1466 = vpow.pop %v1465
        %v1467 = vmul.f32 %v1322, 1.442695
        %v1468 = vpow.pop %v1467
        %v1469 = vmul.f32 %v1323, 1.442695
        %v1470 = vpow.pop %v1469
        %v1471 = vmul.f32 %v1324, 1.442695
        %v1472 = vpow.pop %v1471
        %v1473 = vmul.f32 %v1325, 1.442695
        %v1474 = vpow.pop %v1473
        %v1475 = vmul.f32 %v1326, 1.442695
        %v1476 = vpow.pop %v1475
        %v1477 = vmul.f32 %v1327, 1.442695
        %v1478 = vpow.pop %v1477
        %v1479 = vmul.f32 %v1328, 1.442695
        %v1480 = vpow.pop %v1479
        %v1481 = vmul.f32 %v1329, 1.442695
        %v1482 = vpow.pop %v1481
        %v1483 = vmul.f32 %v1330, 1.442695
        %v1484 = vpow.pop %v1483
        %v1485 = vmul.f32 %v1331, 1.442695
        %v1486 = vpow.pop %v1485
        %v1487 = vmul.f32 %v1332, 1.442695
        %v1488 = vpow.pop %v1487
        %v1489 = vmul.f32 %v1333, 1.442695
        %v1490 = vpow.pop %v1489
        %v1491 = vmul.f32 %v1334, 1.442695
        %v1492 = vpow.pop %v1491
        %v1493 = vmul.f32 %v1335, 1.442695
        %v1494 = vpow.pop %v1493
        %v1495 = vmul.f32 %v1336, 1.442695
        %v1496 = vpow.pop %v1495
        %v1497 = vmul.f32 %v1337, 1.442695
        %v1498 = vpow.pop %v1497
        %v1499 = vmul.f32 %v1338, 1.442695
        %v1500 = vpow.pop %v1499
        %v1501 = vmul.f32 %v1339, 1.442695
        %v1502 = vpow.pop %v1501
        %v1503 = vmul.f32 %v1340, 1.442695
        %v1504 = vpow.pop %v1503
        %v1505 = vmul.f32 %v1341, 1.442695
        %v1506 = vpow.pop %v1505
        %v1507 = vmul.f32 %v1342, 1.442695
        %v1508 = vpow.pop %v1507
        %v1509 = vmul.f32 %v1343, 1.442695
        %v1510 = vpow.pop %v1509
        %v1511 = vmul.f32 %v1344, 1.442695
        %v1512 = vpow.pop %v1511
        %v1513 = vmul.f32 %v1345, 1.442695
        %v1514 = vpow.pop %v1513
        %v1515 = vmul.f32 %v1346, 1.442695
        %v1516 = vpow.pop %v1515
        %v1517 = vmul.f32 %v1347, 1.442695
        %v1518 = vpow.pop %v1517
        %v1519 = vmul.f32 %v1348, 1.442695
        %v1520 = vpow.pop %v1519
        %v1521 = vmul.f32 %v1349, 1.442695
        %v1522 = vpow.pop %v1521
        %v1523 = vmul.f32 %v1350, 1.442695
        %v1524 = vpow.pop %v1523
        %v1525 = vmul.f32 %v1351, 1.442695
        %v1526 = vpow.pop %v1525
        %v1527 = vmul.f32 %v1352, 1.442695
        %v1528 = vpow.pop %v1527
        %v1529 = vmul.f32 %v1353, 1.442695
        %v1530 = vpow.pop %v1529
        %v1531 = vmul.f32 %v1354, 1.442695
        %v1532 = vpow.pop %v1531
        %v1533 = vmul.f32 %v1355, 1.442695
        %v1534 = vpow.pop %v1533
        %v1535 = vmul.f32 %v1356, 1.442695
        %v1536 = vpow.pop %v1535
        %v1537 = vmul.f32 %v1357, 1.442695
        %v1538 = vpow.pop %v1537
        %v1539 = vmul.f32 %v1358, 1.442695
        %v1540 = vpow.pop %v1539
        %v1541 = vmul.f32 %v1359, 1.442695
        %v1542 = vpow.pop %v1541
        %v1543 = vmul.f32 %v1360, 1.442695
        %v1544 = vpow.pop %v1543
        %v1545 = vmul.f32 %v1361, 1.442695
        %v1546 = vpow.pop %v1545
        %v1547 = vmul.f32 %v1362, 1.442695
        %v1548 = vpow.pop %v1547
        %v1549 = vmul.f32 %v1363, 1.442695
        %v1550 = vpow.pop %v1549
        %v1551 = vmul.f32 %v1364, 1.442695
        %v1552 = vpow.pop %v1551
        %v1553 = vmul.f32 %v1365, 1.442695
        %v1554 = vpow.pop %v1553
        %v1555 = vmul.f32 %v1366, 1.442695
        %v1556 = vpow.pop %v1555
        %v1557 = vmul.f32 %v1367, 1.442695
        %v1558 = vpow.pop %v1557
        %v1559 = vmul.f32 %v1368, 1.442695
        %v1560 = vpow.pop %v1559
        %v1561 = vsel %vm920, %v1370, 0.0
        %v1562 = vsel %vm920, %v1372, 0.0
        %v1563 = vadd.f32 %v1561, %v1562
        %v1564 = vsel %vm920, %v1374, 0.0
        %v1565 = vadd.f32 %v1563, %v1564
        %v1566 = vrot.slane %v1565, 4
        %v1567 = vadd.f32 %v1565, %v1566
        %v1568 = vrot.slane %v1567, 2
        %v1569 = vadd.f32 %v1567, %v1568
        %v1570 = vrot.slane %v1569, 1
        %v1571 = vadd.f32 %v1569, %v1570
        %v1572 = vsel %vm920, %v1376, 0.0
        %v1573 = vsel %vm920, %v1378, 0.0
        %v1574 = vadd.f32 %v1572, %v1573
        %v1575 = vsel %vm920, %v1380, 0.0
        %v1576 = vadd.f32 %v1574, %v1575
        %v1577 = vrot.slane %v1576, 4
        %v1578 = vadd.f32 %v1576, %v1577
        %v1579 = vrot.slane %v1578, 2
        %v1580 = vadd.f32 %v1578, %v1579
        %v1581 = vrot.slane %v1580, 1
        %v1582 = vadd.f32 %v1580, %v1581
        %v1583 = vsel %vm920, %v1382, 0.0
        %v1584 = vsel %vm920, %v1384, 0.0
        %v1585 = vadd.f32 %v1583, %v1584
        %v1586 = vsel %vm920, %v1386, 0.0
        %v1587 = vadd.f32 %v1585, %v1586
        %v1588 = vrot.slane %v1587, 4
        %v1589 = vadd.f32 %v1587, %v1588
        %v1590 = vrot.slane %v1589, 2
        %v1591 = vadd.f32 %v1589, %v1590
        %v1592 = vrot.slane %v1591, 1
        %v1593 = vadd.f32 %v1591, %v1592
        %v1594 = vsel %vm920, %v1388, 0.0
        %v1595 = vsel %vm920, %v1390, 0.0
        %v1596 = vadd.f32 %v1594, %v1595
        %v1597 = vsel %vm920, %v1392, 0.0
        %v1598 = vadd.f32 %v1596, %v1597
        %v1599 = vrot.slane %v1598, 4
        %v1600 = vadd.f32 %v1598, %v1599
        %v1601 = vrot.slane %v1600, 2
        %v1602 = vadd.f32 %v1600, %v1601
        %v1603 = vrot.slane %v1602, 1
        %v1604 = vadd.f32 %v1602, %v1603
        %v1605 = vsel %vm920, %v1394, 0.0
        %v1606 = vsel %vm920, %v1396, 0.0
        %v1607 = vadd.f32 %v1605, %v1606
        %v1608 = vsel %vm920, %v1398, 0.0
        %v1609 = vadd.f32 %v1607, %v1608
        %v1610 = vrot.slane %v1609, 4
        %v1611 = vadd.f32 %v1609, %v1610
        %v1612 = vrot.slane %v1611, 2
        %v1613 = vadd.f32 %v1611, %v1612
        %v1614 = vrot.slane %v1613, 1
        %v1615 = vadd.f32 %v1613, %v1614
        %v1616 = vsel %vm920, %v1400, 0.0
        %v1617 = vsel %vm920, %v1402, 0.0
        %v1618 = vadd.f32 %v1616, %v1617
        %v1619 = vsel %vm920, %v1404, 0.0
        %v1620 = vadd.f32 %v1618, %v1619
        %v1621 = vrot.slane %v1620, 4
        %v1622 = vadd.f32 %v1620, %v1621
        %v1623 = vrot.slane %v1622, 2
        %v1624 = vadd.f32 %v1622, %v1623
        %v1625 = vrot.slane %v1624, 1
        %v1626 = vadd.f32 %v1624, %v1625
        %v1627 = vsel %vm920, %v1406, 0.0
        %v1628 = vsel %vm920, %v1408, 0.0
        %v1629 = vadd.f32 %v1627, %v1628
        %v1630 = vsel %vm920, %v1410, 0.0
        %v1631 = vadd.f32 %v1629, %v1630
        %v1632 = vrot.slane %v1631, 4
        %v1633 = vadd.f32 %v1631, %v1632
        %v1634 = vrot.slane %v1633, 2
        %v1635 = vadd.f32 %v1633, %v1634
        %v1636 = vrot.slane %v1635, 1
        %v1637 = vadd.f32 %v1635, %v1636
        %v1638 = vsel %vm920, %v1412, 0.0
        %v1639 = vsel %vm920, %v1414, 0.0
        %v1640 = vadd.f32 %v1638, %v1639
        %v1641 = vsel %vm920, %v1416, 0.0
        %v1642 = vadd.f32 %v1640, %v1641
        %v1643 = vrot.slane %v1642, 4
        %v1644 = vadd.f32 %v1642, %v1643
        %v1645 = vrot.slane %v1644, 2
        %v1646 = vadd.f32 %v1644, %v1645
        %v1647 = vrot.slane %v1646, 1
        %v1648 = vadd.f32 %v1646, %v1647
        %v1649 = vsel %vm920, %v1418, 0.0
        %v1650 = vsel %vm920, %v1420, 0.0
        %v1651 = vadd.f32 %v1649, %v1650
        %v1652 = vsel %vm920, %v1422, 0.0
        %v1653 = vadd.f32 %v1651, %v1652
        %v1654 = vrot.slane %v1653, 4
        %v1655 = vadd.f32 %v1653, %v1654
        %v1656 = vrot.slane %v1655, 2
        %v1657 = vadd.f32 %v1655, %v1656
        %v1658 = vrot.slane %v1657, 1
        %v1659 = vadd.f32 %v1657, %v1658
        %v1660 = vsel %vm920, %v1424, 0.0
        %v1661 = vsel %vm920, %v1426, 0.0
        %v1662 = vadd.f32 %v1660, %v1661
        %v1663 = vsel %vm920, %v1428, 0.0
        %v1664 = vadd.f32 %v1662, %v1663
        %v1665 = vrot.slane %v1664, 4
        %v1666 = vadd.f32 %v1664, %v1665
        %v1667 = vrot.slane %v1666, 2
        %v1668 = vadd.f32 %v1666, %v1667
        %v1669 = vrot.slane %v1668, 1
        %v1670 = vadd.f32 %v1668, %v1669
        %v1671 = vsel %vm920, %v1430, 0.0
        %v1672 = vsel %vm920, %v1432, 0.0
        %v1673 = vadd.f32 %v1671, %v1672
        %v1674 = vsel %vm920, %v1434, 0.0
        %v1675 = vadd.f32 %v1673, %v1674
        %v1676 = vrot.slane %v1675, 4
        %v1677 = vadd.f32 %v1675, %v1676
        %v1678 = vrot.slane %v1677, 2
        %v1679 = vadd.f32 %v1677, %v1678
        %v1680 = vrot.slane %v1679, 1
        %v1681 = vadd.f32 %v1679, %v1680
        %v1682 = vsel %vm920, %v1436, 0.0
        %v1683 = vsel %vm920, %v1438, 0.0
        %v1684 = vadd.f32 %v1682, %v1683
        %v1685 = vsel %vm920, %v1440, 0.0
        %v1686 = vadd.f32 %v1684, %v1685
        %v1687 = vrot.slane %v1686, 4
        %v1688 = vadd.f32 %v1686, %v1687
        %v1689 = vrot.slane %v1688, 2
        %v1690 = vadd.f32 %v1688, %v1689
        %v1691 = vrot.slane %v1690, 1
        %v1692 = vadd.f32 %v1690, %v1691
        %v1693 = vsel %vm920, %v1442, 0.0
        %v1694 = vsel %vm920, %v1444, 0.0
        %v1695 = vadd.f32 %v1693, %v1694
        %v1696 = vsel %vm920, %v1446, 0.0
        %v1697 = vadd.f32 %v1695, %v1696
        %v1698 = vrot.slane %v1697, 4
        %v1699 = vadd.f32 %v1697, %v1698
        %v1700 = vrot.slane %v1699, 2
        %v1701 = vadd.f32 %v1699, %v1700
        %v1702 = vrot.slane %v1701, 1
        %v1703 = vadd.f32 %v1701, %v1702
        %v1704 = vsel %vm920, %v1448, 0.0
        %v1705 = vsel %vm920, %v1450, 0.0
        %v1706 = vadd.f32 %v1704, %v1705
        %v1707 = vsel %vm920, %v1452, 0.0
        %v1708 = vadd.f32 %v1706, %v1707
        %v1709 = vrot.slane %v1708, 4
        %v1710 = vadd.f32 %v1708, %v1709
        %v1711 = vrot.slane %v1710, 2
        %v1712 = vadd.f32 %v1710, %v1711
        %v1713 = vrot.slane %v1712, 1
        %v1714 = vadd.f32 %v1712, %v1713
        %v1715 = vsel %vm920, %v1454, 0.0
        %v1716 = vsel %vm920, %v1456, 0.0
        %v1717 = vadd.f32 %v1715, %v1716
        %v1718 = vsel %vm920, %v1458, 0.0
        %v1719 = vadd.f32 %v1717, %v1718
        %v1720 = vrot.slane %v1719, 4
        %v1721 = vadd.f32 %v1719, %v1720
        %v1722 = vrot.slane %v1721, 2
        %v1723 = vadd.f32 %v1721, %v1722
        %v1724 = vrot.slane %v1723, 1
        %v1725 = vadd.f32 %v1723, %v1724
        %v1726 = vsel %vm920, %v1460, 0.0
        %v1727 = vsel %vm920, %v1462, 0.0
        %v1728 = vadd.f32 %v1726, %v1727
        %v1729 = vsel %vm920, %v1464, 0.0
        %v1730 = vadd.f32 %v1728, %v1729
        %v1731 = vrot.slane %v1730, 4
        %v1732 = vadd.f32 %v1730, %v1731
        %v1733 = vrot.slane %v1732, 2
        %v1734 = vadd.f32 %v1732, %v1733
        %v1735 = vrot.slane %v1734, 1
        %v1736 = vadd.f32 %v1734, %v1735
        %v1737 = vsel %vm920, %v1466, 0.0
        %v1738 = vsel %vm920, %v1468, 0.0
        %v1739 = vadd.f32 %v1737, %v1738
        %v1740 = vsel %vm920, %v1470, 0.0
        %v1741 = vadd.f32 %v1739, %v1740
        %v1742 = vrot.slane %v1741, 4
        %v1743 = vadd.f32 %v1741, %v1742
        %v1744 = vrot.slane %v1743, 2
        %v1745 = vadd.f32 %v1743, %v1744
        %v1746 = vrot.slane %v1745, 1
        %v1747 = vadd.f32 %v1745, %v1746
        %v1748 = vsel %vm920, %v1472, 0.0
        %v1749 = vsel %vm920, %v1474, 0.0
        %v1750 = vadd.f32 %v1748, %v1749
        %v1751 = vsel %vm920, %v1476, 0.0
        %v1752 = vadd.f32 %v1750, %v1751
        %v1753 = vrot.slane %v1752, 4
        %v1754 = vadd.f32 %v1752, %v1753
        %v1755 = vrot.slane %v1754, 2
        %v1756 = vadd.f32 %v1754, %v1755
        %v1757 = vrot.slane %v1756, 1
        %v1758 = vadd.f32 %v1756, %v1757
        %v1759 = vsel %vm920, %v1478, 0.0
        %v1760 = vsel %vm920, %v1480, 0.0
        %v1761 = vadd.f32 %v1759, %v1760
        %v1762 = vsel %vm920, %v1482, 0.0
        %v1763 = vadd.f32 %v1761, %v1762
        %v1764 = vrot.slane %v1763, 4
        %v1765 = vadd.f32 %v1763, %v1764
        %v1766 = vrot.slane %v1765, 2
        %v1767 = vadd.f32 %v1765, %v1766
        %v1768 = vrot.slane %v1767, 1
        %v1769 = vadd.f32 %v1767, %v1768
        %v1770 = vsel %vm920, %v1484, 0.0
        %v1771 = vsel %vm920, %v1486, 0.0
        %v1772 = vadd.f32 %v1770, %v1771
        %v1773 = vsel %vm920, %v1488, 0.0
        %v1774 = vadd.f32 %v1772, %v1773
        %v1775 = vrot.slane %v1774, 4
        %v1776 = vadd.f32 %v1774, %v1775
        %v1777 = vrot.slane %v1776, 2
        %v1778 = vadd.f32 %v1776, %v1777
        %v1779 = vrot.slane %v1778, 1
        %v1780 = vadd.f32 %v1778, %v1779
        %v1781 = vsel %vm920, %v1490, 0.0
        %v1782 = vsel %vm920, %v1492, 0.0
        %v1783 = vadd.f32 %v1781, %v1782
        %v1784 = vsel %vm920, %v1494, 0.0
        %v1785 = vadd.f32 %v1783, %v1784
        %v1786 = vrot.slane %v1785, 4
        %v1787 = vadd.f32 %v1785, %v1786
        %v1788 = vrot.slane %v1787, 2
        %v1789 = vadd.f32 %v1787, %v1788
        %v1790 = vrot.slane %v1789, 1
        %v1791 = vadd.f32 %v1789, %v1790
        %v1792 = vsel %vm920, %v1496, 0.0
        %v1793 = vsel %vm920, %v1498, 0.0
        %v1794 = vadd.f32 %v1792, %v1793
        %v1795 = vsel %vm920, %v1500, 0.0
        %v1796 = vadd.f32 %v1794, %v1795
        %v1797 = vrot.slane %v1796, 4
        %v1798 = vadd.f32 %v1796, %v1797
        %v1799 = vrot.slane %v1798, 2
        %v1800 = vadd.f32 %v1798, %v1799
        %v1801 = vrot.slane %v1800, 1
        %v1802 = vadd.f32 %v1800, %v1801
        %v1803 = vsel %vm920, %v1502, 0.0
        %v1804 = vsel %vm920, %v1504, 0.0
        %v1805 = vadd.f32 %v1803, %v1804
        %v1806 = vsel %vm920, %v1506, 0.0
        %v1807 = vadd.f32 %v1805, %v1806
        %v1808 = vrot.slane %v1807, 4
        %v1809 = vadd.f32 %v1807, %v1808
        %v1810 = vrot.slane %v1809, 2
        %v1811 = vadd.f32 %v1809, %v1810
        %v1812 = vrot.slane %v1811, 1
        %v1813 = vadd.f32 %v1811, %v1812
        %v1814 = vsel %vm920, %v1508, 0.0
        %v1815 = vsel %vm920, %v1510, 0.0
        %v1816 = vadd.f32 %v1814, %v1815
        %v1817 = vsel %vm920, %v1512, 0.0
        %v1818 = vadd.f32 %v1816, %v1817
        %v1819 = vrot.slane %v1818, 4
        %v1820 = vadd.f32 %v1818, %v1819
        %v1821 = vrot.slane %v1820, 2
        %v1822 = vadd.f32 %v1820, %v1821
        %v1823 = vrot.slane %v1822, 1
        %v1824 = vadd.f32 %v1822, %v1823
        %v1825 = vsel %vm920, %v1514, 0.0
        %v1826 = vsel %vm920, %v1516, 0.0
        %v1827 = vadd.f32 %v1825, %v1826
        %v1828 = vsel %vm920, %v1518, 0.0
        %v1829 = vadd.f32 %v1827, %v1828
        %v1830 = vrot.slane %v1829, 4
        %v1831 = vadd.f32 %v1829, %v1830
        %v1832 = vrot.slane %v1831, 2
        %v1833 = vadd.f32 %v1831, %v1832
        %v1834 = vrot.slane %v1833, 1
        %v1835 = vadd.f32 %v1833, %v1834
        %v1836 = vsel %vm920, %v1520, 0.0
        %v1837 = vsel %vm920, %v1522, 0.0
        %v1838 = vadd.f32 %v1836, %v1837
        %v1839 = vsel %vm920, %v1524, 0.0
        %v1840 = vadd.f32 %v1838, %v1839
        %v1841 = vrot.slane %v1840, 4
        %v1842 = vadd.f32 %v1840, %v1841
        %v1843 = vrot.slane %v1842, 2
        %v1844 = vadd.f32 %v1842, %v1843
        %v1845 = vrot.slane %v1844, 1
        %v1846 = vadd.f32 %v1844, %v1845
        %v1847 = vsel %vm920, %v1526, 0.0
        %v1848 = vsel %vm920, %v1528, 0.0
        %v1849 = vadd.f32 %v1847, %v1848
        %v1850 = vsel %vm920, %v1530, 0.0
        %v1851 = vadd.f32 %v1849, %v1850
        %v1852 = vrot.slane %v1851, 4
        %v1853 = vadd.f32 %v1851, %v1852
        %v1854 = vrot.slane %v1853, 2
        %v1855 = vadd.f32 %v1853, %v1854
        %v1856 = vrot.slane %v1855, 1
        %v1857 = vadd.f32 %v1855, %v1856
        %v1858 = vsel %vm920, %v1532, 0.0
        %v1859 = vsel %vm920, %v1534, 0.0
        %v1860 = vadd.f32 %v1858, %v1859
        %v1861 = vsel %vm920, %v1536, 0.0
        %v1862 = vadd.f32 %v1860, %v1861
        %v1863 = vrot.slane %v1862, 4
        %v1864 = vadd.f32 %v1862, %v1863
        %v1865 = vrot.slane %v1864, 2
        %v1866 = vadd.f32 %v1864, %v1865
        %v1867 = vrot.slane %v1866, 1
        %v1868 = vadd.f32 %v1866, %v1867
        %v1869 = vsel %vm920, %v1538, 0.0
        %v1870 = vsel %vm920, %v1540, 0.0
        %v1871 = vadd.f32 %v1869, %v1870
        %v1872 = vsel %vm920, %v1542, 0.0
        %v1873 = vadd.f32 %v1871, %v1872
        %v1874 = vrot.slane %v1873, 4
        %v1875 = vadd.f32 %v1873, %v1874
        %v1876 = vrot.slane %v1875, 2
        %v1877 = vadd.f32 %v1875, %v1876
        %v1878 = vrot.slane %v1877, 1
        %v1879 = vadd.f32 %v1877, %v1878
        %v1880 = vsel %vm920, %v1544, 0.0
        %v1881 = vsel %vm920, %v1546, 0.0
        %v1882 = vadd.f32 %v1880, %v1881
        %v1883 = vsel %vm920, %v1548, 0.0
        %v1884 = vadd.f32 %v1882, %v1883
        %v1885 = vrot.slane %v1884, 4
        %v1886 = vadd.f32 %v1884, %v1885
        %v1887 = vrot.slane %v1886, 2
        %v1888 = vadd.f32 %v1886, %v1887
        %v1889 = vrot.slane %v1888, 1
        %v1890 = vadd.f32 %v1888, %v1889
        %v1891 = vsel %vm920, %v1550, 0.0
        %v1892 = vsel %vm920, %v1552, 0.0
        %v1893 = vadd.f32 %v1891, %v1892
        %v1894 = vsel %vm920, %v1554, 0.0
        %v1895 = vadd.f32 %v1893, %v1894
        %v1896 = vrot.slane %v1895, 4
        %v1897 = vadd.f32 %v1895, %v1896
        %v1898 = vrot.slane %v1897, 2
        %v1899 = vadd.f32 %v1897, %v1898
        %v1900 = vrot.slane %v1899, 1
        %v1901 = vadd.f32 %v1899, %v1900
        %v1902 = vsel %vm920, %v1556, 0.0
        %v1903 = vsel %vm920, %v1558, 0.0
        %v1904 = vadd.f32 %v1902, %v1903
        %v1905 = vsel %vm920, %v1560, 0.0
        %v1906 = vadd.f32 %v1904, %v1905
        %v1907 = vrot.slane %v1906, 4
        %v1908 = vadd.f32 %v1906, %v1907
        %v1909 = vrot.slane %v1908, 2
        %v1910 = vadd.f32 %v1908, %v1909
        %v1911 = vrot.slane %v1910, 1
        %v1912 = vadd.f32 %v1910, %v1911
        %v1913 = vrcp.pop %v1571
        %v1914 = vrcp.pop %v1582
        %v1915 = vrcp.pop %v1593
        %v1916 = vrcp.pop %v1604
        %v1917 = vrcp.pop %v1615
        %v1918 = vrcp.pop %v1626
        %v1919 = vrcp.pop %v1637
        %v1920 = vrcp.pop %v1648
        %v1921 = vrcp.pop %v1659
        %v1922 = vrcp.pop %v1670
        %v1923 = vrcp.pop %v1681
        %v1924 = vrcp.pop %v1692
        %v1925 = vrcp.pop %v1703
        %v1926 = vrcp.pop %v1714
        %v1927 = vrcp.pop %v1725
        %v1928 = vrcp.pop %v1736
        %v1929 = vrcp.pop %v1747
        %v1930 = vrcp.pop %v1758
        %v1931 = vrcp.pop %v1769
        %v1932 = vrcp.pop %v1780
        %v1933 = vrcp.pop %v1791
        %v1934 = vrcp.pop %v1802
        %v1935 = vrcp.pop %v1813
        %v1936 = vrcp.pop %v1824
        %v1937 = vrcp.pop %v1835
        %v1938 = vrcp.pop %v1846
        %v1939 = vrcp.pop %v1857
        %v1940 = vrcp.pop %v1868
        %v1941 = vrcp.pop %v1879
        %v1942 = vrcp.pop %v1890
        %v1943 = vrcp.pop %v1901
        %v1944 = vrcp.pop %v1912
        %v1945 = vmul.f32 %v1370, %v1913
        %v1946 = vmul.f32 %v1372, %v1913
        %v1947 = vmul.f32 %v1374, %v1913
        %v1948 = vmul.f32 %v1376, %v1914
        %v1949 = vmul.f32 %v1378, %v1914
        %v1950 = vmul.f32 %v1380, %v1914
        %v1951 = vmul.f32 %v1382, %v1915
        %v1952 = vmul.f32 %v1384, %v1915
        %v1953 = vmul.f32 %v1386, %v1915
        %v1954 = vmul.f32 %v1388, %v1916
        %v1955 = vmul.f32 %v1390, %v1916
        %v1956 = vmul.f32 %v1392, %v1916
        %v1957 = vmul.f32 %v1394, %v1917
        %v1958 = vmul.f32 %v1396, %v1917
        %v1959 = vmul.f32 %v1398, %v1917
        %v1960 = vmul.f32 %v1400, %v1918
        %v1961 = vmul.f32 %v1402, %v1918
        %v1962 = vmul.f32 %v1404, %v1918
        %v1963 = vmul.f32 %v1406, %v1919
        %v1964 = vmul.f32 %v1408, %v1919
        %v1965 = vmul.f32 %v1410, %v1919
        %v1966 = vmul.f32 %v1412, %v1920
        %v1967 = vmul.f32 %v1414, %v1920
        %v1968 = vmul.f32 %v1416, %v1920
        %v1969 = vmul.f32 %v1418, %v1921
        %v1970 = vmul.f32 %v1420, %v1921
        %v1971 = vmul.f32 %v1422, %v1921
        %v1972 = vmul.f32 %v1424, %v1922
        %v1973 = vmul.f32 %v1426, %v1922
        %v1974 = vmul.f32 %v1428, %v1922
        %v1975 = vmul.f32 %v1430, %v1923
        %v1976 = vmul.f32 %v1432, %v1923
        %v1977 = vmul.f32 %v1434, %v1923
        %v1978 = vmul.f32 %v1436, %v1924
        %v1979 = vmul.f32 %v1438, %v1924
        %v1980 = vmul.f32 %v1440, %v1924
        %v1981 = vmul.f32 %v1442, %v1925
        %v1982 = vmul.f32 %v1444, %v1925
        %v1983 = vmul.f32 %v1446, %v1925
        %v1984 = vmul.f32 %v1448, %v1926
        %v1985 = vmul.f32 %v1450, %v1926
        %v1986 = vmul.f32 %v1452, %v1926
        %v1987 = vmul.f32 %v1454, %v1927
        %v1988 = vmul.f32 %v1456, %v1927
        %v1989 = vmul.f32 %v1458, %v1927
        %v1990 = vmul.f32 %v1460, %v1928
        %v1991 = vmul.f32 %v1462, %v1928
        %v1992 = vmul.f32 %v1464, %v1928
        %v1993 = vmul.f32 %v1466, %v1929
        %v1994 = vmul.f32 %v1468, %v1929
        %v1995 = vmul.f32 %v1470, %v1929
        %v1996 = vmul.f32 %v1472, %v1930
        %v1997 = vmul.f32 %v1474, %v1930
        %v1998 = vmul.f32 %v1476, %v1930
        %v1999 = vmul.f32 %v1478, %v1931
        %v2000 = vmul.f32 %v1480, %v1931
        %v2001 = vmul.f32 %v1482, %v1931
        %v2002 = vmul.f32 %v1484, %v1932
        %v2003 = vmul.f32 %v1486, %v1932
        %v2004 = vmul.f32 %v1488, %v1932
        %v2005 = vmul.f32 %v1490, %v1933
        %v2006 = vmul.f32 %v1492, %v1933
        %v2007 = vmul.f32 %v1494, %v1933
        %v2008 = vmul.f32 %v1496, %v1934
        %v2009 = vmul.f32 %v1498, %v1934
        %v2010 = vmul.f32 %v1500, %v1934
        %v2011 = vmul.f32 %v1502, %v1935
        %v2012 = vmul.f32 %v1504, %v1935
        %v2013 = vmul.f32 %v1506, %v1935
        %v2014 = vmul.f32 %v1508, %v1936
        %v2015 = vmul.f32 %v1510, %v1936
        %v2016 = vmul.f32 %v1512, %v1936
        %v2017 = vmul.f32 %v1514, %v1937
        %v2018 = vmul.f32 %v1516, %v1937
        %v2019 = vmul.f32 %v1518, %v1937
        %v2020 = vmul.f32 %v1520, %v1938
        %v2021 = vmul.f32 %v1522, %v1938
        %v2022 = vmul.f32 %v1524, %v1938
        %v2023 = vmul.f32 %v1526, %v1939
        %v2024 = vmul.f32 %v1528, %v1939
        %v2025 = vmul.f32 %v1530, %v1939
        %v2026 = vmul.f32 %v1532, %v1940
        %v2027 = vmul.f32 %v1534, %v1940
        %v2028 = vmul.f32 %v1536, %v1940
        %v2029 = vmul.f32 %v1538, %v1941
        %v2030 = vmul.f32 %v1540, %v1941
        %v2031 = vmul.f32 %v1542, %v1941
        %v2032 = vmul.f32 %v1544, %v1942
        %v2033 = vmul.f32 %v1546, %v1942
        %v2034 = vmul.f32 %v1548, %v1942
        %v2035 = vmul.f32 %v1550, %v1943
        %v2036 = vmul.f32 %v1552, %v1943
        %v2037 = vmul.f32 %v1554, %v1943
        %v2038 = vmul.f32 %v1556, %v1944
        %v2039 = vmul.f32 %v1558, %v1944
        %v2040 = vmul.f32 %v1560, %v1944
        %2041 = vst.msk [vmem:[%s386] sm:$0xff] %vm920, %v1945
        %2042 = vst.msk [vmem:[%s386 + $0x8] sm:$0xff] %vm920, %v1946
        %2043 = vst.msk [vmem:[%s386 + $0x10] sm:$0xff] %vm920, %v1947
        %2044 = vst.msk [vmem:[%s386 + $0x18] sm:$0xff] %vm920, %v1948
        %2045 = vst.msk [vmem:[%s386 + $0x20] sm:$0xff] %vm920, %v1949
        %2046 = vst.msk [vmem:[%s386 + $0x28] sm:$0xff] %vm920, %v1950
        %2047 = vst.msk [vmem:[%s386 + $0x30] sm:$0xff] %vm920, %v1951
        %2048 = vst.msk [vmem:[%s386 + $0x38] sm:$0xff] %vm920, %v1952
        %2049 = vst.msk [vmem:[%s386 + $0x40] sm:$0xff] %vm920, %v1953
        %2050 = vst.msk [vmem:[%s386 + $0x48] sm:$0xff] %vm920, %v1954
        %2051 = vst.msk [vmem:[%s386 + $0x50] sm:$0xff] %vm920, %v1955
        %2052 = vst.msk [vmem:[%s386 + $0x58] sm:$0xff] %vm920, %v1956
        %2053 = vst.msk [vmem:[%s386 + $0x60] sm:$0xff] %vm920, %v1957
        %2054 = vst.msk [vmem:[%s386 + $0x68] sm:$0xff] %vm920, %v1958
        %2055 = vst.msk [vmem:[%s386 + $0x70] sm:$0xff] %vm920, %v1959
        %2056 = vst.msk [vmem:[%s386 + $0x78] sm:$0xff] %vm920, %v1960
        %2057 = vst.msk [vmem:[%s386 + $0x80] sm:$0xff] %vm920, %v1961
        %2058 = vst.msk [vmem:[%s386 + $0x88] sm:$0xff] %vm920, %v1962
        %2059 = vst.msk [vmem:[%s386 + $0x90] sm:$0xff] %vm920, %v1963
        %2060 = vst.msk [vmem:[%s386 + $0x98] sm:$0xff] %vm920, %v1964
        %2061 = vst.msk [vmem:[%s386 + $0xa0] sm:$0xff] %vm920, %v1965
        %2062 = vst.msk [vmem:[%s386 + $0xa8] sm:$0xff] %vm920, %v1966
        %2063 = vst.msk [vmem:[%s386 + $0xb0] sm:$0xff] %vm920, %v1967
        %2064 = vst.msk [vmem:[%s386 + $0xb8] sm:$0xff] %vm920, %v1968
        %2065 = vst.msk [vmem:[%s386 + $0xc0] sm:$0xff] %vm920, %v1969
        %2066 = vst.msk [vmem:[%s386 + $0xc8] sm:$0xff] %vm920, %v1970
        %2067 = vst.msk [vmem:[%s386 + $0xd0] sm:$0xff] %vm920, %v1971
        %2068 = vst.msk [vmem:[%s386 + $0xd8] sm:$0xff] %vm920, %v1972
        %2069 = vst.msk [vmem:[%s386 + $0xe0] sm:$0xff] %vm920, %v1973
        %2070 = vst.msk [vmem:[%s386 + $0xe8] sm:$0xff] %vm920, %v1974
        %2071 = vst.msk [vmem:[%s386 + $0xf0] sm:$0xff] %vm920, %v1975
        %2072 = vst.msk [vmem:[%s386 + $0xf8] sm:$0xff] %vm920, %v1976
        %2073 = vst.msk [vmem:[%s386 + $0x100] sm:$0xff] %vm920, %v1977
        %2074 = vst.msk [vmem:[%s386 + $0x108] sm:$0xff] %vm920, %v1978
        %2075 = vst.msk [vmem:[%s386 + $0x110] sm:$0xff] %vm920, %v1979
        %2076 = vst.msk [vmem:[%s386 + $0x118] sm:$0xff] %vm920, %v1980
        %2077 = vst.msk [vmem:[%s386 + $0x120] sm:$0xff] %vm920, %v1981
        %2078 = vst.msk [vmem:[%s386 + $0x128] sm:$0xff] %vm920, %v1982
        %2079 = vst.msk [vmem:[%s386 + $0x130] sm:$0xff] %vm920, %v1983
        %2080 = vst.msk [vmem:[%s386 + $0x138] sm:$0xff] %vm920, %v1984
        %2081 = vst.msk [vmem:[%s386 + $0x140] sm:$0xff] %vm920, %v1985
        %2082 = vst.msk [vmem:[%s386 + $0x148] sm:$0xff] %vm920, %v1986
        %2083 = vst.msk [vmem:[%s386 + $0x150] sm:$0xff] %vm920, %v1987
        %2084 = vst.msk [vmem:[%s386 + $0x158] sm:$0xff] %vm920, %v1988
        %2085 = vst.msk [vmem:[%s386 + $0x160] sm:$0xff] %vm920, %v1989
        %2086 = vst.msk [vmem:[%s386 + $0x168] sm:$0xff] %vm920, %v1990
        %2087 = vst.msk [vmem:[%s386 + $0x170] sm:$0xff] %vm920, %v1991
        %2088 = vst.msk [vmem:[%s386 + $0x178] sm:$0xff] %vm920, %v1992
        %2089 = vst.msk [vmem:[%s386 + $0x180] sm:$0xff] %vm920, %v1993
        %2090 = vst.msk [vmem:[%s386 + $0x188] sm:$0xff] %vm920, %v1994
        %2091 = vst.msk [vmem:[%s386 + $0x190] sm:$0xff] %vm920, %v1995
        %2092 = vst.msk [vmem:[%s386 + $0x198] sm:$0xff] %vm920, %v1996
        %2093 = vst.msk [vmem:[%s386 + $0x1a0] sm:$0xff] %vm920, %v1997
        %2094 = vst.msk [vmem:[%s386 + $0x1a8] sm:$0xff] %vm920, %v1998
        %2095 = vst.msk [vmem:[%s386 + $0x1b0] sm:$0xff] %vm920, %v1999
        %2096 = vst.msk [vmem:[%s386 + $0x1b8] sm:$0xff] %vm920, %v2000
        %2097 = vst.msk [vmem:[%s386 + $0x1c0] sm:$0xff] %vm920, %v2001
        %2098 = vst.msk [vmem:[%s386 + $0x1c8] sm:$0xff] %vm920, %v2002
        %2099 = vst.msk [vmem:[%s386 + $0x1d0] sm:$0xff] %vm920, %v2003
        %2100 = vst.msk [vmem:[%s386 + $0x1d8] sm:$0xff] %vm920, %v2004
        %2101 = vst.msk [vmem:[%s386 + $0x1e0] sm:$0xff] %vm920, %v2005
        %2102 = vst.msk [vmem:[%s386 + $0x1e8] sm:$0xff] %vm920, %v2006
        %2103 = vst.msk [vmem:[%s386 + $0x1f0] sm:$0xff] %vm920, %v2007
        %2104 = vst.msk [vmem:[%s386 + $0x1f8] sm:$0xff] %vm920, %v2008
        %2105 = vst.msk [vmem:[%s386 + $0x200] sm:$0xff] %vm920, %v2009
        %2106 = vst.msk [vmem:[%s386 + $0x208] sm:$0xff] %vm920, %v2010
        %2107 = vst.msk [vmem:[%s386 + $0x210] sm:$0xff] %vm920, %v2011
        %2108 = vst.msk [vmem:[%s386 + $0x218] sm:$0xff] %vm920, %v2012
        %2109 = vst.msk [vmem:[%s386 + $0x220] sm:$0xff] %vm920, %v2013
        %2110 = vst.msk [vmem:[%s386 + $0x228] sm:$0xff] %vm920, %v2014
        %2111 = vst.msk [vmem:[%s386 + $0x230] sm:$0xff] %vm920, %v2015
        %2112 = vst.msk [vmem:[%s386 + $0x238] sm:$0xff] %vm920, %v2016
        %2113 = vst.msk [vmem:[%s386 + $0x240] sm:$0xff] %vm920, %v2017
        %2114 = vst.msk [vmem:[%s386 + $0x248] sm:$0xff] %vm920, %v2018
        %2115 = vst.msk [vmem:[%s386 + $0x250] sm:$0xff] %vm920, %v2019
        %2116 = vst.msk [vmem:[%s386 + $0x258] sm:$0xff] %vm920, %v2020
        %2117 = vst.msk [vmem:[%s386 + $0x260] sm:$0xff] %vm920, %v2021
        %2118 = vst.msk [vmem:[%s386 + $0x268] sm:$0xff] %vm920, %v2022
        %2119 = vst.msk [vmem:[%s386 + $0x270] sm:$0xff] %vm920, %v2023
        %2120 = vst.msk [vmem:[%s386 + $0x278] sm:$0xff] %vm920, %v2024
        %2121 = vst.msk [vmem:[%s386 + $0x280] sm:$0xff] %vm920, %v2025
        %2122 = vst.msk [vmem:[%s386 + $0x288] sm:$0xff] %vm920, %v2026
        %2123 = vst.msk [vmem:[%s386 + $0x290] sm:$0xff] %vm920, %v2027
        %2124 = vst.msk [vmem:[%s386 + $0x298] sm:$0xff] %vm920, %v2028
        %2125 = vst.msk [vmem:[%s386 + $0x2a0] sm:$0xff] %vm920, %v2029
        %2126 = vst.msk [vmem:[%s386 + $0x2a8] sm:$0xff] %vm920, %v2030
        %2127 = vst.msk [vmem:[%s386 + $0x2b0] sm:$0xff] %vm920, %v2031
        %2128 = vst.msk [vmem:[%s386 + $0x2b8] sm:$0xff] %vm920, %v2032
        %2129 = vst.msk [vmem:[%s386 + $0x2c0] sm:$0xff] %vm920, %v2033
        %2130 = vst.msk [vmem:[%s386 + $0x2c8] sm:$0xff] %vm920, %v2034
        %2131 = vst.msk [vmem:[%s386 + $0x2d0] sm:$0xff] %vm920, %v2035
        %2132 = vst.msk [vmem:[%s386 + $0x2d8] sm:$0xff] %vm920, %v2036
        %2133 = vst.msk [vmem:[%s386 + $0x2e0] sm:$0xff] %vm920, %v2037
        %2134 = vst.msk [vmem:[%s386 + $0x2e8] sm:$0xff] %vm920, %v2038
        %2135 = vst.msk [vmem:[%s386 + $0x2f0] sm:$0xff] %vm920, %v2039
        %2136 = vst.msk [vmem:[%s386 + $0x2f8] sm:$0xff] %vm920, %v2040
        %v2137 = vmul.f32 %v1370, %v824
        %v2138 = vmul.f32 %v1372, %v825
        %v2139 = vmul.f32 %v1374, %v826
        %v2140 = vmul.f32 %v1376, %v827
        %v2141 = vmul.f32 %v1378, %v828
        %v2142 = vmul.f32 %v1380, %v829
        %v2143 = vmul.f32 %v1382, %v830
        %v2144 = vmul.f32 %v1384, %v831
        %v2145 = vmul.f32 %v1386, %v832
        %v2146 = vmul.f32 %v1388, %v833
        %v2147 = vmul.f32 %v1390, %v834
        %v2148 = vmul.f32 %v1392, %v835
        %v2149 = vmul.f32 %v1394, %v836
        %v2150 = vmul.f32 %v1396, %v837
        %v2151 = vmul.f32 %v1398, %v838
        %v2152 = vmul.f32 %v1400, %v839
        %v2153 = vmul.f32 %v1402, %v840
        %v2154 = vmul.f32 %v1404, %v841
        %v2155 = vmul.f32 %v1406, %v842
        %v2156 = vmul.f32 %v1408, %v843
        %v2157 = vmul.f32 %v1410, %v844
        %v2158 = vmul.f32 %v1412, %v845
        %v2159 = vmul.f32 %v1414, %v846
        %v2160 = vmul.f32 %v1416, %v847
        %v2161 = vmul.f32 %v1418, %v848
        %v2162 = vmul.f32 %v1420, %v849
        %v2163 = vmul.f32 %v1422, %v850
        %v2164 = vmul.f32 %v1424, %v851
        %v2165 = vmul.f32 %v1426, %v852
        %v2166 = vmul.f32 %v1428, %v853
        %v2167 = vmul.f32 %v1430, %v854
        %v2168 = vmul.f32 %v1432, %v855
        %v2169 = vmul.f32 %v1434, %v856
        %v2170 = vmul.f32 %v1436, %v857
        %v2171 = vmul.f32 %v1438, %v858
        %v2172 = vmul.f32 %v1440, %v859
        %v2173 = vmul.f32 %v1442, %v860
        %v2174 = vmul.f32 %v1444, %v861
        %v2175 = vmul.f32 %v1446, %v862
        %v2176 = vmul.f32 %v1448, %v863
        %v2177 = vmul.f32 %v1450, %v864
        %v2178 = vmul.f32 %v1452, %v865
        %v2179 = vmul.f32 %v1454, %v866
        %v2180 = vmul.f32 %v1456, %v867
        %v2181 = vmul.f32 %v1458, %v868
        %v2182 = vmul.f32 %v1460, %v869
        %v2183 = vmul.f32 %v1462, %v870
        %v2184 = vmul.f32 %v1464, %v871
        %v2185 = vmul.f32 %v1466, %v872
        %v2186 = vmul.f32 %v1468, %v873
        %v2187 = vmul.f32 %v1470, %v874
        %v2188 = vmul.f32 %v1472, %v875
        %v2189 = vmul.f32 %v1474, %v876
        %v2190 = vmul.f32 %v1476, %v877
        %v2191 = vmul.f32 %v1478, %v878
        %v2192 = vmul.f32 %v1480, %v879
        %v2193 = vmul.f32 %v1482, %v880
        %v2194 = vmul.f32 %v1484, %v881
        %v2195 = vmul.f32 %v1486, %v882
        %v2196 = vmul.f32 %v1488, %v883
        %v2197 = vmul.f32 %v1490, %v884
        %v2198 = vmul.f32 %v1492, %v885
        %v2199 = vmul.f32 %v1494, %v886
        %v2200 = vmul.f32 %v1496, %v887
        %v2201 = vmul.f32 %v1498, %v888
        %v2202 = vmul.f32 %v1500, %v889
        %v2203 = vmul.f32 %v1502, %v890
        %v2204 = vmul.f32 %v1504, %v891
        %v2205 = vmul.f32 %v1506, %v892
        %v2206 = vmul.f32 %v1508, %v893
        %v2207 = vmul.f32 %v1510, %v894
        %v2208 = vmul.f32 %v1512, %v895
        %v2209 = vmul.f32 %v1514, %v896
        %v2210 = vmul.f32 %v1516, %v897
        %v2211 = vmul.f32 %v1518, %v898
        %v2212 = vmul.f32 %v1520, %v899
        %v2213 = vmul.f32 %v1522, %v900
        %v2214 = vmul.f32 %v1524, %v901
        %v2215 = vmul.f32 %v1526, %v902
        %v2216 = vmul.f32 %v1528, %v903
        %v2217 = vmul.f32 %v1530, %v904
        %v2218 = vmul.f32 %v1532, %v905
        %v2219 = vmul.f32 %v1534, %v906
        %v2220 = vmul.f32 %v1536, %v907
        %v2221 = vmul.f32 %v1538, %v908
        %v2222 = vmul.f32 %v1540, %v909
        %v2223 = vmul.f32 %v1542, %v910
        %v2224 = vmul.f32 %v1544, %v911
        %v2225 = vmul.f32 %v1546, %v912
        %v2226 = vmul.f32 %v1548, %v913
        %v2227 = vmul.f32 %v1550, %v914
        %v2228 = vmul.f32 %v1552, %v915
        %v2229 = vmul.f32 %v1554, %v916
        %v2230 = vmul.f32 %v1556, %v917
        %v2231 = vmul.f32 %v1558, %v918
        %v2232 = vmul.f32 %v1560, %v919
        %v2233 = vsel %vm920, %v2137, 0.0
        %v2234 = vsel %vm920, %v2138, 0.0
        %v2235 = vadd.f32 %v2233, %v2234
        %v2236 = vsel %vm920, %v2139, 0.0
        %v2237 = vadd.f32 %v2235, %v2236
        %v2238 = vrot.slane %v2237, 4
        %v2239 = vadd.f32 %v2237, %v2238
        %v2240 = vrot.slane %v2239, 2
        %v2241 = vadd.f32 %v2239, %v2240
        %v2242 = vrot.slane %v2241, 1
        %v2243 = vadd.f32 %v2241, %v2242
        %v2244 = vsel %vm920, %v2140, 0.0
        %v2245 = vsel %vm920, %v2141, 0.0
        %v2246 = vadd.f32 %v2244, %v2245
        %v2247 = vsel %vm920, %v2142, 0.0
        %v2248 = vadd.f32 %v2246, %v2247
        %v2249 = vrot.slane %v2248, 4
        %v2250 = vadd.f32 %v2248, %v2249
        %v2251 = vrot.slane %v2250, 2
        %v2252 = vadd.f32 %v2250, %v2251
        %v2253 = vrot.slane %v2252, 1
        %v2254 = vadd.f32 %v2252, %v2253
        %v2255 = vsel %vm920, %v2143, 0.0
        %v2256 = vsel %vm920, %v2144, 0.0
        %v2257 = vadd.f32 %v2255, %v2256
        %v2258 = vsel %vm920, %v2145, 0.0
        %v2259 = vadd.f32 %v2257, %v2258
        %v2260 = vrot.slane %v2259, 4
        %v2261 = vadd.f32 %v2259, %v2260
        %v2262 = vrot.slane %v2261, 2
        %v2263 = vadd.f32 %v2261, %v2262
        %v2264 = vrot.slane %v2263, 1
        %v2265 = vadd.f32 %v2263, %v2264
        %v2266 = vsel %vm920, %v2146, 0.0
        %v2267 = vsel %vm920, %v2147, 0.0
        %v2268 = vadd.f32 %v2266, %v2267
        %v2269 = vsel %vm920, %v2148, 0.0
        %v2270 = vadd.f32 %v2268, %v2269
        %v2271 = vrot.slane %v2270, 4
        %v2272 = vadd.f32 %v2270, %v2271
        %v2273 = vrot.slane %v2272, 2
        %v2274 = vadd.f32 %v2272, %v2273
        %v2275 = vrot.slane %v2274, 1
        %v2276 = vadd.f32 %v2274, %v2275
        %v2277 = vsel %vm920, %v2149, 0.0
        %v2278 = vsel %vm920, %v2150, 0.0
        %v2279 = vadd.f32 %v2277, %v2278
        %v2280 = vsel %vm920, %v2151, 0.0
        %v2281 = vadd.f32 %v2279, %v2280
        %v2282 = vrot.slane %v2281, 4
        %v2283 = vadd.f32 %v2281, %v2282
        %v2284 = vrot.slane %v2283, 2
        %v2285 = vadd.f32 %v2283, %v2284
        %v2286 = vrot.slane %v2285, 1
        %v2287 = vadd.f32 %v2285, %v2286
        %v2288 = vsel %vm920, %v2152, 0.0
        %v2289 = vsel %vm920, %v2153, 0.0
        %v2290 = vadd.f32 %v2288, %v2289
        %v2291 = vsel %vm920, %v2154, 0.0
        %v2292 = vadd.f32 %v2290, %v2291
        %v2293 = vrot.slane %v2292, 4
        %v2294 = vadd.f32 %v2292, %v2293
        %v2295 = vrot.slane %v2294, 2
        %v2296 = vadd.f32 %v2294, %v2295
        %v2297 = vrot.slane %v2296, 1
        %v2298 = vadd.f32 %v2296, %v2297
        %v2299 = vsel %vm920, %v2155, 0.0
        %v2300 = vsel %vm920, %v2156, 0.0
        %v2301 = vadd.f32 %v2299, %v2300
        %v2302 = vsel %vm920, %v2157, 0.0
        %v2303 = vadd.f32 %v2301, %v2302
        %v2304 = vrot.slane %v2303, 4
        %v2305 = vadd.f32 %v2303, %v2304
        %v2306 = vrot.slane %v2305, 2
        %v2307 = vadd.f32 %v2305, %v2306
        %v2308 = vrot.slane %v2307, 1
        %v2309 = vadd.f32 %v2307, %v2308
        %v2310 = vsel %vm920, %v2158, 0.0
        %v2311 = vsel %vm920, %v2159, 0.0
        %v2312 = vadd.f32 %v2310, %v2311
        %v2313 = vsel %vm920, %v2160, 0.0
        %v2314 = vadd.f32 %v2312, %v2313
        %v2315 = vrot.slane %v2314, 4
        %v2316 = vadd.f32 %v2314, %v2315
        %v2317 = vrot.slane %v2316, 2
        %v2318 = vadd.f32 %v2316, %v2317
        %v2319 = vrot.slane %v2318, 1
        %v2320 = vadd.f32 %v2318, %v2319
        %v2321 = vsel %vm920, %v2161, 0.0
        %v2322 = vsel %vm920, %v2162, 0.0
        %v2323 = vadd.f32 %v2321, %v2322
        %v2324 = vsel %vm920, %v2163, 0.0
        %v2325 = vadd.f32 %v2323, %v2324
        %v2326 = vrot.slane %v2325, 4
        %v2327 = vadd.f32 %v2325, %v2326
        %v2328 = vrot.slane %v2327, 2
        %v2329 = vadd.f32 %v2327, %v2328
        %v2330 = vrot.slane %v2329, 1
        %v2331 = vadd.f32 %v2329, %v2330
        %v2332 = vsel %vm920, %v2164, 0.0
        %v2333 = vsel %vm920, %v2165, 0.0
        %v2334 = vadd.f32 %v2332, %v2333
        %v2335 = vsel %vm920, %v2166, 0.0
        %v2336 = vadd.f32 %v2334, %v2335
        %v2337 = vrot.slane %v2336, 4
        %v2338 = vadd.f32 %v2336, %v2337
        %v2339 = vrot.slane %v2338, 2
        %v2340 = vadd.f32 %v2338, %v2339
        %v2341 = vrot.slane %v2340, 1
        %v2342 = vadd.f32 %v2340, %v2341
        %v2343 = vsel %vm920, %v2167, 0.0
        %v2344 = vsel %vm920, %v2168, 0.0
        %v2345 = vadd.f32 %v2343, %v2344
        %v2346 = vsel %vm920, %v2169, 0.0
        %v2347 = vadd.f32 %v2345, %v2346
        %v2348 = vrot.slane %v2347, 4
        %v2349 = vadd.f32 %v2347, %v2348
        %v2350 = vrot.slane %v2349, 2
        %v2351 = vadd.f32 %v2349, %v2350
        %v2352 = vrot.slane %v2351, 1
        %v2353 = vadd.f32 %v2351, %v2352
        %v2354 = vsel %vm920, %v2170, 0.0
        %v2355 = vsel %vm920, %v2171, 0.0
        %v2356 = vadd.f32 %v2354, %v2355
        %v2357 = vsel %vm920, %v2172, 0.0
        %v2358 = vadd.f32 %v2356, %v2357
        %v2359 = vrot.slane %v2358, 4
        %v2360 = vadd.f32 %v2358, %v2359
        %v2361 = vrot.slane %v2360, 2
        %v2362 = vadd.f32 %v2360, %v2361
        %v2363 = vrot.slane %v2362, 1
        %v2364 = vadd.f32 %v2362, %v2363
        %v2365 = vsel %vm920, %v2173, 0.0
        %v2366 = vsel %vm920, %v2174, 0.0
        %v2367 = vadd.f32 %v2365, %v2366
        %v2368 = vsel %vm920, %v2175, 0.0
        %v2369 = vadd.f32 %v2367, %v2368
        %v2370 = vrot.slane %v2369, 4
        %v2371 = vadd.f32 %v2369, %v2370
        %v2372 = vrot.slane %v2371, 2
        %v2373 = vadd.f32 %v2371, %v2372
        %v2374 = vrot.slane %v2373, 1
        %v2375 = vadd.f32 %v2373, %v2374
        %v2376 = vsel %vm920, %v2176, 0.0
        %v2377 = vsel %vm920, %v2177, 0.0
        %v2378 = vadd.f32 %v2376, %v2377
        %v2379 = vsel %vm920, %v2178, 0.0
        %v2380 = vadd.f32 %v2378, %v2379
        %v2381 = vrot.slane %v2380, 4
        %v2382 = vadd.f32 %v2380, %v2381
        %v2383 = vrot.slane %v2382, 2
        %v2384 = vadd.f32 %v2382, %v2383
        %v2385 = vrot.slane %v2384, 1
        %v2386 = vadd.f32 %v2384, %v2385
        %v2387 = vsel %vm920, %v2179, 0.0
        %v2388 = vsel %vm920, %v2180, 0.0
        %v2389 = vadd.f32 %v2387, %v2388
        %v2390 = vsel %vm920, %v2181, 0.0
        %v2391 = vadd.f32 %v2389, %v2390
        %v2392 = vrot.slane %v2391, 4
        %v2393 = vadd.f32 %v2391, %v2392
        %v2394 = vrot.slane %v2393, 2
        %v2395 = vadd.f32 %v2393, %v2394
        %v2396 = vrot.slane %v2395, 1
        %v2397 = vadd.f32 %v2395, %v2396
        %v2398 = vsel %vm920, %v2182, 0.0
        %v2399 = vsel %vm920, %v2183, 0.0
        %v2400 = vadd.f32 %v2398, %v2399
        %v2401 = vsel %vm920, %v2184, 0.0
        %v2402 = vadd.f32 %v2400, %v2401
        %v2403 = vrot.slane %v2402, 4
        %v2404 = vadd.f32 %v2402, %v2403
        %v2405 = vrot.slane %v2404, 2
        %v2406 = vadd.f32 %v2404, %v2405
        %v2407 = vrot.slane %v2406, 1
        %v2408 = vadd.f32 %v2406, %v2407
        %v2409 = vsel %vm920, %v2185, 0.0
        %v2410 = vsel %vm920, %v2186, 0.0
        %v2411 = vadd.f32 %v2409, %v2410
        %v2412 = vsel %vm920, %v2187, 0.0
        %v2413 = vadd.f32 %v2411, %v2412
        %v2414 = vrot.slane %v2413, 4
        %v2415 = vadd.f32 %v2413, %v2414
        %v2416 = vrot.slane %v2415, 2
        %v2417 = vadd.f32 %v2415, %v2416
        %v2418 = vrot.slane %v2417, 1
        %v2419 = vadd.f32 %v2417, %v2418
        %v2420 = vsel %vm920, %v2188, 0.0
        %v2421 = vsel %vm920, %v2189, 0.0
        %v2422 = vadd.f32 %v2420, %v2421
        %v2423 = vsel %vm920, %v2190, 0.0
        %v2424 = vadd.f32 %v2422, %v2423
        %v2425 = vrot.slane %v2424, 4
        %v2426 = vadd.f32 %v2424, %v2425
        %v2427 = vrot.slane %v2426, 2
        %v2428 = vadd.f32 %v2426, %v2427
        %v2429 = vrot.slane %v2428, 1
        %v2430 = vadd.f32 %v2428, %v2429
        %v2431 = vsel %vm920, %v2191, 0.0
        %v2432 = vsel %vm920, %v2192, 0.0
        %v2433 = vadd.f32 %v2431, %v2432
        %v2434 = vsel %vm920, %v2193, 0.0
        %v2435 = vadd.f32 %v2433, %v2434
        %v2436 = vrot.slane %v2435, 4
        %v2437 = vadd.f32 %v2435, %v2436
        %v2438 = vrot.slane %v2437, 2
        %v2439 = vadd.f32 %v2437, %v2438
        %v2440 = vrot.slane %v2439, 1
        %v2441 = vadd.f32 %v2439, %v2440
        %v2442 = vsel %vm920, %v2194, 0.0
        %v2443 = vsel %vm920, %v2195, 0.0
        %v2444 = vadd.f32 %v2442, %v2443
        %v2445 = vsel %vm920, %v2196, 0.0
        %v2446 = vadd.f32 %v2444, %v2445
        %v2447 = vrot.slane %v2446, 4
        %v2448 = vadd.f32 %v2446, %v2447
        %v2449 = vrot.slane %v2448, 2
        %v2450 = vadd.f32 %v2448, %v2449
        %v2451 = vrot.slane %v2450, 1
        %v2452 = vadd.f32 %v2450, %v2451
        %v2453 = vsel %vm920, %v2197, 0.0
        %v2454 = vsel %vm920, %v2198, 0.0
        %v2455 = vadd.f32 %v2453, %v2454
        %v2456 = vsel %vm920, %v2199, 0.0
        %v2457 = vadd.f32 %v2455, %v2456
        %v2458 = vrot.slane %v2457, 4
        %v2459 = vadd.f32 %v2457, %v2458
        %v2460 = vrot.slane %v2459, 2
        %v2461 = vadd.f32 %v2459, %v2460
        %v2462 = vrot.slane %v2461, 1
        %v2463 = vadd.f32 %v2461, %v2462
        %v2464 = vsel %vm920, %v2200, 0.0
        %v2465 = vsel %vm920, %v2201, 0.0
        %v2466 = vadd.f32 %v2464, %v2465
        %v2467 = vsel %vm920, %v2202, 0.0
        %v2468 = vadd.f32 %v2466, %v2467
        %v2469 = vrot.slane %v2468, 4
        %v2470 = vadd.f32 %v2468, %v2469
        %v2471 = vrot.slane %v2470, 2
        %v2472 = vadd.f32 %v2470, %v2471
        %v2473 = vrot.slane %v2472, 1
        %v2474 = vadd.f32 %v2472, %v2473
        %v2475 = vsel %vm920, %v2203, 0.0
        %v2476 = vsel %vm920, %v2204, 0.0
        %v2477 = vadd.f32 %v2475, %v2476
        %v2478 = vsel %vm920, %v2205, 0.0
        %v2479 = vadd.f32 %v2477, %v2478
        %v2480 = vrot.slane %v2479, 4
        %v2481 = vadd.f32 %v2479, %v2480
        %v2482 = vrot.slane %v2481, 2
        %v2483 = vadd.f32 %v2481, %v2482
        %v2484 = vrot.slane %v2483, 1
        %v2485 = vadd.f32 %v2483, %v2484
        %v2486 = vsel %vm920, %v2206, 0.0
        %v2487 = vsel %vm920, %v2207, 0.0
        %v2488 = vadd.f32 %v2486, %v2487
        %v2489 = vsel %vm920, %v2208, 0.0
        %v2490 = vadd.f32 %v2488, %v2489
        %v2491 = vrot.slane %v2490, 4
        %v2492 = vadd.f32 %v2490, %v2491
        %v2493 = vrot.slane %v2492, 2
        %v2494 = vadd.f32 %v2492, %v2493
        %v2495 = vrot.slane %v2494, 1
        %v2496 = vadd.f32 %v2494, %v2495
        %v2497 = vsel %vm920, %v2209, 0.0
        %v2498 = vsel %vm920, %v2210, 0.0
        %v2499 = vadd.f32 %v2497, %v2498
        %v2500 = vsel %vm920, %v2211, 0.0
        %v2501 = vadd.f32 %v2499, %v2500
        %v2502 = vrot.slane %v2501, 4
        %v2503 = vadd.f32 %v2501, %v2502
        %v2504 = vrot.slane %v2503, 2
        %v2505 = vadd.f32 %v2503, %v2504
        %v2506 = vrot.slane %v2505, 1
        %v2507 = vadd.f32 %v2505, %v2506
        %v2508 = vsel %vm920, %v2212, 0.0
        %v2509 = vsel %vm920, %v2213, 0.0
        %v2510 = vadd.f32 %v2508, %v2509
        %v2511 = vsel %vm920, %v2214, 0.0
        %v2512 = vadd.f32 %v2510, %v2511
        %v2513 = vrot.slane %v2512, 4
        %v2514 = vadd.f32 %v2512, %v2513
        %v2515 = vrot.slane %v2514, 2
        %v2516 = vadd.f32 %v2514, %v2515
        %v2517 = vrot.slane %v2516, 1
        %v2518 = vadd.f32 %v2516, %v2517
        %v2519 = vsel %vm920, %v2215, 0.0
        %v2520 = vsel %vm920, %v2216, 0.0
        %v2521 = vadd.f32 %v2519, %v2520
        %v2522 = vsel %vm920, %v2217, 0.0
        %v2523 = vadd.f32 %v2521, %v2522
        %v2524 = vrot.slane %v2523, 4
        %v2525 = vadd.f32 %v2523, %v2524
        %v2526 = vrot.slane %v2525, 2
        %v2527 = vadd.f32 %v2525, %v2526
        %v2528 = vrot.slane %v2527, 1
        %v2529 = vadd.f32 %v2527, %v2528
        %v2530 = vsel %vm920, %v2218, 0.0
        %v2531 = vsel %vm920, %v2219, 0.0
        %v2532 = vadd.f32 %v2530, %v2531
        %v2533 = vsel %vm920, %v2220, 0.0
        %v2534 = vadd.f32 %v2532, %v2533
        %v2535 = vrot.slane %v2534, 4
        %v2536 = vadd.f32 %v2534, %v2535
        %v2537 = vrot.slane %v2536, 2
        %v2538 = vadd.f32 %v2536, %v2537
        %v2539 = vrot.slane %v2538, 1
        %v2540 = vadd.f32 %v2538, %v2539
        %v2541 = vsel %vm920, %v2221, 0.0
        %v2542 = vsel %vm920, %v2222, 0.0
        %v2543 = vadd.f32 %v2541, %v2542
        %v2544 = vsel %vm920, %v2223, 0.0
        %v2545 = vadd.f32 %v2543, %v2544
        %v2546 = vrot.slane %v2545, 4
        %v2547 = vadd.f32 %v2545, %v2546
        %v2548 = vrot.slane %v2547, 2
        %v2549 = vadd.f32 %v2547, %v2548
        %v2550 = vrot.slane %v2549, 1
        %v2551 = vadd.f32 %v2549, %v2550
        %v2552 = vsel %vm920, %v2224, 0.0
        %v2553 = vsel %vm920, %v2225, 0.0
        %v2554 = vadd.f32 %v2552, %v2553
        %v2555 = vsel %vm920, %v2226, 0.0
        %v2556 = vadd.f32 %v2554, %v2555
        %v2557 = vrot.slane %v2556, 4
        %v2558 = vadd.f32 %v2556, %v2557
        %v2559 = vrot.slane %v2558, 2
        %v2560 = vadd.f32 %v2558, %v2559
        %v2561 = vrot.slane %v2560, 1
        %v2562 = vadd.f32 %v2560, %v2561
        %v2563 = vsel %vm920, %v2227, 0.0
        %v2564 = vsel %vm920, %v2228, 0.0
        %v2565 = vadd.f32 %v2563, %v2564
        %v2566 = vsel %vm920, %v2229, 0.0
        %v2567 = vadd.f32 %v2565, %v2566
        %v2568 = vrot.slane %v2567, 4
        %v2569 = vadd.f32 %v2567, %v2568
        %v2570 = vrot.slane %v2569, 2
        %v2571 = vadd.f32 %v2569, %v2570
        %v2572 = vrot.slane %v2571, 1
        %v2573 = vadd.f32 %v2571, %v2572
        %v2574 = vsel %vm920, %v2230, 0.0
        %v2575 = vsel %vm920, %v2231, 0.0
        %v2576 = vadd.f32 %v2574, %v2575
        %v2577 = vsel %vm920, %v2232, 0.0
        %v2578 = vadd.f32 %v2576, %v2577
        %v2579 = vrot.slane %v2578, 4
        %v2580 = vadd.f32 %v2578, %v2579
        %v2581 = vrot.slane %v2580, 2
        %v2582 = vadd.f32 %v2580, %v2581
        %v2583 = vrot.slane %v2582, 1
        %v2584 = vadd.f32 %v2582, %v2583
        %v2585 = vmul.f32 %v2243, %v1913
        %v2586 = vmul.f32 %v2254, %v1914
        %v2587 = vmul.f32 %v2265, %v1915
        %v2588 = vmul.f32 %v2276, %v1916
        %v2589 = vmul.f32 %v2287, %v1917
        %v2590 = vmul.f32 %v2298, %v1918
        %v2591 = vmul.f32 %v2309, %v1919
        %v2592 = vmul.f32 %v2320, %v1920
        %v2593 = vmul.f32 %v2331, %v1921
        %v2594 = vmul.f32 %v2342, %v1922
        %v2595 = vmul.f32 %v2353, %v1923
        %v2596 = vmul.f32 %v2364, %v1924
        %v2597 = vmul.f32 %v2375, %v1925
        %v2598 = vmul.f32 %v2386, %v1926
        %v2599 = vmul.f32 %v2397, %v1927
        %v2600 = vmul.f32 %v2408, %v1928
        %v2601 = vmul.f32 %v2419, %v1929
        %v2602 = vmul.f32 %v2430, %v1930
        %v2603 = vmul.f32 %v2441, %v1931
        %v2604 = vmul.f32 %v2452, %v1932
        %v2605 = vmul.f32 %v2463, %v1933
        %v2606 = vmul.f32 %v2474, %v1934
        %v2607 = vmul.f32 %v2485, %v1935
        %v2608 = vmul.f32 %v2496, %v1936
        %v2609 = vmul.f32 %v2507, %v1937
        %v2610 = vmul.f32 %v2518, %v1938
        %v2611 = vmul.f32 %v2529, %v1939
        %v2612 = vmul.f32 %v2540, %v1940
        %v2613 = vmul.f32 %v2551, %v1941
        %v2614 = vmul.f32 %v2562, %v1942
        %v2615 = vmul.f32 %v2573, %v1943
        %v2616 = vmul.f32 %v2584, %v1944
        %v2617 = vpack.c.bf16 %v2585, %v2585
        %v2618 = vpack.c.bf16 %v2586, %v2586
        %v2619 = vpack.c.bf16 %v2587, %v2587
        %v2620 = vpack.c.bf16 %v2588, %v2588
        %v2621 = vpack.c.bf16 %v2589, %v2589
        %v2622 = vpack.c.bf16 %v2590, %v2590
        %v2623 = vpack.c.bf16 %v2591, %v2591
        %v2624 = vpack.c.bf16 %v2592, %v2592
        %v2625 = vpack.c.bf16 %v2593, %v2593
        %v2626 = vpack.c.bf16 %v2594, %v2594
        %v2627 = vpack.c.bf16 %v2595, %v2595
        %v2628 = vpack.c.bf16 %v2596, %v2596
        %v2629 = vpack.c.bf16 %v2597, %v2597
        %v2630 = vpack.c.bf16 %v2598, %v2598
        %v2631 = vpack.c.bf16 %v2599, %v2599
        %v2632 = vpack.c.bf16 %v2600, %v2600
        %v2633 = vpack.c.bf16 %v2601, %v2601
        %v2634 = vpack.c.bf16 %v2602, %v2602
        %v2635 = vpack.c.bf16 %v2603, %v2603
        %v2636 = vpack.c.bf16 %v2604, %v2604
        %v2637 = vpack.c.bf16 %v2605, %v2605
        %v2638 = vpack.c.bf16 %v2606, %v2606
        %v2639 = vpack.c.bf16 %v2607, %v2607
        %v2640 = vpack.c.bf16 %v2608, %v2608
        %v2641 = vpack.c.bf16 %v2609, %v2609
        %v2642 = vpack.c.bf16 %v2610, %v2610
        %v2643 = vpack.c.bf16 %v2611, %v2611
        %v2644 = vpack.c.bf16 %v2612, %v2612
        %v2645 = vpack.c.bf16 %v2613, %v2613
        %v2646 = vpack.c.bf16 %v2614, %v2614
        %v2647 = vpack.c.bf16 %v2615, %v2615
        %v2648 = vpack.c.bf16 %v2616, %v2616
        %v2649 = vld [vmem:[%s4] sm:$0xf]
        %v2650 = vld [vmem:[%s4 + $0x4] sm:$0xf]
        %v2651 = vld [vmem:[%s4 + $0x8] sm:$0xf]
        %v2652 = vld [vmem:[%s4 + $0xc] sm:$0xf]
        %v2653 = vld [vmem:[%s5] sm:$0x1]
        %v2655 = vlaneseq
        %v2656 = vshrl.u32 %v2655, 7
        %v2657 = vsub.s32 0, %v2656
        %v2658 = vrot.slane %v2653, %v2657
        %v2692 = vunpack.c.l.b16 %v2617
        %v2693 = vunpack.c.l.b16 %v2618
        %v2694 = vunpack.c.l.b16 %v2619
        %v2695 = vunpack.c.l.b16 %v2620
        %v2696 = vunpack.c.l.b16 %v2621
        %v2697 = vunpack.c.l.b16 %v2622
        %v2698 = vunpack.c.l.b16 %v2623
        %v2699 = vunpack.c.l.b16 %v2624
        %v2700 = vunpack.c.l.b16 %v2625
        %v2701 = vunpack.c.l.b16 %v2626
        %v2702 = vunpack.c.l.b16 %v2627
        %v2703 = vunpack.c.l.b16 %v2628
        %v2704 = vunpack.c.l.b16 %v2629
        %v2705 = vunpack.c.l.b16 %v2630
        %v2706 = vunpack.c.l.b16 %v2631
        %v2707 = vunpack.c.l.b16 %v2632
        %v2708 = vunpack.c.l.b16 %v2633
        %v2709 = vunpack.c.l.b16 %v2634
        %v2710 = vunpack.c.l.b16 %v2635
        %v2711 = vunpack.c.l.b16 %v2636
        %v2712 = vunpack.c.l.b16 %v2637
        %v2713 = vunpack.c.l.b16 %v2638
        %v2714 = vunpack.c.l.b16 %v2639
        %v2715 = vunpack.c.l.b16 %v2640
        %v2716 = vunpack.c.l.b16 %v2641
        %v2717 = vunpack.c.l.b16 %v2642
        %v2718 = vunpack.c.l.b16 %v2643
        %v2719 = vunpack.c.l.b16 %v2644
        %v2720 = vunpack.c.l.b16 %v2645
        %v2721 = vunpack.c.l.b16 %v2646
        %v2722 = vunpack.c.l.b16 %v2647
        %v2723 = vunpack.c.l.b16 %v2648
        %vm2724 = vcmask 1041409
        %v2725 = vsel %vm2724, %v2693, %v2692
        %vm2726 = vcmask 1042434
        %v2727 = vsel %vm2726, %v2694, %v2725
        %vm2728 = vcmask 1043459
        %v2729 = vsel %vm2728, %v2695, %v2727
        %vm2730 = vcmask 1044484
        %v2731 = vsel %vm2730, %v2696, %v2729
        %vm2732 = vcmask 1045509
        %v2733 = vsel %vm2732, %v2697, %v2731
        %vm2734 = vcmask 1046534
        %v2735 = vsel %vm2734, %v2698, %v2733
        %vm2736 = vcmask 1047559
        %v2737 = vsel %vm2736, %v2699, %v2735
        %v2738 = vsel %vm2724, %v2701, %v2700
        %v2739 = vsel %vm2726, %v2702, %v2738
        %v2740 = vsel %vm2728, %v2703, %v2739
        %v2741 = vsel %vm2730, %v2704, %v2740
        %v2742 = vsel %vm2732, %v2705, %v2741
        %v2743 = vsel %vm2734, %v2706, %v2742
        %v2744 = vsel %vm2736, %v2707, %v2743
        %v2745 = vsel %vm2724, %v2709, %v2708
        %v2746 = vsel %vm2726, %v2710, %v2745
        %v2747 = vsel %vm2728, %v2711, %v2746
        %v2748 = vsel %vm2730, %v2712, %v2747
        %v2749 = vsel %vm2732, %v2713, %v2748
        %v2750 = vsel %vm2734, %v2714, %v2749
        %v2751 = vsel %vm2736, %v2715, %v2750
        %v2752 = vsel %vm2724, %v2717, %v2716
        %v2753 = vsel %vm2726, %v2718, %v2752
        %v2754 = vsel %vm2728, %v2719, %v2753
        %v2755 = vsel %vm2730, %v2720, %v2754
        %v2756 = vsel %vm2732, %v2721, %v2755
        %v2757 = vsel %vm2734, %v2722, %v2756
        %v2758 = vsel %vm2736, %v2723, %v2757
        %v2759 = vpack.c.b16 %v2744, %v2737
        %v2760 = vpack.c.b16 %v2758, %v2751
        %v2765 = vunpack.c.l.b16 %v2649
        %v2766 = vunpack.c.l.b16 %v2650
        %v2767 = vunpack.c.l.b16 %v2651
        %v2768 = vunpack.c.l.b16 %v2652
        %v2769 = vpack.c.b16 %v2766, %v2765
        %v2770 = vpack.c.b16 %v2768, %v2767
        %v2774 = vsel %vm920, %v2759, 0
        %v2777 = vsel %vm920, %v2760, 0
        %2779 = vmatprep.subr.bf16.mxu0 0
        %2780 = vmatpush1.bf16.msra.mxu0 %v2769
        %2781 = vmatprep.subr.bf16.mxu0 0
        %2782 = vmatpush1.bf16.msra.mxu0 %v2770
        %2783 = vmatprep.subr.bf16.mxu0 0
        %2784 = vmatpush1.bf16.msra.mxu0 0
        %2785 = vmatprep.subr.bf16.mxu0 0
        %2786 = vmatpush1.bf16.msra.mxu0 0
        %2787 = vmatprep.subr.bf16.mxu0 0
        %2788 = vmatpush1.bf16.msra.mxu0 0
        %2789 = vmatprep.subr.bf16.mxu0 0
        %2790 = vmatpush1.bf16.msra.mxu0 0
        %2791 = vmatprep.subr.bf16.mxu0 0
        %2792 = vmatpush1.bf16.msra.mxu0 0
        %2793 = vmatprep.subr.bf16.mxu0 0
        %2794 = vmatpush1.bf16.msra.mxu0 0
        %2795 = vmatprep.subr.bf16.mxu0 0
        %2796 = vmatpush1.bf16.msra.mxu0 0
        %2797 = vmatprep.subr.bf16.mxu0 0
        %2798 = vmatpush1.bf16.msra.mxu0 0
        %2799 = vmatprep.subr.bf16.mxu0 0
        %2800 = vmatpush1.bf16.msra.mxu0 0
        %2801 = vmatprep.subr.bf16.mxu0 0
        %2802 = vmatpush1.bf16.msra.mxu0 0
        %2803 = vmatprep.subr.bf16.mxu0 0
        %2804 = vmatpush1.bf16.msra.mxu0 0
        %2805 = vmatprep.subr.bf16.mxu0 0
        %2806 = vmatpush1.bf16.msra.mxu0 0
        %2807 = vmatprep.subr.bf16.mxu0 0
        %2808 = vmatpush1.bf16.msra.mxu0 0
        %2809 = vmatprep.subr.bf16.mxu0 0
        %2810 = vmatpush1.bf16.msra.mxu0 0
        %2811 = vmatprep.mubr.bf16.mxu0 0
        %2812 = vmatmul.mubr.bf16.gmra.mrb[0].mxu0 %v2774
        %v2813 = vpop.f32.mrb[0].mxu0
        %v2814 = vadd.f32 %v2658, %v2813
        %v2815 = vpop.f32.mrb[0].mxu0
        %v2816 = vpop.f32.mrb[0].mxu0
        %v2817 = vadd.f32 %v2658, %v2816
        %v2818 = vpop.f32.mrb[0].mxu0
        %2819 = vmatprep.mubr.bf16.mxu0 0
        %2820 = vmatmul.mubr.bf16.gmra.mrb[0].mxu0 %v2777
        %v2821 = vpop.f32.mrb[0].mxu0
        %v2822 = vadd.f32 %v2658, %v2821
        %v2823 = vpop.f32.mrb[0].mxu0
        %v2824 = vpop.f32.mrb[0].mxu0
        %v2825 = vadd.f32 %v2658, %v2824
        %v2826 = vpop.f32.mrb[0].mxu0
        %2827 = vdwg.mxu0
        %v2828 = vld [vmem:[%s435] sm:$0xff]
        %v2829 = vld [vmem:[%s435 + $0x8] sm:$0xff]
        %v2830 = vld [vmem:[%s435 + $0x10] sm:$0xff]
        %v2831 = vld [vmem:[%s435 + $0x18] sm:$0xff]
        %v2832 = vadd.f32 %v2814, %v2828
        %v2833 = vadd.f32 %v2817, %v2829
        %v2834 = vadd.f32 %v2822, %v2830
        %v2835 = vadd.f32 %v2825, %v2831
        %2836 = vst.msk [vmem:[%s393] sm:$0xff] %vm920, %v2832
        %2837 = vst.msk [vmem:[%s393 + $0x8] sm:$0xff] %vm920, %v2833
        %2838 = vst.msk [vmem:[%s393 + $0x10] sm:$0xff] %vm920, %v2834
        %2839 = vst.msk [vmem:[%s393 + $0x18] sm:$0xff] %vm920, %v2835
        %s2840 = sand.u32 %s201, 1
        %s2841 = scalar_lea.sflag [#allocation3], %s2840
        %s2842 = sand.u32 %s201, 1
        %s2843 = smul.addr %s2842, 768
        %s2844 = scalar_lea.vmem [#allocation2], %s2843
        %s2845 = sand.u32 %s229, 1
        %s2846 = scalar_lea.sflag [#allocation5], %s2845
        %s2847 = sand.u32 %s229, 1
        %s2848 = smul.addr %s2847, 32
        %s2849 = scalar_lea.vmem [#allocation4], %s2848
        // Predicated region
        $region45: #{transformer_block_fc.7} parent=43 // pred_check
          %p2850 = pneg %p211
        $region46: #{transformer_block_fc.7} parent=43 // pred_check_branch
          %2852 = sbr.rel (%p2850) target = $region48
        $region47: #{transformer_block_fc.7} parent=43 // pred_region
          %s2853 = smul.u32 32, %s30
          %s2855 = ssub.s32 12288, 12288
          %2856 = vsyncadd %s2841, %s2855
          %s2857 = smul.addr %s2853, 3
          %s2858 = smul.addr %s29, 96
          %s2859 = sadd.s32 %s2857, %s2858
          %s2860 = smul.addr %s2859, 128
          %s2861 = scalar_lea.hbm %s6, %s2860
          %s2862 = sshll.u32 %s2844, 4
          %s2863 = int_to_ptr.vmem [resolvable:$true] %s2862
          %2868 = dma.vmem_to_hbm [thread:$0]  %s2863, 12288, %s2861, %s2841, 128, 128, 8
        $region48: #{transformer_block_fc.7} parent=43 // pred_fallthru
          _
        // Predicated region
        $region49: #{transformer_block_fc.7} parent=43 // pred_check
          %p2869 = pneg %p239
        $region50: #{transformer_block_fc.7} parent=43 // pred_check_branch
          %2871 = sbr.rel (%p2869) target = $region52
        $region51: #{transformer_block_fc.7} parent=43 // pred_region
          %s2872 = smul.u32 4, %s30
          %s2874 = ssub.s32 512, 512
          %2875 = vsyncadd %s2846, %s2874
          %s2876 = smul.addr %s29, 4
          %s2877 = sadd.s32 %s2872, %s2876
          %s2878 = smul.addr %s2877, 128
          %s2879 = scalar_lea.hbm %s7, %s2878
          %s2880 = sshll.u32 %s2849, 4
          %s2881 = int_to_ptr.vmem [resolvable:$true] %s2880
          %2886 = dma.vmem_to_hbm [thread:$0]  %s2881, 512, %s2879, %s2846, 128, 128, 8
        $region52: #{transformer_block_fc.7} parent=43 // pred_fallthru
          _
      $region44: #{transformer_block_fc.7} parent=5 // pred_fallthru
        _
      %p2887 = scmp.le.s32.totalorder 2, %s20
      // Predicated region
      $region53: #{transformer_block_fc.7} parent=5 // pred_check
        %p2888 = pneg %p2887
      $region54: #{transformer_block_fc.7} parent=5 // pred_check_branch
        %2890 = sbr.rel (%p2888) target = $region56
      $region55: #{transformer_block_fc.7} parent=5 // pred_region
        %s2891 = ssub.s32 %s20, 2
        // Predicated region
        $region57: #{transformer_block_fc.7} parent=55 // pred_check
          %p2892 = pneg %p217
        $region58: #{transformer_block_fc.7} parent=55 // pred_check_branch
          %2894 = sbr.rel (%p2892) target = $region60
        $region59: #{transformer_block_fc.7} parent=55 // pred_region
          %s2895 = sand.u32 %s202, 1
          %s2896 = scalar_lea.sflag [#allocation3], %s2895
          %s2897 = sand.u32 %s202, 1
          %s2898 = smul.addr %s2897, 768
          %s2899 = scalar_lea.vmem [#allocation2], %s2898
          %2900 = dma.done %s2896, 12288
        $region60: #{transformer_block_fc.7} parent=55 // pred_fallthru
          _
        // Predicated region
        $region61: #{transformer_block_fc.7} parent=55 // pred_check
          %p2901 = pneg %p245
        $region62: #{transformer_block_fc.7} parent=55 // pred_check_branch
          %2903 = sbr.rel (%p2901) target = $region64
        $region63: #{transformer_block_fc.7} parent=55 // pred_region
          %s2904 = sand.u32 %s230, 1
          %s2905 = scalar_lea.sflag [#allocation5], %s2904
          %s2906 = sand.u32 %s230, 1
          %s2907 = smul.addr %s2906, 32
          %s2908 = scalar_lea.vmem [#allocation4], %s2907
          %2909 = dma.done %s2905, 512
        $region64: #{transformer_block_fc.7} parent=55 // pred_fallthru
          _
      $region56: #{transformer_block_fc.7} parent=5 // pred_fallthru
        _
    $region6: #{transformer_block_fc.7} parent=1 // loop_footer
      %s24 = sadd.s32 1, %s20
    $region7: #{transformer_block_fc.7} parent=1 // loop_footer_branch
      %19 = sbr.rel target = $region3
    $region8: #{transformer_block_fc.7} parent=1 // loop_exit
      _
    %2910 = vsyncpa [#allocation3], 1
    %s2911 = scalar_lea.sflag [#allocation3], 1
    %2912 = vsyncpa %s2911, 1
    %2913 = vsyncpa [#allocation5], 1
    %s2914 = scalar_lea.sflag [#allocation5], 1
    %2915 = vsyncpa %s2914, 1

// kernel: transformer_block_fc.6
$region0: #{transformer_block_fc.6}
  #allocation0 [shape = 'u32[]', space=smem, size = 0x4, offset = 0x4, fixed_abs, tag = 'smem constant byte address 0x4 - core index']
  #allocation1 [shape = 'u32[144,128]{1,0:T(1,128)}', space=vmem, size = 0x12000, scoped, tag = 'internal scratch']
  %s0 = inlined_call_operand.vmem [shape: f32[64,32], index: 0, kind: input, shape index: {}]
  %s1 = inlined_call_operand.vmem [shape: f32[64,768], index: 1, kind: input, shape index: {}]
  %s2 = inlined_call_operand.vmem [shape: f32[64,768], index: 2, kind: input, shape index: {}]
  %s3 = inlined_call_operand.vmem [shape: bf16[768,768], index: 3, kind: input, shape index: {}]
  %s4 = inlined_call_operand.vmem [shape: bf16[32,768], index: 4, kind: input, shape index: {}]
  %s5 = inlined_call_operand.vmem [shape: f32[1,768], index: 5, kind: input, shape index: {}]
  %s6 = inlined_call_operand.vmem [shape: f32[64,768], index: 6, kind: output, shape index: {}]
  %s7 = sld [smem:[#allocation0]]
  $region34: #{transformer_block_fc.6} parent=0
    _
  %s9 = ssub.s32 1, %s7
  %s10 = scalar_select 0, %s9, %s7
  // Predicated region
  $region2: #{transformer_block_fc.6} parent=0 // pred_check
    _
  $region3: #{transformer_block_fc.6} parent=0 // pred_check_branch
    %12 = sbr.rel (0) target = $region5
  $region4: #{transformer_block_fc.6} parent=0 // pred_region
    _
  $region5: #{transformer_block_fc.6} parent=0 // pred_fallthru
    _
  // Predicated region
  $region6: #{transformer_block_fc.6} parent=0 // pred_check
    _
  $region7: #{transformer_block_fc.6} parent=0 // pred_check_branch
    %14 = sbr.rel (0) target = $region9
  $region8: #{transformer_block_fc.6} parent=0 // pred_region
    _
  $region9: #{transformer_block_fc.6} parent=0 // pred_fallthru
    _
  // Predicated region
  $region10: #{transformer_block_fc.6} parent=0 // pred_check
    _
  $region11: #{transformer_block_fc.6} parent=0 // pred_check_branch
    %16 = sbr.rel (0) target = $region13
  $region12: #{transformer_block_fc.6} parent=0 // pred_region
    _
  $region13: #{transformer_block_fc.6} parent=0 // pred_fallthru
    _
  // Predicated region
  $region14: #{transformer_block_fc.6} parent=0 // pred_check
    _
  $region15: #{transformer_block_fc.6} parent=0 // pred_check_branch
    %18 = sbr.rel (0) target = $region17
  $region16: #{transformer_block_fc.6} parent=0 // pred_region
    _
  $region17: #{transformer_block_fc.6} parent=0 // pred_fallthru
    _
  // Predicated region
  $region18: #{transformer_block_fc.6} parent=0 // pred_check
    _
  $region19: #{transformer_block_fc.6} parent=0 // pred_check_branch
    %20 = sbr.rel (0) target = $region21
  $region20: #{transformer_block_fc.6} parent=0 // pred_region
    _
  $region21: #{transformer_block_fc.6} parent=0 // pred_fallthru
    _
  // Predicated region
  $region22: #{transformer_block_fc.6} parent=0 // pred_check
    _
  $region23: #{transformer_block_fc.6} parent=0 // pred_check_branch
    %22 = sbr.rel (0) target = $region25
  $region24: #{transformer_block_fc.6} parent=0 // pred_region
    _
  $region25: #{transformer_block_fc.6} parent=0 // pred_fallthru
    _
  %v24 = vld [vmem:[%s2] sm:$0xff]
  %v25 = vld [vmem:[%s2 + $0x8] sm:$0xff]
  %v26 = vld [vmem:[%s2 + $0x10] sm:$0xff]
  %v27 = vld [vmem:[%s2 + $0x18] sm:$0xff]
  %v28 = vld [vmem:[%s2 + $0x20] sm:$0xff]
  %v29 = vld [vmem:[%s2 + $0x28] sm:$0xff]
  %v30 = vld [vmem:[%s2 + $0x30] sm:$0xff]
  %v31 = vld [vmem:[%s2 + $0x38] sm:$0xff]
  %v32 = vld [vmem:[%s2 + $0x40] sm:$0xff]
  %v33 = vld [vmem:[%s2 + $0x48] sm:$0xff]
  %v34 = vld [vmem:[%s2 + $0x50] sm:$0xff]
  %v35 = vld [vmem:[%s2 + $0x58] sm:$0xff]
  %v36 = vld [vmem:[%s2 + $0x60] sm:$0xff]
  %v37 = vld [vmem:[%s2 + $0x68] sm:$0xff]
  %v38 = vld [vmem:[%s2 + $0x70] sm:$0xff]
  %v39 = vld [vmem:[%s2 + $0x78] sm:$0xff]
  %v40 = vld [vmem:[%s2 + $0x80] sm:$0xff]
  %v41 = vld [vmem:[%s2 + $0x88] sm:$0xff]
  %v42 = vld [vmem:[%s2 + $0x90] sm:$0xff]
  %v43 = vld [vmem:[%s2 + $0x98] sm:$0xff]
  %v44 = vld [vmem:[%s2 + $0xa0] sm:$0xff]
  %v45 = vld [vmem:[%s2 + $0xa8] sm:$0xff]
  %v46 = vld [vmem:[%s2 + $0xb0] sm:$0xff]
  %v47 = vld [vmem:[%s2 + $0xb8] sm:$0xff]
  %v48 = vld [vmem:[%s2 + $0xc0] sm:$0xff]
  %v49 = vld [vmem:[%s2 + $0xc8] sm:$0xff]
  %v50 = vld [vmem:[%s2 + $0xd0] sm:$0xff]
  %v51 = vld [vmem:[%s2 + $0xd8] sm:$0xff]
  %v52 = vld [vmem:[%s2 + $0xe0] sm:$0xff]
  %v53 = vld [vmem:[%s2 + $0xe8] sm:$0xff]
  %v54 = vld [vmem:[%s2 + $0xf0] sm:$0xff]
  %v55 = vld [vmem:[%s2 + $0xf8] sm:$0xff]
  %v56 = vld [vmem:[%s2 + $0x100] sm:$0xff]
  %v57 = vld [vmem:[%s2 + $0x108] sm:$0xff]
  %v58 = vld [vmem:[%s2 + $0x110] sm:$0xff]
  %v59 = vld [vmem:[%s2 + $0x118] sm:$0xff]
  %v60 = vld [vmem:[%s2 + $0x120] sm:$0xff]
  %v61 = vld [vmem:[%s2 + $0x128] sm:$0xff]
  %v62 = vld [vmem:[%s2 + $0x130] sm:$0xff]
  %v63 = vld [vmem:[%s2 + $0x138] sm:$0xff]
  %v64 = vld [vmem:[%s2 + $0x140] sm:$0xff]
  %v65 = vld [vmem:[%s2 + $0x148] sm:$0xff]
  %v66 = vld [vmem:[%s2 + $0x150] sm:$0xff]
  %v67 = vld [vmem:[%s2 + $0x158] sm:$0xff]
  %v68 = vld [vmem:[%s2 + $0x160] sm:$0xff]
  %v69 = vld [vmem:[%s2 + $0x168] sm:$0xff]
  %v70 = vld [vmem:[%s2 + $0x170] sm:$0xff]
  %v71 = vld [vmem:[%s2 + $0x178] sm:$0xff]
  %v72 = vld [vmem:[%s1] sm:$0xff]
  %v73 = vld [vmem:[%s1 + $0x8] sm:$0xff]
  %v74 = vld [vmem:[%s1 + $0x10] sm:$0xff]
  %v75 = vld [vmem:[%s1 + $0x18] sm:$0xff]
  %v76 = vld [vmem:[%s1 + $0x20] sm:$0xff]
  %v77 = vld [vmem:[%s1 + $0x28] sm:$0xff]
  %v78 = vld [vmem:[%s1 + $0x30] sm:$0xff]
  %v79 = vld [vmem:[%s1 + $0x38] sm:$0xff]
  %v80 = vld [vmem:[%s1 + $0x40] sm:$0xff]
  %v81 = vld [vmem:[%s1 + $0x48] sm:$0xff]
  %v82 = vld [vmem:[%s1 + $0x50] sm:$0xff]
  %v83 = vld [vmem:[%s1 + $0x58] sm:$0xff]
  %v84 = vld [vmem:[%s1 + $0x60] sm:$0xff]
  %v85 = vld [vmem:[%s1 + $0x68] sm:$0xff]
  %v86 = vld [vmem:[%s1 + $0x70] sm:$0xff]
  %v87 = vld [vmem:[%s1 + $0x78] sm:$0xff]
  %v88 = vld [vmem:[%s1 + $0x80] sm:$0xff]
  %v89 = vld [vmem:[%s1 + $0x88] sm:$0xff]
  %v90 = vld [vmem:[%s1 + $0x90] sm:$0xff]
  %v91 = vld [vmem:[%s1 + $0x98] sm:$0xff]
  %v92 = vld [vmem:[%s1 + $0xa0] sm:$0xff]
  %v93 = vld [vmem:[%s1 + $0xa8] sm:$0xff]
  %v94 = vld [vmem:[%s1 + $0xb0] sm:$0xff]
  %v95 = vld [vmem:[%s1 + $0xb8] sm:$0xff]
  %v96 = vld [vmem:[%s1 + $0xc0] sm:$0xff]
  %v97 = vld [vmem:[%s1 + $0xc8] sm:$0xff]
  %v98 = vld [vmem:[%s1 + $0xd0] sm:$0xff]
  %v99 = vld [vmem:[%s1 + $0xd8] sm:$0xff]
  %v100 = vld [vmem:[%s1 + $0xe0] sm:$0xff]
  %v101 = vld [vmem:[%s1 + $0xe8] sm:$0xff]
  %v102 = vld [vmem:[%s1 + $0xf0] sm:$0xff]
  %v103 = vld [vmem:[%s1 + $0xf8] sm:$0xff]
  %v104 = vld [vmem:[%s1 + $0x100] sm:$0xff]
  %v105 = vld [vmem:[%s1 + $0x108] sm:$0xff]
  %v106 = vld [vmem:[%s1 + $0x110] sm:$0xff]
  %v107 = vld [vmem:[%s1 + $0x118] sm:$0xff]
  %v108 = vld [vmem:[%s1 + $0x120] sm:$0xff]
  %v109 = vld [vmem:[%s1 + $0x128] sm:$0xff]
  %v110 = vld [vmem:[%s1 + $0x130] sm:$0xff]
  %v111 = vld [vmem:[%s1 + $0x138] sm:$0xff]
  %v112 = vld [vmem:[%s1 + $0x140] sm:$0xff]
  %v113 = vld [vmem:[%s1 + $0x148] sm:$0xff]
  %v114 = vld [vmem:[%s1 + $0x150] sm:$0xff]
  %v115 = vld [vmem:[%s1 + $0x158] sm:$0xff]
  %v116 = vld [vmem:[%s1 + $0x160] sm:$0xff]
  %v117 = vld [vmem:[%s1 + $0x168] sm:$0xff]
  %v118 = vld [vmem:[%s1 + $0x170] sm:$0xff]
  %v119 = vld [vmem:[%s1 + $0x178] sm:$0xff]
  %v120 = vsub.f32 %v24, %v72
  %v121 = vsub.f32 %v25, %v73
  %v122 = vsub.f32 %v26, %v74
  %v123 = vsub.f32 %v27, %v75
  %v124 = vsub.f32 %v28, %v76
  %v125 = vsub.f32 %v29, %v77
  %v126 = vsub.f32 %v30, %v78
  %v127 = vsub.f32 %v31, %v79
  %v128 = vsub.f32 %v32, %v80
  %v129 = vsub.f32 %v33, %v81
  %v130 = vsub.f32 %v34, %v82
  %v131 = vsub.f32 %v35, %v83
  %v132 = vsub.f32 %v36, %v84
  %v133 = vsub.f32 %v37, %v85
  %v134 = vsub.f32 %v38, %v86
  %v135 = vsub.f32 %v39, %v87
  %v136 = vsub.f32 %v40, %v88
  %v137 = vsub.f32 %v41, %v89
  %v138 = vsub.f32 %v42, %v90
  %v139 = vsub.f32 %v43, %v91
  %v140 = vsub.f32 %v44, %v92
  %v141 = vsub.f32 %v45, %v93
  %v142 = vsub.f32 %v46, %v94
  %v143 = vsub.f32 %v47, %v95
  %v144 = vsub.f32 %v48, %v96
  %v145 = vsub.f32 %v49, %v97
  %v146 = vsub.f32 %v50, %v98
  %v147 = vsub.f32 %v51, %v99
  %v148 = vsub.f32 %v52, %v100
  %v149 = vsub.f32 %v53, %v101
  %v150 = vsub.f32 %v54, %v102
  %v151 = vsub.f32 %v55, %v103
  %v152 = vsub.f32 %v56, %v104
  %v153 = vsub.f32 %v57, %v105
  %v154 = vsub.f32 %v58, %v106
  %v155 = vsub.f32 %v59, %v107
  %v156 = vsub.f32 %v60, %v108
  %v157 = vsub.f32 %v61, %v109
  %v158 = vsub.f32 %v62, %v110
  %v159 = vsub.f32 %v63, %v111
  %v160 = vsub.f32 %v64, %v112
  %v161 = vsub.f32 %v65, %v113
  %v162 = vsub.f32 %v66, %v114
  %v163 = vsub.f32 %v67, %v115
  %v164 = vsub.f32 %v68, %v116
  %v165 = vsub.f32 %v69, %v117
  %v166 = vsub.f32 %v70, %v118
  %v167 = vsub.f32 %v71, %v119
  %v168 = vpack.c.bf16 %v126, %v120
  %v169 = vpack.c.bf16 %v127, %v121
  %v170 = vpack.c.bf16 %v128, %v122
  %v171 = vpack.c.bf16 %v129, %v123
  %v172 = vpack.c.bf16 %v130, %v124
  %v173 = vpack.c.bf16 %v131, %v125
  %v174 = vpack.c.bf16 %v138, %v132
  %v175 = vpack.c.bf16 %v139, %v133
  %v176 = vpack.c.bf16 %v140, %v134
  %v177 = vpack.c.bf16 %v141, %v135
  %v178 = vpack.c.bf16 %v142, %v136
  %v179 = vpack.c.bf16 %v143, %v137
  %v180 = vpack.c.bf16 %v150, %v144
  %v181 = vpack.c.bf16 %v151, %v145
  %v182 = vpack.c.bf16 %v152, %v146
  %v183 = vpack.c.bf16 %v153, %v147
  %v184 = vpack.c.bf16 %v154, %v148
  %v185 = vpack.c.bf16 %v155, %v149
  %v186 = vpack.c.bf16 %v162, %v156
  %v187 = vpack.c.bf16 %v163, %v157
  %v188 = vpack.c.bf16 %v164, %v158
  %v189 = vpack.c.bf16 %v165, %v159
  %v190 = vpack.c.bf16 %v166, %v160
  %v191 = vpack.c.bf16 %v167, %v161
  %v192 = vld [vmem:[%s0] sm:$0xff]
  %v193 = vld [vmem:[%s0 + $0x8] sm:$0xff]
  %v194 = vld [vmem:[%s0 + $0x10] sm:$0xff]
  %v195 = vld [vmem:[%s0 + $0x18] sm:$0xff]
  %v196 = vld [vmem:[%s0 + $0x20] sm:$0xff]
  %v197 = vld [vmem:[%s0 + $0x28] sm:$0xff]
  %v198 = vld [vmem:[%s0 + $0x30] sm:$0xff]
  %v199 = vld [vmem:[%s0 + $0x38] sm:$0xff]
  %v200 = vpack.c.bf16 %v193, %v192
  %v201 = vpack.c.bf16 %v195, %v194
  %v202 = vpack.c.bf16 %v197, %v196
  %v203 = vpack.c.bf16 %v199, %v198
  %v204 = vld [vmem:[%s3] sm:$0xff]
  %v205 = vld [vmem:[%s3 + $0x8] sm:$0xff]
  %v206 = vld [vmem:[%s3 + $0x10] sm:$0xff]
  %v207 = vld [vmem:[%s3 + $0x18] sm:$0xff]
  %v208 = vld [vmem:[%s3 + $0x20] sm:$0xff]
  %v209 = vld [vmem:[%s3 + $0x28] sm:$0xff]
  %v210 = vld [vmem:[%s3 + $0x30] sm:$0xff]
  %v211 = vld [vmem:[%s3 + $0x38] sm:$0xff]
  %v212 = vld [vmem:[%s3 + $0x40] sm:$0xff]
  %v213 = vld [vmem:[%s3 + $0x48] sm:$0xff]
  %v214 = vld [vmem:[%s3 + $0x50] sm:$0xff]
  %v215 = vld [vmem:[%s3 + $0x58] sm:$0xff]
  %v216 = vld [vmem:[%s3 + $0x60] sm:$0xff]
  %v217 = vld [vmem:[%s3 + $0x68] sm:$0xff]
  %v218 = vld [vmem:[%s3 + $0x70] sm:$0xff]
  %v219 = vld [vmem:[%s3 + $0x78] sm:$0xff]
  %v220 = vld [vmem:[%s3 + $0x80] sm:$0xff]
  %v221 = vld [vmem:[%s3 + $0x88] sm:$0xff]
  %v222 = vld [vmem:[%s3 + $0x90] sm:$0xff]
  %v223 = vld [vmem:[%s3 + $0x98] sm:$0xff]
  %v224 = vld [vmem:[%s3 + $0xa0] sm:$0xff]
  %v225 = vld [vmem:[%s3 + $0xa8] sm:$0xff]
  %v226 = vld [vmem:[%s3 + $0xb0] sm:$0xff]
  %v227 = vld [vmem:[%s3 + $0xb8] sm:$0xff]
  %v228 = vld [vmem:[%s3 + $0xc0] sm:$0xff]
  %v229 = vld [vmem:[%s3 + $0xc8] sm:$0xff]
  %v230 = vld [vmem:[%s3 + $0xd0] sm:$0xff]
  %v231 = vld [vmem:[%s3 + $0xd8] sm:$0xff]
  %v232 = vld [vmem:[%s3 + $0xe0] sm:$0xff]
  %v233 = vld [vmem:[%s3 + $0xe8] sm:$0xff]
  %v234 = vld [vmem:[%s3 + $0xf0] sm:$0xff]
  %v235 = vld [vmem:[%s3 + $0xf8] sm:$0xff]
  %v236 = vld [vmem:[%s3 + $0x100] sm:$0xff]
  %v237 = vld [vmem:[%s3 + $0x108] sm:$0xff]
  %v238 = vld [vmem:[%s3 + $0x110] sm:$0xff]
  %v239 = vld [vmem:[%s3 + $0x118] sm:$0xff]
  %v240 = vld [vmem:[%s3 + $0x120] sm:$0xff]
  %v241 = vld [vmem:[%s3 + $0x128] sm:$0xff]
  %v242 = vld [vmem:[%s3 + $0x130] sm:$0xff]
  %v243 = vld [vmem:[%s3 + $0x138] sm:$0xff]
  %v244 = vld [vmem:[%s3 + $0x140] sm:$0xff]
  %v245 = vld [vmem:[%s3 + $0x148] sm:$0xff]
  %v246 = vld [vmem:[%s3 + $0x150] sm:$0xff]
  %v247 = vld [vmem:[%s3 + $0x158] sm:$0xff]
  %v248 = vld [vmem:[%s3 + $0x160] sm:$0xff]
  %v249 = vld [vmem:[%s3 + $0x168] sm:$0xff]
  %v250 = vld [vmem:[%s3 + $0x170] sm:$0xff]
  %v251 = vld [vmem:[%s3 + $0x178] sm:$0xff]
  %v252 = vld [vmem:[%s3 + $0x180] sm:$0xff]
  %v253 = vld [vmem:[%s3 + $0x188] sm:$0xff]
  %v254 = vld [vmem:[%s3 + $0x190] sm:$0xff]
  %v255 = vld [vmem:[%s3 + $0x198] sm:$0xff]
  %v256 = vld [vmem:[%s3 + $0x1a0] sm:$0xff]
  %v257 = vld [vmem:[%s3 + $0x1a8] sm:$0xff]
  %v258 = vld [vmem:[%s3 + $0x1b0] sm:$0xff]
  %v259 = vld [vmem:[%s3 + $0x1b8] sm:$0xff]
  %v260 = vld [vmem:[%s3 + $0x1c0] sm:$0xff]
  %v261 = vld [vmem:[%s3 + $0x1c8] sm:$0xff]
  %v262 = vld [vmem:[%s3 + $0x1d0] sm:$0xff]
  %v263 = vld [vmem:[%s3 + $0x1d8] sm:$0xff]
  %v264 = vld [vmem:[%s3 + $0x1e0] sm:$0xff]
  %v265 = vld [vmem:[%s3 + $0x1e8] sm:$0xff]
  %v266 = vld [vmem:[%s3 + $0x1f0] sm:$0xff]
  %v267 = vld [vmem:[%s3 + $0x1f8] sm:$0xff]
  %v268 = vld [vmem:[%s3 + $0x200] sm:$0xff]
  %v269 = vld [vmem:[%s3 + $0x208] sm:$0xff]
  %v270 = vld [vmem:[%s3 + $0x210] sm:$0xff]
  %v271 = vld [vmem:[%s3 + $0x218] sm:$0xff]
  %v272 = vld [vmem:[%s3 + $0x220] sm:$0xff]
  %v273 = vld [vmem:[%s3 + $0x228] sm:$0xff]
  %v274 = vld [vmem:[%s3 + $0x230] sm:$0xff]
  %v275 = vld [vmem:[%s3 + $0x238] sm:$0xff]
  %v276 = vld [vmem:[%s3 + $0x240] sm:$0xff]
  %v277 = vld [vmem:[%s3 + $0x248] sm:$0xff]
  %v278 = vld [vmem:[%s3 + $0x250] sm:$0xff]
  %v279 = vld [vmem:[%s3 + $0x258] sm:$0xff]
  %v280 = vld [vmem:[%s3 + $0x260] sm:$0xff]
  %v281 = vld [vmem:[%s3 + $0x268] sm:$0xff]
  %v282 = vld [vmem:[%s3 + $0x270] sm:$0xff]
  %v283 = vld [vmem:[%s3 + $0x278] sm:$0xff]
  %v284 = vld [vmem:[%s3 + $0x280] sm:$0xff]
  %v285 = vld [vmem:[%s3 + $0x288] sm:$0xff]
  %v286 = vld [vmem:[%s3 + $0x290] sm:$0xff]
  %v287 = vld [vmem:[%s3 + $0x298] sm:$0xff]
  %v288 = vld [vmem:[%s3 + $0x2a0] sm:$0xff]
  %v289 = vld [vmem:[%s3 + $0x2a8] sm:$0xff]
  %v290 = vld [vmem:[%s3 + $0x2b0] sm:$0xff]
  %v291 = vld [vmem:[%s3 + $0x2b8] sm:$0xff]
  %v292 = vld [vmem:[%s3 + $0x2c0] sm:$0xff]
  %v293 = vld [vmem:[%s3 + $0x2c8] sm:$0xff]
  %v294 = vld [vmem:[%s3 + $0x2d0] sm:$0xff]
  %v295 = vld [vmem:[%s3 + $0x2d8] sm:$0xff]
  %v296 = vld [vmem:[%s3 + $0x2e0] sm:$0xff]
  %v297 = vld [vmem:[%s3 + $0x2e8] sm:$0xff]
  %v298 = vld [vmem:[%s3 + $0x2f0] sm:$0xff]
  %v299 = vld [vmem:[%s3 + $0x2f8] sm:$0xff]
  %v300 = vld [vmem:[%s3 + $0x300] sm:$0xff]
  %v301 = vld [vmem:[%s3 + $0x308] sm:$0xff]
  %v302 = vld [vmem:[%s3 + $0x310] sm:$0xff]
  %v303 = vld [vmem:[%s3 + $0x318] sm:$0xff]
  %v304 = vld [vmem:[%s3 + $0x320] sm:$0xff]
  %v305 = vld [vmem:[%s3 + $0x328] sm:$0xff]
  %v306 = vld [vmem:[%s3 + $0x330] sm:$0xff]
  %v307 = vld [vmem:[%s3 + $0x338] sm:$0xff]
  %v308 = vld [vmem:[%s3 + $0x340] sm:$0xff]
  %v309 = vld [vmem:[%s3 + $0x348] sm:$0xff]
  %v310 = vld [vmem:[%s3 + $0x350] sm:$0xff]
  %v311 = vld [vmem:[%s3 + $0x358] sm:$0xff]
  %v312 = vld [vmem:[%s3 + $0x360] sm:$0xff]
  %v313 = vld [vmem:[%s3 + $0x368] sm:$0xff]
  %v314 = vld [vmem:[%s3 + $0x370] sm:$0xff]
  %v315 = vld [vmem:[%s3 + $0x378] sm:$0xff]
  %v316 = vld [vmem:[%s3 + $0x380] sm:$0xff]
  %v317 = vld [vmem:[%s3 + $0x388] sm:$0xff]
  %v318 = vld [vmem:[%s3 + $0x390] sm:$0xff]
  %v319 = vld [vmem:[%s3 + $0x398] sm:$0xff]
  %v320 = vld [vmem:[%s3 + $0x3a0] sm:$0xff]
  %v321 = vld [vmem:[%s3 + $0x3a8] sm:$0xff]
  %v322 = vld [vmem:[%s3 + $0x3b0] sm:$0xff]
  %v323 = vld [vmem:[%s3 + $0x3b8] sm:$0xff]
  %v324 = vld [vmem:[%s3 + $0x3c0] sm:$0xff]
  %v325 = vld [vmem:[%s3 + $0x3c8] sm:$0xff]
  %v326 = vld [vmem:[%s3 + $0x3d0] sm:$0xff]
  %v327 = vld [vmem:[%s3 + $0x3d8] sm:$0xff]
  %v328 = vld [vmem:[%s3 + $0x3e0] sm:$0xff]
  %v329 = vld [vmem:[%s3 + $0x3e8] sm:$0xff]
  %v330 = vld [vmem:[%s3 + $0x3f0] sm:$0xff]
  %v331 = vld [vmem:[%s3 + $0x3f8] sm:$0xff]
  %v332 = vld [vmem:[%s3 + $0x400] sm:$0xff]
  %v333 = vld [vmem:[%s3 + $0x408] sm:$0xff]
  %v334 = vld [vmem:[%s3 + $0x410] sm:$0xff]
  %v335 = vld [vmem:[%s3 + $0x418] sm:$0xff]
  %v336 = vld [vmem:[%s3 + $0x420] sm:$0xff]
  %v337 = vld [vmem:[%s3 + $0x428] sm:$0xff]
  %v338 = vld [vmem:[%s3 + $0x430] sm:$0xff]
  %v339 = vld [vmem:[%s3 + $0x438] sm:$0xff]
  %v340 = vld [vmem:[%s3 + $0x440] sm:$0xff]
  %v341 = vld [vmem:[%s3 + $0x448] sm:$0xff]
  %v342 = vld [vmem:[%s3 + $0x450] sm:$0xff]
  %v343 = vld [vmem:[%s3 + $0x458] sm:$0xff]
  %v344 = vld [vmem:[%s3 + $0x460] sm:$0xff]
  %v345 = vld [vmem:[%s3 + $0x468] sm:$0xff]
  %v346 = vld [vmem:[%s3 + $0x470] sm:$0xff]
  %v347 = vld [vmem:[%s3 + $0x478] sm:$0xff]
  %v348 = vld [vmem:[%s3 + $0x480] sm:$0xff]
  %v349 = vld [vmem:[%s3 + $0x488] sm:$0xff]
  %v350 = vld [vmem:[%s3 + $0x490] sm:$0xff]
  %v351 = vld [vmem:[%s3 + $0x498] sm:$0xff]
  %v352 = vld [vmem:[%s3 + $0x4a0] sm:$0xff]
  %v353 = vld [vmem:[%s3 + $0x4a8] sm:$0xff]
  %v354 = vld [vmem:[%s3 + $0x4b0] sm:$0xff]
  %v355 = vld [vmem:[%s3 + $0x4b8] sm:$0xff]
  %v356 = vld [vmem:[%s3 + $0x4c0] sm:$0xff]
  %v357 = vld [vmem:[%s3 + $0x4c8] sm:$0xff]
  %v358 = vld [vmem:[%s3 + $0x4d0] sm:$0xff]
  %v359 = vld [vmem:[%s3 + $0x4d8] sm:$0xff]
  %v360 = vld [vmem:[%s3 + $0x4e0] sm:$0xff]
  %v361 = vld [vmem:[%s3 + $0x4e8] sm:$0xff]
  %v362 = vld [vmem:[%s3 + $0x4f0] sm:$0xff]
  %v363 = vld [vmem:[%s3 + $0x4f8] sm:$0xff]
  %v364 = vld [vmem:[%s3 + $0x500] sm:$0xff]
  %v365 = vld [vmem:[%s3 + $0x508] sm:$0xff]
  %v366 = vld [vmem:[%s3 + $0x510] sm:$0xff]
  %v367 = vld [vmem:[%s3 + $0x518] sm:$0xff]
  %v368 = vld [vmem:[%s3 + $0x520] sm:$0xff]
  %v369 = vld [vmem:[%s3 + $0x528] sm:$0xff]
  %v370 = vld [vmem:[%s3 + $0x530] sm:$0xff]
  %v371 = vld [vmem:[%s3 + $0x538] sm:$0xff]
  %v372 = vld [vmem:[%s3 + $0x540] sm:$0xff]
  %v373 = vld [vmem:[%s3 + $0x548] sm:$0xff]
  %v374 = vld [vmem:[%s3 + $0x550] sm:$0xff]
  %v375 = vld [vmem:[%s3 + $0x558] sm:$0xff]
  %v376 = vld [vmem:[%s3 + $0x560] sm:$0xff]
  %v377 = vld [vmem:[%s3 + $0x568] sm:$0xff]
  %v378 = vld [vmem:[%s3 + $0x570] sm:$0xff]
  %v379 = vld [vmem:[%s3 + $0x578] sm:$0xff]
  %v380 = vld [vmem:[%s3 + $0x580] sm:$0xff]
  %v381 = vld [vmem:[%s3 + $0x588] sm:$0xff]
  %v382 = vld [vmem:[%s3 + $0x590] sm:$0xff]
  %v383 = vld [vmem:[%s3 + $0x598] sm:$0xff]
  %v384 = vld [vmem:[%s3 + $0x5a0] sm:$0xff]
  %v385 = vld [vmem:[%s3 + $0x5a8] sm:$0xff]
  %v386 = vld [vmem:[%s3 + $0x5b0] sm:$0xff]
  %v387 = vld [vmem:[%s3 + $0x5b8] sm:$0xff]
  %v388 = vld [vmem:[%s3 + $0x5c0] sm:$0xff]
  %v389 = vld [vmem:[%s3 + $0x5c8] sm:$0xff]
  %v390 = vld [vmem:[%s3 + $0x5d0] sm:$0xff]
  %v391 = vld [vmem:[%s3 + $0x5d8] sm:$0xff]
  %v392 = vld [vmem:[%s3 + $0x5e0] sm:$0xff]
  %v393 = vld [vmem:[%s3 + $0x5e8] sm:$0xff]
  %v394 = vld [vmem:[%s3 + $0x5f0] sm:$0xff]
  %v395 = vld [vmem:[%s3 + $0x5f8] sm:$0xff]
  %v396 = vld [vmem:[%s3 + $0x600] sm:$0xff]
  %v397 = vld [vmem:[%s3 + $0x608] sm:$0xff]
  %v398 = vld [vmem:[%s3 + $0x610] sm:$0xff]
  %v399 = vld [vmem:[%s3 + $0x618] sm:$0xff]
  %v400 = vld [vmem:[%s3 + $0x620] sm:$0xff]
  %v401 = vld [vmem:[%s3 + $0x628] sm:$0xff]
  %v402 = vld [vmem:[%s3 + $0x630] sm:$0xff]
  %v403 = vld [vmem:[%s3 + $0x638] sm:$0xff]
  %v404 = vld [vmem:[%s3 + $0x640] sm:$0xff]
  %v405 = vld [vmem:[%s3 + $0x648] sm:$0xff]
  %v406 = vld [vmem:[%s3 + $0x650] sm:$0xff]
  %v407 = vld [vmem:[%s3 + $0x658] sm:$0xff]
  %v408 = vld [vmem:[%s3 + $0x660] sm:$0xff]
  %v409 = vld [vmem:[%s3 + $0x668] sm:$0xff]
  %v410 = vld [vmem:[%s3 + $0x670] sm:$0xff]
  %v411 = vld [vmem:[%s3 + $0x678] sm:$0xff]
  %v412 = vld [vmem:[%s3 + $0x680] sm:$0xff]
  %v413 = vld [vmem:[%s3 + $0x688] sm:$0xff]
  %v414 = vld [vmem:[%s3 + $0x690] sm:$0xff]
  %v415 = vld [vmem:[%s3 + $0x698] sm:$0xff]
  %v416 = vld [vmem:[%s3 + $0x6a0] sm:$0xff]
  %v417 = vld [vmem:[%s3 + $0x6a8] sm:$0xff]
  %v418 = vld [vmem:[%s3 + $0x6b0] sm:$0xff]
  %v419 = vld [vmem:[%s3 + $0x6b8] sm:$0xff]
  %v420 = vld [vmem:[%s3 + $0x6c0] sm:$0xff]
  %v421 = vld [vmem:[%s3 + $0x6c8] sm:$0xff]
  %v422 = vld [vmem:[%s3 + $0x6d0] sm:$0xff]
  %v423 = vld [vmem:[%s3 + $0x6d8] sm:$0xff]
  %v424 = vld [vmem:[%s3 + $0x6e0] sm:$0xff]
  %v425 = vld [vmem:[%s3 + $0x6e8] sm:$0xff]
  %v426 = vld [vmem:[%s3 + $0x6f0] sm:$0xff]
  %v427 = vld [vmem:[%s3 + $0x6f8] sm:$0xff]
  %v428 = vld [vmem:[%s3 + $0x700] sm:$0xff]
  %v429 = vld [vmem:[%s3 + $0x708] sm:$0xff]
  %v430 = vld [vmem:[%s3 + $0x710] sm:$0xff]
  %v431 = vld [vmem:[%s3 + $0x718] sm:$0xff]
  %v432 = vld [vmem:[%s3 + $0x720] sm:$0xff]
  %v433 = vld [vmem:[%s3 + $0x728] sm:$0xff]
  %v434 = vld [vmem:[%s3 + $0x730] sm:$0xff]
  %v435 = vld [vmem:[%s3 + $0x738] sm:$0xff]
  %v436 = vld [vmem:[%s3 + $0x740] sm:$0xff]
  %v437 = vld [vmem:[%s3 + $0x748] sm:$0xff]
  %v438 = vld [vmem:[%s3 + $0x750] sm:$0xff]
  %v439 = vld [vmem:[%s3 + $0x758] sm:$0xff]
  %v440 = vld [vmem:[%s3 + $0x760] sm:$0xff]
  %v441 = vld [vmem:[%s3 + $0x768] sm:$0xff]
  %v442 = vld [vmem:[%s3 + $0x770] sm:$0xff]
  %v443 = vld [vmem:[%s3 + $0x778] sm:$0xff]
  %v444 = vld [vmem:[%s3 + $0x780] sm:$0xff]
  %v445 = vld [vmem:[%s3 + $0x788] sm:$0xff]
  %v446 = vld [vmem:[%s3 + $0x790] sm:$0xff]
  %v447 = vld [vmem:[%s3 + $0x798] sm:$0xff]
  %v448 = vld [vmem:[%s3 + $0x7a0] sm:$0xff]
  %v449 = vld [vmem:[%s3 + $0x7a8] sm:$0xff]
  %v450 = vld [vmem:[%s3 + $0x7b0] sm:$0xff]
  %v451 = vld [vmem:[%s3 + $0x7b8] sm:$0xff]
  %v452 = vld [vmem:[%s3 + $0x7c0] sm:$0xff]
  %v453 = vld [vmem:[%s3 + $0x7c8] sm:$0xff]
  %v454 = vld [vmem:[%s3 + $0x7d0] sm:$0xff]
  %v455 = vld [vmem:[%s3 + $0x7d8] sm:$0xff]
  %v456 = vld [vmem:[%s3 + $0x7e0] sm:$0xff]
  %v457 = vld [vmem:[%s3 + $0x7e8] sm:$0xff]
  %v458 = vld [vmem:[%s3 + $0x7f0] sm:$0xff]
  %v459 = vld [vmem:[%s3 + $0x7f8] sm:$0xff]
  %v460 = vld [vmem:[%s3 + $0x800] sm:$0xff]
  %v461 = vld [vmem:[%s3 + $0x808] sm:$0xff]
  %v462 = vld [vmem:[%s3 + $0x810] sm:$0xff]
  %v463 = vld [vmem:[%s3 + $0x818] sm:$0xff]
  %v464 = vld [vmem:[%s3 + $0x820] sm:$0xff]
  %v465 = vld [vmem:[%s3 + $0x828] sm:$0xff]
  %v466 = vld [vmem:[%s3 + $0x830] sm:$0xff]
  %v467 = vld [vmem:[%s3 + $0x838] sm:$0xff]
  %v468 = vld [vmem:[%s3 + $0x840] sm:$0xff]
  %v469 = vld [vmem:[%s3 + $0x848] sm:$0xff]
  %v470 = vld [vmem:[%s3 + $0x850] sm:$0xff]
  %v471 = vld [vmem:[%s3 + $0x858] sm:$0xff]
  %v472 = vld [vmem:[%s3 + $0x860] sm:$0xff]
  %v473 = vld [vmem:[%s3 + $0x868] sm:$0xff]
  %v474 = vld [vmem:[%s3 + $0x870] sm:$0xff]
  %v475 = vld [vmem:[%s3 + $0x878] sm:$0xff]
  %v476 = vld [vmem:[%s3 + $0x880] sm:$0xff]
  %v477 = vld [vmem:[%s3 + $0x888] sm:$0xff]
  %v478 = vld [vmem:[%s3 + $0x890] sm:$0xff]
  %v479 = vld [vmem:[%s3 + $0x898] sm:$0xff]
  %v480 = vld [vmem:[%s3 + $0x8a0] sm:$0xff]
  %v481 = vld [vmem:[%s3 + $0x8a8] sm:$0xff]
  %v482 = vld [vmem:[%s3 + $0x8b0] sm:$0xff]
  %v483 = vld [vmem:[%s3 + $0x8b8] sm:$0xff]
  %v484 = vld [vmem:[%s3 + $0x8c0] sm:$0xff]
  %v485 = vld [vmem:[%s3 + $0x8c8] sm:$0xff]
  %v486 = vld [vmem:[%s3 + $0x8d0] sm:$0xff]
  %v487 = vld [vmem:[%s3 + $0x8d8] sm:$0xff]
  %v488 = vld [vmem:[%s3 + $0x8e0] sm:$0xff]
  %v489 = vld [vmem:[%s3 + $0x8e8] sm:$0xff]
  %v490 = vld [vmem:[%s3 + $0x8f0] sm:$0xff]
  %v491 = vld [vmem:[%s3 + $0x8f8] sm:$0xff]
  %v492 = vld [vmem:[%s4] sm:$0xff]
  %v493 = vld [vmem:[%s4 + $0x8] sm:$0xff]
  %v494 = vld [vmem:[%s4 + $0x10] sm:$0xff]
  %v495 = vld [vmem:[%s4 + $0x18] sm:$0xff]
  %v496 = vld [vmem:[%s4 + $0x20] sm:$0xff]
  %v497 = vld [vmem:[%s4 + $0x28] sm:$0xff]
  %v498 = vld [vmem:[%s4 + $0x30] sm:$0xff]
  %v499 = vld [vmem:[%s4 + $0x38] sm:$0xff]
  %v500 = vld [vmem:[%s4 + $0x40] sm:$0xff]
  %v501 = vld [vmem:[%s4 + $0x48] sm:$0xff]
  %v502 = vld [vmem:[%s4 + $0x50] sm:$0xff]
  %v503 = vld [vmem:[%s4 + $0x58] sm:$0xff]
  %v516 = vunpack.c.l.b16 %v492
  %v517 = vunpack.c.h.b16 %v492
  %v518 = vunpack.c.l.b16 %v493
  %v519 = vunpack.c.h.b16 %v493
  %v520 = vunpack.c.l.b16 %v494
  %v521 = vunpack.c.h.b16 %v494
  %v522 = vunpack.c.l.b16 %v495
  %v523 = vunpack.c.h.b16 %v495
  %v524 = vunpack.c.l.b16 %v496
  %v525 = vunpack.c.h.b16 %v496
  %v526 = vunpack.c.l.b16 %v497
  %v527 = vunpack.c.h.b16 %v497
  %v528 = vunpack.c.l.b16 %v498
  %v529 = vunpack.c.h.b16 %v498
  %v530 = vunpack.c.l.b16 %v499
  %v531 = vunpack.c.h.b16 %v499
  %v532 = vunpack.c.l.b16 %v500
  %v533 = vunpack.c.h.b16 %v500
  %v534 = vunpack.c.l.b16 %v501
  %v535 = vunpack.c.h.b16 %v501
  %v536 = vunpack.c.l.b16 %v502
  %v537 = vunpack.c.h.b16 %v502
  %v538 = vunpack.c.l.b16 %v503
  %v539 = vunpack.c.h.b16 %v503
  %v540 = vpack.c.b16 %v522, %v516
  %v541 = vpack.c.b16 %v523, %v517
  %v542 = vpack.c.b16 %v524, %v518
  %v543 = vpack.c.b16 %v525, %v519
  %v544 = vpack.c.b16 %v526, %v520
  %v545 = vpack.c.b16 %v527, %v521
  %v546 = vpack.c.b16 %v534, %v528
  %v547 = vpack.c.b16 %v535, %v529
  %v548 = vpack.c.b16 %v536, %v530
  %v549 = vpack.c.b16 %v537, %v531
  %v550 = vpack.c.b16 %v538, %v532
  %v551 = vpack.c.b16 %v539, %v533
  %vm564 = vcmask 261120
  %v566 = vsel %vm564, %v200, 0
  %v569 = vsel %vm564, %v201, 0
  %v572 = vsel %vm564, %v202, 0
  %v575 = vsel %vm564, %v203, 0
  %577 = vmatprep.subr.bf16.mxu0 %v541
  %578 = vmatpush1.bf16.msra.mxu0 %v540
  %579 = vmatprep.subr.bf16.mxu0 %v547
  %580 = vmatpush1.bf16.msra.mxu0 %v546
  %581 = vmatprep.subr.bf16.mxu0 0
  %582 = vmatpush1.bf16.msra.mxu0 0
  %583 = vmatprep.subr.bf16.mxu0 0
  %584 = vmatpush1.bf16.msra.mxu0 0
  %585 = vmatprep.subr.bf16.mxu0 0
  %586 = vmatpush1.bf16.msra.mxu0 0
  %587 = vmatprep.subr.bf16.mxu0 0
  %588 = vmatpush1.bf16.msra.mxu0 0
  %589 = vmatprep.subr.bf16.mxu0 0
  %590 = vmatpush1.bf16.msra.mxu0 0
  %591 = vmatprep.subr.bf16.mxu0 0
  %592 = vmatpush1.bf16.msra.mxu0 0
  %593 = vmatprep.subr.bf16.mxu0 0
  %594 = vmatpush1.bf16.msra.mxu0 0
  %595 = vmatprep.subr.bf16.mxu0 0
  %596 = vmatpush1.bf16.msra.mxu0 0
  %597 = vmatprep.subr.bf16.mxu0 0
  %598 = vmatpush1.bf16.msra.mxu0 0
  %599 = vmatprep.subr.bf16.mxu0 0
  %600 = vmatpush1.bf16.msra.mxu0 0
  %601 = vmatprep.subr.bf16.mxu0 0
  %602 = vmatpush1.bf16.msra.mxu0 0
  %603 = vmatprep.subr.bf16.mxu0 0
  %604 = vmatpush1.bf16.msra.mxu0 0
  %605 = vmatprep.subr.bf16.mxu0 0
  %606 = vmatpush1.bf16.msra.mxu0 0
  %607 = vmatprep.subr.bf16.mxu0 0
  %608 = vmatpush1.bf16.msra.mxu0 0
  %609 = vmatprep.mubr.bf16.mxu0 0
  %610 = vmatmul.mubr.bf16.gmra.mrb[0].mxu0 %v566
  %v611 = vpop.f32.mrb[0].mxu0
  %v612 = vadd.f32 0.0, %v611
  %v613 = vpop.f32.mrb[0].mxu0
  %v614 = vadd.f32 0.0, %v613
  %v615 = vpop.f32.mrb[0].mxu0
  %v616 = vadd.f32 0.0, %v615
  %v617 = vpop.f32.mrb[0].mxu0
  %v618 = vadd.f32 0.0, %v617
  %619 = vmatprep.mubr.bf16.mxu0 0
  %620 = vmatmul.mubr.bf16.gmra.mrb[0].mxu0 %v569
  %v621 = vpop.f32.mrb[0].mxu0
  %v622 = vadd.f32 0.0, %v621
  %v623 = vpop.f32.mrb[0].mxu0
  %v624 = vadd.f32 0.0, %v623
  %v625 = vpop.f32.mrb[0].mxu0
  %v626 = vadd.f32 0.0, %v625
  %v627 = vpop.f32.mrb[0].mxu0
  %v628 = vadd.f32 0.0, %v627
  %629 = vmatprep.mubr.bf16.mxu0 0
  %630 = vmatmul.mubr.bf16.gmra.mrb[0].mxu0 %v572
  %v631 = vpop.f32.mrb[0].mxu0
  %v632 = vadd.f32 0.0, %v631
  %v633 = vpop.f32.mrb[0].mxu0
  %v634 = vadd.f32 0.0, %v633
  %v635 = vpop.f32.mrb[0].mxu0
  %v636 = vadd.f32 0.0, %v635
  %v637 = vpop.f32.mrb[0].mxu0
  %v638 = vadd.f32 0.0, %v637
  %639 = vmatprep.mubr.bf16.mxu0 0
  %640 = vmatmul.mubr.bf16.gmra.mrb[0].mxu0 %v575
  %v641 = vpop.f32.mrb[0].mxu0
  %v642 = vadd.f32 0.0, %v641
  %v643 = vpop.f32.mrb[0].mxu0
  %v644 = vadd.f32 0.0, %v643
  %v645 = vpop.f32.mrb[0].mxu0
  %v646 = vadd.f32 0.0, %v645
  %v647 = vpop.f32.mrb[0].mxu0
  %v648 = vadd.f32 0.0, %v647
  %649 = vdwg.mxu0
  %650 = vmatprep.subr.bf16.mxu0 %v543
  %651 = vmatpush1.bf16.msra.mxu0 %v542
  %652 = vmatprep.subr.bf16.mxu0 %v549
  %653 = vmatpush1.bf16.msra.mxu0 %v548
  %654 = vmatprep.subr.bf16.mxu0 0
  %655 = vmatpush1.bf16.msra.mxu0 0
  %656 = vmatprep.subr.bf16.mxu0 0
  %657 = vmatpush1.bf16.msra.mxu0 0
  %658 = vmatprep.subr.bf16.mxu0 0
  %659 = vmatpush1.bf16.msra.mxu0 0
  %660 = vmatprep.subr.bf16.mxu0 0
  %661 = vmatpush1.bf16.msra.mxu0 0
  %662 = vmatprep.subr.bf16.mxu0 0
  %663 = vmatpush1.bf16.msra.mxu0 0
  %664 = vmatprep.subr.bf16.mxu0 0
  %665 = vmatpush1.bf16.msra.mxu0 0
  %666 = vmatprep.subr.bf16.mxu0 0
  %667 = vmatpush1.bf16.msra.mxu0 0
  %668 = vmatprep.subr.bf16.mxu0 0
  %669 = vmatpush1.bf16.msra.mxu0 0
  %670 = vmatprep.subr.bf16.mxu0 0
  %671 = vmatpush1.bf16.msra.mxu0 0
  %672 = vmatprep.subr.bf16.mxu0 0
  %673 = vmatpush1.bf16.msra.mxu0 0
  %674 = vmatprep.subr.bf16.mxu0 0
  %675 = vmatpush1.bf16.msra.mxu0 0
  %676 = vmatprep.subr.bf16.mxu0 0
  %677 = vmatpush1.bf16.msra.mxu0 0
  %678 = vmatprep.subr.bf16.mxu0 0
  %679 = vmatpush1.bf16.msra.mxu0 0
  %680 = vmatprep.subr.bf16.mxu0 0
  %681 = vmatpush1.bf16.msra.mxu0 0
  %682 = vmatprep.mubr.bf16.mxu0 0
  %683 = vmatmul.mubr.bf16.gmra.mrb[0].mxu0 %v566
  %v684 = vpop.f32.mrb[0].mxu0
  %v685 = vadd.f32 0.0, %v684
  %v686 = vpop.f32.mrb[0].mxu0
  %v687 = vadd.f32 0.0, %v686
  %v688 = vpop.f32.mrb[0].mxu0
  %v689 = vadd.f32 0.0, %v688
  %v690 = vpop.f32.mrb[0].mxu0
  %v691 = vadd.f32 0.0, %v690
  %692 = vmatprep.mubr.bf16.mxu0 0
  %693 = vmatmul.mubr.bf16.gmra.mrb[0].mxu0 %v569
  %v694 = vpop.f32.mrb[0].mxu0
  %v695 = vadd.f32 0.0, %v694
  %v696 = vpop.f32.mrb[0].mxu0
  %v697 = vadd.f32 0.0, %v696
  %v698 = vpop.f32.mrb[0].mxu0
  %v699 = vadd.f32 0.0, %v698
  %v700 = vpop.f32.mrb[0].mxu0
  %v701 = vadd.f32 0.0, %v700
  %702 = vmatprep.mubr.bf16.mxu0 0
  %703 = vmatmul.mubr.bf16.gmra.mrb[0].mxu0 %v572
  %v704 = vpop.f32.mrb[0].mxu0
  %v705 = vadd.f32 0.0, %v704
  %v706 = vpop.f32.mrb[0].mxu0
  %v707 = vadd.f32 0.0, %v706
  %v708 = vpop.f32.mrb[0].mxu0
  %v709 = vadd.f32 0.0, %v708
  %v710 = vpop.f32.mrb[0].mxu0
  %v711 = vadd.f32 0.0, %v710
  %712 = vmatprep.mubr.bf16.mxu0 0
  %713 = vmatmul.mubr.bf16.gmra.mrb[0].mxu0 %v575
  %v714 = vpop.f32.mrb[0].mxu0
  %v715 = vadd.f32 0.0, %v714
  %v716 = vpop.f32.mrb[0].mxu0
  %v717 = vadd.f32 0.0, %v716
  %v718 = vpop.f32.mrb[0].mxu0
  %v719 = vadd.f32 0.0, %v718
  %v720 = vpop.f32.mrb[0].mxu0
  %v721 = vadd.f32 0.0, %v720
  %722 = vdwg.mxu0
  %723 = vmatprep.subr.bf16.mxu0 %v545
  %724 = vmatpush1.bf16.msra.mxu0 %v544
  %725 = vmatprep.subr.bf16.mxu0 %v551
  %726 = vmatpush1.bf16.msra.mxu0 %v550
  %727 = vmatprep.subr.bf16.mxu0 0
  %728 = vmatpush1.bf16.msra.mxu0 0
  %729 = vmatprep.subr.bf16.mxu0 0
  %730 = vmatpush1.bf16.msra.mxu0 0
  %731 = vmatprep.subr.bf16.mxu0 0
  %732 = vmatpush1.bf16.msra.mxu0 0
  %733 = vmatprep.subr.bf16.mxu0 0
  %734 = vmatpush1.bf16.msra.mxu0 0
  %735 = vmatprep.subr.bf16.mxu0 0
  %736 = vmatpush1.bf16.msra.mxu0 0
  %737 = vmatprep.subr.bf16.mxu0 0
  %738 = vmatpush1.bf16.msra.mxu0 0
  %739 = vmatprep.subr.bf16.mxu0 0
  %740 = vmatpush1.bf16.msra.mxu0 0
  %741 = vmatprep.subr.bf16.mxu0 0
  %742 = vmatpush1.bf16.msra.mxu0 0
  %743 = vmatprep.subr.bf16.mxu0 0
  %744 = vmatpush1.bf16.msra.mxu0 0
  %745 = vmatprep.subr.bf16.mxu0 0
  %746 = vmatpush1.bf16.msra.mxu0 0
  %747 = vmatprep.subr.bf16.mxu0 0
  %748 = vmatpush1.bf16.msra.mxu0 0
  %749 = vmatprep.subr.bf16.mxu0 0
  %750 = vmatpush1.bf16.msra.mxu0 0
  %751 = vmatprep.subr.bf16.mxu0 0
  %752 = vmatpush1.bf16.msra.mxu0 0
  %753 = vmatprep.subr.bf16.mxu0 0
  %754 = vmatpush1.bf16.msra.mxu0 0
  %755 = vmatprep.mubr.bf16.mxu0 0
  %756 = vmatmul.mubr.bf16.gmra.mrb[0].mxu0 %v566
  %v757 = vpop.f32.mrb[0].mxu0
  %v758 = vadd.f32 0.0, %v757
  %v759 = vpop.f32.mrb[0].mxu0
  %v760 = vadd.f32 0.0, %v759
  %v761 = vpop.f32.mrb[0].mxu0
  %v762 = vadd.f32 0.0, %v761
  %v763 = vpop.f32.mrb[0].mxu0
  %v764 = vadd.f32 0.0, %v763
  %765 = vmatprep.mubr.bf16.mxu0 0
  %766 = vmatmul.mubr.bf16.gmra.mrb[0].mxu0 %v569
  %v767 = vpop.f32.mrb[0].mxu0
  %v768 = vadd.f32 0.0, %v767
  %v769 = vpop.f32.mrb[0].mxu0
  %v770 = vadd.f32 0.0, %v769
  %v771 = vpop.f32.mrb[0].mxu0
  %v772 = vadd.f32 0.0, %v771
  %v773 = vpop.f32.mrb[0].mxu0
  %v774 = vadd.f32 0.0, %v773
  %775 = vmatprep.mubr.bf16.mxu0 0
  %776 = vmatmul.mubr.bf16.gmra.mrb[0].mxu0 %v572
  %v777 = vpop.f32.mrb[0].mxu0
  %v778 = vadd.f32 0.0, %v777
  %v779 = vpop.f32.mrb[0].mxu0
  %v780 = vadd.f32 0.0, %v779
  %v781 = vpop.f32.mrb[0].mxu0
  %v782 = vadd.f32 0.0, %v781
  %v783 = vpop.f32.mrb[0].mxu0
  %v784 = vadd.f32 0.0, %v783
  %785 = vmatprep.mubr.bf16.mxu0 0
  %786 = vmatmul.mubr.bf16.gmra.mrb[0].mxu0 %v575
  %v787 = vpop.f32.mrb[0].mxu0
  %v788 = vadd.f32 0.0, %v787
  %v789 = vpop.f32.mrb[0].mxu0
  %v790 = vadd.f32 0.0, %v789
  %v791 = vpop.f32.mrb[0].mxu0
  %v792 = vadd.f32 0.0, %v791
  %v793 = vpop.f32.mrb[0].mxu0
  %v794 = vadd.f32 0.0, %v793
  %795 = vdwg.mxu0
  %v1084 = vunpack.c.l.b16 %v204
  %v1085 = vunpack.c.h.b16 %v204
  %v1086 = vunpack.c.l.b16 %v205
  %v1087 = vunpack.c.h.b16 %v205
  %v1088 = vunpack.c.l.b16 %v206
  %v1089 = vunpack.c.h.b16 %v206
  %v1090 = vunpack.c.l.b16 %v207
  %v1091 = vunpack.c.h.b16 %v207
  %v1092 = vunpack.c.l.b16 %v208
  %v1093 = vunpack.c.h.b16 %v208
  %v1094 = vunpack.c.l.b16 %v209
  %v1095 = vunpack.c.h.b16 %v209
  %v1096 = vunpack.c.l.b16 %v210
  %v1097 = vunpack.c.h.b16 %v210
  %v1098 = vunpack.c.l.b16 %v211
  %v1099 = vunpack.c.h.b16 %v211
  %v1100 = vunpack.c.l.b16 %v212
  %v1101 = vunpack.c.h.b16 %v212
  %v1102 = vunpack.c.l.b16 %v213
  %v1103 = vunpack.c.h.b16 %v213
  %v1104 = vunpack.c.l.b16 %v214
  %v1105 = vunpack.c.h.b16 %v214
  %v1106 = vunpack.c.l.b16 %v215
  %v1107 = vunpack.c.h.b16 %v215
  %v1108 = vunpack.c.l.b16 %v216
  %v1109 = vunpack.c.h.b16 %v216
  %v1110 = vunpack.c.l.b16 %v217
  %v1111 = vunpack.c.h.b16 %v217
  %v1112 = vunpack.c.l.b16 %v218
  %v1113 = vunpack.c.h.b16 %v218
  %v1114 = vunpack.c.l.b16 %v219
  %v1115 = vunpack.c.h.b16 %v219
  %v1116 = vunpack.c.l.b16 %v220
  %v1117 = vunpack.c.h.b16 %v220
  %v1118 = vunpack.c.l.b16 %v221
  %v1119 = vunpack.c.h.b16 %v221
  %v1120 = vunpack.c.l.b16 %v222
  %v1121 = vunpack.c.h.b16 %v222
  %v1122 = vunpack.c.l.b16 %v223
  %v1123 = vunpack.c.h.b16 %v223
  %v1124 = vunpack.c.l.b16 %v224
  %v1125 = vunpack.c.h.b16 %v224
  %v1126 = vunpack.c.l.b16 %v225
  %v1127 = vunpack.c.h.b16 %v225
  %v1128 = vunpack.c.l.b16 %v226
  %v1129 = vunpack.c.h.b16 %v226
  %v1130 = vunpack.c.l.b16 %v227
  %v1131 = vunpack.c.h.b16 %v227
  %v1132 = vunpack.c.l.b16 %v228
  %v1133 = vunpack.c.h.b16 %v228
  %v1134 = vunpack.c.l.b16 %v229
  %v1135 = vunpack.c.h.b16 %v229
  %v1136 = vunpack.c.l.b16 %v230
  %v1137 = vunpack.c.h.b16 %v230
  %v1138 = vunpack.c.l.b16 %v231
  %v1139 = vunpack.c.h.b16 %v231
  %v1140 = vunpack.c.l.b16 %v232
  %v1141 = vunpack.c.h.b16 %v232
  %v1142 = vunpack.c.l.b16 %v233
  %v1143 = vunpack.c.h.b16 %v233
  %v1144 = vunpack.c.l.b16 %v234
  %v1145 = vunpack.c.h.b16 %v234
  %v1146 = vunpack.c.l.b16 %v235
  %v1147 = vunpack.c.h.b16 %v235
  %v1148 = vunpack.c.l.b16 %v236
  %v1149 = vunpack.c.h.b16 %v236
  %v1150 = vunpack.c.l.b16 %v237
  %v1151 = vunpack.c.h.b16 %v237
  %v1152 = vunpack.c.l.b16 %v238
  %v1153 = vunpack.c.h.b16 %v238
  %v1154 = vunpack.c.l.b16 %v239
  %v1155 = vunpack.c.h.b16 %v239
  %v1156 = vunpack.c.l.b16 %v240
  %v1157 = vunpack.c.h.b16 %v240
  %v1158 = vunpack.c.l.b16 %v241
  %v1159 = vunpack.c.h.b16 %v241
  %v1160 = vunpack.c.l.b16 %v242
  %v1161 = vunpack.c.h.b16 %v242
  %v1162 = vunpack.c.l.b16 %v243
  %v1163 = vunpack.c.h.b16 %v243
  %v1164 = vunpack.c.l.b16 %v244
  %v1165 = vunpack.c.h.b16 %v244
  %v1166 = vunpack.c.l.b16 %v245
  %v1167 = vunpack.c.h.b16 %v245
  %v1168 = vunpack.c.l.b16 %v246
  %v1169 = vunpack.c.h.b16 %v246
  %v1170 = vunpack.c.l.b16 %v247
  %v1171 = vunpack.c.h.b16 %v247
  %v1172 = vunpack.c.l.b16 %v248
  %v1173 = vunpack.c.h.b16 %v248
  %v1174 = vunpack.c.l.b16 %v249
  %v1175 = vunpack.c.h.b16 %v249
  %v1176 = vunpack.c.l.b16 %v250
  %v1177 = vunpack.c.h.b16 %v250
  %v1178 = vunpack.c.l.b16 %v251
  %v1179 = vunpack.c.h.b16 %v251
  %v1180 = vunpack.c.l.b16 %v252
  %v1181 = vunpack.c.h.b16 %v252
  %v1182 = vunpack.c.l.b16 %v253
  %v1183 = vunpack.c.h.b16 %v253
  %v1184 = vunpack.c.l.b16 %v254
  %v1185 = vunpack.c.h.b16 %v254
  %v1186 = vunpack.c.l.b16 %v255
  %v1187 = vunpack.c.h.b16 %v255
  %v1188 = vunpack.c.l.b16 %v256
  %v1189 = vunpack.c.h.b16 %v256
  %v1190 = vunpack.c.l.b16 %v257
  %v1191 = vunpack.c.h.b16 %v257
  %v1192 = vunpack.c.l.b16 %v258
  %v1193 = vunpack.c.h.b16 %v258
  %v1194 = vunpack.c.l.b16 %v259
  %v1195 = vunpack.c.h.b16 %v259
  %v1196 = vunpack.c.l.b16 %v260
  %v1197 = vunpack.c.h.b16 %v260
  %v1198 = vunpack.c.l.b16 %v261
  %v1199 = vunpack.c.h.b16 %v261
  %v1200 = vunpack.c.l.b16 %v262
  %v1201 = vunpack.c.h.b16 %v262
  %v1202 = vunpack.c.l.b16 %v263
  %v1203 = vunpack.c.h.b16 %v263
  %v1204 = vunpack.c.l.b16 %v264
  %v1205 = vunpack.c.h.b16 %v264
  %v1206 = vunpack.c.l.b16 %v265
  %v1207 = vunpack.c.h.b16 %v265
  %v1208 = vunpack.c.l.b16 %v266
  %v1209 = vunpack.c.h.b16 %v266
  %v1210 = vunpack.c.l.b16 %v267
  %v1211 = vunpack.c.h.b16 %v267
  %v1212 = vunpack.c.l.b16 %v268
  %v1213 = vunpack.c.h.b16 %v268
  %v1214 = vunpack.c.l.b16 %v269
  %v1215 = vunpack.c.h.b16 %v269
  %v1216 = vunpack.c.l.b16 %v270
  %v1217 = vunpack.c.h.b16 %v270
  %v1218 = vunpack.c.l.b16 %v271
  %v1219 = vunpack.c.h.b16 %v271
  %v1220 = vunpack.c.l.b16 %v272
  %v1221 = vunpack.c.h.b16 %v272
  %v1222 = vunpack.c.l.b16 %v273
  %v1223 = vunpack.c.h.b16 %v273
  %v1224 = vunpack.c.l.b16 %v274
  %v1225 = vunpack.c.h.b16 %v274
  %v1226 = vunpack.c.l.b16 %v275
  %v1227 = vunpack.c.h.b16 %v275
  %v1228 = vunpack.c.l.b16 %v276
  %v1229 = vunpack.c.h.b16 %v276
  %v1230 = vunpack.c.l.b16 %v277
  %v1231 = vunpack.c.h.b16 %v277
  %v1232 = vunpack.c.l.b16 %v278
  %v1233 = vunpack.c.h.b16 %v278
  %v1234 = vunpack.c.l.b16 %v279
  %v1235 = vunpack.c.h.b16 %v279
  %v1236 = vunpack.c.l.b16 %v280
  %v1237 = vunpack.c.h.b16 %v280
  %v1238 = vunpack.c.l.b16 %v281
  %v1239 = vunpack.c.h.b16 %v281
  %v1240 = vunpack.c.l.b16 %v282
  %v1241 = vunpack.c.h.b16 %v282
  %v1242 = vunpack.c.l.b16 %v283
  %v1243 = vunpack.c.h.b16 %v283
  %v1244 = vunpack.c.l.b16 %v284
  %v1245 = vunpack.c.h.b16 %v284
  %v1246 = vunpack.c.l.b16 %v285
  %v1247 = vunpack.c.h.b16 %v285
  %v1248 = vunpack.c.l.b16 %v286
  %v1249 = vunpack.c.h.b16 %v286
  %v1250 = vunpack.c.l.b16 %v287
  %v1251 = vunpack.c.h.b16 %v287
  %v1252 = vunpack.c.l.b16 %v288
  %v1253 = vunpack.c.h.b16 %v288
  %v1254 = vunpack.c.l.b16 %v289
  %v1255 = vunpack.c.h.b16 %v289
  %v1256 = vunpack.c.l.b16 %v290
  %v1257 = vunpack.c.h.b16 %v290
  %v1258 = vunpack.c.l.b16 %v291
  %v1259 = vunpack.c.h.b16 %v291
  %v1260 = vunpack.c.l.b16 %v292
  %v1261 = vunpack.c.h.b16 %v292
  %v1262 = vunpack.c.l.b16 %v293
  %v1263 = vunpack.c.h.b16 %v293
  %v1264 = vunpack.c.l.b16 %v294
  %v1265 = vunpack.c.h.b16 %v294
  %v1266 = vunpack.c.l.b16 %v295
  %v1267 = vunpack.c.h.b16 %v295
  %v1268 = vunpack.c.l.b16 %v296
  %v1269 = vunpack.c.h.b16 %v296
  %v1270 = vunpack.c.l.b16 %v297
  %v1271 = vunpack.c.h.b16 %v297
  %v1272 = vunpack.c.l.b16 %v298
  %v1273 = vunpack.c.h.b16 %v298
  %v1274 = vunpack.c.l.b16 %v299
  %v1275 = vunpack.c.h.b16 %v299
  %v1276 = vunpack.c.l.b16 %v300
  %v1277 = vunpack.c.h.b16 %v300
  %v1278 = vunpack.c.l.b16 %v301
  %v1279 = vunpack.c.h.b16 %v301
  %v1280 = vunpack.c.l.b16 %v302
  %v1281 = vunpack.c.h.b16 %v302
  %v1282 = vunpack.c.l.b16 %v303
  %v1283 = vunpack.c.h.b16 %v303
  %v1284 = vunpack.c.l.b16 %v304
  %v1285 = vunpack.c.h.b16 %v304
  %v1286 = vunpack.c.l.b16 %v305
  %v1287 = vunpack.c.h.b16 %v305
  %v1288 = vunpack.c.l.b16 %v306
  %v1289 = vunpack.c.h.b16 %v306
  %v1290 = vunpack.c.l.b16 %v307
  %v1291 = vunpack.c.h.b16 %v307
  %v1292 = vunpack.c.l.b16 %v308
  %v1293 = vunpack.c.h.b16 %v308
  %v1294 = vunpack.c.l.b16 %v309
  %v1295 = vunpack.c.h.b16 %v309
  %v1296 = vunpack.c.l.b16 %v310
  %v1297 = vunpack.c.h.b16 %v310
  %v1298 = vunpack.c.l.b16 %v311
  %v1299 = vunpack.c.h.b16 %v311
  %v1300 = vunpack.c.l.b16 %v312
  %v1301 = vunpack.c.h.b16 %v312
  %v1302 = vunpack.c.l.b16 %v313
  %v1303 = vunpack.c.h.b16 %v313
  %v1304 = vunpack.c.l.b16 %v314
  %v1305 = vunpack.c.h.b16 %v314
  %v1306 = vunpack.c.l.b16 %v315
  %v1307 = vunpack.c.h.b16 %v315
  %v1308 = vunpack.c.l.b16 %v316
  %v1309 = vunpack.c.h.b16 %v316
  %v1310 = vunpack.c.l.b16 %v317
  %v1311 = vunpack.c.h.b16 %v317
  %v1312 = vunpack.c.l.b16 %v318
  %v1313 = vunpack.c.h.b16 %v318
  %v1314 = vunpack.c.l.b16 %v319
  %v1315 = vunpack.c.h.b16 %v319
  %v1316 = vunpack.c.l.b16 %v320
  %v1317 = vunpack.c.h.b16 %v320
  %v1318 = vunpack.c.l.b16 %v321
  %v1319 = vunpack.c.h.b16 %v321
  %v1320 = vunpack.c.l.b16 %v322
  %v1321 = vunpack.c.h.b16 %v322
  %v1322 = vunpack.c.l.b16 %v323
  %v1323 = vunpack.c.h.b16 %v323
  %v1324 = vunpack.c.l.b16 %v324
  %v1325 = vunpack.c.h.b16 %v324
  %v1326 = vunpack.c.l.b16 %v325
  %v1327 = vunpack.c.h.b16 %v325
  %v1328 = vunpack.c.l.b16 %v326
  %v1329 = vunpack.c.h.b16 %v326
  %v1330 = vunpack.c.l.b16 %v327
  %v1331 = vunpack.c.h.b16 %v327
  %v1332 = vunpack.c.l.b16 %v328
  %v1333 = vunpack.c.h.b16 %v328
  %v1334 = vunpack.c.l.b16 %v329
  %v1335 = vunpack.c.h.b16 %v329
  %v1336 = vunpack.c.l.b16 %v330
  %v1337 = vunpack.c.h.b16 %v330
  %v1338 = vunpack.c.l.b16 %v331
  %v1339 = vunpack.c.h.b16 %v331
  %v1340 = vunpack.c.l.b16 %v332
  %v1341 = vunpack.c.h.b16 %v332
  %v1342 = vunpack.c.l.b16 %v333
  %v1343 = vunpack.c.h.b16 %v333
  %v1344 = vunpack.c.l.b16 %v334
  %v1345 = vunpack.c.h.b16 %v334
  %v1346 = vunpack.c.l.b16 %v335
  %v1347 = vunpack.c.h.b16 %v335
  %v1348 = vunpack.c.l.b16 %v336
  %v1349 = vunpack.c.h.b16 %v336
  %v1350 = vunpack.c.l.b16 %v337
  %v1351 = vunpack.c.h.b16 %v337
  %v1352 = vunpack.c.l.b16 %v338
  %v1353 = vunpack.c.h.b16 %v338
  %v1354 = vunpack.c.l.b16 %v339
  %v1355 = vunpack.c.h.b16 %v339
  %v1356 = vunpack.c.l.b16 %v340
  %v1357 = vunpack.c.h.b16 %v340
  %v1358 = vunpack.c.l.b16 %v341
  %v1359 = vunpack.c.h.b16 %v341
  %v1360 = vunpack.c.l.b16 %v342
  %v1361 = vunpack.c.h.b16 %v342
  %v1362 = vunpack.c.l.b16 %v343
  %v1363 = vunpack.c.h.b16 %v343
  %v1364 = vunpack.c.l.b16 %v344
  %v1365 = vunpack.c.h.b16 %v344
  %v1366 = vunpack.c.l.b16 %v345
  %v1367 = vunpack.c.h.b16 %v345
  %v1368 = vunpack.c.l.b16 %v346
  %v1369 = vunpack.c.h.b16 %v346
  %v1370 = vunpack.c.l.b16 %v347
  %v1371 = vunpack.c.h.b16 %v347
  %v1372 = vunpack.c.l.b16 %v348
  %v1373 = vunpack.c.h.b16 %v348
  %v1374 = vunpack.c.l.b16 %v349
  %v1375 = vunpack.c.h.b16 %v349
  %v1376 = vunpack.c.l.b16 %v350
  %v1377 = vunpack.c.h.b16 %v350
  %v1378 = vunpack.c.l.b16 %v351
  %v1379 = vunpack.c.h.b16 %v351
  %v1380 = vunpack.c.l.b16 %v352
  %v1381 = vunpack.c.h.b16 %v352
  %v1382 = vunpack.c.l.b16 %v353
  %v1383 = vunpack.c.h.b16 %v353
  %v1384 = vunpack.c.l.b16 %v354
  %v1385 = vunpack.c.h.b16 %v354
  %v1386 = vunpack.c.l.b16 %v355
  %v1387 = vunpack.c.h.b16 %v355
  %v1388 = vunpack.c.l.b16 %v356
  %v1389 = vunpack.c.h.b16 %v356
  %v1390 = vunpack.c.l.b16 %v357
  %v1391 = vunpack.c.h.b16 %v357
  %v1392 = vunpack.c.l.b16 %v358
  %v1393 = vunpack.c.h.b16 %v358
  %v1394 = vunpack.c.l.b16 %v359
  %v1395 = vunpack.c.h.b16 %v359
  %v1396 = vunpack.c.l.b16 %v360
  %v1397 = vunpack.c.h.b16 %v360
  %v1398 = vunpack.c.l.b16 %v361
  %v1399 = vunpack.c.h.b16 %v361
  %v1400 = vunpack.c.l.b16 %v362
  %v1401 = vunpack.c.h.b16 %v362
  %v1402 = vunpack.c.l.b16 %v363
  %v1403 = vunpack.c.h.b16 %v363
  %v1404 = vunpack.c.l.b16 %v364
  %v1405 = vunpack.c.h.b16 %v364
  %v1406 = vunpack.c.l.b16 %v365
  %v1407 = vunpack.c.h.b16 %v365
  %v1408 = vunpack.c.l.b16 %v366
  %v1409 = vunpack.c.h.b16 %v366
  %v1410 = vunpack.c.l.b16 %v367
  %v1411 = vunpack.c.h.b16 %v367
  %v1412 = vunpack.c.l.b16 %v368
  %v1413 = vunpack.c.h.b16 %v368
  %v1414 = vunpack.c.l.b16 %v369
  %v1415 = vunpack.c.h.b16 %v369
  %v1416 = vunpack.c.l.b16 %v370
  %v1417 = vunpack.c.h.b16 %v370
  %v1418 = vunpack.c.l.b16 %v371
  %v1419 = vunpack.c.h.b16 %v371
  %v1420 = vunpack.c.l.b16 %v372
  %v1421 = vunpack.c.h.b16 %v372
  %v1422 = vunpack.c.l.b16 %v373
  %v1423 = vunpack.c.h.b16 %v373
  %v1424 = vunpack.c.l.b16 %v374
  %v1425 = vunpack.c.h.b16 %v374
  %v1426 = vunpack.c.l.b16 %v375
  %v1427 = vunpack.c.h.b16 %v375
  %v1428 = vunpack.c.l.b16 %v376
  %v1429 = vunpack.c.h.b16 %v376
  %v1430 = vunpack.c.l.b16 %v377
  %v1431 = vunpack.c.h.b16 %v377
  %v1432 = vunpack.c.l.b16 %v378
  %v1433 = vunpack.c.h.b16 %v378
  %v1434 = vunpack.c.l.b16 %v379
  %v1435 = vunpack.c.h.b16 %v379
  %v1436 = vunpack.c.l.b16 %v380
  %v1437 = vunpack.c.h.b16 %v380
  %v1438 = vunpack.c.l.b16 %v381
  %v1439 = vunpack.c.h.b16 %v381
  %v1440 = vunpack.c.l.b16 %v382
  %v1441 = vunpack.c.h.b16 %v382
  %v1442 = vunpack.c.l.b16 %v383
  %v1443 = vunpack.c.h.b16 %v383
  %v1444 = vunpack.c.l.b16 %v384
  %v1445 = vunpack.c.h.b16 %v384
  %v1446 = vunpack.c.l.b16 %v385
  %v1447 = vunpack.c.h.b16 %v385
  %v1448 = vunpack.c.l.b16 %v386
  %v1449 = vunpack.c.h.b16 %v386
  %v1450 = vunpack.c.l.b16 %v387
  %v1451 = vunpack.c.h.b16 %v387
  %v1452 = vunpack.c.l.b16 %v388
  %v1453 = vunpack.c.h.b16 %v388
  %v1454 = vunpack.c.l.b16 %v389
  %v1455 = vunpack.c.h.b16 %v389
  %v1456 = vunpack.c.l.b16 %v390
  %v1457 = vunpack.c.h.b16 %v390
  %v1458 = vunpack.c.l.b16 %v391
  %v1459 = vunpack.c.h.b16 %v391
  %v1460 = vunpack.c.l.b16 %v392
  %v1461 = vunpack.c.h.b16 %v392
  %v1462 = vunpack.c.l.b16 %v393
  %v1463 = vunpack.c.h.b16 %v393
  %v1464 = vunpack.c.l.b16 %v394
  %v1465 = vunpack.c.h.b16 %v394
  %v1466 = vunpack.c.l.b16 %v395
  %v1467 = vunpack.c.h.b16 %v395
  %v1468 = vunpack.c.l.b16 %v396
  %v1469 = vunpack.c.h.b16 %v396
  %v1470 = vunpack.c.l.b16 %v397
  %v1471 = vunpack.c.h.b16 %v397
  %v1472 = vunpack.c.l.b16 %v398
  %v1473 = vunpack.c.h.b16 %v398
  %v1474 = vunpack.c.l.b16 %v399
  %v1475 = vunpack.c.h.b16 %v399
  %v1476 = vunpack.c.l.b16 %v400
  %v1477 = vunpack.c.h.b16 %v400
  %v1478 = vunpack.c.l.b16 %v401
  %v1479 = vunpack.c.h.b16 %v401
  %v1480 = vunpack.c.l.b16 %v402
  %v1481 = vunpack.c.h.b16 %v402
  %v1482 = vunpack.c.l.b16 %v403
  %v1483 = vunpack.c.h.b16 %v403
  %v1484 = vunpack.c.l.b16 %v404
  %v1485 = vunpack.c.h.b16 %v404
  %v1486 = vunpack.c.l.b16 %v405
  %v1487 = vunpack.c.h.b16 %v405
  %v1488 = vunpack.c.l.b16 %v406
  %v1489 = vunpack.c.h.b16 %v406
  %v1490 = vunpack.c.l.b16 %v407
  %v1491 = vunpack.c.h.b16 %v407
  %v1492 = vunpack.c.l.b16 %v408
  %v1493 = vunpack.c.h.b16 %v408
  %v1494 = vunpack.c.l.b16 %v409
  %v1495 = vunpack.c.h.b16 %v409
  %v1496 = vunpack.c.l.b16 %v410
  %v1497 = vunpack.c.h.b16 %v410
  %v1498 = vunpack.c.l.b16 %v411
  %v1499 = vunpack.c.h.b16 %v411
  %v1500 = vunpack.c.l.b16 %v412
  %v1501 = vunpack.c.h.b16 %v412
  %v1502 = vunpack.c.l.b16 %v413
  %v1503 = vunpack.c.h.b16 %v413
  %v1504 = vunpack.c.l.b16 %v414
  %v1505 = vunpack.c.h.b16 %v414
  %v1506 = vunpack.c.l.b16 %v415
  %v1507 = vunpack.c.h.b16 %v415
  %v1508 = vunpack.c.l.b16 %v416
  %v1509 = vunpack.c.h.b16 %v416
  %v1510 = vunpack.c.l.b16 %v417
  %v1511 = vunpack.c.h.b16 %v417
  %v1512 = vunpack.c.l.b16 %v418
  %v1513 = vunpack.c.h.b16 %v418
  %v1514 = vunpack.c.l.b16 %v419
  %v1515 = vunpack.c.h.b16 %v419
  %v1516 = vunpack.c.l.b16 %v420
  %v1517 = vunpack.c.h.b16 %v420
  %v1518 = vunpack.c.l.b16 %v421
  %v1519 = vunpack.c.h.b16 %v421
  %v1520 = vunpack.c.l.b16 %v422
  %v1521 = vunpack.c.h.b16 %v422
  %v1522 = vunpack.c.l.b16 %v423
  %v1523 = vunpack.c.h.b16 %v423
  %v1524 = vunpack.c.l.b16 %v424
  %v1525 = vunpack.c.h.b16 %v424
  %v1526 = vunpack.c.l.b16 %v425
  %v1527 = vunpack.c.h.b16 %v425
  %v1528 = vunpack.c.l.b16 %v426
  %v1529 = vunpack.c.h.b16 %v426
  %v1530 = vunpack.c.l.b16 %v427
  %v1531 = vunpack.c.h.b16 %v427
  %v1532 = vunpack.c.l.b16 %v428
  %v1533 = vunpack.c.h.b16 %v428
  %v1534 = vunpack.c.l.b16 %v429
  %v1535 = vunpack.c.h.b16 %v429
  %v1536 = vunpack.c.l.b16 %v430
  %v1537 = vunpack.c.h.b16 %v430
  %v1538 = vunpack.c.l.b16 %v431
  %v1539 = vunpack.c.h.b16 %v431
  %v1540 = vunpack.c.l.b16 %v432
  %v1541 = vunpack.c.h.b16 %v432
  %v1542 = vunpack.c.l.b16 %v433
  %v1543 = vunpack.c.h.b16 %v433
  %v1544 = vunpack.c.l.b16 %v434
  %v1545 = vunpack.c.h.b16 %v434
  %v1546 = vunpack.c.l.b16 %v435
  %v1547 = vunpack.c.h.b16 %v435
  %v1548 = vunpack.c.l.b16 %v436
  %v1549 = vunpack.c.h.b16 %v436
  %v1550 = vunpack.c.l.b16 %v437
  %v1551 = vunpack.c.h.b16 %v437
  %v1552 = vunpack.c.l.b16 %v438
  %v1553 = vunpack.c.h.b16 %v438
  %v1554 = vunpack.c.l.b16 %v439
  %v1555 = vunpack.c.h.b16 %v439
  %v1556 = vunpack.c.l.b16 %v440
  %v1557 = vunpack.c.h.b16 %v440
  %v1558 = vunpack.c.l.b16 %v441
  %v1559 = vunpack.c.h.b16 %v441
  %v1560 = vunpack.c.l.b16 %v442
  %v1561 = vunpack.c.h.b16 %v442
  %v1562 = vunpack.c.l.b16 %v443
  %v1563 = vunpack.c.h.b16 %v443
  %v1564 = vunpack.c.l.b16 %v444
  %v1565 = vunpack.c.h.b16 %v444
  %v1566 = vunpack.c.l.b16 %v445
  %v1567 = vunpack.c.h.b16 %v445
  %v1568 = vunpack.c.l.b16 %v446
  %v1569 = vunpack.c.h.b16 %v446
  %v1570 = vunpack.c.l.b16 %v447
  %v1571 = vunpack.c.h.b16 %v447
  %v1572 = vunpack.c.l.b16 %v448
  %v1573 = vunpack.c.h.b16 %v448
  %v1574 = vunpack.c.l.b16 %v449
  %v1575 = vunpack.c.h.b16 %v449
  %v1576 = vunpack.c.l.b16 %v450
  %v1577 = vunpack.c.h.b16 %v450
  %v1578 = vunpack.c.l.b16 %v451
  %v1579 = vunpack.c.h.b16 %v451
  %v1580 = vunpack.c.l.b16 %v452
  %v1581 = vunpack.c.h.b16 %v452
  %v1582 = vunpack.c.l.b16 %v453
  %v1583 = vunpack.c.h.b16 %v453
  %v1584 = vunpack.c.l.b16 %v454
  %v1585 = vunpack.c.h.b16 %v454
  %v1586 = vunpack.c.l.b16 %v455
  %v1587 = vunpack.c.h.b16 %v455
  %v1588 = vunpack.c.l.b16 %v456
  %v1589 = vunpack.c.h.b16 %v456
  %v1590 = vunpack.c.l.b16 %v457
  %v1591 = vunpack.c.h.b16 %v457
  %v1592 = vunpack.c.l.b16 %v458
  %v1593 = vunpack.c.h.b16 %v458
  %v1594 = vunpack.c.l.b16 %v459
  %v1595 = vunpack.c.h.b16 %v459
  %v1596 = vunpack.c.l.b16 %v460
  %v1597 = vunpack.c.h.b16 %v460
  %v1598 = vunpack.c.l.b16 %v461
  %v1599 = vunpack.c.h.b16 %v461
  %v1600 = vunpack.c.l.b16 %v462
  %v1601 = vunpack.c.h.b16 %v462
  %v1602 = vunpack.c.l.b16 %v463
  %v1603 = vunpack.c.h.b16 %v463
  %v1604 = vunpack.c.l.b16 %v464
  %v1605 = vunpack.c.h.b16 %v464
  %v1606 = vunpack.c.l.b16 %v465
  %v1607 = vunpack.c.h.b16 %v465
  %v1608 = vunpack.c.l.b16 %v466
  %v1609 = vunpack.c.h.b16 %v466
  %v1610 = vunpack.c.l.b16 %v467
  %v1611 = vunpack.c.h.b16 %v467
  %v1612 = vunpack.c.l.b16 %v468
  %v1613 = vunpack.c.h.b16 %v468
  %v1614 = vunpack.c.l.b16 %v469
  %v1615 = vunpack.c.h.b16 %v469
  %v1616 = vunpack.c.l.b16 %v470
  %v1617 = vunpack.c.h.b16 %v470
  %v1618 = vunpack.c.l.b16 %v471
  %v1619 = vunpack.c.h.b16 %v471
  %v1620 = vunpack.c.l.b16 %v472
  %v1621 = vunpack.c.h.b16 %v472
  %v1622 = vunpack.c.l.b16 %v473
  %v1623 = vunpack.c.h.b16 %v473
  %v1624 = vunpack.c.l.b16 %v474
  %v1625 = vunpack.c.h.b16 %v474
  %v1626 = vunpack.c.l.b16 %v475
  %v1627 = vunpack.c.h.b16 %v475
  %v1628 = vunpack.c.l.b16 %v476
  %v1629 = vunpack.c.h.b16 %v476
  %v1630 = vunpack.c.l.b16 %v477
  %v1631 = vunpack.c.h.b16 %v477
  %v1632 = vunpack.c.l.b16 %v478
  %v1633 = vunpack.c.h.b16 %v478
  %v1634 = vunpack.c.l.b16 %v479
  %v1635 = vunpack.c.h.b16 %v479
  %v1636 = vunpack.c.l.b16 %v480
  %v1637 = vunpack.c.h.b16 %v480
  %v1638 = vunpack.c.l.b16 %v481
  %v1639 = vunpack.c.h.b16 %v481
  %v1640 = vunpack.c.l.b16 %v482
  %v1641 = vunpack.c.h.b16 %v482
  %v1642 = vunpack.c.l.b16 %v483
  %v1643 = vunpack.c.h.b16 %v483
  %v1644 = vunpack.c.l.b16 %v484
  %v1645 = vunpack.c.h.b16 %v484
  %v1646 = vunpack.c.l.b16 %v485
  %v1647 = vunpack.c.h.b16 %v485
  %v1648 = vunpack.c.l.b16 %v486
  %v1649 = vunpack.c.h.b16 %v486
  %v1650 = vunpack.c.l.b16 %v487
  %v1651 = vunpack.c.h.b16 %v487
  %v1652 = vunpack.c.l.b16 %v488
  %v1653 = vunpack.c.h.b16 %v488
  %v1654 = vunpack.c.l.b16 %v489
  %v1655 = vunpack.c.h.b16 %v489
  %v1656 = vunpack.c.l.b16 %v490
  %v1657 = vunpack.c.h.b16 %v490
  %v1658 = vunpack.c.l.b16 %v491
  %v1659 = vunpack.c.h.b16 %v491
  %v1660 = vpack.c.b16 %v1090, %v1084
  %v1661 = vpack.c.b16 %v1091, %v1085
  %v1662 = vpack.c.b16 %v1092, %v1086
  %v1663 = vpack.c.b16 %v1093, %v1087
  %v1664 = vpack.c.b16 %v1094, %v1088
  %v1665 = vpack.c.b16 %v1095, %v1089
  %v1666 = vpack.c.b16 %v1102, %v1096
  %v1667 = vpack.c.b16 %v1103, %v1097
  %v1668 = vpack.c.b16 %v1104, %v1098
  %v1669 = vpack.c.b16 %v1105, %v1099
  %v1670 = vpack.c.b16 %v1106, %v1100
  %v1671 = vpack.c.b16 %v1107, %v1101
  %v1672 = vpack.c.b16 %v1114, %v1108
  %v1673 = vpack.c.b16 %v1115, %v1109
  %v1674 = vpack.c.b16 %v1116, %v1110
  %v1675 = vpack.c.b16 %v1117, %v1111
  %v1676 = vpack.c.b16 %v1118, %v1112
  %v1677 = vpack.c.b16 %v1119, %v1113
  %v1678 = vpack.c.b16 %v1126, %v1120
  %v1679 = vpack.c.b16 %v1127, %v1121
  %v1680 = vpack.c.b16 %v1128, %v1122
  %v1681 = vpack.c.b16 %v1129, %v1123
  %v1682 = vpack.c.b16 %v1130, %v1124
  %v1683 = vpack.c.b16 %v1131, %v1125
  %v1684 = vpack.c.b16 %v1138, %v1132
  %v1685 = vpack.c.b16 %v1139, %v1133
  %v1686 = vpack.c.b16 %v1140, %v1134
  %v1687 = vpack.c.b16 %v1141, %v1135
  %v1688 = vpack.c.b16 %v1142, %v1136
  %v1689 = vpack.c.b16 %v1143, %v1137
  %v1690 = vpack.c.b16 %v1150, %v1144
  %v1691 = vpack.c.b16 %v1151, %v1145
  %v1692 = vpack.c.b16 %v1152, %v1146
  %v1693 = vpack.c.b16 %v1153, %v1147
  %v1694 = vpack.c.b16 %v1154, %v1148
  %v1695 = vpack.c.b16 %v1155, %v1149
  %v1696 = vpack.c.b16 %v1162, %v1156
  %v1697 = vpack.c.b16 %v1163, %v1157
  %v1698 = vpack.c.b16 %v1164, %v1158
  %v1699 = vpack.c.b16 %v1165, %v1159
  %v1700 = vpack.c.b16 %v1166, %v1160
  %v1701 = vpack.c.b16 %v1167, %v1161
  %v1702 = vpack.c.b16 %v1174, %v1168
  %v1703 = vpack.c.b16 %v1175, %v1169
  %v1704 = vpack.c.b16 %v1176, %v1170
  %v1705 = vpack.c.b16 %v1177, %v1171
  %v1706 = vpack.c.b16 %v1178, %v1172
  %v1707 = vpack.c.b16 %v1179, %v1173
  %v1708 = vpack.c.b16 %v1186, %v1180
  %v1709 = vpack.c.b16 %v1187, %v1181
  %v1710 = vpack.c.b16 %v1188, %v1182
  %v1711 = vpack.c.b16 %v1189, %v1183
  %v1712 = vpack.c.b16 %v1190, %v1184
  %v1713 = vpack.c.b16 %v1191, %v1185
  %v1714 = vpack.c.b16 %v1198, %v1192
  %v1715 = vpack.c.b16 %v1199, %v1193
  %v1716 = vpack.c.b16 %v1200, %v1194
  %v1717 = vpack.c.b16 %v1201, %v1195
  %v1718 = vpack.c.b16 %v1202, %v1196
  %v1719 = vpack.c.b16 %v1203, %v1197
  %v1720 = vpack.c.b16 %v1210, %v1204
  %v1721 = vpack.c.b16 %v1211, %v1205
  %v1722 = vpack.c.b16 %v1212, %v1206
  %v1723 = vpack.c.b16 %v1213, %v1207
  %v1724 = vpack.c.b16 %v1214, %v1208
  %v1725 = vpack.c.b16 %v1215, %v1209
  %v1726 = vpack.c.b16 %v1222, %v1216
  %v1727 = vpack.c.b16 %v1223, %v1217
  %v1728 = vpack.c.b16 %v1224, %v1218
  %v1729 = vpack.c.b16 %v1225, %v1219
  %v1730 = vpack.c.b16 %v1226, %v1220
  %v1731 = vpack.c.b16 %v1227, %v1221
  %v1732 = vpack.c.b16 %v1234, %v1228
  %v1733 = vpack.c.b16 %v1235, %v1229
  %v1734 = vpack.c.b16 %v1236, %v1230
  %v1735 = vpack.c.b16 %v1237, %v1231
  %v1736 = vpack.c.b16 %v1238, %v1232
  %v1737 = vpack.c.b16 %v1239, %v1233
  %v1738 = vpack.c.b16 %v1246, %v1240
  %v1739 = vpack.c.b16 %v1247, %v1241
  %v1740 = vpack.c.b16 %v1248, %v1242
  %v1741 = vpack.c.b16 %v1249, %v1243
  %v1742 = vpack.c.b16 %v1250, %v1244
  %v1743 = vpack.c.b16 %v1251, %v1245
  %v1744 = vpack.c.b16 %v1258, %v1252
  %v1745 = vpack.c.b16 %v1259, %v1253
  %v1746 = vpack.c.b16 %v1260, %v1254
  %v1747 = vpack.c.b16 %v1261, %v1255
  %v1748 = vpack.c.b16 %v1262, %v1256
  %v1749 = vpack.c.b16 %v1263, %v1257
  %v1750 = vpack.c.b16 %v1270, %v1264
  %v1751 = vpack.c.b16 %v1271, %v1265
  %v1752 = vpack.c.b16 %v1272, %v1266
  %v1753 = vpack.c.b16 %v1273, %v1267
  %v1754 = vpack.c.b16 %v1274, %v1268
  %v1755 = vpack.c.b16 %v1275, %v1269
  %v1756 = vpack.c.b16 %v1282, %v1276
  %v1757 = vpack.c.b16 %v1283, %v1277
  %v1758 = vpack.c.b16 %v1284, %v1278
  %v1759 = vpack.c.b16 %v1285, %v1279
  %v1760 = vpack.c.b16 %v1286, %v1280
  %v1761 = vpack.c.b16 %v1287, %v1281
  %v1762 = vpack.c.b16 %v1294, %v1288
  %v1763 = vpack.c.b16 %v1295, %v1289
  %v1764 = vpack.c.b16 %v1296, %v1290
  %v1765 = vpack.c.b16 %v1297, %v1291
  %v1766 = vpack.c.b16 %v1298, %v1292
  %v1767 = vpack.c.b16 %v1299, %v1293
  %v1768 = vpack.c.b16 %v1306, %v1300
  %v1769 = vpack.c.b16 %v1307, %v1301
  %v1770 = vpack.c.b16 %v1308, %v1302
  %v1771 = vpack.c.b16 %v1309, %v1303
  %v1772 = vpack.c.b16 %v1310, %v1304
  %v1773 = vpack.c.b16 %v1311, %v1305
  %v1774 = vpack.c.b16 %v1318, %v1312
  %v1775 = vpack.c.b16 %v1319, %v1313
  %v1776 = vpack.c.b16 %v1320, %v1314
  %v1777 = vpack.c.b16 %v1321, %v1315
  %v1778 = vpack.c.b16 %v1322, %v1316
  %v1779 = vpack.c.b16 %v1323, %v1317
  %v1780 = vpack.c.b16 %v1330, %v1324
  %v1781 = vpack.c.b16 %v1331, %v1325
  %v1782 = vpack.c.b16 %v1332, %v1326
  %v1783 = vpack.c.b16 %v1333, %v1327
  %v1784 = vpack.c.b16 %v1334, %v1328
  %v1785 = vpack.c.b16 %v1335, %v1329
  %v1786 = vpack.c.b16 %v1342, %v1336
  %v1787 = vpack.c.b16 %v1343, %v1337
  %v1788 = vpack.c.b16 %v1344, %v1338
  %v1789 = vpack.c.b16 %v1345, %v1339
  %v1790 = vpack.c.b16 %v1346, %v1340
  %v1791 = vpack.c.b16 %v1347, %v1341
  %v1792 = vpack.c.b16 %v1354, %v1348
  %v1793 = vpack.c.b16 %v1355, %v1349
  %v1794 = vpack.c.b16 %v1356, %v1350
  %v1795 = vpack.c.b16 %v1357, %v1351
  %v1796 = vpack.c.b16 %v1358, %v1352
  %v1797 = vpack.c.b16 %v1359, %v1353
  %v1798 = vpack.c.b16 %v1366, %v1360
  %v1799 = vpack.c.b16 %v1367, %v1361
  %v1800 = vpack.c.b16 %v1368, %v1362
  %v1801 = vpack.c.b16 %v1369, %v1363
  %v1802 = vpack.c.b16 %v1370, %v1364
  %v1803 = vpack.c.b16 %v1371, %v1365
  %v1804 = vpack.c.b16 %v1378, %v1372
  %v1805 = vpack.c.b16 %v1379, %v1373
  %v1806 = vpack.c.b16 %v1380, %v1374
  %v1807 = vpack.c.b16 %v1381, %v1375
  %v1808 = vpack.c.b16 %v1382, %v1376
  %v1809 = vpack.c.b16 %v1383, %v1377
  %v1810 = vpack.c.b16 %v1390, %v1384
  %v1811 = vpack.c.b16 %v1391, %v1385
  %v1812 = vpack.c.b16 %v1392, %v1386
  %v1813 = vpack.c.b16 %v1393, %v1387
  %v1814 = vpack.c.b16 %v1394, %v1388
  %v1815 = vpack.c.b16 %v1395, %v1389
  %v1816 = vpack.c.b16 %v1402, %v1396
  %v1817 = vpack.c.b16 %v1403, %v1397
  %v1818 = vpack.c.b16 %v1404, %v1398
  %v1819 = vpack.c.b16 %v1405, %v1399
  %v1820 = vpack.c.b16 %v1406, %v1400
  %v1821 = vpack.c.b16 %v1407, %v1401
  %v1822 = vpack.c.b16 %v1414, %v1408
  %v1823 = vpack.c.b16 %v1415, %v1409
  %v1824 = vpack.c.b16 %v1416, %v1410
  %v1825 = vpack.c.b16 %v1417, %v1411
  %v1826 = vpack.c.b16 %v1418, %v1412
  %v1827 = vpack.c.b16 %v1419, %v1413
  %v1828 = vpack.c.b16 %v1426, %v1420
  %v1829 = vpack.c.b16 %v1427, %v1421
  %v1830 = vpack.c.b16 %v1428, %v1422
  %v1831 = vpack.c.b16 %v1429, %v1423
  %v1832 = vpack.c.b16 %v1430, %v1424
  %v1833 = vpack.c.b16 %v1431, %v1425
  %v1834 = vpack.c.b16 %v1438, %v1432
  %v1835 = vpack.c.b16 %v1439, %v1433
  %v1836 = vpack.c.b16 %v1440, %v1434
  %v1837 = vpack.c.b16 %v1441, %v1435
  %v1838 = vpack.c.b16 %v1442, %v1436
  %v1839 = vpack.c.b16 %v1443, %v1437
  %v1840 = vpack.c.b16 %v1450, %v1444
  %v1841 = vpack.c.b16 %v1451, %v1445
  %v1842 = vpack.c.b16 %v1452, %v1446
  %v1843 = vpack.c.b16 %v1453, %v1447
  %v1844 = vpack.c.b16 %v1454, %v1448
  %v1845 = vpack.c.b16 %v1455, %v1449
  %v1846 = vpack.c.b16 %v1462, %v1456
  %v1847 = vpack.c.b16 %v1463, %v1457
  %v1848 = vpack.c.b16 %v1464, %v1458
  %v1849 = vpack.c.b16 %v1465, %v1459
  %v1850 = vpack.c.b16 %v1466, %v1460
  %v1851 = vpack.c.b16 %v1467, %v1461
  %v1852 = vpack.c.b16 %v1474, %v1468
  %v1853 = vpack.c.b16 %v1475, %v1469
  %v1854 = vpack.c.b16 %v1476, %v1470
  %v1855 = vpack.c.b16 %v1477, %v1471
  %v1856 = vpack.c.b16 %v1478, %v1472
  %v1857 = vpack.c.b16 %v1479, %v1473
  %v1858 = vpack.c.b16 %v1486, %v1480
  %v1859 = vpack.c.b16 %v1487, %v1481
  %v1860 = vpack.c.b16 %v1488, %v1482
  %v1861 = vpack.c.b16 %v1489, %v1483
  %v1862 = vpack.c.b16 %v1490, %v1484
  %v1863 = vpack.c.b16 %v1491, %v1485
  %v1864 = vpack.c.b16 %v1498, %v1492
  %v1865 = vpack.c.b16 %v1499, %v1493
  %v1866 = vpack.c.b16 %v1500, %v1494
  %v1867 = vpack.c.b16 %v1501, %v1495
  %v1868 = vpack.c.b16 %v1502, %v1496
  %v1869 = vpack.c.b16 %v1503, %v1497
  %v1870 = vpack.c.b16 %v1510, %v1504
  %v1871 = vpack.c.b16 %v1511, %v1505
  %v1872 = vpack.c.b16 %v1512, %v1506
  %v1873 = vpack.c.b16 %v1513, %v1507
  %v1874 = vpack.c.b16 %v1514, %v1508
  %v1875 = vpack.c.b16 %v1515, %v1509
  %v1876 = vpack.c.b16 %v1522, %v1516
  %v1877 = vpack.c.b16 %v1523, %v1517
  %v1878 = vpack.c.b16 %v1524, %v1518
  %v1879 = vpack.c.b16 %v1525, %v1519
  %v1880 = vpack.c.b16 %v1526, %v1520
  %v1881 = vpack.c.b16 %v1527, %v1521
  %v1882 = vpack.c.b16 %v1534, %v1528
  %v1883 = vpack.c.b16 %v1535, %v1529
  %v1884 = vpack.c.b16 %v1536, %v1530
  %v1885 = vpack.c.b16 %v1537, %v1531
  %v1886 = vpack.c.b16 %v1538, %v1532
  %v1887 = vpack.c.b16 %v1539, %v1533
  %v1888 = vpack.c.b16 %v1546, %v1540
  %v1889 = vpack.c.b16 %v1547, %v1541
  %v1890 = vpack.c.b16 %v1548, %v1542
  %v1891 = vpack.c.b16 %v1549, %v1543
  %v1892 = vpack.c.b16 %v1550, %v1544
  %v1893 = vpack.c.b16 %v1551, %v1545
  %v1894 = vpack.c.b16 %v1558, %v1552
  %v1895 = vpack.c.b16 %v1559, %v1553
  %v1896 = vpack.c.b16 %v1560, %v1554
  %v1897 = vpack.c.b16 %v1561, %v1555
  %v1898 = vpack.c.b16 %v1562, %v1556
  %v1899 = vpack.c.b16 %v1563, %v1557
  %v1900 = vpack.c.b16 %v1570, %v1564
  %v1901 = vpack.c.b16 %v1571, %v1565
  %v1902 = vpack.c.b16 %v1572, %v1566
  %v1903 = vpack.c.b16 %v1573, %v1567
  %v1904 = vpack.c.b16 %v1574, %v1568
  %v1905 = vpack.c.b16 %v1575, %v1569
  %v1906 = vpack.c.b16 %v1582, %v1576
  %v1907 = vpack.c.b16 %v1583, %v1577
  %v1908 = vpack.c.b16 %v1584, %v1578
  %v1909 = vpack.c.b16 %v1585, %v1579
  %v1910 = vpack.c.b16 %v1586, %v1580
  %v1911 = vpack.c.b16 %v1587, %v1581
  %v1912 = vpack.c.b16 %v1594, %v1588
  %v1913 = vpack.c.b16 %v1595, %v1589
  %v1914 = vpack.c.b16 %v1596, %v1590
  %v1915 = vpack.c.b16 %v1597, %v1591
  %v1916 = vpack.c.b16 %v1598, %v1592
  %v1917 = vpack.c.b16 %v1599, %v1593
  %v1918 = vpack.c.b16 %v1606, %v1600
  %v1919 = vpack.c.b16 %v1607, %v1601
  %v1920 = vpack.c.b16 %v1608, %v1602
  %v1921 = vpack.c.b16 %v1609, %v1603
  %v1922 = vpack.c.b16 %v1610, %v1604
  %v1923 = vpack.c.b16 %v1611, %v1605
  %v1924 = vpack.c.b16 %v1618, %v1612
  %v1925 = vpack.c.b16 %v1619, %v1613
  %v1926 = vpack.c.b16 %v1620, %v1614
  %v1927 = vpack.c.b16 %v1621, %v1615
  %v1928 = vpack.c.b16 %v1622, %v1616
  %v1929 = vpack.c.b16 %v1623, %v1617
  %v1930 = vpack.c.b16 %v1630, %v1624
  %v1931 = vpack.c.b16 %v1631, %v1625
  %v1932 = vpack.c.b16 %v1632, %v1626
  %v1933 = vpack.c.b16 %v1633, %v1627
  %v1934 = vpack.c.b16 %v1634, %v1628
  %v1935 = vpack.c.b16 %v1635, %v1629
  %v1936 = vpack.c.b16 %v1642, %v1636
  %v1937 = vpack.c.b16 %v1643, %v1637
  %v1938 = vpack.c.b16 %v1644, %v1638
  %v1939 = vpack.c.b16 %v1645, %v1639
  %v1940 = vpack.c.b16 %v1646, %v1640
  %v1941 = vpack.c.b16 %v1647, %v1641
  %v1942 = vpack.c.b16 %v1654, %v1648
  %v1943 = vpack.c.b16 %v1655, %v1649
  %v1944 = vpack.c.b16 %v1656, %v1650
  %v1945 = vpack.c.b16 %v1657, %v1651
  %v1946 = vpack.c.b16 %v1658, %v1652
  %v1947 = vpack.c.b16 %v1659, %v1653
  %2236 = vmatprep.subr.bf16.mxu0 %v1661
  %2237 = vmatpush1.bf16.msra.mxu0 %v1660
  %2238 = vmatprep.subr.bf16.mxu0 %v1667
  %2239 = vmatpush1.bf16.msra.mxu0 %v1666
  %2240 = vmatprep.subr.bf16.mxu0 %v1673
  %2241 = vmatpush1.bf16.msra.mxu0 %v1672
  %2242 = vmatprep.subr.bf16.mxu0 %v1679
  %2243 = vmatpush1.bf16.msra.mxu0 %v1678
  %2244 = vmatprep.subr.bf16.mxu0 %v1685
  %2245 = vmatpush1.bf16.msra.mxu0 %v1684
  %2246 = vmatprep.subr.bf16.mxu0 %v1691
  %2247 = vmatpush1.bf16.msra.mxu0 %v1690
  %2248 = vmatprep.subr.bf16.mxu0 %v1697
  %2249 = vmatpush1.bf16.msra.mxu0 %v1696
  %2250 = vmatprep.subr.bf16.mxu0 %v1703
  %2251 = vmatpush1.bf16.msra.mxu0 %v1702
  %2252 = vmatprep.subr.bf16.mxu0 %v1709
  %2253 = vmatpush1.bf16.msra.mxu0 %v1708
  %2254 = vmatprep.subr.bf16.mxu0 %v1715
  %2255 = vmatpush1.bf16.msra.mxu0 %v1714
  %2256 = vmatprep.subr.bf16.mxu0 %v1721
  %2257 = vmatpush1.bf16.msra.mxu0 %v1720
  %2258 = vmatprep.subr.bf16.mxu0 %v1727
  %2259 = vmatpush1.bf16.msra.mxu0 %v1726
  %2260 = vmatprep.subr.bf16.mxu0 %v1733
  %2261 = vmatpush1.bf16.msra.mxu0 %v1732
  %2262 = vmatprep.subr.bf16.mxu0 %v1739
  %2263 = vmatpush1.bf16.msra.mxu0 %v1738
  %2264 = vmatprep.subr.bf16.mxu0 %v1745
  %2265 = vmatpush1.bf16.msra.mxu0 %v1744
  %2266 = vmatprep.subr.bf16.mxu0 %v1751
  %2267 = vmatpush1.bf16.msra.mxu0 %v1750
  %2268 = vmatprep.mubr.bf16.mxu0 %v169
  %2269 = vmatmul.mubr.bf16.gmra.mrb[0].mxu0 %v168
  %v2270 = vpop.f32.mrb[0].mxu0
  %v2271 = vadd.f32 %v612, %v2270
  %v2272 = vpop.f32.mrb[0].mxu0
  %v2273 = vadd.f32 %v614, %v2272
  %v2274 = vpop.f32.mrb[0].mxu0
  %v2275 = vadd.f32 %v616, %v2274
  %v2276 = vpop.f32.mrb[0].mxu0
  %v2277 = vadd.f32 %v618, %v2276
  %2278 = vmatprep.mubr.bf16.mxu0 %v175
  %2279 = vmatmul.mubr.bf16.gmra.mrb[0].mxu0 %v174
  %v2280 = vpop.f32.mrb[0].mxu0
  %v2281 = vadd.f32 %v622, %v2280
  %v2282 = vpop.f32.mrb[0].mxu0
  %v2283 = vadd.f32 %v624, %v2282
  %v2284 = vpop.f32.mrb[0].mxu0
  %v2285 = vadd.f32 %v626, %v2284
  %v2286 = vpop.f32.mrb[0].mxu0
  %v2287 = vadd.f32 %v628, %v2286
  %2288 = vmatprep.mubr.bf16.mxu0 %v181
  %2289 = vmatmul.mubr.bf16.gmra.mrb[0].mxu0 %v180
  %v2290 = vpop.f32.mrb[0].mxu0
  %v2291 = vadd.f32 %v632, %v2290
  %v2292 = vpop.f32.mrb[0].mxu0
  %v2293 = vadd.f32 %v634, %v2292
  %v2294 = vpop.f32.mrb[0].mxu0
  %v2295 = vadd.f32 %v636, %v2294
  %v2296 = vpop.f32.mrb[0].mxu0
  %v2297 = vadd.f32 %v638, %v2296
  %2298 = vmatprep.mubr.bf16.mxu0 %v187
  %2299 = vmatmul.mubr.bf16.gmra.mrb[0].mxu0 %v186
  %v2300 = vpop.f32.mrb[0].mxu0
  %v2301 = vadd.f32 %v642, %v2300
  %v2302 = vpop.f32.mrb[0].mxu0
  %v2303 = vadd.f32 %v644, %v2302
  %v2304 = vpop.f32.mrb[0].mxu0
  %v2305 = vadd.f32 %v646, %v2304
  %v2306 = vpop.f32.mrb[0].mxu0
  %v2307 = vadd.f32 %v648, %v2306
  %2308 = vdwg.mxu0
  %2309 = vmatprep.subr.bf16.mxu0 %v1757
  %2310 = vmatpush1.bf16.msra.mxu0 %v1756
  %2311 = vmatprep.subr.bf16.mxu0 %v1763
  %2312 = vmatpush1.bf16.msra.mxu0 %v1762
  %2313 = vmatprep.subr.bf16.mxu0 %v1769
  %2314 = vmatpush1.bf16.msra.mxu0 %v1768
  %2315 = vmatprep.subr.bf16.mxu0 %v1775
  %2316 = vmatpush1.bf16.msra.mxu0 %v1774
  %2317 = vmatprep.subr.bf16.mxu0 %v1781
  %2318 = vmatpush1.bf16.msra.mxu0 %v1780
  %2319 = vmatprep.subr.bf16.mxu0 %v1787
  %2320 = vmatpush1.bf16.msra.mxu0 %v1786
  %2321 = vmatprep.subr.bf16.mxu0 %v1793
  %2322 = vmatpush1.bf16.msra.mxu0 %v1792
  %2323 = vmatprep.subr.bf16.mxu0 %v1799
  %2324 = vmatpush1.bf16.msra.mxu0 %v1798
  %2325 = vmatprep.subr.bf16.mxu0 %v1805
  %2326 = vmatpush1.bf16.msra.mxu0 %v1804
  %2327 = vmatprep.subr.bf16.mxu0 %v1811
  %2328 = vmatpush1.bf16.msra.mxu0 %v1810
  %2329 = vmatprep.subr.bf16.mxu0 %v1817
  %2330 = vmatpush1.bf16.msra.mxu0 %v1816
  %2331 = vmatprep.subr.bf16.mxu0 %v1823
  %2332 = vmatpush1.bf16.msra.mxu0 %v1822
  %2333 = vmatprep.subr.bf16.mxu0 %v1829
  %2334 = vmatpush1.bf16.msra.mxu0 %v1828
  %2335 = vmatprep.subr.bf16.mxu0 %v1835
  %2336 = vmatpush1.bf16.msra.mxu0 %v1834
  %2337 = vmatprep.subr.bf16.mxu0 %v1841
  %2338 = vmatpush1.bf16.msra.mxu0 %v1840
  %2339 = vmatprep.subr.bf16.mxu0 %v1847
  %2340 = vmatpush1.bf16.msra.mxu0 %v1846
  %2341 = vmatprep.mubr.bf16.mxu0 %v171
  %2342 = vmatmul.mubr.bf16.gmra.mrb[0].mxu0 %v170
  %v2343 = vpop.f32.mrb[0].mxu0
  %v2344 = vadd.f32 %v2271, %v2343
  %v2345 = vpop.f32.mrb[0].mxu0
  %v2346 = vadd.f32 %v2273, %v2345
  %v2347 = vpop.f32.mrb[0].mxu0
  %v2348 = vadd.f32 %v2275, %v2347
  %v2349 = vpop.f32.mrb[0].mxu0
  %v2350 = vadd.f32 %v2277, %v2349
  %2351 = vmatprep.mubr.bf16.mxu0 %v177
  %2352 = vmatmul.mubr.bf16.gmra.mrb[0].mxu0 %v176
  %v2353 = vpop.f32.mrb[0].mxu0
  %v2354 = vadd.f32 %v2281, %v2353
  %v2355 = vpop.f32.mrb[0].mxu0
  %v2356 = vadd.f32 %v2283, %v2355
  %v2357 = vpop.f32.mrb[0].mxu0
  %v2358 = vadd.f32 %v2285, %v2357
  %v2359 = vpop.f32.mrb[0].mxu0
  %v2360 = vadd.f32 %v2287, %v2359
  %2361 = vmatprep.mubr.bf16.mxu0 %v183
  %2362 = vmatmul.mubr.bf16.gmra.mrb[0].mxu0 %v182
  %v2363 = vpop.f32.mrb[0].mxu0
  %v2364 = vadd.f32 %v2291, %v2363
  %v2365 = vpop.f32.mrb[0].mxu0
  %v2366 = vadd.f32 %v2293, %v2365
  %v2367 = vpop.f32.mrb[0].mxu0
  %v2368 = vadd.f32 %v2295, %v2367
  %v2369 = vpop.f32.mrb[0].mxu0
  %v2370 = vadd.f32 %v2297, %v2369
  %2371 = vmatprep.mubr.bf16.mxu0 %v189
  %2372 = vmatmul.mubr.bf16.gmra.mrb[0].mxu0 %v188
  %v2373 = vpop.f32.mrb[0].mxu0
  %v2374 = vadd.f32 %v2301, %v2373
  %v2375 = vpop.f32.mrb[0].mxu0
  %v2376 = vadd.f32 %v2303, %v2375
  %v2377 = vpop.f32.mrb[0].mxu0
  %v2378 = vadd.f32 %v2305, %v2377
  %v2379 = vpop.f32.mrb[0].mxu0
  %v2380 = vadd.f32 %v2307, %v2379
  %2381 = vdwg.mxu0
  %2382 = vmatprep.subr.bf16.mxu0 %v1853
  %2383 = vmatpush1.bf16.msra.mxu0 %v1852
  %2384 = vmatprep.subr.bf16.mxu0 %v1859
  %2385 = vmatpush1.bf16.msra.mxu0 %v1858
  %2386 = vmatprep.subr.bf16.mxu0 %v1865
  %2387 = vmatpush1.bf16.msra.mxu0 %v1864
  %2388 = vmatprep.subr.bf16.mxu0 %v1871
  %2389 = vmatpush1.bf16.msra.mxu0 %v1870
  %2390 = vmatprep.subr.bf16.mxu0 %v1877
  %2391 = vmatpush1.bf16.msra.mxu0 %v1876
  %2392 = vmatprep.subr.bf16.mxu0 %v1883
  %2393 = vmatpush1.bf16.msra.mxu0 %v1882
  %2394 = vmatprep.subr.bf16.mxu0 %v1889
  %2395 = vmatpush1.bf16.msra.mxu0 %v1888
  %2396 = vmatprep.subr.bf16.mxu0 %v1895
  %2397 = vmatpush1.bf16.msra.mxu0 %v1894
  %2398 = vmatprep.subr.bf16.mxu0 %v1901
  %2399 = vmatpush1.bf16.msra.mxu0 %v1900
  %2400 = vmatprep.subr.bf16.mxu0 %v1907
  %2401 = vmatpush1.bf16.msra.mxu0 %v1906
  %2402 = vmatprep.subr.bf16.mxu0 %v1913
  %2403 = vmatpush1.bf16.msra.mxu0 %v1912
  %2404 = vmatprep.subr.bf16.mxu0 %v1919
  %2405 = vmatpush1.bf16.msra.mxu0 %v1918
  %2406 = vmatprep.subr.bf16.mxu0 %v1925
  %2407 = vmatpush1.bf16.msra.mxu0 %v1924
  %2408 = vmatprep.subr.bf16.mxu0 %v1931
  %2409 = vmatpush1.bf16.msra.mxu0 %v1930
  %2410 = vmatprep.subr.bf16.mxu0 %v1937
  %2411 = vmatpush1.bf16.msra.mxu0 %v1936
  %2412 = vmatprep.subr.bf16.mxu0 %v1943
  %2413 = vmatpush1.bf16.msra.mxu0 %v1942
  %2414 = vmatprep.mubr.bf16.mxu0 %v173
  %2415 = vmatmul.mubr.bf16.gmra.mrb[0].mxu0 %v172
  %v2416 = vpop.f32.mrb[0].mxu0
  %v2417 = vadd.f32 %v2344, %v2416
  %v2418 = vpop.f32.mrb[0].mxu0
  %v2419 = vadd.f32 %v2346, %v2418
  %v2420 = vpop.f32.mrb[0].mxu0
  %v2421 = vadd.f32 %v2348, %v2420
  %v2422 = vpop.f32.mrb[0].mxu0
  %v2423 = vadd.f32 %v2350, %v2422
  %2424 = vmatprep.mubr.bf16.mxu0 %v179
  %2425 = vmatmul.mubr.bf16.gmra.mrb[0].mxu0 %v178
  %v2426 = vpop.f32.mrb[0].mxu0
  %v2427 = vadd.f32 %v2354, %v2426
  %v2428 = vpop.f32.mrb[0].mxu0
  %v2429 = vadd.f32 %v2356, %v2428
  %v2430 = vpop.f32.mrb[0].mxu0
  %v2431 = vadd.f32 %v2358, %v2430
  %v2432 = vpop.f32.mrb[0].mxu0
  %v2433 = vadd.f32 %v2360, %v2432
  %2434 = vmatprep.mubr.bf16.mxu0 %v185
  %2435 = vmatmul.mubr.bf16.gmra.mrb[0].mxu0 %v184
  %v2436 = vpop.f32.mrb[0].mxu0
  %v2437 = vadd.f32 %v2364, %v2436
  %v2438 = vpop.f32.mrb[0].mxu0
  %v2439 = vadd.f32 %v2366, %v2438
  %v2440 = vpop.f32.mrb[0].mxu0
  %v2441 = vadd.f32 %v2368, %v2440
  %v2442 = vpop.f32.mrb[0].mxu0
  %v2443 = vadd.f32 %v2370, %v2442
  %2444 = vmatprep.mubr.bf16.mxu0 %v191
  %2445 = vmatmul.mubr.bf16.gmra.mrb[0].mxu0 %v190
  %v2446 = vpop.f32.mrb[0].mxu0
  %v2447 = vadd.f32 %v2374, %v2446
  %v2448 = vpop.f32.mrb[0].mxu0
  %v2449 = vadd.f32 %v2376, %v2448
  %v2450 = vpop.f32.mrb[0].mxu0
  %v2451 = vadd.f32 %v2378, %v2450
  %v2452 = vpop.f32.mrb[0].mxu0
  %v2453 = vadd.f32 %v2380, %v2452
  %2454 = vdwg.mxu0
  %2455 = vmatprep.subr.bf16.mxu0 %v1663
  %2456 = vmatpush1.bf16.msra.mxu0 %v1662
  %2457 = vmatprep.subr.bf16.mxu0 %v1669
  %2458 = vmatpush1.bf16.msra.mxu0 %v1668
  %2459 = vmatprep.subr.bf16.mxu0 %v1675
  %2460 = vmatpush1.bf16.msra.mxu0 %v1674
  %2461 = vmatprep.subr.bf16.mxu0 %v1681
  %2462 = vmatpush1.bf16.msra.mxu0 %v1680
  %2463 = vmatprep.subr.bf16.mxu0 %v1687
  %2464 = vmatpush1.bf16.msra.mxu0 %v1686
  %2465 = vmatprep.subr.bf16.mxu0 %v1693
  %2466 = vmatpush1.bf16.msra.mxu0 %v1692
  %2467 = vmatprep.subr.bf16.mxu0 %v1699
  %2468 = vmatpush1.bf16.msra.mxu0 %v1698
  %2469 = vmatprep.subr.bf16.mxu0 %v1705
  %2470 = vmatpush1.bf16.msra.mxu0 %v1704
  %2471 = vmatprep.subr.bf16.mxu0 %v1711
  %2472 = vmatpush1.bf16.msra.mxu0 %v1710
  %2473 = vmatprep.subr.bf16.mxu0 %v1717
  %2474 = vmatpush1.bf16.msra.mxu0 %v1716
  %2475 = vmatprep.subr.bf16.mxu0 %v1723
  %2476 = vmatpush1.bf16.msra.mxu0 %v1722
  %2477 = vmatprep.subr.bf16.mxu0 %v1729
  %2478 = vmatpush1.bf16.msra.mxu0 %v1728
  %2479 = vmatprep.subr.bf16.mxu0 %v1735
  %2480 = vmatpush1.bf16.msra.mxu0 %v1734
  %2481 = vmatprep.subr.bf16.mxu0 %v1741
  %2482 = vmatpush1.bf16.msra.mxu0 %v1740
  %2483 = vmatprep.subr.bf16.mxu0 %v1747
  %2484 = vmatpush1.bf16.msra.mxu0 %v1746
  %2485 = vmatprep.subr.bf16.mxu0 %v1753
  %2486 = vmatpush1.bf16.msra.mxu0 %v1752
  %2487 = vmatprep.mubr.bf16.mxu0 %v169
  %2488 = vmatmul.mubr.bf16.gmra.mrb[0].mxu0 %v168
  %v2489 = vpop.f32.mrb[0].mxu0
  %v2490 = vadd.f32 %v685, %v2489
  %v2491 = vpop.f32.mrb[0].mxu0
  %v2492 = vadd.f32 %v687, %v2491
  %v2493 = vpop.f32.mrb[0].mxu0
  %v2494 = vadd.f32 %v689, %v2493
  %v2495 = vpop.f32.mrb[0].mxu0
  %v2496 = vadd.f32 %v691, %v2495
  %2497 = vmatprep.mubr.bf16.mxu0 %v175
  %2498 = vmatmul.mubr.bf16.gmra.mrb[0].mxu0 %v174
  %v2499 = vpop.f32.mrb[0].mxu0
  %v2500 = vadd.f32 %v695, %v2499
  %v2501 = vpop.f32.mrb[0].mxu0
  %v2502 = vadd.f32 %v697, %v2501
  %v2503 = vpop.f32.mrb[0].mxu0
  %v2504 = vadd.f32 %v699, %v2503
  %v2505 = vpop.f32.mrb[0].mxu0
  %v2506 = vadd.f32 %v701, %v2505
  %2507 = vmatprep.mubr.bf16.mxu0 %v181
  %2508 = vmatmul.mubr.bf16.gmra.mrb[0].mxu0 %v180
  %v2509 = vpop.f32.mrb[0].mxu0
  %v2510 = vadd.f32 %v705, %v2509
  %v2511 = vpop.f32.mrb[0].mxu0
  %v2512 = vadd.f32 %v707, %v2511
  %v2513 = vpop.f32.mrb[0].mxu0
  %v2514 = vadd.f32 %v709, %v2513
  %v2515 = vpop.f32.mrb[0].mxu0
  %v2516 = vadd.f32 %v711, %v2515
  %2517 = vmatprep.mubr.bf16.mxu0 %v187
  %2518 = vmatmul.mubr.bf16.gmra.mrb[0].mxu0 %v186
  %v2519 = vpop.f32.mrb[0].mxu0
  %v2520 = vadd.f32 %v715, %v2519
  %v2521 = vpop.f32.mrb[0].mxu0
  %v2522 = vadd.f32 %v717, %v2521
  %v2523 = vpop.f32.mrb[0].mxu0
  %v2524 = vadd.f32 %v719, %v2523
  %v2525 = vpop.f32.mrb[0].mxu0
  %v2526 = vadd.f32 %v721, %v2525
  %2527 = vdwg.mxu0
  %2528 = vmatprep.subr.bf16.mxu0 %v1759
  %2529 = vmatpush1.bf16.msra.mxu0 %v1758
  %2530 = vmatprep.subr.bf16.mxu0 %v1765
  %2531 = vmatpush1.bf16.msra.mxu0 %v1764
  %2532 = vmatprep.subr.bf16.mxu0 %v1771
  %2533 = vmatpush1.bf16.msra.mxu0 %v1770
  %2534 = vmatprep.subr.bf16.mxu0 %v1777
  %2535 = vmatpush1.bf16.msra.mxu0 %v1776
  %2536 = vmatprep.subr.bf16.mxu0 %v1783
  %2537 = vmatpush1.bf16.msra.mxu0 %v1782
  %2538 = vmatprep.subr.bf16.mxu0 %v1789
  %2539 = vmatpush1.bf16.msra.mxu0 %v1788
  %2540 = vmatprep.subr.bf16.mxu0 %v1795
  %2541 = vmatpush1.bf16.msra.mxu0 %v1794
  %2542 = vmatprep.subr.bf16.mxu0 %v1801
  %2543 = vmatpush1.bf16.msra.mxu0 %v1800
  %2544 = vmatprep.subr.bf16.mxu0 %v1807
  %2545 = vmatpush1.bf16.msra.mxu0 %v1806
  %2546 = vmatprep.subr.bf16.mxu0 %v1813
  %2547 = vmatpush1.bf16.msra.mxu0 %v1812
  %2548 = vmatprep.subr.bf16.mxu0 %v1819
  %2549 = vmatpush1.bf16.msra.mxu0 %v1818
  %2550 = vmatprep.subr.bf16.mxu0 %v1825
  %2551 = vmatpush1.bf16.msra.mxu0 %v1824
  %2552 = vmatprep.subr.bf16.mxu0 %v1831
  %2553 = vmatpush1.bf16.msra.mxu0 %v1830
  %2554 = vmatprep.subr.bf16.mxu0 %v1837
  %2555 = vmatpush1.bf16.msra.mxu0 %v1836
  %2556 = vmatprep.subr.bf16.mxu0 %v1843
  %2557 = vmatpush1.bf16.msra.mxu0 %v1842
  %2558 = vmatprep.subr.bf16.mxu0 %v1849
  %2559 = vmatpush1.bf16.msra.mxu0 %v1848
  %2560 = vmatprep.mubr.bf16.mxu0 %v171
  %2561 = vmatmul.mubr.bf16.gmra.mrb[0].mxu0 %v170
  %v2562 = vpop.f32.mrb[0].mxu0
  %v2563 = vadd.f32 %v2490, %v2562
  %v2564 = vpop.f32.mrb[0].mxu0
  %v2565 = vadd.f32 %v2492, %v2564
  %v2566 = vpop.f32.mrb[0].mxu0
  %v2567 = vadd.f32 %v2494, %v2566
  %v2568 = vpop.f32.mrb[0].mxu0
  %v2569 = vadd.f32 %v2496, %v2568
  %2570 = vmatprep.mubr.bf16.mxu0 %v177
  %2571 = vmatmul.mubr.bf16.gmra.mrb[0].mxu0 %v176
  %v2572 = vpop.f32.mrb[0].mxu0
  %v2573 = vadd.f32 %v2500, %v2572
  %v2574 = vpop.f32.mrb[0].mxu0
  %v2575 = vadd.f32 %v2502, %v2574
  %v2576 = vpop.f32.mrb[0].mxu0
  %v2577 = vadd.f32 %v2504, %v2576
  %v2578 = vpop.f32.mrb[0].mxu0
  %v2579 = vadd.f32 %v2506, %v2578
  %2580 = vmatprep.mubr.bf16.mxu0 %v183
  %2581 = vmatmul.mubr.bf16.gmra.mrb[0].mxu0 %v182
  %v2582 = vpop.f32.mrb[0].mxu0
  %v2583 = vadd.f32 %v2510, %v2582
  %v2584 = vpop.f32.mrb[0].mxu0
  %v2585 = vadd.f32 %v2512, %v2584
  %v2586 = vpop.f32.mrb[0].mxu0
  %v2587 = vadd.f32 %v2514, %v2586
  %v2588 = vpop.f32.mrb[0].mxu0
  %v2589 = vadd.f32 %v2516, %v2588
  %2590 = vmatprep.mubr.bf16.mxu0 %v189
  %2591 = vmatmul.mubr.bf16.gmra.mrb[0].mxu0 %v188
  %v2592 = vpop.f32.mrb[0].mxu0
  %v2593 = vadd.f32 %v2520, %v2592
  %v2594 = vpop.f32.mrb[0].mxu0
  %v2595 = vadd.f32 %v2522, %v2594
  %v2596 = vpop.f32.mrb[0].mxu0
  %v2597 = vadd.f32 %v2524, %v2596
  %v2598 = vpop.f32.mrb[0].mxu0
  %v2599 = vadd.f32 %v2526, %v2598
  %2600 = vdwg.mxu0
  %2601 = vmatprep.subr.bf16.mxu0 %v1855
  %2602 = vmatpush1.bf16.msra.mxu0 %v1854
  %2603 = vmatprep.subr.bf16.mxu0 %v1861
  %2604 = vmatpush1.bf16.msra.mxu0 %v1860
  %2605 = vmatprep.subr.bf16.mxu0 %v1867
  %2606 = vmatpush1.bf16.msra.mxu0 %v1866
  %2607 = vmatprep.subr.bf16.mxu0 %v1873
  %2608 = vmatpush1.bf16.msra.mxu0 %v1872
  %2609 = vmatprep.subr.bf16.mxu0 %v1879
  %2610 = vmatpush1.bf16.msra.mxu0 %v1878
  %2611 = vmatprep.subr.bf16.mxu0 %v1885
  %2612 = vmatpush1.bf16.msra.mxu0 %v1884
  %2613 = vmatprep.subr.bf16.mxu0 %v1891
  %2614 = vmatpush1.bf16.msra.mxu0 %v1890
  %2615 = vmatprep.subr.bf16.mxu0 %v1897
  %2616 = vmatpush1.bf16.msra.mxu0 %v1896
  %2617 = vmatprep.subr.bf16.mxu0 %v1903
  %2618 = vmatpush1.bf16.msra.mxu0 %v1902
  %2619 = vmatprep.subr.bf16.mxu0 %v1909
  %2620 = vmatpush1.bf16.msra.mxu0 %v1908
  %2621 = vmatprep.subr.bf16.mxu0 %v1915
  %2622 = vmatpush1.bf16.msra.mxu0 %v1914
  %2623 = vmatprep.subr.bf16.mxu0 %v1921
  %2624 = vmatpush1.bf16.msra.mxu0 %v1920
  %2625 = vmatprep.subr.bf16.mxu0 %v1927
  %2626 = vmatpush1.bf16.msra.mxu0 %v1926
  %2627 = vmatprep.subr.bf16.mxu0 %v1933
  %2628 = vmatpush1.bf16.msra.mxu0 %v1932
  %2629 = vmatprep.subr.bf16.mxu0 %v1939
  %2630 = vmatpush1.bf16.msra.mxu0 %v1938
  %2631 = vmatprep.subr.bf16.mxu0 %v1945
  %2632 = vmatpush1.bf16.msra.mxu0 %v1944
  %2633 = vmatprep.mubr.bf16.mxu0 %v173
  %2634 = vmatmul.mubr.bf16.gmra.mrb[0].mxu0 %v172
  %v2635 = vpop.f32.mrb[0].mxu0
  %v2636 = vadd.f32 %v2563, %v2635
  %v2637 = vpop.f32.mrb[0].mxu0
  %v2638 = vadd.f32 %v2565, %v2637
  %v2639 = vpop.f32.mrb[0].mxu0
  %v2640 = vadd.f32 %v2567, %v2639
  %v2641 = vpop.f32.mrb[0].mxu0
  %v2642 = vadd.f32 %v2569, %v2641
  %2643 = vmatprep.mubr.bf16.mxu0 %v179
  %2644 = vmatmul.mubr.bf16.gmra.mrb[0].mxu0 %v178
  %v2645 = vpop.f32.mrb[0].mxu0
  %v2646 = vadd.f32 %v2573, %v2645
  %v2647 = vpop.f32.mrb[0].mxu0
  %v2648 = vadd.f32 %v2575, %v2647
  %v2649 = vpop.f32.mrb[0].mxu0
  %v2650 = vadd.f32 %v2577, %v2649
  %v2651 = vpop.f32.mrb[0].mxu0
  %v2652 = vadd.f32 %v2579, %v2651
  %2653 = vmatprep.mubr.bf16.mxu0 %v185
  %2654 = vmatmul.mubr.bf16.gmra.mrb[0].mxu0 %v184
  %v2655 = vpop.f32.mrb[0].mxu0
  %v2656 = vadd.f32 %v2583, %v2655
  %v2657 = vpop.f32.mrb[0].mxu0
  %v2658 = vadd.f32 %v2585, %v2657
  %v2659 = vpop.f32.mrb[0].mxu0
  %v2660 = vadd.f32 %v2587, %v2659
  %v2661 = vpop.f32.mrb[0].mxu0
  %v2662 = vadd.f32 %v2589, %v2661
  %2663 = vmatprep.mubr.bf16.mxu0 %v191
  %2664 = vmatmul.mubr.bf16.gmra.mrb[0].mxu0 %v190
  %v2665 = vpop.f32.mrb[0].mxu0
  %v2666 = vadd.f32 %v2593, %v2665
  %v2667 = vpop.f32.mrb[0].mxu0
  %v2668 = vadd.f32 %v2595, %v2667
  %v2669 = vpop.f32.mrb[0].mxu0
  %v2670 = vadd.f32 %v2597, %v2669
  %v2671 = vpop.f32.mrb[0].mxu0
  %v2672 = vadd.f32 %v2599, %v2671
  %2673 = vdwg.mxu0
  %2674 = vmatprep.subr.bf16.mxu0 %v1665
  %2675 = vmatpush1.bf16.msra.mxu0 %v1664
  %2676 = vmatprep.subr.bf16.mxu0 %v1671
  %2677 = vmatpush1.bf16.msra.mxu0 %v1670
  %2678 = vmatprep.subr.bf16.mxu0 %v1677
  %2679 = vmatpush1.bf16.msra.mxu0 %v1676
  %2680 = vmatprep.subr.bf16.mxu0 %v1683
  %2681 = vmatpush1.bf16.msra.mxu0 %v1682
  %2682 = vmatprep.subr.bf16.mxu0 %v1689
  %2683 = vmatpush1.bf16.msra.mxu0 %v1688
  %2684 = vmatprep.subr.bf16.mxu0 %v1695
  %2685 = vmatpush1.bf16.msra.mxu0 %v1694
  %2686 = vmatprep.subr.bf16.mxu0 %v1701
  %2687 = vmatpush1.bf16.msra.mxu0 %v1700
  %2688 = vmatprep.subr.bf16.mxu0 %v1707
  %2689 = vmatpush1.bf16.msra.mxu0 %v1706
  %2690 = vmatprep.subr.bf16.mxu0 %v1713
  %2691 = vmatpush1.bf16.msra.mxu0 %v1712
  %2692 = vmatprep.subr.bf16.mxu0 %v1719
  %2693 = vmatpush1.bf16.msra.mxu0 %v1718
  %2694 = vmatprep.subr.bf16.mxu0 %v1725
  %2695 = vmatpush1.bf16.msra.mxu0 %v1724
  %2696 = vmatprep.subr.bf16.mxu0 %v1731
  %2697 = vmatpush1.bf16.msra.mxu0 %v1730
  %2698 = vmatprep.subr.bf16.mxu0 %v1737
  %2699 = vmatpush1.bf16.msra.mxu0 %v1736
  %2700 = vmatprep.subr.bf16.mxu0 %v1743
  %2701 = vmatpush1.bf16.msra.mxu0 %v1742
  %2702 = vmatprep.subr.bf16.mxu0 %v1749
  %2703 = vmatpush1.bf16.msra.mxu0 %v1748
  %2704 = vmatprep.subr.bf16.mxu0 %v1755
  %2705 = vmatpush1.bf16.msra.mxu0 %v1754
  %2706 = vmatprep.mubr.bf16.mxu0 %v169
  %2707 = vmatmul.mubr.bf16.gmra.mrb[0].mxu0 %v168
  %v2708 = vpop.f32.mrb[0].mxu0
  %v2709 = vadd.f32 %v758, %v2708
  %v2710 = vpop.f32.mrb[0].mxu0
  %v2711 = vadd.f32 %v760, %v2710
  %v2712 = vpop.f32.mrb[0].mxu0
  %v2713 = vadd.f32 %v762, %v2712
  %v2714 = vpop.f32.mrb[0].mxu0
  %v2715 = vadd.f32 %v764, %v2714
  %2716 = vmatprep.mubr.bf16.mxu0 %v175
  %2717 = vmatmul.mubr.bf16.gmra.mrb[0].mxu0 %v174
  %v2718 = vpop.f32.mrb[0].mxu0
  %v2719 = vadd.f32 %v768, %v2718
  %v2720 = vpop.f32.mrb[0].mxu0
  %v2721 = vadd.f32 %v770, %v2720
  %v2722 = vpop.f32.mrb[0].mxu0
  %v2723 = vadd.f32 %v772, %v2722
  %v2724 = vpop.f32.mrb[0].mxu0
  %v2725 = vadd.f32 %v774, %v2724
  %2726 = vmatprep.mubr.bf16.mxu0 %v181
  %2727 = vmatmul.mubr.bf16.gmra.mrb[0].mxu0 %v180
  %v2728 = vpop.f32.mrb[0].mxu0
  %v2729 = vadd.f32 %v778, %v2728
  %v2730 = vpop.f32.mrb[0].mxu0
  %v2731 = vadd.f32 %v780, %v2730
  %v2732 = vpop.f32.mrb[0].mxu0
  %v2733 = vadd.f32 %v782, %v2732
  %v2734 = vpop.f32.mrb[0].mxu0
  %v2735 = vadd.f32 %v784, %v2734
  %2736 = vmatprep.mubr.bf16.mxu0 %v187
  %2737 = vmatmul.mubr.bf16.gmra.mrb[0].mxu0 %v186
  %v2738 = vpop.f32.mrb[0].mxu0
  %v2739 = vadd.f32 %v788, %v2738
  %v2740 = vpop.f32.mrb[0].mxu0
  %v2741 = vadd.f32 %v790, %v2740
  %v2742 = vpop.f32.mrb[0].mxu0
  %v2743 = vadd.f32 %v792, %v2742
  %v2744 = vpop.f32.mrb[0].mxu0
  %v2745 = vadd.f32 %v794, %v2744
  %2746 = vdwg.mxu0
  %2747 = vmatprep.subr.bf16.mxu0 %v1761
  %2748 = vmatpush1.bf16.msra.mxu0 %v1760
  %2749 = vmatprep.subr.bf16.mxu0 %v1767
  %2750 = vmatpush1.bf16.msra.mxu0 %v1766
  %2751 = vmatprep.subr.bf16.mxu0 %v1773
  %2752 = vmatpush1.bf16.msra.mxu0 %v1772
  %2753 = vmatprep.subr.bf16.mxu0 %v1779
  %2754 = vmatpush1.bf16.msra.mxu0 %v1778
  %2755 = vmatprep.subr.bf16.mxu0 %v1785
  %2756 = vmatpush1.bf16.msra.mxu0 %v1784
  %2757 = vmatprep.subr.bf16.mxu0 %v1791
  %2758 = vmatpush1.bf16.msra.mxu0 %v1790
  %2759 = vmatprep.subr.bf16.mxu0 %v1797
  %2760 = vmatpush1.bf16.msra.mxu0 %v1796
  %2761 = vmatprep.subr.bf16.mxu0 %v1803
  %2762 = vmatpush1.bf16.msra.mxu0 %v1802
  %2763 = vmatprep.subr.bf16.mxu0 %v1809
  %2764 = vmatpush1.bf16.msra.mxu0 %v1808
  %2765 = vmatprep.subr.bf16.mxu0 %v1815
  %2766 = vmatpush1.bf16.msra.mxu0 %v1814
  %2767 = vmatprep.subr.bf16.mxu0 %v1821
  %2768 = vmatpush1.bf16.msra.mxu0 %v1820
  %2769 = vmatprep.subr.bf16.mxu0 %v1827
  %2770 = vmatpush1.bf16.msra.mxu0 %v1826
  %2771 = vmatprep.subr.bf16.mxu0 %v1833
  %2772 = vmatpush1.bf16.msra.mxu0 %v1832
  %2773 = vmatprep.subr.bf16.mxu0 %v1839
  %2774 = vmatpush1.bf16.msra.mxu0 %v1838
  %2775 = vmatprep.subr.bf16.mxu0 %v1845
  %2776 = vmatpush1.bf16.msra.mxu0 %v1844
  %2777 = vmatprep.subr.bf16.mxu0 %v1851
  %2778 = vmatpush1.bf16.msra.mxu0 %v1850
  %2779 = vmatprep.mubr.bf16.mxu0 %v171
  %2780 = vmatmul.mubr.bf16.gmra.mrb[0].mxu0 %v170
  %v2781 = vpop.f32.mrb[0].mxu0
  %v2782 = vadd.f32 %v2709, %v2781
  %v2783 = vpop.f32.mrb[0].mxu0
  %v2784 = vadd.f32 %v2711, %v2783
  %v2785 = vpop.f32.mrb[0].mxu0
  %v2786 = vadd.f32 %v2713, %v2785
  %v2787 = vpop.f32.mrb[0].mxu0
  %v2788 = vadd.f32 %v2715, %v2787
  %2789 = vmatprep.mubr.bf16.mxu0 %v177
  %2790 = vmatmul.mubr.bf16.gmra.mrb[0].mxu0 %v176
  %v2791 = vpop.f32.mrb[0].mxu0
  %v2792 = vadd.f32 %v2719, %v2791
  %v2793 = vpop.f32.mrb[0].mxu0
  %v2794 = vadd.f32 %v2721, %v2793
  %v2795 = vpop.f32.mrb[0].mxu0
  %v2796 = vadd.f32 %v2723, %v2795
  %v2797 = vpop.f32.mrb[0].mxu0
  %v2798 = vadd.f32 %v2725, %v2797
  %2799 = vmatprep.mubr.bf16.mxu0 %v183
  %2800 = vmatmul.mubr.bf16.gmra.mrb[0].mxu0 %v182
  %v2801 = vpop.f32.mrb[0].mxu0
  %v2802 = vadd.f32 %v2729, %v2801
  %v2803 = vpop.f32.mrb[0].mxu0
  %v2804 = vadd.f32 %v2731, %v2803
  %v2805 = vpop.f32.mrb[0].mxu0
  %v2806 = vadd.f32 %v2733, %v2805
  %v2807 = vpop.f32.mrb[0].mxu0
  %v2808 = vadd.f32 %v2735, %v2807
  %2809 = vmatprep.mubr.bf16.mxu0 %v189
  %2810 = vmatmul.mubr.bf16.gmra.mrb[0].mxu0 %v188
  %v2811 = vpop.f32.mrb[0].mxu0
  %v2812 = vadd.f32 %v2739, %v2811
  %v2813 = vpop.f32.mrb[0].mxu0
  %v2814 = vadd.f32 %v2741, %v2813
  %v2815 = vpop.f32.mrb[0].mxu0
  %v2816 = vadd.f32 %v2743, %v2815
  %v2817 = vpop.f32.mrb[0].mxu0
  %v2818 = vadd.f32 %v2745, %v2817
  %2819 = vdwg.mxu0
  %2820 = vmatprep.subr.bf16.mxu0 %v1857
  %2821 = vmatpush1.bf16.msra.mxu0 %v1856
  %2822 = vmatprep.subr.bf16.mxu0 %v1863
  %2823 = vmatpush1.bf16.msra.mxu0 %v1862
  %2824 = vmatprep.subr.bf16.mxu0 %v1869
  %2825 = vmatpush1.bf16.msra.mxu0 %v1868
  %2826 = vmatprep.subr.bf16.mxu0 %v1875
  %2827 = vmatpush1.bf16.msra.mxu0 %v1874
  %2828 = vmatprep.subr.bf16.mxu0 %v1881
  %2829 = vmatpush1.bf16.msra.mxu0 %v1880
  %2830 = vmatprep.subr.bf16.mxu0 %v1887
  %2831 = vmatpush1.bf16.msra.mxu0 %v1886
  %2832 = vmatprep.subr.bf16.mxu0 %v1893
  %2833 = vmatpush1.bf16.msra.mxu0 %v1892
  %2834 = vmatprep.subr.bf16.mxu0 %v1899
  %2835 = vmatpush1.bf16.msra.mxu0 %v1898
  %2836 = vmatprep.subr.bf16.mxu0 %v1905
  %2837 = vmatpush1.bf16.msra.mxu0 %v1904
  %2838 = vmatprep.subr.bf16.mxu0 %v1911
  %2839 = vmatpush1.bf16.msra.mxu0 %v1910
  %2840 = vmatprep.subr.bf16.mxu0 %v1917
  %2841 = vmatpush1.bf16.msra.mxu0 %v1916
  %2842 = vmatprep.subr.bf16.mxu0 %v1923
  %2843 = vmatpush1.bf16.msra.mxu0 %v1922
  %2844 = vmatprep.subr.bf16.mxu0 %v1929
  %2845 = vmatpush1.bf16.msra.mxu0 %v1928
  %2846 = vmatprep.subr.bf16.mxu0 %v1935
  %2847 = vmatpush1.bf16.msra.mxu0 %v1934
  %2848 = vmatprep.subr.bf16.mxu0 %v1941
  %2849 = vmatpush1.bf16.msra.mxu0 %v1940
  %2850 = vmatprep.subr.bf16.mxu0 %v1947
  %2851 = vmatpush1.bf16.msra.mxu0 %v1946
  %2852 = vmatprep.mubr.bf16.mxu0 %v173
  %2853 = vmatmul.mubr.bf16.gmra.mrb[0].mxu0 %v172
  %v2854 = vpop.f32.mrb[0].mxu0
  %v2855 = vadd.f32 %v2782, %v2854
  %v2856 = vpop.f32.mrb[0].mxu0
  %v2857 = vadd.f32 %v2784, %v2856
  %v2858 = vpop.f32.mrb[0].mxu0
  %v2859 = vadd.f32 %v2786, %v2858
  %v2860 = vpop.f32.mrb[0].mxu0
  %v2861 = vadd.f32 %v2788, %v2860
  %2862 = vmatprep.mubr.bf16.mxu0 %v179
  %2863 = vmatmul.mubr.bf16.gmra.mrb[0].mxu0 %v178
  %v2864 = vpop.f32.mrb[0].mxu0
  %v2865 = vadd.f32 %v2792, %v2864
  %v2866 = vpop.f32.mrb[0].mxu0
  %v2867 = vadd.f32 %v2794, %v2866
  %v2868 = vpop.f32.mrb[0].mxu0
  %v2869 = vadd.f32 %v2796, %v2868
  %v2870 = vpop.f32.mrb[0].mxu0
  %v2871 = vadd.f32 %v2798, %v2870
  %2872 = vmatprep.mubr.bf16.mxu0 %v185
  %2873 = vmatmul.mubr.bf16.gmra.mrb[0].mxu0 %v184
  %v2874 = vpop.f32.mrb[0].mxu0
  %v2875 = vadd.f32 %v2802, %v2874
  %v2876 = vpop.f32.mrb[0].mxu0
  %v2877 = vadd.f32 %v2804, %v2876
  %v2878 = vpop.f32.mrb[0].mxu0
  %v2879 = vadd.f32 %v2806, %v2878
  %v2880 = vpop.f32.mrb[0].mxu0
  %v2881 = vadd.f32 %v2808, %v2880
  %2882 = vmatprep.mubr.bf16.mxu0 %v191
  %2883 = vmatmul.mubr.bf16.gmra.mrb[0].mxu0 %v190
  %v2884 = vpop.f32.mrb[0].mxu0
  %v2885 = vadd.f32 %v2812, %v2884
  %v2886 = vpop.f32.mrb[0].mxu0
  %v2887 = vadd.f32 %v2814, %v2886
  %v2888 = vpop.f32.mrb[0].mxu0
  %v2889 = vadd.f32 %v2816, %v2888
  %v2890 = vpop.f32.mrb[0].mxu0
  %v2891 = vadd.f32 %v2818, %v2890
  %2892 = vdwg.mxu0
  %v2893 = vld [vmem:[%s5] sm:$0x3f]
  %v2895 = vlaneseq
  %v2896 = vshrl.u32 %v2895, 7
  %v2897 = vsub.s32 0, %v2896
  %v2898 = vrot.slane %v2893, %v2897
  %v2899 = vlaneseq
  %v2900 = vshrl.u32 %v2899, 7
  %v2901 = vsub.s32 1, %v2900
  %v2902 = vrot.slane %v2893, %v2901
  %v2903 = vlaneseq
  %v2904 = vshrl.u32 %v2903, 7
  %v2905 = vsub.s32 2, %v2904
  %v2906 = vrot.slane %v2893, %v2905
  %v2907 = vlaneseq
  %v2908 = vshrl.u32 %v2907, 7
  %v2909 = vsub.s32 3, %v2908
  %v2910 = vrot.slane %v2893, %v2909
  %v2911 = vlaneseq
  %v2912 = vshrl.u32 %v2911, 7
  %v2913 = vsub.s32 4, %v2912
  %v2914 = vrot.slane %v2893, %v2913
  %v2915 = vlaneseq
  %v2916 = vshrl.u32 %v2915, 7
  %v2917 = vsub.s32 5, %v2916
  %v2918 = vrot.slane %v2893, %v2917
  %v2925 = vadd.f32 %v2417, %v2898
  %v2926 = vadd.f32 %v2419, %v2902
  %v2927 = vadd.f32 %v2636, %v2906
  %v2928 = vadd.f32 %v2638, %v2910
  %v2929 = vadd.f32 %v2855, %v2914
  %v2930 = vadd.f32 %v2857, %v2918
  %v2931 = vadd.f32 %v2421, %v2898
  %v2932 = vadd.f32 %v2423, %v2902
  %v2933 = vadd.f32 %v2640, %v2906
  %v2934 = vadd.f32 %v2642, %v2910
  %v2935 = vadd.f32 %v2859, %v2914
  %v2936 = vadd.f32 %v2861, %v2918
  %v2937 = vadd.f32 %v2427, %v2898
  %v2938 = vadd.f32 %v2429, %v2902
  %v2939 = vadd.f32 %v2646, %v2906
  %v2940 = vadd.f32 %v2648, %v2910
  %v2941 = vadd.f32 %v2865, %v2914
  %v2942 = vadd.f32 %v2867, %v2918
  %v2943 = vadd.f32 %v2431, %v2898
  %v2944 = vadd.f32 %v2433, %v2902
  %v2945 = vadd.f32 %v2650, %v2906
  %v2946 = vadd.f32 %v2652, %v2910
  %v2947 = vadd.f32 %v2869, %v2914
  %v2948 = vadd.f32 %v2871, %v2918
  %v2949 = vadd.f32 %v2437, %v2898
  %v2950 = vadd.f32 %v2439, %v2902
  %v2951 = vadd.f32 %v2656, %v2906
  %v2952 = vadd.f32 %v2658, %v2910
  %v2953 = vadd.f32 %v2875, %v2914
  %v2954 = vadd.f32 %v2877, %v2918
  %v2955 = vadd.f32 %v2441, %v2898
  %v2956 = vadd.f32 %v2443, %v2902
  %v2957 = vadd.f32 %v2660, %v2906
  %v2958 = vadd.f32 %v2662, %v2910
  %v2959 = vadd.f32 %v2879, %v2914
  %v2960 = vadd.f32 %v2881, %v2918
  %v2961 = vadd.f32 %v2447, %v2898
  %v2962 = vadd.f32 %v2449, %v2902
  %v2963 = vadd.f32 %v2666, %v2906
  %v2964 = vadd.f32 %v2668, %v2910
  %v2965 = vadd.f32 %v2885, %v2914
  %v2966 = vadd.f32 %v2887, %v2918
  %v2967 = vadd.f32 %v2451, %v2898
  %v2968 = vadd.f32 %v2453, %v2902
  %v2969 = vadd.f32 %v2670, %v2906
  %v2970 = vadd.f32 %v2672, %v2910
  %v2971 = vadd.f32 %v2889, %v2914
  %v2972 = vadd.f32 %v2891, %v2918
  %2973 = vst [vmem:[%s6] sm:$0xff] %v2925
  %2974 = vst [vmem:[%s6 + $0x8] sm:$0xff] %v2926
  %2975 = vst [vmem:[%s6 + $0x10] sm:$0xff] %v2927
  %2976 = vst [vmem:[%s6 + $0x18] sm:$0xff] %v2928
  %2977 = vst [vmem:[%s6 + $0x20] sm:$0xff] %v2929
  %2978 = vst [vmem:[%s6 + $0x28] sm:$0xff] %v2930
  %2979 = vst [vmem:[%s6 + $0x30] sm:$0xff] %v2931
  %2980 = vst [vmem:[%s6 + $0x38] sm:$0xff] %v2932
  %2981 = vst [vmem:[%s6 + $0x40] sm:$0xff] %v2933
  %2982 = vst [vmem:[%s6 + $0x48] sm:$0xff] %v2934
  %2983 = vst [vmem:[%s6 + $0x50] sm:$0xff] %v2935
  %2984 = vst [vmem:[%s6 + $0x58] sm:$0xff] %v2936
  %2985 = vst [vmem:[%s6 + $0x60] sm:$0xff] %v2937
  %2986 = vst [vmem:[%s6 + $0x68] sm:$0xff] %v2938
  %2987 = vst [vmem:[%s6 + $0x70] sm:$0xff] %v2939
  %2988 = vst [vmem:[%s6 + $0x78] sm:$0xff] %v2940
  %2989 = vst [vmem:[%s6 + $0x80] sm:$0xff] %v2941
  %2990 = vst [vmem:[%s6 + $0x88] sm:$0xff] %v2942
  %2991 = vst [vmem:[%s6 + $0x90] sm:$0xff] %v2943
  %2992 = vst [vmem:[%s6 + $0x98] sm:$0xff] %v2944
  %2993 = vst [vmem:[%s6 + $0xa0] sm:$0xff] %v2945
  %2994 = vst [vmem:[%s6 + $0xa8] sm:$0xff] %v2946
  %2995 = vst [vmem:[%s6 + $0xb0] sm:$0xff] %v2947
  %2996 = vst [vmem:[%s6 + $0xb8] sm:$0xff] %v2948
  %2997 = vst [vmem:[%s6 + $0xc0] sm:$0xff] %v2949
  %2998 = vst [vmem:[%s6 + $0xc8] sm:$0xff] %v2950
  %2999 = vst [vmem:[%s6 + $0xd0] sm:$0xff] %v2951
  %3000 = vst [vmem:[%s6 + $0xd8] sm:$0xff] %v2952
  %3001 = vst [vmem:[%s6 + $0xe0] sm:$0xff] %v2953
  %3002 = vst [vmem:[%s6 + $0xe8] sm:$0xff] %v2954
  %3003 = vst [vmem:[%s6 + $0xf0] sm:$0xff] %v2955
  %3004 = vst [vmem:[%s6 + $0xf8] sm:$0xff] %v2956
  %3005 = vst [vmem:[%s6 + $0x100] sm:$0xff] %v2957
  %3006 = vst [vmem:[%s6 + $0x108] sm:$0xff] %v2958
  %3007 = vst [vmem:[%s6 + $0x110] sm:$0xff] %v2959
  %3008 = vst [vmem:[%s6 + $0x118] sm:$0xff] %v2960
  %3009 = vst [vmem:[%s6 + $0x120] sm:$0xff] %v2961
  %3010 = vst [vmem:[%s6 + $0x128] sm:$0xff] %v2962
  %3011 = vst [vmem:[%s6 + $0x130] sm:$0xff] %v2963
  %3012 = vst [vmem:[%s6 + $0x138] sm:$0xff] %v2964
  %3013 = vst [vmem:[%s6 + $0x140] sm:$0xff] %v2965
  %3014 = vst [vmem:[%s6 + $0x148] sm:$0xff] %v2966
  %3015 = vst [vmem:[%s6 + $0x150] sm:$0xff] %v2967
  %3016 = vst [vmem:[%s6 + $0x158] sm:$0xff] %v2968
  %3017 = vst [vmem:[%s6 + $0x160] sm:$0xff] %v2969
  %3018 = vst [vmem:[%s6 + $0x168] sm:$0xff] %v2970
  %3019 = vst [vmem:[%s6 + $0x170] sm:$0xff] %v2971
  %3020 = vst [vmem:[%s6 + $0x178] sm:$0xff] %v2972
  // Predicated region
  $region26: #{transformer_block_fc.6} parent=0 // pred_check
    _
  $region27: #{transformer_block_fc.6} parent=0 // pred_check_branch
    %3022 = sbr.rel (0) target = $region29
  $region28: #{transformer_block_fc.6} parent=0 // pred_region
    _
  $region29: #{transformer_block_fc.6} parent=0 // pred_fallthru
    _
  // Predicated region
  $region30: #{transformer_block_fc.6} parent=0 // pred_check
    _
  $region31: #{transformer_block_fc.6} parent=0 // pred_check_branch
    %3024 = sbr.rel (0) target = $region33
  $region32: #{transformer_block_fc.6} parent=0 // pred_region
    _
  $region33: #{transformer_block_fc.6} parent=0 // pred_fallthru
    _

</llo_original>
